<compile_context>
chip_gen: v5e
topology: v5e:2x2
jax: 0.10.0
libtpu: 0.0.40
codegen_flags: <defaults>
</compile_context>

<pallas_src>
import functools

import jax
import jax.numpy as jnp
from jax.experimental import pallas as pl
from jax.experimental.pallas import tpu as pltpu


def _fkan_kernel(x_ref, w_ref, b_ref, o_ref, *, gridsize, mxu_dtype):
    # x_ref: (tm, D) f32
    # w_ref: (2*G*D, out_pad) mxu_dtype   rows: [cos block | sin block]
    # b_ref: (1, out_pad) f32
    # o_ref: (tm, out_pad) f32
    x = x_ref[...].astype(jnp.float32)

    # Lane-dense harmonic slab: column g*D + i holds (g+1) * x[:, i].
    # (cheap VPU scalings + one lane assembly; the transcendentals below then
    #  run on full 128-lane vregs instead of 2*G lane-sparse calls)
    kx = jnp.concatenate([(g + 1.0) * x for g in range(gridsize)], axis=-1)

    c = jnp.cos(kx)                       # one full-width EUP call
    s = jnp.sin(kx)                       # one full-width EUP call

    # [cos | sin] feature slab, single fused MXU matmul (K = 2*G*D).
    feats = jnp.concatenate([c, s], axis=-1).astype(mxu_dtype)
    y = jnp.dot(feats, w_ref[...], preferred_element_type=jnp.float32)
    o_ref[...] = (y + b_ref[...]).astype(o_ref.dtype)


def fourier_kan_forward(x, fouriercoeffs, bias=None, *, gridsize, tm=256,
                        mxu_dtype=jnp.bfloat16):
    """x: (..., inputdim) -> (..., outdim).

    fouriercoeffs: (2, outdim, inputdim, gridsize); bias: (1, outdim) or None.
    """
    inputdim = x.shape[-1]
    outdim = fouriercoeffs.shape[1]
    outshape = x.shape[:-1] + (outdim,)

    xf = x.reshape(-1, inputdim).astype(jnp.float32)
    n_rows = xf.shape[0]

    # Pad rows to a multiple of tm (enables large row tiles for any N).
    n_pad = -(-n_rows // tm) * tm
    if n_pad != n_rows:
        xf = jnp.pad(xf, ((0, n_pad - n_rows), (0, 0)))

    # Pad output width to a multiple of 128 (lane-dense, unmasked stores).
    out_pad = -(-outdim // 128) * 128

    # Stacked weight: row g*inputdim + i of the top half is the cos coeff
    # A[o, i, g]; bottom half is the sin coeff B[o, i, g].  Matches the
    # feature-column order built in the kernel.
    wc = jnp.transpose(fouriercoeffs[0], (2, 1, 0)).reshape(gridsize * inputdim, outdim)
    ws = jnp.transpose(fouriercoeffs[1], (2, 1, 0)).reshape(gridsize * inputdim, outdim)
    w = jnp.concatenate([wc, ws], axis=0)
    w = jnp.pad(w, ((0, 0), (0, out_pad - outdim))).astype(mxu_dtype)

    b = bias if bias is not None else jnp.zeros((1, outdim), jnp.float32)
    b = jnp.pad(b.astype(jnp.float32), ((0, 0), (0, out_pad - outdim)))

    kdim = 2 * gridsize * inputdim
    kernel = functools.partial(_fkan_kernel, gridsize=gridsize, mxu_dtype=mxu_dtype)

    y = pl.pallas_call(
        kernel,
        out_shape=jax.ShapeDtypeStruct((n_pad, out_pad), jnp.float32),
        grid_spec=pltpu.PrefetchScalarGridSpec(
            num_scalar_prefetch=0,
            grid=(n_pad // tm,),
            in_specs=[
                pl.BlockSpec((tm, inputdim), lambda i: (i, 0)),
                pl.BlockSpec((kdim, out_pad), lambda i: (0, 0)),   # resident weights
                pl.BlockSpec((1, out_pad), lambda i: (0, 0)),      # resident bias
            ],
            out_specs=pl.BlockSpec((tm, out_pad), lambda i: (i, 0)),
        ),
        compiler_params=pltpu.CompilerParams(
            dimension_semantics=("parallel",),
        ),
    )(xf, w, b)

    return y[:n_rows, :outdim].reshape(outshape)


def reference_forward(x, fouriercoeffs, bias, *, gridsize):
    inputdim = x.shape[-1]
    outdim = fouriercoeffs.shape[1]
    outshape = x.shape[:-1] + (outdim,)
    xf = x.reshape(-1, inputdim)
    k = jnp.arange(1, gridsize + 1, dtype=jnp.float32).reshape(1, 1, 1, gridsize)
    xr = xf.reshape(xf.shape[0], 1, inputdim, 1)
    c = jnp.cos(k * xr)
    s = jnp.sin(k * xr)
    y = jnp.sum(c * fouriercoeffs[0:1], axis=(-2, -1))
    y = y + jnp.sum(s * fouriercoeffs[1:2], axis=(-2, -1))
    if bias is not None:
        y = y + bias
    return y.reshape(outshape)


if __name__ == "__main__":
    # Module config (small). seq=200 -> 400 rows: exercises row padding (to
    # tm=256 multiples) and a grid of >1 steps.
    inputdim, outdim, gridsize = 16, 32, 8
    batch, seq = 2, 200

    key = jax.random.PRNGKey(0)
    k_x, k_w = jax.random.split(key)

    # Deterministic parameter init mirroring __init__ (smooth_initialization=False)
    grid_norm_factor = jnp.sqrt(jnp.float32(gridsize))
    fouriercoeffs = (
        jax.random.normal(k_w, (2, outdim, inputdim, gridsize), dtype=jnp.float32)
        / (jnp.sqrt(jnp.float32(inputdim)) * grid_norm_factor)
    )
    bias = jnp.zeros((1, outdim), dtype=jnp.float32)   # addbias=True

    x = jax.random.normal(k_x, (batch, seq, inputdim), dtype=jnp.float32)

    y_ref = reference_forward(x, fouriercoeffs, bias, gridsize=gridsize)

    # Default fast path: bf16 MXU operands, f32 accumulation.
    y_bf16 = jax.block_until_ready(
        fourier_kan_forward(x, fouriercoeffs, bias, gridsize=gridsize))
    assert y_bf16.shape == (batch, seq, outdim)
    assert jnp.allclose(y_bf16, y_ref, atol=3e-2, rtol=3e-2)

    # f32 MXU path: tight-accuracy check of the kernel math / layout.
    y_f32 = jax.block_until_ready(
        fourier_kan_forward(x, fouriercoeffs, bias, gridsize=gridsize,
                            mxu_dtype=jnp.float32))
    assert jnp.allclose(y_f32, y_ref, atol=5e-4, rtol=5e-4)

    print("KERNEL_OK")
</pallas_src>

<mosaic_0001>
module attributes {stable_mosaic.version = 11 : i64} {
  func.func @_fkan_kernel(%arg0: i32, %arg1: memref<256x16xf32, #tpu.memory_space<vmem>>, %arg2: memref<256x128xbf16, #tpu.memory_space<vmem>>, %arg3: memref<1x128xf32, #tpu.memory_space<vmem>>, %arg4: memref<256x128xf32, #tpu.memory_space<vmem>>) attributes {dimension_semantics = [#tpu.dimension_semantics<parallel>], iteration_bounds = array<i64: 2>, scalar_prefetch = 0 : i64, scratch_operands = 0 : i64, tpu.core_type = #tpu.core_type<tc>, window_params = [{transform_indices = @transform_0, window_bounds = array<i64: 256, 16>}, {pipeline_mode = #tpu.pipeline_mode<synchronous>, transform_indices = @transform_1, window_bounds = array<i64: 256, 128>}, {pipeline_mode = #tpu.pipeline_mode<synchronous>, transform_indices = @transform_2, window_bounds = array<i64: 1, 128>}, {transform_indices = @transform_3, window_bounds = array<i64: 256, 128>}]} {
    %c0 = arith.constant 0 : index
    %c0_0 = arith.constant 0 : index
    %0 = vector.load %arg1[%c0, %c0_0] : memref<256x16xf32, #tpu.memory_space<vmem>>, vector<256x16xf32>
    %cst = arith.constant 1.000000e+00 : f32
    %1 = vector.broadcast %cst : f32 to vector<256x16xf32>
    %2 = arith.mulf %1, %0 : vector<256x16xf32>
    %cst_1 = arith.constant 2.000000e+00 : f32
    %3 = vector.broadcast %cst_1 : f32 to vector<256x16xf32>
    %4 = arith.mulf %3, %0 : vector<256x16xf32>
    %cst_2 = arith.constant 3.000000e+00 : f32
    %5 = vector.broadcast %cst_2 : f32 to vector<256x16xf32>
    %6 = arith.mulf %5, %0 : vector<256x16xf32>
    %cst_3 = arith.constant 4.000000e+00 : f32
    %7 = vector.broadcast %cst_3 : f32 to vector<256x16xf32>
    %8 = arith.mulf %7, %0 : vector<256x16xf32>
    %cst_4 = arith.constant 5.000000e+00 : f32
    %9 = vector.broadcast %cst_4 : f32 to vector<256x16xf32>
    %10 = arith.mulf %9, %0 : vector<256x16xf32>
    %cst_5 = arith.constant 6.000000e+00 : f32
    %11 = vector.broadcast %cst_5 : f32 to vector<256x16xf32>
    %12 = arith.mulf %11, %0 : vector<256x16xf32>
    %cst_6 = arith.constant 7.000000e+00 : f32
    %13 = vector.broadcast %cst_6 : f32 to vector<256x16xf32>
    %14 = arith.mulf %13, %0 : vector<256x16xf32>
    %cst_7 = arith.constant 8.000000e+00 : f32
    %15 = vector.broadcast %cst_7 : f32 to vector<256x16xf32>
    %16 = arith.mulf %15, %0 : vector<256x16xf32>
    %17 = tpu.concatenate %2, %4, %6, %8, %10, %12, %14, %16 in 1 : vector<256x16xf32>, vector<256x16xf32>, vector<256x16xf32>, vector<256x16xf32>, vector<256x16xf32>, vector<256x16xf32>, vector<256x16xf32>, vector<256x16xf32> -> vector<256x128xf32>
    %18 = math.cos %17 : vector<256x128xf32>
    %19 = math.sin %17 : vector<256x128xf32>
    %20 = tpu.concatenate %18, %19 in 1 : vector<256x128xf32>, vector<256x128xf32> -> vector<256x256xf32>
    %21 = arith.truncf %20 : vector<256x256xf32> to vector<256x256xbf16>
    %c0_8 = arith.constant 0 : index
    %c0_9 = arith.constant 0 : index
    %22 = vector.load %arg2[%c0_8, %c0_9] : memref<256x128xbf16, #tpu.memory_space<vmem>>, vector<256x128xbf16>
    %cst_10 = arith.constant dense<0.000000e+00> : vector<256x128xf32>
    %23 = tpu.matmul %21, %22, %cst_10 {dimension_numbers = #tpu.dot_dimension_numbers<[1], [0], [0], [1], [0, 0, 1, 1], [], []>} : vector<256x256xbf16>, vector<256x128xbf16>, vector<256x128xf32> -> vector<256x128xf32>
    %c0_11 = arith.constant 0 : index
    %c0_12 = arith.constant 0 : index
    %24 = vector.load %arg3[%c0_11, %c0_12] : memref<1x128xf32, #tpu.memory_space<vmem>>, vector<1x128xf32>
    %25 = vector.broadcast %24 : vector<1x128xf32> to vector<256x128xf32>
    %26 = arith.addf %23, %25 : vector<256x128xf32>
    %c0_13 = arith.constant 0 : index
    %c0_14 = arith.constant 0 : index
    %27 = vector.load %arg4[%c0_13, %c0_14] : memref<256x128xf32, #tpu.memory_space<vmem>>, vector<256x128xf32>
    tpu.vector_store %arg4[%c0_13, %c0_14], %26 {strides = array<i32>} : memref<256x128xf32, #tpu.memory_space<vmem>>, vector<256x128xf32>,
    return
  }
  func.func @transform_0(%arg0: i32) -> (i32, i32) {
    %c0_i32 = arith.constant 0 : i32
    %c0_i32_0 = arith.constant 0 : i32
    return %arg0, %c0_i32 : i32, i32
  }
  func.func @transform_1(%arg0: i32) -> (i32, i32) {
    %c0_i32 = arith.constant 0 : i32
    %c0_i32_0 = arith.constant 0 : i32
    %c0_i32_1 = arith.constant 0 : i32
    return %c0_i32, %c0_i32_0 : i32, i32
  }
  func.func @transform_2(%arg0: i32) -> (i32, i32) {
    %c0_i32 = arith.constant 0 : i32
    %c0_i32_0 = arith.constant 0 : i32
    %c0_i32_1 = arith.constant 0 : i32
    return %c0_i32, %c0_i32_0 : i32, i32
  }
  func.func @transform_3(%arg0: i32) -> (i32, i32) {
    %c0_i32 = arith.constant 0 : i32
    %c0_i32_0 = arith.constant 0 : i32
    return %arg0, %c0_i32 : i32, i32
  }
}

</mosaic_0001>

<llo_original>
// kernel: tpu_custom_call.1
$region0: #{tpu_custom_call.1}
  #allocation0 [shape = 'u32[]', space=smem, size = 0x4, offset = 0x4, fixed_abs, tag = 'smem constant byte address 0x4 - core index']
  #allocation1 [shape = 'u32[72,128]{1,0:T(1,128)}', space=vmem, size = 0x9000, scoped, tag = 'internal scratch']
  %s0 = inlined_call_operand.vmem [shape: f32[512,16], index: 0, kind: input, shape index: {}]
  %s1 = inlined_call_operand.vmem [shape: bf16[256,128], index: 1, kind: input, shape index: {}]
  %s2 = inlined_call_operand.vmem [shape: f32[1,128], index: 2, kind: input, shape index: {}]
  %s3 = inlined_call_operand.hbm [shape: f32[512,128], index: 3, kind: output, shape index: {}]
  %s4 = sld [smem:[#allocation0]]
  $region45: #{tpu_custom_call.1} parent=0
    _
  %s6 = ssub.s32 1, %s4
  %s7 = scalar_select 0, %s6, %s4
  $region1: #{tpu_custom_call.1} parent=0
    #allocation2 [shape = 'u8[262144]{0}', space=vmem, size = 0x40000, scoped, tag = 'output window, operand 0']
    #allocation3 [shape = 's32[2]{0}', space=sflag, size = 0x8, scoped, tag = 'scoped memory for tpu_custom_call.1']
    %8 = vsyncpa [#allocation3], 0
    %s9 = scalar_lea.sflag [#allocation3], 1
    %10 = vsyncpa %s9, 0
    loop: start=0, step=1, limit=4
    $region2: #{tpu_custom_call.1} parent=1 // loop_pre_header
      _
    $region3: #{tpu_custom_call.1} parent=1 // loop_header
      %s12 = sphi 0, %s16
      %p13 = scmp.ge.s32.totalorder %s12, 4
      %s22 = sphi 0, %s24
      %s25 = sphi 0, %s22
      %s26 = sphi 0, %s25
      %s42 = sphi 0, %s26
      %s46 = sphi 0, %s46
      %s48 = sphi 0, %s46
      %s49 = sphi 0, %s48
      %s63 = sphi 0, %s49
      %s67 = sphi 0, %s67
      %s69 = sphi 0, %s67
      %s70 = sphi 0, %s69
      %s84 = sphi 0, %s70
      %s90 = sphi 0, %s92
      %s93 = sphi 0, %s90
      %s94 = sphi 0, %s93
      %s110 = sphi 0, %s94
    $region4: #{tpu_custom_call.1} parent=1 // loop_header_branch
      %15 = sbr.rel (%p13) target = $region8
    $region5: #{tpu_custom_call.1} parent=1 // loop_body
      %s17 = ssub.s32 %s12, 1
      %s18 = ssub.s32 %s12, 2
      %s19 = sadd.s32 %s12, 1
      %s20 = ssub.s32 %s12, %s19
      %p21 = scmp.eq.s32.totalorder %s20, 0
      %s23 = sadd.s32 %s22, 1
      %s24 = scalar_select %p21, %s22, %s23
      %p27 = pneg %p21
      %p28 = scmp.eq.s32.totalorder %s12, 1
      %p29 = por %p27, %p28
      %p30 = scmp.ne.s32.totalorder %s22, %s25
      %p31 = scmp.eq.s32.totalorder %s12, 0
      %p32 = por %p30, %p31
      %p33 = scmp.ne.s32.totalorder %s22, %s25
      %p34 = scmp.eq.s32.totalorder %s17, 1
      %p35 = por %p33, %p34
      %p36 = scmp.ne.s32.totalorder %s25, %s26
      %p37 = scmp.eq.s32.totalorder %s17, 0
      %p38 = por %p36, %p37
      %p39 = scmp.ne.s32.totalorder %s25, %s26
      %p40 = scmp.eq.s32.totalorder %s18, 1
      %p41 = por %p39, %p40
      %p43 = scmp.ne.s32.totalorder %s26, %s42
      %p44 = scmp.eq.s32.totalorder %s18, 0
      %p45 = por %p43, %p44
      %s47 = sadd.s32 %s46, 1
      %p50 = scmp.eq.s32.totalorder %s12, 1
      %p51 = scmp.ne.s32.totalorder %s46, %s48
      %p52 = scmp.eq.s32.totalorder %s12, 0
      %p53 = por %p51, %p52
      %p54 = scmp.ne.s32.totalorder %s46, %s48
      %p55 = scmp.eq.s32.totalorder %s17, 1
      %p56 = por %p54, %p55
      %p57 = scmp.ne.s32.totalorder %s48, %s49
      %p58 = scmp.eq.s32.totalorder %s17, 0
      %p59 = por %p57, %p58
      %p60 = scmp.ne.s32.totalorder %s48, %s49
      %p61 = scmp.eq.s32.totalorder %s18, 1
      %p62 = por %p60, %p61
      %p64 = scmp.ne.s32.totalorder %s49, %s63
      %p65 = scmp.eq.s32.totalorder %s18, 0
      %p66 = por %p64, %p65
      %s68 = sadd.s32 %s67, 1
      %p71 = scmp.eq.s32.totalorder %s12, 1
      %p72 = scmp.ne.s32.totalorder %s67, %s69
      %p73 = scmp.eq.s32.totalorder %s12, 0
      %p74 = por %p72, %p73
      %p75 = scmp.ne.s32.totalorder %s67, %s69
      %p76 = scmp.eq.s32.totalorder %s17, 1
      %p77 = por %p75, %p76
      %p78 = scmp.ne.s32.totalorder %s69, %s70
      %p79 = scmp.eq.s32.totalorder %s17, 0
      %p80 = por %p78, %p79
      %p81 = scmp.ne.s32.totalorder %s69, %s70
      %p82 = scmp.eq.s32.totalorder %s18, 1
      %p83 = por %p81, %p82
      %p85 = scmp.ne.s32.totalorder %s70, %s84
      %p86 = scmp.eq.s32.totalorder %s18, 0
      %p87 = por %p85, %p86
      %s88 = ssub.s32 %s12, %s19
      %p89 = scmp.eq.s32.totalorder %s88, 0
      %s91 = sadd.s32 %s90, 1
      %s92 = scalar_select %p89, %s90, %s91
      %p95 = pneg %p89
      %p96 = scmp.eq.s32.totalorder %s12, 1
      %p97 = por %p95, %p96
      %p98 = scmp.ne.s32.totalorder %s90, %s93
      %p99 = scmp.eq.s32.totalorder %s12, 0
      %p100 = por %p98, %p99
      %p101 = scmp.ne.s32.totalorder %s90, %s93
      %p102 = scmp.eq.s32.totalorder %s17, 1
      %p103 = por %p101, %p102
      %p104 = scmp.ne.s32.totalorder %s93, %s94
      %p105 = scmp.eq.s32.totalorder %s17, 0
      %p106 = por %p104, %p105
      %p107 = scmp.ne.s32.totalorder %s93, %s94
      %p108 = scmp.eq.s32.totalorder %s18, 1
      %p109 = por %p107, %p108
      %p111 = scmp.ne.s32.totalorder %s94, %s110
      %p112 = scmp.eq.s32.totalorder %s18, 0
      %p113 = por %p111, %p112
      %p114 = scmp.le.s32.totalorder 1, %s12
      %p115 = scmp.lt.s32.totalorder %s12, 3
      %p116 = pnand %p114, %p115
      %p117 = pneg %p116
      // Predicated region
      $region9: #{tpu_custom_call.1} parent=5 // pred_check
        _
      $region10: #{tpu_custom_call.1} parent=5 // pred_check_branch
        %119 = sbr.rel (%p116) target = $region12
      $region11: #{tpu_custom_call.1} parent=5 // pred_region
        %s120 = ssub.s32 %s12, 1
        // Predicated region
        $region13: #{tpu_custom_call.1} parent=11 // pred_check
          %p121 = pneg %p59
        $region14: #{tpu_custom_call.1} parent=11 // pred_check_branch
          %123 = sbr.rel (%p121) target = $region16
        $region15: #{tpu_custom_call.1} parent=11 // pred_region
          _
        $region16: #{tpu_custom_call.1} parent=11 // pred_fallthru
          _
        // Predicated region
        $region17: #{tpu_custom_call.1} parent=11 // pred_check
          %p124 = pneg %p80
        $region18: #{tpu_custom_call.1} parent=11 // pred_check_branch
          %126 = sbr.rel (%p124) target = $region20
        $region19: #{tpu_custom_call.1} parent=11 // pred_region
          _
        $region20: #{tpu_custom_call.1} parent=11 // pred_fallthru
          _
      $region12: #{tpu_custom_call.1} parent=5 // pred_fallthru
        _
      %p127 = scmp.lt.s32.totalorder %s12, 2
      // Predicated region
      $region21: #{tpu_custom_call.1} parent=5 // pred_check
        %p128 = pneg %p127
      $region22: #{tpu_custom_call.1} parent=5 // pred_check_branch
        %130 = sbr.rel (%p128) target = $region24
      $region23: #{tpu_custom_call.1} parent=5 // pred_region
        // Predicated region
        $region25: #{tpu_custom_call.1} parent=23 // pred_check
          %p131 = pneg %p32
        $region26: #{tpu_custom_call.1} parent=23 // pred_check_branch
          %133 = sbr.rel (%p131) target = $region28
        $region27: #{tpu_custom_call.1} parent=23 // pred_region
          %s134 = smul.u32 32, %s12
          %p135 = scmp.lt.s32.totalorder %s134, 63
          %s136 = scalar_select %p135, %s134, 63
          %s137 = smul.addr %s136, 8
          %s138 = scalar_lea.vmem %s0, %s137
          %s139 = smul.u32 32, %s12
        $region28: #{tpu_custom_call.1} parent=23 // pred_fallthru
          _
      $region24: #{tpu_custom_call.1} parent=5 // pred_fallthru
        _
      %p140 = scmp.le.s32.totalorder 1, %s12
      %p141 = scmp.lt.s32.totalorder %s12, 3
      %p142 = pnand %p140, %p141
      %p143 = pneg %p142
      // Predicated region
      $region29: #{tpu_custom_call.1} parent=5 // pred_check
        _
      $region30: #{tpu_custom_call.1} parent=5 // pred_check_branch
        %145 = sbr.rel (%p142) target = $region32
      $region31: #{tpu_custom_call.1} parent=5 // pred_region
        %s146 = ssub.s32 %s12, 1
        %s147 = smul.u32 32, %s17
        %p148 = scmp.lt.s32.totalorder %s147, 63
        %s149 = scalar_select %p148, %s147, 63
        %s150 = smul.addr %s149, 8
        %s151 = scalar_lea.vmem %s0, %s150
        %p152 = pneg %p38
        %p153 = pneg %p35
        %p154 = pneg %p59
        %p155 = pneg %p56
        %p156 = pneg %p80
        %p157 = pneg %p77
        %p158 = pneg %p106
        %p159 = pneg %p103
        %s160 = sand.u32 %s93, 1
        %s161 = scalar_lea.sflag [#allocation3], %s160
        %s162 = sand.u32 %s93, 1
        %s163 = smul.addr %s162, 256
        %s164 = scalar_lea.vmem [#allocation2], %s163
        %s165 = smul.u32 32, %s17
        %p166 = scmp.lt.s32.totalorder %s165, 63
        %s167 = scalar_select %p166, %s165, 63
        %s168 = smul.addr %s167, 8
        %s169 = scalar_lea.vmem %s0, %s168
        %s170 = smul.u32 32, %s17
        %s171 = smul.u32 32, %s17
        %v172 = vld [vmem:[%s169] sm:$0xff]
        %v173 = vld [vmem:[%s169 + $0x8] sm:$0xff]
        %v174 = vld [vmem:[%s169 + $0x10] sm:$0xff]
        %v175 = vld [vmem:[%s169 + $0x18] sm:$0xff]
        %v176 = vld [vmem:[%s169 + $0x20] sm:$0xff]
        %v177 = vld [vmem:[%s169 + $0x28] sm:$0xff]
        %v178 = vld [vmem:[%s169 + $0x30] sm:$0xff]
        %v179 = vld [vmem:[%s169 + $0x38] sm:$0xff]
        %v180 = vld [vmem:[%s169 + $0x40] sm:$0xff]
        %v181 = vld [vmem:[%s169 + $0x48] sm:$0xff]
        %v182 = vld [vmem:[%s169 + $0x50] sm:$0xff]
        %v183 = vld [vmem:[%s169 + $0x58] sm:$0xff]
        %v184 = vld [vmem:[%s169 + $0x60] sm:$0xff]
        %v185 = vld [vmem:[%s169 + $0x68] sm:$0xff]
        %v186 = vld [vmem:[%s169 + $0x70] sm:$0xff]
        %v187 = vld [vmem:[%s169 + $0x78] sm:$0xff]
        %v188 = vld [vmem:[%s169 + $0x80] sm:$0xff]
        %v189 = vld [vmem:[%s169 + $0x88] sm:$0xff]
        %v190 = vld [vmem:[%s169 + $0x90] sm:$0xff]
        %v191 = vld [vmem:[%s169 + $0x98] sm:$0xff]
        %v192 = vld [vmem:[%s169 + $0xa0] sm:$0xff]
        %v193 = vld [vmem:[%s169 + $0xa8] sm:$0xff]
        %v194 = vld [vmem:[%s169 + $0xb0] sm:$0xff]
        %v195 = vld [vmem:[%s169 + $0xb8] sm:$0xff]
        %v196 = vld [vmem:[%s169 + $0xc0] sm:$0xff]
        %v197 = vld [vmem:[%s169 + $0xc8] sm:$0xff]
        %v198 = vld [vmem:[%s169 + $0xd0] sm:$0xff]
        %v199 = vld [vmem:[%s169 + $0xd8] sm:$0xff]
        %v200 = vld [vmem:[%s169 + $0xe0] sm:$0xff]
        %v201 = vld [vmem:[%s169 + $0xe8] sm:$0xff]
        %v202 = vld [vmem:[%s169 + $0xf0] sm:$0xff]
        %v203 = vld [vmem:[%s169 + $0xf8] sm:$0xff]
        %v204 = vmul.f32 %v172, 2.0
        %v205 = vmul.f32 %v173, 2.0
        %v206 = vmul.f32 %v174, 2.0
        %v207 = vmul.f32 %v175, 2.0
        %v208 = vmul.f32 %v176, 2.0
        %v209 = vmul.f32 %v177, 2.0
        %v210 = vmul.f32 %v178, 2.0
        %v211 = vmul.f32 %v179, 2.0
        %v212 = vmul.f32 %v180, 2.0
        %v213 = vmul.f32 %v181, 2.0
        %v214 = vmul.f32 %v182, 2.0
        %v215 = vmul.f32 %v183, 2.0
        %v216 = vmul.f32 %v184, 2.0
        %v217 = vmul.f32 %v185, 2.0
        %v218 = vmul.f32 %v186, 2.0
        %v219 = vmul.f32 %v187, 2.0
        %v220 = vmul.f32 %v188, 2.0
        %v221 = vmul.f32 %v189, 2.0
        %v222 = vmul.f32 %v190, 2.0
        %v223 = vmul.f32 %v191, 2.0
        %v224 = vmul.f32 %v192, 2.0
        %v225 = vmul.f32 %v193, 2.0
        %v226 = vmul.f32 %v194, 2.0
        %v227 = vmul.f32 %v195, 2.0
        %v228 = vmul.f32 %v196, 2.0
        %v229 = vmul.f32 %v197, 2.0
        %v230 = vmul.f32 %v198, 2.0
        %v231 = vmul.f32 %v199, 2.0
        %v232 = vmul.f32 %v200, 2.0
        %v233 = vmul.f32 %v201, 2.0
        %v234 = vmul.f32 %v202, 2.0
        %v235 = vmul.f32 %v203, 2.0
        %v236 = vmul.f32 %v172, 3.0
        %v237 = vmul.f32 %v173, 3.0
        %v238 = vmul.f32 %v174, 3.0
        %v239 = vmul.f32 %v175, 3.0
        %v240 = vmul.f32 %v176, 3.0
        %v241 = vmul.f32 %v177, 3.0
        %v242 = vmul.f32 %v178, 3.0
        %v243 = vmul.f32 %v179, 3.0
        %v244 = vmul.f32 %v180, 3.0
        %v245 = vmul.f32 %v181, 3.0
        %v246 = vmul.f32 %v182, 3.0
        %v247 = vmul.f32 %v183, 3.0
        %v248 = vmul.f32 %v184, 3.0
        %v249 = vmul.f32 %v185, 3.0
        %v250 = vmul.f32 %v186, 3.0
        %v251 = vmul.f32 %v187, 3.0
        %v252 = vmul.f32 %v188, 3.0
        %v253 = vmul.f32 %v189, 3.0
        %v254 = vmul.f32 %v190, 3.0
        %v255 = vmul.f32 %v191, 3.0
        %v256 = vmul.f32 %v192, 3.0
        %v257 = vmul.f32 %v193, 3.0
        %v258 = vmul.f32 %v194, 3.0
        %v259 = vmul.f32 %v195, 3.0
        %v260 = vmul.f32 %v196, 3.0
        %v261 = vmul.f32 %v197, 3.0
        %v262 = vmul.f32 %v198, 3.0
        %v263 = vmul.f32 %v199, 3.0
        %v264 = vmul.f32 %v200, 3.0
        %v265 = vmul.f32 %v201, 3.0
        %v266 = vmul.f32 %v202, 3.0
        %v267 = vmul.f32 %v203, 3.0
        %v268 = vmul.f32 %v172, 4.0
        %v269 = vmul.f32 %v173, 4.0
        %v270 = vmul.f32 %v174, 4.0
        %v271 = vmul.f32 %v175, 4.0
        %v272 = vmul.f32 %v176, 4.0
        %v273 = vmul.f32 %v177, 4.0
        %v274 = vmul.f32 %v178, 4.0
        %v275 = vmul.f32 %v179, 4.0
        %v276 = vmul.f32 %v180, 4.0
        %v277 = vmul.f32 %v181, 4.0
        %v278 = vmul.f32 %v182, 4.0
        %v279 = vmul.f32 %v183, 4.0
        %v280 = vmul.f32 %v184, 4.0
        %v281 = vmul.f32 %v185, 4.0
        %v282 = vmul.f32 %v186, 4.0
        %v283 = vmul.f32 %v187, 4.0
        %v284 = vmul.f32 %v188, 4.0
        %v285 = vmul.f32 %v189, 4.0
        %v286 = vmul.f32 %v190, 4.0
        %v287 = vmul.f32 %v191, 4.0
        %v288 = vmul.f32 %v192, 4.0
        %v289 = vmul.f32 %v193, 4.0
        %v290 = vmul.f32 %v194, 4.0
        %v291 = vmul.f32 %v195, 4.0
        %v292 = vmul.f32 %v196, 4.0
        %v293 = vmul.f32 %v197, 4.0
        %v294 = vmul.f32 %v198, 4.0
        %v295 = vmul.f32 %v199, 4.0
        %v296 = vmul.f32 %v200, 4.0
        %v297 = vmul.f32 %v201, 4.0
        %v298 = vmul.f32 %v202, 4.0
        %v299 = vmul.f32 %v203, 4.0
        %v300 = vmul.f32 %v172, 5.0
        %v301 = vmul.f32 %v173, 5.0
        %v302 = vmul.f32 %v174, 5.0
        %v303 = vmul.f32 %v175, 5.0
        %v304 = vmul.f32 %v176, 5.0
        %v305 = vmul.f32 %v177, 5.0
        %v306 = vmul.f32 %v178, 5.0
        %v307 = vmul.f32 %v179, 5.0
        %v308 = vmul.f32 %v180, 5.0
        %v309 = vmul.f32 %v181, 5.0
        %v310 = vmul.f32 %v182, 5.0
        %v311 = vmul.f32 %v183, 5.0
        %v312 = vmul.f32 %v184, 5.0
        %v313 = vmul.f32 %v185, 5.0
        %v314 = vmul.f32 %v186, 5.0
        %v315 = vmul.f32 %v187, 5.0
        %v316 = vmul.f32 %v188, 5.0
        %v317 = vmul.f32 %v189, 5.0
        %v318 = vmul.f32 %v190, 5.0
        %v319 = vmul.f32 %v191, 5.0
        %v320 = vmul.f32 %v192, 5.0
        %v321 = vmul.f32 %v193, 5.0
        %v322 = vmul.f32 %v194, 5.0
        %v323 = vmul.f32 %v195, 5.0
        %v324 = vmul.f32 %v196, 5.0
        %v325 = vmul.f32 %v197, 5.0
        %v326 = vmul.f32 %v198, 5.0
        %v327 = vmul.f32 %v199, 5.0
        %v328 = vmul.f32 %v200, 5.0
        %v329 = vmul.f32 %v201, 5.0
        %v330 = vmul.f32 %v202, 5.0
        %v331 = vmul.f32 %v203, 5.0
        %v332 = vmul.f32 %v172, 6.0
        %v333 = vmul.f32 %v173, 6.0
        %v334 = vmul.f32 %v174, 6.0
        %v335 = vmul.f32 %v175, 6.0
        %v336 = vmul.f32 %v176, 6.0
        %v337 = vmul.f32 %v177, 6.0
        %v338 = vmul.f32 %v178, 6.0
        %v339 = vmul.f32 %v179, 6.0
        %v340 = vmul.f32 %v180, 6.0
        %v341 = vmul.f32 %v181, 6.0
        %v342 = vmul.f32 %v182, 6.0
        %v343 = vmul.f32 %v183, 6.0
        %v344 = vmul.f32 %v184, 6.0
        %v345 = vmul.f32 %v185, 6.0
        %v346 = vmul.f32 %v186, 6.0
        %v347 = vmul.f32 %v187, 6.0
        %v348 = vmul.f32 %v188, 6.0
        %v349 = vmul.f32 %v189, 6.0
        %v350 = vmul.f32 %v190, 6.0
        %v351 = vmul.f32 %v191, 6.0
        %v352 = vmul.f32 %v192, 6.0
        %v353 = vmul.f32 %v193, 6.0
        %v354 = vmul.f32 %v194, 6.0
        %v355 = vmul.f32 %v195, 6.0
        %v356 = vmul.f32 %v196, 6.0
        %v357 = vmul.f32 %v197, 6.0
        %v358 = vmul.f32 %v198, 6.0
        %v359 = vmul.f32 %v199, 6.0
        %v360 = vmul.f32 %v200, 6.0
        %v361 = vmul.f32 %v201, 6.0
        %v362 = vmul.f32 %v202, 6.0
        %v363 = vmul.f32 %v203, 6.0
        %v364 = vmul.f32 %v172, 7.0
        %v365 = vmul.f32 %v173, 7.0
        %v366 = vmul.f32 %v174, 7.0
        %v367 = vmul.f32 %v175, 7.0
        %v368 = vmul.f32 %v176, 7.0
        %v369 = vmul.f32 %v177, 7.0
        %v370 = vmul.f32 %v178, 7.0
        %v371 = vmul.f32 %v179, 7.0
        %v372 = vmul.f32 %v180, 7.0
        %v373 = vmul.f32 %v181, 7.0
        %v374 = vmul.f32 %v182, 7.0
        %v375 = vmul.f32 %v183, 7.0
        %v376 = vmul.f32 %v184, 7.0
        %v377 = vmul.f32 %v185, 7.0
        %v378 = vmul.f32 %v186, 7.0
        %v379 = vmul.f32 %v187, 7.0
        %v380 = vmul.f32 %v188, 7.0
        %v381 = vmul.f32 %v189, 7.0
        %v382 = vmul.f32 %v190, 7.0
        %v383 = vmul.f32 %v191, 7.0
        %v384 = vmul.f32 %v192, 7.0
        %v385 = vmul.f32 %v193, 7.0
        %v386 = vmul.f32 %v194, 7.0
        %v387 = vmul.f32 %v195, 7.0
        %v388 = vmul.f32 %v196, 7.0
        %v389 = vmul.f32 %v197, 7.0
        %v390 = vmul.f32 %v198, 7.0
        %v391 = vmul.f32 %v199, 7.0
        %v392 = vmul.f32 %v200, 7.0
        %v393 = vmul.f32 %v201, 7.0
        %v394 = vmul.f32 %v202, 7.0
        %v395 = vmul.f32 %v203, 7.0
        %v396 = vmul.f32 %v172, 8.0
        %v397 = vmul.f32 %v173, 8.0
        %v398 = vmul.f32 %v174, 8.0
        %v399 = vmul.f32 %v175, 8.0
        %v400 = vmul.f32 %v176, 8.0
        %v401 = vmul.f32 %v177, 8.0
        %v402 = vmul.f32 %v178, 8.0
        %v403 = vmul.f32 %v179, 8.0
        %v404 = vmul.f32 %v180, 8.0
        %v405 = vmul.f32 %v181, 8.0
        %v406 = vmul.f32 %v182, 8.0
        %v407 = vmul.f32 %v183, 8.0
        %v408 = vmul.f32 %v184, 8.0
        %v409 = vmul.f32 %v185, 8.0
        %v410 = vmul.f32 %v186, 8.0
        %v411 = vmul.f32 %v187, 8.0
        %v412 = vmul.f32 %v188, 8.0
        %v413 = vmul.f32 %v189, 8.0
        %v414 = vmul.f32 %v190, 8.0
        %v415 = vmul.f32 %v191, 8.0
        %v416 = vmul.f32 %v192, 8.0
        %v417 = vmul.f32 %v193, 8.0
        %v418 = vmul.f32 %v194, 8.0
        %v419 = vmul.f32 %v195, 8.0
        %v420 = vmul.f32 %v196, 8.0
        %v421 = vmul.f32 %v197, 8.0
        %v422 = vmul.f32 %v198, 8.0
        %v423 = vmul.f32 %v199, 8.0
        %v424 = vmul.f32 %v200, 8.0
        %v425 = vmul.f32 %v201, 8.0
        %v426 = vmul.f32 %v202, 8.0
        %v427 = vmul.f32 %v203, 8.0
        %460 = vrot.lane.b32.xlu0 %v204, 16
        %v461 = vpop.permute.xlu0 %460
        %462 = vrot.lane.b32.xlu0 %v205, 16
        %v463 = vpop.permute.xlu0 %462
        %464 = vrot.lane.b32.xlu0 %v206, 16
        %v465 = vpop.permute.xlu0 %464
        %466 = vrot.lane.b32.xlu0 %v207, 16
        %v467 = vpop.permute.xlu0 %466
        %468 = vrot.lane.b32.xlu0 %v208, 16
        %v469 = vpop.permute.xlu0 %468
        %470 = vrot.lane.b32.xlu0 %v209, 16
        %v471 = vpop.permute.xlu0 %470
        %472 = vrot.lane.b32.xlu0 %v210, 16
        %v473 = vpop.permute.xlu0 %472
        %474 = vrot.lane.b32.xlu0 %v211, 16
        %v475 = vpop.permute.xlu0 %474
        %476 = vrot.lane.b32.xlu0 %v212, 16
        %v477 = vpop.permute.xlu0 %476
        %478 = vrot.lane.b32.xlu0 %v213, 16
        %v479 = vpop.permute.xlu0 %478
        %480 = vrot.lane.b32.xlu0 %v214, 16
        %v481 = vpop.permute.xlu0 %480
        %482 = vrot.lane.b32.xlu0 %v215, 16
        %v483 = vpop.permute.xlu0 %482
        %484 = vrot.lane.b32.xlu0 %v216, 16
        %v485 = vpop.permute.xlu0 %484
        %486 = vrot.lane.b32.xlu0 %v217, 16
        %v487 = vpop.permute.xlu0 %486
        %488 = vrot.lane.b32.xlu0 %v218, 16
        %v489 = vpop.permute.xlu0 %488
        %490 = vrot.lane.b32.xlu0 %v219, 16
        %v491 = vpop.permute.xlu0 %490
        %492 = vrot.lane.b32.xlu0 %v220, 16
        %v493 = vpop.permute.xlu0 %492
        %494 = vrot.lane.b32.xlu0 %v221, 16
        %v495 = vpop.permute.xlu0 %494
        %496 = vrot.lane.b32.xlu0 %v222, 16
        %v497 = vpop.permute.xlu0 %496
        %498 = vrot.lane.b32.xlu0 %v223, 16
        %v499 = vpop.permute.xlu0 %498
        %500 = vrot.lane.b32.xlu0 %v224, 16
        %v501 = vpop.permute.xlu0 %500
        %502 = vrot.lane.b32.xlu0 %v225, 16
        %v503 = vpop.permute.xlu0 %502
        %504 = vrot.lane.b32.xlu0 %v226, 16
        %v505 = vpop.permute.xlu0 %504
        %506 = vrot.lane.b32.xlu0 %v227, 16
        %v507 = vpop.permute.xlu0 %506
        %508 = vrot.lane.b32.xlu0 %v228, 16
        %v509 = vpop.permute.xlu0 %508
        %510 = vrot.lane.b32.xlu0 %v229, 16
        %v511 = vpop.permute.xlu0 %510
        %512 = vrot.lane.b32.xlu0 %v230, 16
        %v513 = vpop.permute.xlu0 %512
        %514 = vrot.lane.b32.xlu0 %v231, 16
        %v515 = vpop.permute.xlu0 %514
        %516 = vrot.lane.b32.xlu0 %v232, 16
        %v517 = vpop.permute.xlu0 %516
        %518 = vrot.lane.b32.xlu0 %v233, 16
        %v519 = vpop.permute.xlu0 %518
        %520 = vrot.lane.b32.xlu0 %v234, 16
        %v521 = vpop.permute.xlu0 %520
        %522 = vrot.lane.b32.xlu0 %v235, 16
        %v523 = vpop.permute.xlu0 %522
        %588 = vrot.lane.b32.xlu0 %v236, 32
        %v589 = vpop.permute.xlu0 %588
        %590 = vrot.lane.b32.xlu0 %v237, 32
        %v591 = vpop.permute.xlu0 %590
        %592 = vrot.lane.b32.xlu0 %v238, 32
        %v593 = vpop.permute.xlu0 %592
        %594 = vrot.lane.b32.xlu0 %v239, 32
        %v595 = vpop.permute.xlu0 %594
        %596 = vrot.lane.b32.xlu0 %v240, 32
        %v597 = vpop.permute.xlu0 %596
        %598 = vrot.lane.b32.xlu0 %v241, 32
        %v599 = vpop.permute.xlu0 %598
        %600 = vrot.lane.b32.xlu0 %v242, 32
        %v601 = vpop.permute.xlu0 %600
        %602 = vrot.lane.b32.xlu0 %v243, 32
        %v603 = vpop.permute.xlu0 %602
        %604 = vrot.lane.b32.xlu0 %v244, 32
        %v605 = vpop.permute.xlu0 %604
        %606 = vrot.lane.b32.xlu0 %v245, 32
        %v607 = vpop.permute.xlu0 %606
        %608 = vrot.lane.b32.xlu0 %v246, 32
        %v609 = vpop.permute.xlu0 %608
        %610 = vrot.lane.b32.xlu0 %v247, 32
        %v611 = vpop.permute.xlu0 %610
        %612 = vrot.lane.b32.xlu0 %v248, 32
        %v613 = vpop.permute.xlu0 %612
        %614 = vrot.lane.b32.xlu0 %v249, 32
        %v615 = vpop.permute.xlu0 %614
        %616 = vrot.lane.b32.xlu0 %v250, 32
        %v617 = vpop.permute.xlu0 %616
        %618 = vrot.lane.b32.xlu0 %v251, 32
        %v619 = vpop.permute.xlu0 %618
        %620 = vrot.lane.b32.xlu0 %v252, 32
        %v621 = vpop.permute.xlu0 %620
        %622 = vrot.lane.b32.xlu0 %v253, 32
        %v623 = vpop.permute.xlu0 %622
        %624 = vrot.lane.b32.xlu0 %v254, 32
        %v625 = vpop.permute.xlu0 %624
        %626 = vrot.lane.b32.xlu0 %v255, 32
        %v627 = vpop.permute.xlu0 %626
        %628 = vrot.lane.b32.xlu0 %v256, 32
        %v629 = vpop.permute.xlu0 %628
        %630 = vrot.lane.b32.xlu0 %v257, 32
        %v631 = vpop.permute.xlu0 %630
        %632 = vrot.lane.b32.xlu0 %v258, 32
        %v633 = vpop.permute.xlu0 %632
        %634 = vrot.lane.b32.xlu0 %v259, 32
        %v635 = vpop.permute.xlu0 %634
        %636 = vrot.lane.b32.xlu0 %v260, 32
        %v637 = vpop.permute.xlu0 %636
        %638 = vrot.lane.b32.xlu0 %v261, 32
        %v639 = vpop.permute.xlu0 %638
        %640 = vrot.lane.b32.xlu0 %v262, 32
        %v641 = vpop.permute.xlu0 %640
        %642 = vrot.lane.b32.xlu0 %v263, 32
        %v643 = vpop.permute.xlu0 %642
        %644 = vrot.lane.b32.xlu0 %v264, 32
        %v645 = vpop.permute.xlu0 %644
        %646 = vrot.lane.b32.xlu0 %v265, 32
        %v647 = vpop.permute.xlu0 %646
        %648 = vrot.lane.b32.xlu0 %v266, 32
        %v649 = vpop.permute.xlu0 %648
        %650 = vrot.lane.b32.xlu0 %v267, 32
        %v651 = vpop.permute.xlu0 %650
        %716 = vrot.lane.b32.xlu0 %v268, 48
        %v717 = vpop.permute.xlu0 %716
        %718 = vrot.lane.b32.xlu0 %v269, 48
        %v719 = vpop.permute.xlu0 %718
        %720 = vrot.lane.b32.xlu0 %v270, 48
        %v721 = vpop.permute.xlu0 %720
        %722 = vrot.lane.b32.xlu0 %v271, 48
        %v723 = vpop.permute.xlu0 %722
        %724 = vrot.lane.b32.xlu0 %v272, 48
        %v725 = vpop.permute.xlu0 %724
        %726 = vrot.lane.b32.xlu0 %v273, 48
        %v727 = vpop.permute.xlu0 %726
        %728 = vrot.lane.b32.xlu0 %v274, 48
        %v729 = vpop.permute.xlu0 %728
        %730 = vrot.lane.b32.xlu0 %v275, 48
        %v731 = vpop.permute.xlu0 %730
        %732 = vrot.lane.b32.xlu0 %v276, 48
        %v733 = vpop.permute.xlu0 %732
        %734 = vrot.lane.b32.xlu0 %v277, 48
        %v735 = vpop.permute.xlu0 %734
        %736 = vrot.lane.b32.xlu0 %v278, 48
        %v737 = vpop.permute.xlu0 %736
        %738 = vrot.lane.b32.xlu0 %v279, 48
        %v739 = vpop.permute.xlu0 %738
        %740 = vrot.lane.b32.xlu0 %v280, 48
        %v741 = vpop.permute.xlu0 %740
        %742 = vrot.lane.b32.xlu0 %v281, 48
        %v743 = vpop.permute.xlu0 %742
        %744 = vrot.lane.b32.xlu0 %v282, 48
        %v745 = vpop.permute.xlu0 %744
        %746 = vrot.lane.b32.xlu0 %v283, 48
        %v747 = vpop.permute.xlu0 %746
        %748 = vrot.lane.b32.xlu0 %v284, 48
        %v749 = vpop.permute.xlu0 %748
        %750 = vrot.lane.b32.xlu0 %v285, 48
        %v751 = vpop.permute.xlu0 %750
        %752 = vrot.lane.b32.xlu0 %v286, 48
        %v753 = vpop.permute.xlu0 %752
        %754 = vrot.lane.b32.xlu0 %v287, 48
        %v755 = vpop.permute.xlu0 %754
        %756 = vrot.lane.b32.xlu0 %v288, 48
        %v757 = vpop.permute.xlu0 %756
        %758 = vrot.lane.b32.xlu0 %v289, 48
        %v759 = vpop.permute.xlu0 %758
        %760 = vrot.lane.b32.xlu0 %v290, 48
        %v761 = vpop.permute.xlu0 %760
        %762 = vrot.lane.b32.xlu0 %v291, 48
        %v763 = vpop.permute.xlu0 %762
        %764 = vrot.lane.b32.xlu0 %v292, 48
        %v765 = vpop.permute.xlu0 %764
        %766 = vrot.lane.b32.xlu0 %v293, 48
        %v767 = vpop.permute.xlu0 %766
        %768 = vrot.lane.b32.xlu0 %v294, 48
        %v769 = vpop.permute.xlu0 %768
        %770 = vrot.lane.b32.xlu0 %v295, 48
        %v771 = vpop.permute.xlu0 %770
        %772 = vrot.lane.b32.xlu0 %v296, 48
        %v773 = vpop.permute.xlu0 %772
        %774 = vrot.lane.b32.xlu0 %v297, 48
        %v775 = vpop.permute.xlu0 %774
        %776 = vrot.lane.b32.xlu0 %v298, 48
        %v777 = vpop.permute.xlu0 %776
        %778 = vrot.lane.b32.xlu0 %v299, 48
        %v779 = vpop.permute.xlu0 %778
        %844 = vrot.lane.b32.xlu0 %v300, 64
        %v845 = vpop.permute.xlu0 %844
        %846 = vrot.lane.b32.xlu0 %v301, 64
        %v847 = vpop.permute.xlu0 %846
        %848 = vrot.lane.b32.xlu0 %v302, 64
        %v849 = vpop.permute.xlu0 %848
        %850 = vrot.lane.b32.xlu0 %v303, 64
        %v851 = vpop.permute.xlu0 %850
        %852 = vrot.lane.b32.xlu0 %v304, 64
        %v853 = vpop.permute.xlu0 %852
        %854 = vrot.lane.b32.xlu0 %v305, 64
        %v855 = vpop.permute.xlu0 %854
        %856 = vrot.lane.b32.xlu0 %v306, 64
        %v857 = vpop.permute.xlu0 %856
        %858 = vrot.lane.b32.xlu0 %v307, 64
        %v859 = vpop.permute.xlu0 %858
        %860 = vrot.lane.b32.xlu0 %v308, 64
        %v861 = vpop.permute.xlu0 %860
        %862 = vrot.lane.b32.xlu0 %v309, 64
        %v863 = vpop.permute.xlu0 %862
        %864 = vrot.lane.b32.xlu0 %v310, 64
        %v865 = vpop.permute.xlu0 %864
        %866 = vrot.lane.b32.xlu0 %v311, 64
        %v867 = vpop.permute.xlu0 %866
        %868 = vrot.lane.b32.xlu0 %v312, 64
        %v869 = vpop.permute.xlu0 %868
        %870 = vrot.lane.b32.xlu0 %v313, 64
        %v871 = vpop.permute.xlu0 %870
        %872 = vrot.lane.b32.xlu0 %v314, 64
        %v873 = vpop.permute.xlu0 %872
        %874 = vrot.lane.b32.xlu0 %v315, 64
        %v875 = vpop.permute.xlu0 %874
        %876 = vrot.lane.b32.xlu0 %v316, 64
        %v877 = vpop.permute.xlu0 %876
        %878 = vrot.lane.b32.xlu0 %v317, 64
        %v879 = vpop.permute.xlu0 %878
        %880 = vrot.lane.b32.xlu0 %v318, 64
        %v881 = vpop.permute.xlu0 %880
        %882 = vrot.lane.b32.xlu0 %v319, 64
        %v883 = vpop.permute.xlu0 %882
        %884 = vrot.lane.b32.xlu0 %v320, 64
        %v885 = vpop.permute.xlu0 %884
        %886 = vrot.lane.b32.xlu0 %v321, 64
        %v887 = vpop.permute.xlu0 %886
        %888 = vrot.lane.b32.xlu0 %v322, 64
        %v889 = vpop.permute.xlu0 %888
        %890 = vrot.lane.b32.xlu0 %v323, 64
        %v891 = vpop.permute.xlu0 %890
        %892 = vrot.lane.b32.xlu0 %v324, 64
        %v893 = vpop.permute.xlu0 %892
        %894 = vrot.lane.b32.xlu0 %v325, 64
        %v895 = vpop.permute.xlu0 %894
        %896 = vrot.lane.b32.xlu0 %v326, 64
        %v897 = vpop.permute.xlu0 %896
        %898 = vrot.lane.b32.xlu0 %v327, 64
        %v899 = vpop.permute.xlu0 %898
        %900 = vrot.lane.b32.xlu0 %v328, 64
        %v901 = vpop.permute.xlu0 %900
        %902 = vrot.lane.b32.xlu0 %v329, 64
        %v903 = vpop.permute.xlu0 %902
        %904 = vrot.lane.b32.xlu0 %v330, 64
        %v905 = vpop.permute.xlu0 %904
        %906 = vrot.lane.b32.xlu0 %v331, 64
        %v907 = vpop.permute.xlu0 %906
        %972 = vrot.lane.b32.xlu0 %v332, 80
        %v973 = vpop.permute.xlu0 %972
        %974 = vrot.lane.b32.xlu0 %v333, 80
        %v975 = vpop.permute.xlu0 %974
        %976 = vrot.lane.b32.xlu0 %v334, 80
        %v977 = vpop.permute.xlu0 %976
        %978 = vrot.lane.b32.xlu0 %v335, 80
        %v979 = vpop.permute.xlu0 %978
        %980 = vrot.lane.b32.xlu0 %v336, 80
        %v981 = vpop.permute.xlu0 %980
        %982 = vrot.lane.b32.xlu0 %v337, 80
        %v983 = vpop.permute.xlu0 %982
        %984 = vrot.lane.b32.xlu0 %v338, 80
        %v985 = vpop.permute.xlu0 %984
        %986 = vrot.lane.b32.xlu0 %v339, 80
        %v987 = vpop.permute.xlu0 %986
        %988 = vrot.lane.b32.xlu0 %v340, 80
        %v989 = vpop.permute.xlu0 %988
        %990 = vrot.lane.b32.xlu0 %v341, 80
        %v991 = vpop.permute.xlu0 %990
        %992 = vrot.lane.b32.xlu0 %v342, 80
        %v993 = vpop.permute.xlu0 %992
        %994 = vrot.lane.b32.xlu0 %v343, 80
        %v995 = vpop.permute.xlu0 %994
        %996 = vrot.lane.b32.xlu0 %v344, 80
        %v997 = vpop.permute.xlu0 %996
        %998 = vrot.lane.b32.xlu0 %v345, 80
        %v999 = vpop.permute.xlu0 %998
        %1000 = vrot.lane.b32.xlu0 %v346, 80
        %v1001 = vpop.permute.xlu0 %1000
        %1002 = vrot.lane.b32.xlu0 %v347, 80
        %v1003 = vpop.permute.xlu0 %1002
        %1004 = vrot.lane.b32.xlu0 %v348, 80
        %v1005 = vpop.permute.xlu0 %1004
        %1006 = vrot.lane.b32.xlu0 %v349, 80
        %v1007 = vpop.permute.xlu0 %1006
        %1008 = vrot.lane.b32.xlu0 %v350, 80
        %v1009 = vpop.permute.xlu0 %1008
        %1010 = vrot.lane.b32.xlu0 %v351, 80
        %v1011 = vpop.permute.xlu0 %1010
        %1012 = vrot.lane.b32.xlu0 %v352, 80
        %v1013 = vpop.permute.xlu0 %1012
        %1014 = vrot.lane.b32.xlu0 %v353, 80
        %v1015 = vpop.permute.xlu0 %1014
        %1016 = vrot.lane.b32.xlu0 %v354, 80
        %v1017 = vpop.permute.xlu0 %1016
        %1018 = vrot.lane.b32.xlu0 %v355, 80
        %v1019 = vpop.permute.xlu0 %1018
        %1020 = vrot.lane.b32.xlu0 %v356, 80
        %v1021 = vpop.permute.xlu0 %1020
        %1022 = vrot.lane.b32.xlu0 %v357, 80
        %v1023 = vpop.permute.xlu0 %1022
        %1024 = vrot.lane.b32.xlu0 %v358, 80
        %v1025 = vpop.permute.xlu0 %1024
        %1026 = vrot.lane.b32.xlu0 %v359, 80
        %v1027 = vpop.permute.xlu0 %1026
        %1028 = vrot.lane.b32.xlu0 %v360, 80
        %v1029 = vpop.permute.xlu0 %1028
        %1030 = vrot.lane.b32.xlu0 %v361, 80
        %v1031 = vpop.permute.xlu0 %1030
        %1032 = vrot.lane.b32.xlu0 %v362, 80
        %v1033 = vpop.permute.xlu0 %1032
        %1034 = vrot.lane.b32.xlu0 %v363, 80
        %v1035 = vpop.permute.xlu0 %1034
        %1100 = vrot.lane.b32.xlu0 %v364, 96
        %v1101 = vpop.permute.xlu0 %1100
        %1102 = vrot.lane.b32.xlu0 %v365, 96
        %v1103 = vpop.permute.xlu0 %1102
        %1104 = vrot.lane.b32.xlu0 %v366, 96
        %v1105 = vpop.permute.xlu0 %1104
        %1106 = vrot.lane.b32.xlu0 %v367, 96
        %v1107 = vpop.permute.xlu0 %1106
        %1108 = vrot.lane.b32.xlu0 %v368, 96
        %v1109 = vpop.permute.xlu0 %1108
        %1110 = vrot.lane.b32.xlu0 %v369, 96
        %v1111 = vpop.permute.xlu0 %1110
        %1112 = vrot.lane.b32.xlu0 %v370, 96
        %v1113 = vpop.permute.xlu0 %1112
        %1114 = vrot.lane.b32.xlu0 %v371, 96
        %v1115 = vpop.permute.xlu0 %1114
        %1116 = vrot.lane.b32.xlu0 %v372, 96
        %v1117 = vpop.permute.xlu0 %1116
        %1118 = vrot.lane.b32.xlu0 %v373, 96
        %v1119 = vpop.permute.xlu0 %1118
        %1120 = vrot.lane.b32.xlu0 %v374, 96
        %v1121 = vpop.permute.xlu0 %1120
        %1122 = vrot.lane.b32.xlu0 %v375, 96
        %v1123 = vpop.permute.xlu0 %1122
        %1124 = vrot.lane.b32.xlu0 %v376, 96
        %v1125 = vpop.permute.xlu0 %1124
        %1126 = vrot.lane.b32.xlu0 %v377, 96
        %v1127 = vpop.permute.xlu0 %1126
        %1128 = vrot.lane.b32.xlu0 %v378, 96
        %v1129 = vpop.permute.xlu0 %1128
        %1130 = vrot.lane.b32.xlu0 %v379, 96
        %v1131 = vpop.permute.xlu0 %1130
        %1132 = vrot.lane.b32.xlu0 %v380, 96
        %v1133 = vpop.permute.xlu0 %1132
        %1134 = vrot.lane.b32.xlu0 %v381, 96
        %v1135 = vpop.permute.xlu0 %1134
        %1136 = vrot.lane.b32.xlu0 %v382, 96
        %v1137 = vpop.permute.xlu0 %1136
        %1138 = vrot.lane.b32.xlu0 %v383, 96
        %v1139 = vpop.permute.xlu0 %1138
        %1140 = vrot.lane.b32.xlu0 %v384, 96
        %v1141 = vpop.permute.xlu0 %1140
        %1142 = vrot.lane.b32.xlu0 %v385, 96
        %v1143 = vpop.permute.xlu0 %1142
        %1144 = vrot.lane.b32.xlu0 %v386, 96
        %v1145 = vpop.permute.xlu0 %1144
        %1146 = vrot.lane.b32.xlu0 %v387, 96
        %v1147 = vpop.permute.xlu0 %1146
        %1148 = vrot.lane.b32.xlu0 %v388, 96
        %v1149 = vpop.permute.xlu0 %1148
        %1150 = vrot.lane.b32.xlu0 %v389, 96
        %v1151 = vpop.permute.xlu0 %1150
        %1152 = vrot.lane.b32.xlu0 %v390, 96
        %v1153 = vpop.permute.xlu0 %1152
        %1154 = vrot.lane.b32.xlu0 %v391, 96
        %v1155 = vpop.permute.xlu0 %1154
        %1156 = vrot.lane.b32.xlu0 %v392, 96
        %v1157 = vpop.permute.xlu0 %1156
        %1158 = vrot.lane.b32.xlu0 %v393, 96
        %v1159 = vpop.permute.xlu0 %1158
        %1160 = vrot.lane.b32.xlu0 %v394, 96
        %v1161 = vpop.permute.xlu0 %1160
        %1162 = vrot.lane.b32.xlu0 %v395, 96
        %v1163 = vpop.permute.xlu0 %1162
        %1228 = vrot.lane.b32.xlu0 %v396, 112
        %v1229 = vpop.permute.xlu0 %1228
        %1230 = vrot.lane.b32.xlu0 %v397, 112
        %v1231 = vpop.permute.xlu0 %1230
        %1232 = vrot.lane.b32.xlu0 %v398, 112
        %v1233 = vpop.permute.xlu0 %1232
        %1234 = vrot.lane.b32.xlu0 %v399, 112
        %v1235 = vpop.permute.xlu0 %1234
        %1236 = vrot.lane.b32.xlu0 %v400, 112
        %v1237 = vpop.permute.xlu0 %1236
        %1238 = vrot.lane.b32.xlu0 %v401, 112
        %v1239 = vpop.permute.xlu0 %1238
        %1240 = vrot.lane.b32.xlu0 %v402, 112
        %v1241 = vpop.permute.xlu0 %1240
        %1242 = vrot.lane.b32.xlu0 %v403, 112
        %v1243 = vpop.permute.xlu0 %1242
        %1244 = vrot.lane.b32.xlu0 %v404, 112
        %v1245 = vpop.permute.xlu0 %1244
        %1246 = vrot.lane.b32.xlu0 %v405, 112
        %v1247 = vpop.permute.xlu0 %1246
        %1248 = vrot.lane.b32.xlu0 %v406, 112
        %v1249 = vpop.permute.xlu0 %1248
        %1250 = vrot.lane.b32.xlu0 %v407, 112
        %v1251 = vpop.permute.xlu0 %1250
        %1252 = vrot.lane.b32.xlu0 %v408, 112
        %v1253 = vpop.permute.xlu0 %1252
        %1254 = vrot.lane.b32.xlu0 %v409, 112
        %v1255 = vpop.permute.xlu0 %1254
        %1256 = vrot.lane.b32.xlu0 %v410, 112
        %v1257 = vpop.permute.xlu0 %1256
        %1258 = vrot.lane.b32.xlu0 %v411, 112
        %v1259 = vpop.permute.xlu0 %1258
        %1260 = vrot.lane.b32.xlu0 %v412, 112
        %v1261 = vpop.permute.xlu0 %1260
        %1262 = vrot.lane.b32.xlu0 %v413, 112
        %v1263 = vpop.permute.xlu0 %1262
        %1264 = vrot.lane.b32.xlu0 %v414, 112
        %v1265 = vpop.permute.xlu0 %1264
        %1266 = vrot.lane.b32.xlu0 %v415, 112
        %v1267 = vpop.permute.xlu0 %1266
        %1268 = vrot.lane.b32.xlu0 %v416, 112
        %v1269 = vpop.permute.xlu0 %1268
        %1270 = vrot.lane.b32.xlu0 %v417, 112
        %v1271 = vpop.permute.xlu0 %1270
        %1272 = vrot.lane.b32.xlu0 %v418, 112
        %v1273 = vpop.permute.xlu0 %1272
        %1274 = vrot.lane.b32.xlu0 %v419, 112
        %v1275 = vpop.permute.xlu0 %1274
        %1276 = vrot.lane.b32.xlu0 %v420, 112
        %v1277 = vpop.permute.xlu0 %1276
        %1278 = vrot.lane.b32.xlu0 %v421, 112
        %v1279 = vpop.permute.xlu0 %1278
        %1280 = vrot.lane.b32.xlu0 %v422, 112
        %v1281 = vpop.permute.xlu0 %1280
        %1282 = vrot.lane.b32.xlu0 %v423, 112
        %v1283 = vpop.permute.xlu0 %1282
        %1284 = vrot.lane.b32.xlu0 %v424, 112
        %v1285 = vpop.permute.xlu0 %1284
        %1286 = vrot.lane.b32.xlu0 %v425, 112
        %v1287 = vpop.permute.xlu0 %1286
        %1288 = vrot.lane.b32.xlu0 %v426, 112
        %v1289 = vpop.permute.xlu0 %1288
        %1290 = vrot.lane.b32.xlu0 %v427, 112
        %v1291 = vpop.permute.xlu0 %1290
        %vm1324 = vcmask 130048
        %v1325 = vsel %vm1324, %v172, %v461
        %v1326 = vsel %vm1324, %v173, %v463
        %v1327 = vsel %vm1324, %v174, %v465
        %v1328 = vsel %vm1324, %v175, %v467
        %v1329 = vsel %vm1324, %v176, %v469
        %v1330 = vsel %vm1324, %v177, %v471
        %v1331 = vsel %vm1324, %v178, %v473
        %v1332 = vsel %vm1324, %v179, %v475
        %v1333 = vsel %vm1324, %v180, %v477
        %v1334 = vsel %vm1324, %v181, %v479
        %v1335 = vsel %vm1324, %v182, %v481
        %v1336 = vsel %vm1324, %v183, %v483
        %v1337 = vsel %vm1324, %v184, %v485
        %v1338 = vsel %vm1324, %v185, %v487
        %v1339 = vsel %vm1324, %v186, %v489
        %v1340 = vsel %vm1324, %v187, %v491
        %v1341 = vsel %vm1324, %v188, %v493
        %v1342 = vsel %vm1324, %v189, %v495
        %v1343 = vsel %vm1324, %v190, %v497
        %v1344 = vsel %vm1324, %v191, %v499
        %v1345 = vsel %vm1324, %v192, %v501
        %v1346 = vsel %vm1324, %v193, %v503
        %v1347 = vsel %vm1324, %v194, %v505
        %v1348 = vsel %vm1324, %v195, %v507
        %v1349 = vsel %vm1324, %v196, %v509
        %v1350 = vsel %vm1324, %v197, %v511
        %v1351 = vsel %vm1324, %v198, %v513
        %v1352 = vsel %vm1324, %v199, %v515
        %v1353 = vsel %vm1324, %v200, %v517
        %v1354 = vsel %vm1324, %v201, %v519
        %v1355 = vsel %vm1324, %v202, %v521
        %v1356 = vsel %vm1324, %v203, %v523
        %vm1357 = vcmask 261120
        %v1358 = vsel %vm1357, %v1325, %v589
        %v1359 = vsel %vm1357, %v1326, %v591
        %v1360 = vsel %vm1357, %v1327, %v593
        %v1361 = vsel %vm1357, %v1328, %v595
        %v1362 = vsel %vm1357, %v1329, %v597
        %v1363 = vsel %vm1357, %v1330, %v599
        %v1364 = vsel %vm1357, %v1331, %v601
        %v1365 = vsel %vm1357, %v1332, %v603
        %v1366 = vsel %vm1357, %v1333, %v605
        %v1367 = vsel %vm1357, %v1334, %v607
        %v1368 = vsel %vm1357, %v1335, %v609
        %v1369 = vsel %vm1357, %v1336, %v611
        %v1370 = vsel %vm1357, %v1337, %v613
        %v1371 = vsel %vm1357, %v1338, %v615
        %v1372 = vsel %vm1357, %v1339, %v617
        %v1373 = vsel %vm1357, %v1340, %v619
        %v1374 = vsel %vm1357, %v1341, %v621
        %v1375 = vsel %vm1357, %v1342, %v623
        %v1376 = vsel %vm1357, %v1343, %v625
        %v1377 = vsel %vm1357, %v1344, %v627
        %v1378 = vsel %vm1357, %v1345, %v629
        %v1379 = vsel %vm1357, %v1346, %v631
        %v1380 = vsel %vm1357, %v1347, %v633
        %v1381 = vsel %vm1357, %v1348, %v635
        %v1382 = vsel %vm1357, %v1349, %v637
        %v1383 = vsel %vm1357, %v1350, %v639
        %v1384 = vsel %vm1357, %v1351, %v641
        %v1385 = vsel %vm1357, %v1352, %v643
        %v1386 = vsel %vm1357, %v1353, %v645
        %v1387 = vsel %vm1357, %v1354, %v647
        %v1388 = vsel %vm1357, %v1355, %v649
        %v1389 = vsel %vm1357, %v1356, %v651
        %vm1390 = vcmask 392192
        %v1391 = vsel %vm1390, %v1358, %v717
        %v1392 = vsel %vm1390, %v1359, %v719
        %v1393 = vsel %vm1390, %v1360, %v721
        %v1394 = vsel %vm1390, %v1361, %v723
        %v1395 = vsel %vm1390, %v1362, %v725
        %v1396 = vsel %vm1390, %v1363, %v727
        %v1397 = vsel %vm1390, %v1364, %v729
        %v1398 = vsel %vm1390, %v1365, %v731
        %v1399 = vsel %vm1390, %v1366, %v733
        %v1400 = vsel %vm1390, %v1367, %v735
        %v1401 = vsel %vm1390, %v1368, %v737
        %v1402 = vsel %vm1390, %v1369, %v739
        %v1403 = vsel %vm1390, %v1370, %v741
        %v1404 = vsel %vm1390, %v1371, %v743
        %v1405 = vsel %vm1390, %v1372, %v745
        %v1406 = vsel %vm1390, %v1373, %v747
        %v1407 = vsel %vm1390, %v1374, %v749
        %v1408 = vsel %vm1390, %v1375, %v751
        %v1409 = vsel %vm1390, %v1376, %v753
        %v1410 = vsel %vm1390, %v1377, %v755
        %v1411 = vsel %vm1390, %v1378, %v757
        %v1412 = vsel %vm1390, %v1379, %v759
        %v1413 = vsel %vm1390, %v1380, %v761
        %v1414 = vsel %vm1390, %v1381, %v763
        %v1415 = vsel %vm1390, %v1382, %v765
        %v1416 = vsel %vm1390, %v1383, %v767
        %v1417 = vsel %vm1390, %v1384, %v769
        %v1418 = vsel %vm1390, %v1385, %v771
        %v1419 = vsel %vm1390, %v1386, %v773
        %v1420 = vsel %vm1390, %v1387, %v775
        %v1421 = vsel %vm1390, %v1388, %v777
        %v1422 = vsel %vm1390, %v1389, %v779
        %vm1423 = vcmask 523264
        %v1424 = vsel %vm1423, %v1391, %v845
        %v1425 = vsel %vm1423, %v1392, %v847
        %v1426 = vsel %vm1423, %v1393, %v849
        %v1427 = vsel %vm1423, %v1394, %v851
        %v1428 = vsel %vm1423, %v1395, %v853
        %v1429 = vsel %vm1423, %v1396, %v855
        %v1430 = vsel %vm1423, %v1397, %v857
        %v1431 = vsel %vm1423, %v1398, %v859
        %v1432 = vsel %vm1423, %v1399, %v861
        %v1433 = vsel %vm1423, %v1400, %v863
        %v1434 = vsel %vm1423, %v1401, %v865
        %v1435 = vsel %vm1423, %v1402, %v867
        %v1436 = vsel %vm1423, %v1403, %v869
        %v1437 = vsel %vm1423, %v1404, %v871
        %v1438 = vsel %vm1423, %v1405, %v873
        %v1439 = vsel %vm1423, %v1406, %v875
        %v1440 = vsel %vm1423, %v1407, %v877
        %v1441 = vsel %vm1423, %v1408, %v879
        %v1442 = vsel %vm1423, %v1409, %v881
        %v1443 = vsel %vm1423, %v1410, %v883
        %v1444 = vsel %vm1423, %v1411, %v885
        %v1445 = vsel %vm1423, %v1412, %v887
        %v1446 = vsel %vm1423, %v1413, %v889
        %v1447 = vsel %vm1423, %v1414, %v891
        %v1448 = vsel %vm1423, %v1415, %v893
        %v1449 = vsel %vm1423, %v1416, %v895
        %v1450 = vsel %vm1423, %v1417, %v897
        %v1451 = vsel %vm1423, %v1418, %v899
        %v1452 = vsel %vm1423, %v1419, %v901
        %v1453 = vsel %vm1423, %v1420, %v903
        %v1454 = vsel %vm1423, %v1421, %v905
        %v1455 = vsel %vm1423, %v1422, %v907
        %vm1456 = vcmask 654336
        %v1457 = vsel %vm1456, %v1424, %v973
        %v1458 = vsel %vm1456, %v1425, %v975
        %v1459 = vsel %vm1456, %v1426, %v977
        %v1460 = vsel %vm1456, %v1427, %v979
        %v1461 = vsel %vm1456, %v1428, %v981
        %v1462 = vsel %vm1456, %v1429, %v983
        %v1463 = vsel %vm1456, %v1430, %v985
        %v1464 = vsel %vm1456, %v1431, %v987
        %v1465 = vsel %vm1456, %v1432, %v989
        %v1466 = vsel %vm1456, %v1433, %v991
        %v1467 = vsel %vm1456, %v1434, %v993
        %v1468 = vsel %vm1456, %v1435, %v995
        %v1469 = vsel %vm1456, %v1436, %v997
        %v1470 = vsel %vm1456, %v1437, %v999
        %v1471 = vsel %vm1456, %v1438, %v1001
        %v1472 = vsel %vm1456, %v1439, %v1003
        %v1473 = vsel %vm1456, %v1440, %v1005
        %v1474 = vsel %vm1456, %v1441, %v1007
        %v1475 = vsel %vm1456, %v1442, %v1009
        %v1476 = vsel %vm1456, %v1443, %v1011
        %v1477 = vsel %vm1456, %v1444, %v1013
        %v1478 = vsel %vm1456, %v1445, %v1015
        %v1479 = vsel %vm1456, %v1446, %v1017
        %v1480 = vsel %vm1456, %v1447, %v1019
        %v1481 = vsel %vm1456, %v1448, %v1021
        %v1482 = vsel %vm1456, %v1449, %v1023
        %v1483 = vsel %vm1456, %v1450, %v1025
        %v1484 = vsel %vm1456, %v1451, %v1027
        %v1485 = vsel %vm1456, %v1452, %v1029
        %v1486 = vsel %vm1456, %v1453, %v1031
        %v1487 = vsel %vm1456, %v1454, %v1033
        %v1488 = vsel %vm1456, %v1455, %v1035
        %vm1489 = vcmask 785408
        %v1490 = vsel %vm1489, %v1457, %v1101
        %v1491 = vsel %vm1489, %v1458, %v1103
        %v1492 = vsel %vm1489, %v1459, %v1105
        %v1493 = vsel %vm1489, %v1460, %v1107
        %v1494 = vsel %vm1489, %v1461, %v1109
        %v1495 = vsel %vm1489, %v1462, %v1111
        %v1496 = vsel %vm1489, %v1463, %v1113
        %v1497 = vsel %vm1489, %v1464, %v1115
        %v1498 = vsel %vm1489, %v1465, %v1117
        %v1499 = vsel %vm1489, %v1466, %v1119
        %v1500 = vsel %vm1489, %v1467, %v1121
        %v1501 = vsel %vm1489, %v1468, %v1123
        %v1502 = vsel %vm1489, %v1469, %v1125
        %v1503 = vsel %vm1489, %v1470, %v1127
        %v1504 = vsel %vm1489, %v1471, %v1129
        %v1505 = vsel %vm1489, %v1472, %v1131
        %v1506 = vsel %vm1489, %v1473, %v1133
        %v1507 = vsel %vm1489, %v1474, %v1135
        %v1508 = vsel %vm1489, %v1475, %v1137
        %v1509 = vsel %vm1489, %v1476, %v1139
        %v1510 = vsel %vm1489, %v1477, %v1141
        %v1511 = vsel %vm1489, %v1478, %v1143
        %v1512 = vsel %vm1489, %v1479, %v1145
        %v1513 = vsel %vm1489, %v1480, %v1147
        %v1514 = vsel %vm1489, %v1481, %v1149
        %v1515 = vsel %vm1489, %v1482, %v1151
        %v1516 = vsel %vm1489, %v1483, %v1153
        %v1517 = vsel %vm1489, %v1484, %v1155
        %v1518 = vsel %vm1489, %v1485, %v1157
        %v1519 = vsel %vm1489, %v1486, %v1159
        %v1520 = vsel %vm1489, %v1487, %v1161
        %v1521 = vsel %vm1489, %v1488, %v1163
        %vm1522 = vcmask 916480
        %v1523 = vsel %vm1522, %v1490, %v1229
        %v1524 = vsel %vm1522, %v1491, %v1231
        %v1525 = vsel %vm1522, %v1492, %v1233
        %v1526 = vsel %vm1522, %v1493, %v1235
        %v1527 = vsel %vm1522, %v1494, %v1237
        %v1528 = vsel %vm1522, %v1495, %v1239
        %v1529 = vsel %vm1522, %v1496, %v1241
        %v1530 = vsel %vm1522, %v1497, %v1243
        %v1531 = vsel %vm1522, %v1498, %v1245
        %v1532 = vsel %vm1522, %v1499, %v1247
        %v1533 = vsel %vm1522, %v1500, %v1249
        %v1534 = vsel %vm1522, %v1501, %v1251
        %v1535 = vsel %vm1522, %v1502, %v1253
        %v1536 = vsel %vm1522, %v1503, %v1255
        %v1537 = vsel %vm1522, %v1504, %v1257
        %v1538 = vsel %vm1522, %v1505, %v1259
        %v1539 = vsel %vm1522, %v1506, %v1261
        %v1540 = vsel %vm1522, %v1507, %v1263
        %v1541 = vsel %vm1522, %v1508, %v1265
        %v1542 = vsel %vm1522, %v1509, %v1267
        %v1543 = vsel %vm1522, %v1510, %v1269
        %v1544 = vsel %vm1522, %v1511, %v1271
        %v1545 = vsel %vm1522, %v1512, %v1273
        %v1546 = vsel %vm1522, %v1513, %v1275
        %v1547 = vsel %vm1522, %v1514, %v1277
        %v1548 = vsel %vm1522, %v1515, %v1279
        %v1549 = vsel %vm1522, %v1516, %v1281
        %v1550 = vsel %vm1522, %v1517, %v1283
        %v1551 = vsel %vm1522, %v1518, %v1285
        %v1552 = vsel %vm1522, %v1519, %v1287
        %v1553 = vsel %vm1522, %v1520, %v1289
        %v1554 = vsel %vm1522, %v1521, %v1291
        %v1555 = vand.u32 2147483647, %v1523
        %vm1556 = vcmp.le.f32.partialorder %v1555, 0.7853982
        %vm1557 = vcmp.lt.s32.totalorder %v1523, 0
        %v1558 = vand.u32 %v1523, 2139095040
        %v1559 = vshrl.u32 %v1558, 23
        %v1560 = vsub.s32 %v1559, 127
        %v1561 = vand.u32 2147483647, %v1523
        %v1562 = vand.u32 %v1561, 8388607
        %v1563 = vor.u32 %v1562, 8388608
        %v1564 = vsub.s32 0, %v1563
        %v1565 = vadd.s32 %v1560, 1
        %vm1566 = vcmp.gt.s32.totalorder %v1565, 0
        %v1567 = vsel %vm1566, %v1565, 0
        %v1568 = vshrl.u32 %v1567, 5
        %v1569 = vand.u32 %v1567, 31
        %v1570 = vsub.s32 32, %v1569
        %v1571 = vshrl.u32 683565275, %v1570
        %v1572 = vshll.u32 683565275, %v1569
        %v1573 = vshrl.u32 2475754826, %v1570
        %v1574 = vor.u32 %v1572, %v1573
        %v1575 = vshll.u32 2475754826, %v1569
        %v1576 = vshrl.u32 2131351028, %v1570
        %v1577 = vor.u32 %v1575, %v1576
        %v1578 = vshll.u32 2131351028, %v1569
        %v1579 = vshrl.u32 2102212464, %v1570
        %v1580 = vor.u32 %v1578, %v1579
        %v1581 = vshll.u32 2102212464, %v1569
        %v1582 = vshrl.u32 920167782, %v1570
        %v1583 = vor.u32 %v1581, %v1582
        %v1584 = vshll.u32 920167782, %v1569
        %v1585 = vshrl.u32 1326507024, %v1570
        %v1586 = vor.u32 %v1584, %v1585
        %vm1587 = vcmp.lt.s32.totalorder %v1568, 1
        %vm1588 = vcmp.lt.s32.totalorder %v1568, 2
        %vm1589 = vcmp.lt.s32.totalorder %v1568, 3
        %vm1590 = vcmp.lt.s32.totalorder %v1568, 4
        %v1591 = vsel %vm1587, %v1571, %v1574
        %v1592 = vsel %vm1590, %v1580, 2102212464
        %v1593 = vsel %vm1589, %v1577, %v1592
        %v1594 = vsel %vm1588, %v1591, %v1593
        %v1595 = vsel %vm1587, %v1574, %v1577
        %v1596 = vsel %vm1590, %v1583, 920167782
        %v1597 = vsel %vm1589, %v1580, %v1596
        %v1598 = vsel %vm1588, %v1595, %v1597
        %v1599 = vsel %vm1587, %v1577, %v1580
        %v1600 = vsel %vm1590, %v1586, 1326507024
        %v1601 = vsel %vm1589, %v1583, %v1600
        %v1602 = vsel %vm1588, %v1599, %v1601
        %v1603 = vshll.u32 %v1563, 8
        %v1604 = vand.u32 %v1603, 65535
        %v1605 = vshrl.u32 %v1603, 16
        %v1606 = vand.u32 %v1602, 65535
        %v1607 = vshrl.u32 %v1602, 16
        %v1608 = vmul.u32 %v1604, %v1606
        %v1609 = vmul.u32 %v1604, %v1607
        %v1610 = vmul.u32 %v1605, %v1606
        %v1611 = vmul.u32 %v1605, %v1607
        %v1612 = vshll.u32 %v1609, 16
        %v1613 = vshrl.u32 %v1609, 16
        %v1614 = vshll.u32 %v1610, 16
        %v1615 = vshrl.u32 %v1610, 16
        %vm1616 = vc.u32 %v1608, %v1612
        %v1617 = vsel %vm1616, 1, 0
        %v1618 = vadd.s32 %v1608, %v1612
        %v1619 = vadd.s32 %v1611, %v1617
        %vm1620 = vc.u32 %v1618, %v1614
        %v1621 = vsel %vm1620, 1, 0
        %v1622 = vadd.s32 %v1618, %v1614
        %v1623 = vadd.s32 %v1619, %v1621
        %v1624 = vadd.s32 %v1623, %v1613
        %v1625 = vadd.s32 %v1624, %v1615
        %v1626 = vand.u32 %v1603, 65535
        %v1627 = vshrl.u32 %v1603, 16
        %v1628 = vand.u32 %v1598, 65535
        %v1629 = vshrl.u32 %v1598, 16
        %v1630 = vmul.u32 %v1626, %v1628
        %v1631 = vmul.u32 %v1626, %v1629
        %v1632 = vmul.u32 %v1627, %v1628
        %v1633 = vmul.u32 %v1627, %v1629
        %v1634 = vshll.u32 %v1631, 16
        %v1635 = vshrl.u32 %v1631, 16
        %v1636 = vshll.u32 %v1632, 16
        %v1637 = vshrl.u32 %v1632, 16
        %vm1638 = vc.u32 %v1630, %v1634
        %v1639 = vsel %vm1638, 1, 0
        %v1640 = vadd.s32 %v1630, %v1634
        %v1641 = vadd.s32 %v1633, %v1639
        %vm1642 = vc.u32 %v1640, %v1636
        %v1643 = vsel %vm1642, 1, 0
        %v1644 = vadd.s32 %v1640, %v1636
        %v1645 = vadd.s32 %v1641, %v1643
        %v1646 = vadd.s32 %v1645, %v1635
        %v1647 = vadd.s32 %v1646, %v1637
        %v1648 = vmul.u32 %v1603, %v1594
        %v1649 = vadd.s32 %v1625, %v1644
        %vm1650 = vc.u32 %v1625, %v1644
        %v1651 = vadd.s32 %v1647, 1
        %v1652 = vsel %vm1650, %v1651, %v1647
        %v1653 = vadd.s32 %v1648, %v1652
        %v1654 = vadd.s32 %v1653, 536870912
        %v1655 = vshrl.u32 %v1654, 30
        %v1656 = vshll.u32 %v1655, 30
        %v1657 = vsub.s32 %v1653, %v1656
        %vm1658 = vcmp.lt.s32.totalorder %v1657, 0
        %v1659 = vsub.s32 0, %v1657
        %v1660 = vsel %vm1658, %v1659, %v1657
        %v1661 = vclz %v1660
        %v1662 = vsub.s32 %v1661, 2
        %vm1663 = vcmp.gt.s32.totalorder 0, %v1662
        %v1664 = vsel %vm1663, 0, %v1662
        %v1665 = vsub.s32 32, %v1664
        %v1666 = vshll.u32 %v1657, %v1664
        %v1667 = vshrl.u32 %v1649, %v1665
        %v1668 = vor.u32 %v1666, %v1667
        %v1669 = vsub.s32 4294967266, %v1664
        %v1670 = vadd.s32 %v1669, 127
        %v1671 = vshll.u32 %v1670, 23
        %v1672 = vor.u32 4788187, %v1671
        %v1673 = vand.u32 2147483647, %v1672
        %v1675 = vcvt.s32.f32 %v1668
        %v1676 = vmul.f32 %v1675, %v1673
        %v1677 = vxor.u32 %v1676, 2147483648
        %v1678 = vsel %vm1557, %v1677, %v1676
        %v1679 = vsub.s32 4, %v1655
        %v1680 = vsel %vm1557, %v1679, %v1655
        %v1681 = vsel %vm1556, %v1523, %v1678
        %v1682 = vsel %vm1556, 0, %v1680
        %v1683 = vmul.f32 %v1681, %v1681
        %v1684 = vmul.f32 %v1683, -0.001358992
        %v1685 = vadd.f32 %v1684, 0.041655596
        %v1686 = vmul.f32 %v1683, %v1685
        %v1687 = vadd.f32 %v1686, -0.4999988
        %v1688 = vmul.f32 %v1683, %v1687
        %v1689 = vadd.f32 1.0, %v1688
        %v1690 = vmul.f32 %v1681, %v1681
        %v1691 = vmul.f32 %v1690, -0.00019511016
        %v1692 = vadd.f32 %v1691, 0.008332121
        %v1693 = vmul.f32 %v1690, %v1692
        %v1694 = vadd.f32 %v1693, -0.16666654
        %v1695 = vmul.f32 %v1690, %v1694
        %v1696 = vadd.f32 %v1695, 1.0
        %v1697 = vmul.f32 %v1696, %v1681
        %vm1698 = vweird.f32 %v1523
        %v1699 = vand.u32 %v1682, 3
        %vm1700 = vcmp.lt.s32.totalorder %v1699, 2
        %vm1701 = vcmp.eq.s32.totalorder %v1699, 0
        %v1702 = vxor.u32 %v1697, 2147483648
        %v1703 = vsel %vm1701, %v1689, %v1702
        %vm1704 = vcmp.eq.s32.totalorder %v1699, 2
        %v1705 = vxor.u32 %v1689, 2147483648
        %v1706 = vsel %vm1704, %v1705, %v1697
        %v1707 = vsel %vm1700, %v1703, %v1706
        %v1708 = vsel %vm1698, nan, %v1707
        %v1709 = vand.u32 2147483647, %v1524
        %vm1710 = vcmp.le.f32.partialorder %v1709, 0.7853982
        %vm1711 = vcmp.lt.s32.totalorder %v1524, 0
        %v1712 = vand.u32 %v1524, 2139095040
        %v1713 = vshrl.u32 %v1712, 23
        %v1714 = vsub.s32 %v1713, 127
        %v1715 = vand.u32 2147483647, %v1524
        %v1716 = vand.u32 %v1715, 8388607
        %v1717 = vor.u32 %v1716, 8388608
        %v1718 = vsub.s32 0, %v1717
        %v1719 = vadd.s32 %v1714, 1
        %vm1720 = vcmp.gt.s32.totalorder %v1719, 0
        %v1721 = vsel %vm1720, %v1719, 0
        %v1722 = vshrl.u32 %v1721, 5
        %v1723 = vand.u32 %v1721, 31
        %v1724 = vsub.s32 32, %v1723
        %v1725 = vshrl.u32 683565275, %v1724
        %v1726 = vshll.u32 683565275, %v1723
        %v1727 = vshrl.u32 2475754826, %v1724
        %v1728 = vor.u32 %v1726, %v1727
        %v1729 = vshll.u32 2475754826, %v1723
        %v1730 = vshrl.u32 2131351028, %v1724
        %v1731 = vor.u32 %v1729, %v1730
        %v1732 = vshll.u32 2131351028, %v1723
        %v1733 = vshrl.u32 2102212464, %v1724
        %v1734 = vor.u32 %v1732, %v1733
        %v1735 = vshll.u32 2102212464, %v1723
        %v1736 = vshrl.u32 920167782, %v1724
        %v1737 = vor.u32 %v1735, %v1736
        %v1738 = vshll.u32 920167782, %v1723
        %v1739 = vshrl.u32 1326507024, %v1724
        %v1740 = vor.u32 %v1738, %v1739
        %vm1741 = vcmp.lt.s32.totalorder %v1722, 1
        %vm1742 = vcmp.lt.s32.totalorder %v1722, 2
        %vm1743 = vcmp.lt.s32.totalorder %v1722, 3
        %vm1744 = vcmp.lt.s32.totalorder %v1722, 4
        %v1745 = vsel %vm1741, %v1725, %v1728
        %v1746 = vsel %vm1744, %v1734, 2102212464
        %v1747 = vsel %vm1743, %v1731, %v1746
        %v1748 = vsel %vm1742, %v1745, %v1747
        %v1749 = vsel %vm1741, %v1728, %v1731
        %v1750 = vsel %vm1744, %v1737, 920167782
        %v1751 = vsel %vm1743, %v1734, %v1750
        %v1752 = vsel %vm1742, %v1749, %v1751
        %v1753 = vsel %vm1741, %v1731, %v1734
        %v1754 = vsel %vm1744, %v1740, 1326507024
        %v1755 = vsel %vm1743, %v1737, %v1754
        %v1756 = vsel %vm1742, %v1753, %v1755
        %v1757 = vshll.u32 %v1717, 8
        %v1758 = vand.u32 %v1757, 65535
        %v1759 = vshrl.u32 %v1757, 16
        %v1760 = vand.u32 %v1756, 65535
        %v1761 = vshrl.u32 %v1756, 16
        %v1762 = vmul.u32 %v1758, %v1760
        %v1763 = vmul.u32 %v1758, %v1761
        %v1764 = vmul.u32 %v1759, %v1760
        %v1765 = vmul.u32 %v1759, %v1761
        %v1766 = vshll.u32 %v1763, 16
        %v1767 = vshrl.u32 %v1763, 16
        %v1768 = vshll.u32 %v1764, 16
        %v1769 = vshrl.u32 %v1764, 16
        %vm1770 = vc.u32 %v1762, %v1766
        %v1771 = vsel %vm1770, 1, 0
        %v1772 = vadd.s32 %v1762, %v1766
        %v1773 = vadd.s32 %v1765, %v1771
        %vm1774 = vc.u32 %v1772, %v1768
        %v1775 = vsel %vm1774, 1, 0
        %v1776 = vadd.s32 %v1772, %v1768
        %v1777 = vadd.s32 %v1773, %v1775
        %v1778 = vadd.s32 %v1777, %v1767
        %v1779 = vadd.s32 %v1778, %v1769
        %v1780 = vand.u32 %v1757, 65535
        %v1781 = vshrl.u32 %v1757, 16
        %v1782 = vand.u32 %v1752, 65535
        %v1783 = vshrl.u32 %v1752, 16
        %v1784 = vmul.u32 %v1780, %v1782
        %v1785 = vmul.u32 %v1780, %v1783
        %v1786 = vmul.u32 %v1781, %v1782
        %v1787 = vmul.u32 %v1781, %v1783
        %v1788 = vshll.u32 %v1785, 16
        %v1789 = vshrl.u32 %v1785, 16
        %v1790 = vshll.u32 %v1786, 16
        %v1791 = vshrl.u32 %v1786, 16
        %vm1792 = vc.u32 %v1784, %v1788
        %v1793 = vsel %vm1792, 1, 0
        %v1794 = vadd.s32 %v1784, %v1788
        %v1795 = vadd.s32 %v1787, %v1793
        %vm1796 = vc.u32 %v1794, %v1790
        %v1797 = vsel %vm1796, 1, 0
        %v1798 = vadd.s32 %v1794, %v1790
        %v1799 = vadd.s32 %v1795, %v1797
        %v1800 = vadd.s32 %v1799, %v1789
        %v1801 = vadd.s32 %v1800, %v1791
        %v1802 = vmul.u32 %v1757, %v1748
        %v1803 = vadd.s32 %v1779, %v1798
        %vm1804 = vc.u32 %v1779, %v1798
        %v1805 = vadd.s32 %v1801, 1
        %v1806 = vsel %vm1804, %v1805, %v1801
        %v1807 = vadd.s32 %v1802, %v1806
        %v1808 = vadd.s32 %v1807, 536870912
        %v1809 = vshrl.u32 %v1808, 30
        %v1810 = vshll.u32 %v1809, 30
        %v1811 = vsub.s32 %v1807, %v1810
        %vm1812 = vcmp.lt.s32.totalorder %v1811, 0
        %v1813 = vsub.s32 0, %v1811
        %v1814 = vsel %vm1812, %v1813, %v1811
        %v1815 = vclz %v1814
        %v1816 = vsub.s32 %v1815, 2
        %vm1817 = vcmp.gt.s32.totalorder 0, %v1816
        %v1818 = vsel %vm1817, 0, %v1816
        %v1819 = vsub.s32 32, %v1818
        %v1820 = vshll.u32 %v1811, %v1818
        %v1821 = vshrl.u32 %v1803, %v1819
        %v1822 = vor.u32 %v1820, %v1821
        %v1823 = vsub.s32 4294967266, %v1818
        %v1824 = vadd.s32 %v1823, 127
        %v1825 = vshll.u32 %v1824, 23
        %v1826 = vor.u32 4788187, %v1825
        %v1827 = vand.u32 2147483647, %v1826
        %v1829 = vcvt.s32.f32 %v1822
        %v1830 = vmul.f32 %v1829, %v1827
        %v1831 = vxor.u32 %v1830, 2147483648
        %v1832 = vsel %vm1711, %v1831, %v1830
        %v1833 = vsub.s32 4, %v1809
        %v1834 = vsel %vm1711, %v1833, %v1809
        %v1835 = vsel %vm1710, %v1524, %v1832
        %v1836 = vsel %vm1710, 0, %v1834
        %v1837 = vmul.f32 %v1835, %v1835
        %v1838 = vmul.f32 %v1837, -0.001358992
        %v1839 = vadd.f32 %v1838, 0.041655596
        %v1840 = vmul.f32 %v1837, %v1839
        %v1841 = vadd.f32 %v1840, -0.4999988
        %v1842 = vmul.f32 %v1837, %v1841
        %v1843 = vadd.f32 1.0, %v1842
        %v1844 = vmul.f32 %v1835, %v1835
        %v1845 = vmul.f32 %v1844, -0.00019511016
        %v1846 = vadd.f32 %v1845, 0.008332121
        %v1847 = vmul.f32 %v1844, %v1846
        %v1848 = vadd.f32 %v1847, -0.16666654
        %v1849 = vmul.f32 %v1844, %v1848
        %v1850 = vadd.f32 %v1849, 1.0
        %v1851 = vmul.f32 %v1850, %v1835
        %vm1852 = vweird.f32 %v1524
        %v1853 = vand.u32 %v1836, 3
        %vm1854 = vcmp.lt.s32.totalorder %v1853, 2
        %vm1855 = vcmp.eq.s32.totalorder %v1853, 0
        %v1856 = vxor.u32 %v1851, 2147483648
        %v1857 = vsel %vm1855, %v1843, %v1856
        %vm1858 = vcmp.eq.s32.totalorder %v1853, 2
        %v1859 = vxor.u32 %v1843, 2147483648
        %v1860 = vsel %vm1858, %v1859, %v1851
        %v1861 = vsel %vm1854, %v1857, %v1860
        %v1862 = vsel %vm1852, nan, %v1861
        %v1863 = vand.u32 2147483647, %v1525
        %vm1864 = vcmp.le.f32.partialorder %v1863, 0.7853982
        %vm1865 = vcmp.lt.s32.totalorder %v1525, 0
        %v1866 = vand.u32 %v1525, 2139095040
        %v1867 = vshrl.u32 %v1866, 23
        %v1868 = vsub.s32 %v1867, 127
        %v1869 = vand.u32 2147483647, %v1525
        %v1870 = vand.u32 %v1869, 8388607
        %v1871 = vor.u32 %v1870, 8388608
        %v1872 = vsub.s32 0, %v1871
        %v1873 = vadd.s32 %v1868, 1
        %vm1874 = vcmp.gt.s32.totalorder %v1873, 0
        %v1875 = vsel %vm1874, %v1873, 0
        %v1876 = vshrl.u32 %v1875, 5
        %v1877 = vand.u32 %v1875, 31
        %v1878 = vsub.s32 32, %v1877
        %v1879 = vshrl.u32 683565275, %v1878
        %v1880 = vshll.u32 683565275, %v1877
        %v1881 = vshrl.u32 2475754826, %v1878
        %v1882 = vor.u32 %v1880, %v1881
        %v1883 = vshll.u32 2475754826, %v1877
        %v1884 = vshrl.u32 2131351028, %v1878
        %v1885 = vor.u32 %v1883, %v1884
        %v1886 = vshll.u32 2131351028, %v1877
        %v1887 = vshrl.u32 2102212464, %v1878
        %v1888 = vor.u32 %v1886, %v1887
        %v1889 = vshll.u32 2102212464, %v1877
        %v1890 = vshrl.u32 920167782, %v1878
        %v1891 = vor.u32 %v1889, %v1890
        %v1892 = vshll.u32 920167782, %v1877
        %v1893 = vshrl.u32 1326507024, %v1878
        %v1894 = vor.u32 %v1892, %v1893
        %vm1895 = vcmp.lt.s32.totalorder %v1876, 1
        %vm1896 = vcmp.lt.s32.totalorder %v1876, 2
        %vm1897 = vcmp.lt.s32.totalorder %v1876, 3
        %vm1898 = vcmp.lt.s32.totalorder %v1876, 4
        %v1899 = vsel %vm1895, %v1879, %v1882
        %v1900 = vsel %vm1898, %v1888, 2102212464
        %v1901 = vsel %vm1897, %v1885, %v1900
        %v1902 = vsel %vm1896, %v1899, %v1901
        %v1903 = vsel %vm1895, %v1882, %v1885
        %v1904 = vsel %vm1898, %v1891, 920167782
        %v1905 = vsel %vm1897, %v1888, %v1904
        %v1906 = vsel %vm1896, %v1903, %v1905
        %v1907 = vsel %vm1895, %v1885, %v1888
        %v1908 = vsel %vm1898, %v1894, 1326507024
        %v1909 = vsel %vm1897, %v1891, %v1908
        %v1910 = vsel %vm1896, %v1907, %v1909
        %v1911 = vshll.u32 %v1871, 8
        %v1912 = vand.u32 %v1911, 65535
        %v1913 = vshrl.u32 %v1911, 16
        %v1914 = vand.u32 %v1910, 65535
        %v1915 = vshrl.u32 %v1910, 16
        %v1916 = vmul.u32 %v1912, %v1914
        %v1917 = vmul.u32 %v1912, %v1915
        %v1918 = vmul.u32 %v1913, %v1914
        %v1919 = vmul.u32 %v1913, %v1915
        %v1920 = vshll.u32 %v1917, 16
        %v1921 = vshrl.u32 %v1917, 16
        %v1922 = vshll.u32 %v1918, 16
        %v1923 = vshrl.u32 %v1918, 16
        %vm1924 = vc.u32 %v1916, %v1920
        %v1925 = vsel %vm1924, 1, 0
        %v1926 = vadd.s32 %v1916, %v1920
        %v1927 = vadd.s32 %v1919, %v1925
        %vm1928 = vc.u32 %v1926, %v1922
        %v1929 = vsel %vm1928, 1, 0
        %v1930 = vadd.s32 %v1926, %v1922
        %v1931 = vadd.s32 %v1927, %v1929
        %v1932 = vadd.s32 %v1931, %v1921
        %v1933 = vadd.s32 %v1932, %v1923
        %v1934 = vand.u32 %v1911, 65535
        %v1935 = vshrl.u32 %v1911, 16
        %v1936 = vand.u32 %v1906, 65535
        %v1937 = vshrl.u32 %v1906, 16
        %v1938 = vmul.u32 %v1934, %v1936
        %v1939 = vmul.u32 %v1934, %v1937
        %v1940 = vmul.u32 %v1935, %v1936
        %v1941 = vmul.u32 %v1935, %v1937
        %v1942 = vshll.u32 %v1939, 16
        %v1943 = vshrl.u32 %v1939, 16
        %v1944 = vshll.u32 %v1940, 16
        %v1945 = vshrl.u32 %v1940, 16
        %vm1946 = vc.u32 %v1938, %v1942
        %v1947 = vsel %vm1946, 1, 0
        %v1948 = vadd.s32 %v1938, %v1942
        %v1949 = vadd.s32 %v1941, %v1947
        %vm1950 = vc.u32 %v1948, %v1944
        %v1951 = vsel %vm1950, 1, 0
        %v1952 = vadd.s32 %v1948, %v1944
        %v1953 = vadd.s32 %v1949, %v1951
        %v1954 = vadd.s32 %v1953, %v1943
        %v1955 = vadd.s32 %v1954, %v1945
        %v1956 = vmul.u32 %v1911, %v1902
        %v1957 = vadd.s32 %v1933, %v1952
        %vm1958 = vc.u32 %v1933, %v1952
        %v1959 = vadd.s32 %v1955, 1
        %v1960 = vsel %vm1958, %v1959, %v1955
        %v1961 = vadd.s32 %v1956, %v1960
        %v1962 = vadd.s32 %v1961, 536870912
        %v1963 = vshrl.u32 %v1962, 30
        %v1964 = vshll.u32 %v1963, 30
        %v1965 = vsub.s32 %v1961, %v1964
        %vm1966 = vcmp.lt.s32.totalorder %v1965, 0
        %v1967 = vsub.s32 0, %v1965
        %v1968 = vsel %vm1966, %v1967, %v1965
        %v1969 = vclz %v1968
        %v1970 = vsub.s32 %v1969, 2
        %vm1971 = vcmp.gt.s32.totalorder 0, %v1970
        %v1972 = vsel %vm1971, 0, %v1970
        %v1973 = vsub.s32 32, %v1972
        %v1974 = vshll.u32 %v1965, %v1972
        %v1975 = vshrl.u32 %v1957, %v1973
        %v1976 = vor.u32 %v1974, %v1975
        %v1977 = vsub.s32 4294967266, %v1972
        %v1978 = vadd.s32 %v1977, 127
        %v1979 = vshll.u32 %v1978, 23
        %v1980 = vor.u32 4788187, %v1979
        %v1981 = vand.u32 2147483647, %v1980
        %v1983 = vcvt.s32.f32 %v1976
        %v1984 = vmul.f32 %v1983, %v1981
        %v1985 = vxor.u32 %v1984, 2147483648
        %v1986 = vsel %vm1865, %v1985, %v1984
        %v1987 = vsub.s32 4, %v1963
        %v1988 = vsel %vm1865, %v1987, %v1963
        %v1989 = vsel %vm1864, %v1525, %v1986
        %v1990 = vsel %vm1864, 0, %v1988
        %v1991 = vmul.f32 %v1989, %v1989
        %v1992 = vmul.f32 %v1991, -0.001358992
        %v1993 = vadd.f32 %v1992, 0.041655596
        %v1994 = vmul.f32 %v1991, %v1993
        %v1995 = vadd.f32 %v1994, -0.4999988
        %v1996 = vmul.f32 %v1991, %v1995
        %v1997 = vadd.f32 1.0, %v1996
        %v1998 = vmul.f32 %v1989, %v1989
        %v1999 = vmul.f32 %v1998, -0.00019511016
        %v2000 = vadd.f32 %v1999, 0.008332121
        %v2001 = vmul.f32 %v1998, %v2000
        %v2002 = vadd.f32 %v2001, -0.16666654
        %v2003 = vmul.f32 %v1998, %v2002
        %v2004 = vadd.f32 %v2003, 1.0
        %v2005 = vmul.f32 %v2004, %v1989
        %vm2006 = vweird.f32 %v1525
        %v2007 = vand.u32 %v1990, 3
        %vm2008 = vcmp.lt.s32.totalorder %v2007, 2
        %vm2009 = vcmp.eq.s32.totalorder %v2007, 0
        %v2010 = vxor.u32 %v2005, 2147483648
        %v2011 = vsel %vm2009, %v1997, %v2010
        %vm2012 = vcmp.eq.s32.totalorder %v2007, 2
        %v2013 = vxor.u32 %v1997, 2147483648
        %v2014 = vsel %vm2012, %v2013, %v2005
        %v2015 = vsel %vm2008, %v2011, %v2014
        %v2016 = vsel %vm2006, nan, %v2015
        %v2017 = vand.u32 2147483647, %v1526
        %vm2018 = vcmp.le.f32.partialorder %v2017, 0.7853982
        %vm2019 = vcmp.lt.s32.totalorder %v1526, 0
        %v2020 = vand.u32 %v1526, 2139095040
        %v2021 = vshrl.u32 %v2020, 23
        %v2022 = vsub.s32 %v2021, 127
        %v2023 = vand.u32 2147483647, %v1526
        %v2024 = vand.u32 %v2023, 8388607
        %v2025 = vor.u32 %v2024, 8388608
        %v2026 = vsub.s32 0, %v2025
        %v2027 = vadd.s32 %v2022, 1
        %vm2028 = vcmp.gt.s32.totalorder %v2027, 0
        %v2029 = vsel %vm2028, %v2027, 0
        %v2030 = vshrl.u32 %v2029, 5
        %v2031 = vand.u32 %v2029, 31
        %v2032 = vsub.s32 32, %v2031
        %v2033 = vshrl.u32 683565275, %v2032
        %v2034 = vshll.u32 683565275, %v2031
        %v2035 = vshrl.u32 2475754826, %v2032
        %v2036 = vor.u32 %v2034, %v2035
        %v2037 = vshll.u32 2475754826, %v2031
        %v2038 = vshrl.u32 2131351028, %v2032
        %v2039 = vor.u32 %v2037, %v2038
        %v2040 = vshll.u32 2131351028, %v2031
        %v2041 = vshrl.u32 2102212464, %v2032
        %v2042 = vor.u32 %v2040, %v2041
        %v2043 = vshll.u32 2102212464, %v2031
        %v2044 = vshrl.u32 920167782, %v2032
        %v2045 = vor.u32 %v2043, %v2044
        %v2046 = vshll.u32 920167782, %v2031
        %v2047 = vshrl.u32 1326507024, %v2032
        %v2048 = vor.u32 %v2046, %v2047
        %vm2049 = vcmp.lt.s32.totalorder %v2030, 1
        %vm2050 = vcmp.lt.s32.totalorder %v2030, 2
        %vm2051 = vcmp.lt.s32.totalorder %v2030, 3
        %vm2052 = vcmp.lt.s32.totalorder %v2030, 4
        %v2053 = vsel %vm2049, %v2033, %v2036
        %v2054 = vsel %vm2052, %v2042, 2102212464
        %v2055 = vsel %vm2051, %v2039, %v2054
        %v2056 = vsel %vm2050, %v2053, %v2055
        %v2057 = vsel %vm2049, %v2036, %v2039
        %v2058 = vsel %vm2052, %v2045, 920167782
        %v2059 = vsel %vm2051, %v2042, %v2058
        %v2060 = vsel %vm2050, %v2057, %v2059
        %v2061 = vsel %vm2049, %v2039, %v2042
        %v2062 = vsel %vm2052, %v2048, 1326507024
        %v2063 = vsel %vm2051, %v2045, %v2062
        %v2064 = vsel %vm2050, %v2061, %v2063
        %v2065 = vshll.u32 %v2025, 8
        %v2066 = vand.u32 %v2065, 65535
        %v2067 = vshrl.u32 %v2065, 16
        %v2068 = vand.u32 %v2064, 65535
        %v2069 = vshrl.u32 %v2064, 16
        %v2070 = vmul.u32 %v2066, %v2068
        %v2071 = vmul.u32 %v2066, %v2069
        %v2072 = vmul.u32 %v2067, %v2068
        %v2073 = vmul.u32 %v2067, %v2069
        %v2074 = vshll.u32 %v2071, 16
        %v2075 = vshrl.u32 %v2071, 16
        %v2076 = vshll.u32 %v2072, 16
        %v2077 = vshrl.u32 %v2072, 16
        %vm2078 = vc.u32 %v2070, %v2074
        %v2079 = vsel %vm2078, 1, 0
        %v2080 = vadd.s32 %v2070, %v2074
        %v2081 = vadd.s32 %v2073, %v2079
        %vm2082 = vc.u32 %v2080, %v2076
        %v2083 = vsel %vm2082, 1, 0
        %v2084 = vadd.s32 %v2080, %v2076
        %v2085 = vadd.s32 %v2081, %v2083
        %v2086 = vadd.s32 %v2085, %v2075
        %v2087 = vadd.s32 %v2086, %v2077
        %v2088 = vand.u32 %v2065, 65535
        %v2089 = vshrl.u32 %v2065, 16
        %v2090 = vand.u32 %v2060, 65535
        %v2091 = vshrl.u32 %v2060, 16
        %v2092 = vmul.u32 %v2088, %v2090
        %v2093 = vmul.u32 %v2088, %v2091
        %v2094 = vmul.u32 %v2089, %v2090
        %v2095 = vmul.u32 %v2089, %v2091
        %v2096 = vshll.u32 %v2093, 16
        %v2097 = vshrl.u32 %v2093, 16
        %v2098 = vshll.u32 %v2094, 16
        %v2099 = vshrl.u32 %v2094, 16
        %vm2100 = vc.u32 %v2092, %v2096
        %v2101 = vsel %vm2100, 1, 0
        %v2102 = vadd.s32 %v2092, %v2096
        %v2103 = vadd.s32 %v2095, %v2101
        %vm2104 = vc.u32 %v2102, %v2098
        %v2105 = vsel %vm2104, 1, 0
        %v2106 = vadd.s32 %v2102, %v2098
        %v2107 = vadd.s32 %v2103, %v2105
        %v2108 = vadd.s32 %v2107, %v2097
        %v2109 = vadd.s32 %v2108, %v2099
        %v2110 = vmul.u32 %v2065, %v2056
        %v2111 = vadd.s32 %v2087, %v2106
        %vm2112 = vc.u32 %v2087, %v2106
        %v2113 = vadd.s32 %v2109, 1
        %v2114 = vsel %vm2112, %v2113, %v2109
        %v2115 = vadd.s32 %v2110, %v2114
        %v2116 = vadd.s32 %v2115, 536870912
        %v2117 = vshrl.u32 %v2116, 30
        %v2118 = vshll.u32 %v2117, 30
        %v2119 = vsub.s32 %v2115, %v2118
        %vm2120 = vcmp.lt.s32.totalorder %v2119, 0
        %v2121 = vsub.s32 0, %v2119
        %v2122 = vsel %vm2120, %v2121, %v2119
        %v2123 = vclz %v2122
        %v2124 = vsub.s32 %v2123, 2
        %vm2125 = vcmp.gt.s32.totalorder 0, %v2124
        %v2126 = vsel %vm2125, 0, %v2124
        %v2127 = vsub.s32 32, %v2126
        %v2128 = vshll.u32 %v2119, %v2126
        %v2129 = vshrl.u32 %v2111, %v2127
        %v2130 = vor.u32 %v2128, %v2129
        %v2131 = vsub.s32 4294967266, %v2126
        %v2132 = vadd.s32 %v2131, 127
        %v2133 = vshll.u32 %v2132, 23
        %v2134 = vor.u32 4788187, %v2133
        %v2135 = vand.u32 2147483647, %v2134
        %v2137 = vcvt.s32.f32 %v2130
        %v2138 = vmul.f32 %v2137, %v2135
        %v2139 = vxor.u32 %v2138, 2147483648
        %v2140 = vsel %vm2019, %v2139, %v2138
        %v2141 = vsub.s32 4, %v2117
        %v2142 = vsel %vm2019, %v2141, %v2117
        %v2143 = vsel %vm2018, %v1526, %v2140
        %v2144 = vsel %vm2018, 0, %v2142
        %v2145 = vmul.f32 %v2143, %v2143
        %v2146 = vmul.f32 %v2145, -0.001358992
        %v2147 = vadd.f32 %v2146, 0.041655596
        %v2148 = vmul.f32 %v2145, %v2147
        %v2149 = vadd.f32 %v2148, -0.4999988
        %v2150 = vmul.f32 %v2145, %v2149
        %v2151 = vadd.f32 1.0, %v2150
        %v2152 = vmul.f32 %v2143, %v2143
        %v2153 = vmul.f32 %v2152, -0.00019511016
        %v2154 = vadd.f32 %v2153, 0.008332121
        %v2155 = vmul.f32 %v2152, %v2154
        %v2156 = vadd.f32 %v2155, -0.16666654
        %v2157 = vmul.f32 %v2152, %v2156
        %v2158 = vadd.f32 %v2157, 1.0
        %v2159 = vmul.f32 %v2158, %v2143
        %vm2160 = vweird.f32 %v1526
        %v2161 = vand.u32 %v2144, 3
        %vm2162 = vcmp.lt.s32.totalorder %v2161, 2
        %vm2163 = vcmp.eq.s32.totalorder %v2161, 0
        %v2164 = vxor.u32 %v2159, 2147483648
        %v2165 = vsel %vm2163, %v2151, %v2164
        %vm2166 = vcmp.eq.s32.totalorder %v2161, 2
        %v2167 = vxor.u32 %v2151, 2147483648
        %v2168 = vsel %vm2166, %v2167, %v2159
        %v2169 = vsel %vm2162, %v2165, %v2168
        %v2170 = vsel %vm2160, nan, %v2169
        %v2171 = vand.u32 2147483647, %v1527
        %vm2172 = vcmp.le.f32.partialorder %v2171, 0.7853982
        %vm2173 = vcmp.lt.s32.totalorder %v1527, 0
        %v2174 = vand.u32 %v1527, 2139095040
        %v2175 = vshrl.u32 %v2174, 23
        %v2176 = vsub.s32 %v2175, 127
        %v2177 = vand.u32 2147483647, %v1527
        %v2178 = vand.u32 %v2177, 8388607
        %v2179 = vor.u32 %v2178, 8388608
        %v2180 = vsub.s32 0, %v2179
        %v2181 = vadd.s32 %v2176, 1
        %vm2182 = vcmp.gt.s32.totalorder %v2181, 0
        %v2183 = vsel %vm2182, %v2181, 0
        %v2184 = vshrl.u32 %v2183, 5
        %v2185 = vand.u32 %v2183, 31
        %v2186 = vsub.s32 32, %v2185
        %v2187 = vshrl.u32 683565275, %v2186
        %v2188 = vshll.u32 683565275, %v2185
        %v2189 = vshrl.u32 2475754826, %v2186
        %v2190 = vor.u32 %v2188, %v2189
        %v2191 = vshll.u32 2475754826, %v2185
        %v2192 = vshrl.u32 2131351028, %v2186
        %v2193 = vor.u32 %v2191, %v2192
        %v2194 = vshll.u32 2131351028, %v2185
        %v2195 = vshrl.u32 2102212464, %v2186
        %v2196 = vor.u32 %v2194, %v2195
        %v2197 = vshll.u32 2102212464, %v2185
        %v2198 = vshrl.u32 920167782, %v2186
        %v2199 = vor.u32 %v2197, %v2198
        %v2200 = vshll.u32 920167782, %v2185
        %v2201 = vshrl.u32 1326507024, %v2186
        %v2202 = vor.u32 %v2200, %v2201
        %vm2203 = vcmp.lt.s32.totalorder %v2184, 1
        %vm2204 = vcmp.lt.s32.totalorder %v2184, 2
        %vm2205 = vcmp.lt.s32.totalorder %v2184, 3
        %vm2206 = vcmp.lt.s32.totalorder %v2184, 4
        %v2207 = vsel %vm2203, %v2187, %v2190
        %v2208 = vsel %vm2206, %v2196, 2102212464
        %v2209 = vsel %vm2205, %v2193, %v2208
        %v2210 = vsel %vm2204, %v2207, %v2209
        %v2211 = vsel %vm2203, %v2190, %v2193
        %v2212 = vsel %vm2206, %v2199, 920167782
        %v2213 = vsel %vm2205, %v2196, %v2212
        %v2214 = vsel %vm2204, %v2211, %v2213
        %v2215 = vsel %vm2203, %v2193, %v2196
        %v2216 = vsel %vm2206, %v2202, 1326507024
        %v2217 = vsel %vm2205, %v2199, %v2216
        %v2218 = vsel %vm2204, %v2215, %v2217
        %v2219 = vshll.u32 %v2179, 8
        %v2220 = vand.u32 %v2219, 65535
        %v2221 = vshrl.u32 %v2219, 16
        %v2222 = vand.u32 %v2218, 65535
        %v2223 = vshrl.u32 %v2218, 16
        %v2224 = vmul.u32 %v2220, %v2222
        %v2225 = vmul.u32 %v2220, %v2223
        %v2226 = vmul.u32 %v2221, %v2222
        %v2227 = vmul.u32 %v2221, %v2223
        %v2228 = vshll.u32 %v2225, 16
        %v2229 = vshrl.u32 %v2225, 16
        %v2230 = vshll.u32 %v2226, 16
        %v2231 = vshrl.u32 %v2226, 16
        %vm2232 = vc.u32 %v2224, %v2228
        %v2233 = vsel %vm2232, 1, 0
        %v2234 = vadd.s32 %v2224, %v2228
        %v2235 = vadd.s32 %v2227, %v2233
        %vm2236 = vc.u32 %v2234, %v2230
        %v2237 = vsel %vm2236, 1, 0
        %v2238 = vadd.s32 %v2234, %v2230
        %v2239 = vadd.s32 %v2235, %v2237
        %v2240 = vadd.s32 %v2239, %v2229
        %v2241 = vadd.s32 %v2240, %v2231
        %v2242 = vand.u32 %v2219, 65535
        %v2243 = vshrl.u32 %v2219, 16
        %v2244 = vand.u32 %v2214, 65535
        %v2245 = vshrl.u32 %v2214, 16
        %v2246 = vmul.u32 %v2242, %v2244
        %v2247 = vmul.u32 %v2242, %v2245
        %v2248 = vmul.u32 %v2243, %v2244
        %v2249 = vmul.u32 %v2243, %v2245
        %v2250 = vshll.u32 %v2247, 16
        %v2251 = vshrl.u32 %v2247, 16
        %v2252 = vshll.u32 %v2248, 16
        %v2253 = vshrl.u32 %v2248, 16
        %vm2254 = vc.u32 %v2246, %v2250
        %v2255 = vsel %vm2254, 1, 0
        %v2256 = vadd.s32 %v2246, %v2250
        %v2257 = vadd.s32 %v2249, %v2255
        %vm2258 = vc.u32 %v2256, %v2252
        %v2259 = vsel %vm2258, 1, 0
        %v2260 = vadd.s32 %v2256, %v2252
        %v2261 = vadd.s32 %v2257, %v2259
        %v2262 = vadd.s32 %v2261, %v2251
        %v2263 = vadd.s32 %v2262, %v2253
        %v2264 = vmul.u32 %v2219, %v2210
        %v2265 = vadd.s32 %v2241, %v2260
        %vm2266 = vc.u32 %v2241, %v2260
        %v2267 = vadd.s32 %v2263, 1
        %v2268 = vsel %vm2266, %v2267, %v2263
        %v2269 = vadd.s32 %v2264, %v2268
        %v2270 = vadd.s32 %v2269, 536870912
        %v2271 = vshrl.u32 %v2270, 30
        %v2272 = vshll.u32 %v2271, 30
        %v2273 = vsub.s32 %v2269, %v2272
        %vm2274 = vcmp.lt.s32.totalorder %v2273, 0
        %v2275 = vsub.s32 0, %v2273
        %v2276 = vsel %vm2274, %v2275, %v2273
        %v2277 = vclz %v2276
        %v2278 = vsub.s32 %v2277, 2
        %vm2279 = vcmp.gt.s32.totalorder 0, %v2278
        %v2280 = vsel %vm2279, 0, %v2278
        %v2281 = vsub.s32 32, %v2280
        %v2282 = vshll.u32 %v2273, %v2280
        %v2283 = vshrl.u32 %v2265, %v2281
        %v2284 = vor.u32 %v2282, %v2283
        %v2285 = vsub.s32 4294967266, %v2280
        %v2286 = vadd.s32 %v2285, 127
        %v2287 = vshll.u32 %v2286, 23
        %v2288 = vor.u32 4788187, %v2287
        %v2289 = vand.u32 2147483647, %v2288
        %v2291 = vcvt.s32.f32 %v2284
        %v2292 = vmul.f32 %v2291, %v2289
        %v2293 = vxor.u32 %v2292, 2147483648
        %v2294 = vsel %vm2173, %v2293, %v2292
        %v2295 = vsub.s32 4, %v2271
        %v2296 = vsel %vm2173, %v2295, %v2271
        %v2297 = vsel %vm2172, %v1527, %v2294
        %v2298 = vsel %vm2172, 0, %v2296
        %v2299 = vmul.f32 %v2297, %v2297
        %v2300 = vmul.f32 %v2299, -0.001358992
        %v2301 = vadd.f32 %v2300, 0.041655596
        %v2302 = vmul.f32 %v2299, %v2301
        %v2303 = vadd.f32 %v2302, -0.4999988
        %v2304 = vmul.f32 %v2299, %v2303
        %v2305 = vadd.f32 1.0, %v2304
        %v2306 = vmul.f32 %v2297, %v2297
        %v2307 = vmul.f32 %v2306, -0.00019511016
        %v2308 = vadd.f32 %v2307, 0.008332121
        %v2309 = vmul.f32 %v2306, %v2308
        %v2310 = vadd.f32 %v2309, -0.16666654
        %v2311 = vmul.f32 %v2306, %v2310
        %v2312 = vadd.f32 %v2311, 1.0
        %v2313 = vmul.f32 %v2312, %v2297
        %vm2314 = vweird.f32 %v1527
        %v2315 = vand.u32 %v2298, 3
        %vm2316 = vcmp.lt.s32.totalorder %v2315, 2
        %vm2317 = vcmp.eq.s32.totalorder %v2315, 0
        %v2318 = vxor.u32 %v2313, 2147483648
        %v2319 = vsel %vm2317, %v2305, %v2318
        %vm2320 = vcmp.eq.s32.totalorder %v2315, 2
        %v2321 = vxor.u32 %v2305, 2147483648
        %v2322 = vsel %vm2320, %v2321, %v2313
        %v2323 = vsel %vm2316, %v2319, %v2322
        %v2324 = vsel %vm2314, nan, %v2323
        %v2325 = vand.u32 2147483647, %v1528
        %vm2326 = vcmp.le.f32.partialorder %v2325, 0.7853982
        %vm2327 = vcmp.lt.s32.totalorder %v1528, 0
        %v2328 = vand.u32 %v1528, 2139095040
        %v2329 = vshrl.u32 %v2328, 23
        %v2330 = vsub.s32 %v2329, 127
        %v2331 = vand.u32 2147483647, %v1528
        %v2332 = vand.u32 %v2331, 8388607
        %v2333 = vor.u32 %v2332, 8388608
        %v2334 = vsub.s32 0, %v2333
        %v2335 = vadd.s32 %v2330, 1
        %vm2336 = vcmp.gt.s32.totalorder %v2335, 0
        %v2337 = vsel %vm2336, %v2335, 0
        %v2338 = vshrl.u32 %v2337, 5
        %v2339 = vand.u32 %v2337, 31
        %v2340 = vsub.s32 32, %v2339
        %v2341 = vshrl.u32 683565275, %v2340
        %v2342 = vshll.u32 683565275, %v2339
        %v2343 = vshrl.u32 2475754826, %v2340
        %v2344 = vor.u32 %v2342, %v2343
        %v2345 = vshll.u32 2475754826, %v2339
        %v2346 = vshrl.u32 2131351028, %v2340
        %v2347 = vor.u32 %v2345, %v2346
        %v2348 = vshll.u32 2131351028, %v2339
        %v2349 = vshrl.u32 2102212464, %v2340
        %v2350 = vor.u32 %v2348, %v2349
        %v2351 = vshll.u32 2102212464, %v2339
        %v2352 = vshrl.u32 920167782, %v2340
        %v2353 = vor.u32 %v2351, %v2352
        %v2354 = vshll.u32 920167782, %v2339
        %v2355 = vshrl.u32 1326507024, %v2340
        %v2356 = vor.u32 %v2354, %v2355
        %vm2357 = vcmp.lt.s32.totalorder %v2338, 1
        %vm2358 = vcmp.lt.s32.totalorder %v2338, 2
        %vm2359 = vcmp.lt.s32.totalorder %v2338, 3
        %vm2360 = vcmp.lt.s32.totalorder %v2338, 4
        %v2361 = vsel %vm2357, %v2341, %v2344
        %v2362 = vsel %vm2360, %v2350, 2102212464
        %v2363 = vsel %vm2359, %v2347, %v2362
        %v2364 = vsel %vm2358, %v2361, %v2363
        %v2365 = vsel %vm2357, %v2344, %v2347
        %v2366 = vsel %vm2360, %v2353, 920167782
        %v2367 = vsel %vm2359, %v2350, %v2366
        %v2368 = vsel %vm2358, %v2365, %v2367
        %v2369 = vsel %vm2357, %v2347, %v2350
        %v2370 = vsel %vm2360, %v2356, 1326507024
        %v2371 = vsel %vm2359, %v2353, %v2370
        %v2372 = vsel %vm2358, %v2369, %v2371
        %v2373 = vshll.u32 %v2333, 8
        %v2374 = vand.u32 %v2373, 65535
        %v2375 = vshrl.u32 %v2373, 16
        %v2376 = vand.u32 %v2372, 65535
        %v2377 = vshrl.u32 %v2372, 16
        %v2378 = vmul.u32 %v2374, %v2376
        %v2379 = vmul.u32 %v2374, %v2377
        %v2380 = vmul.u32 %v2375, %v2376
        %v2381 = vmul.u32 %v2375, %v2377
        %v2382 = vshll.u32 %v2379, 16
        %v2383 = vshrl.u32 %v2379, 16
        %v2384 = vshll.u32 %v2380, 16
        %v2385 = vshrl.u32 %v2380, 16
        %vm2386 = vc.u32 %v2378, %v2382
        %v2387 = vsel %vm2386, 1, 0
        %v2388 = vadd.s32 %v2378, %v2382
        %v2389 = vadd.s32 %v2381, %v2387
        %vm2390 = vc.u32 %v2388, %v2384
        %v2391 = vsel %vm2390, 1, 0
        %v2392 = vadd.s32 %v2388, %v2384
        %v2393 = vadd.s32 %v2389, %v2391
        %v2394 = vadd.s32 %v2393, %v2383
        %v2395 = vadd.s32 %v2394, %v2385
        %v2396 = vand.u32 %v2373, 65535
        %v2397 = vshrl.u32 %v2373, 16
        %v2398 = vand.u32 %v2368, 65535
        %v2399 = vshrl.u32 %v2368, 16
        %v2400 = vmul.u32 %v2396, %v2398
        %v2401 = vmul.u32 %v2396, %v2399
        %v2402 = vmul.u32 %v2397, %v2398
        %v2403 = vmul.u32 %v2397, %v2399
        %v2404 = vshll.u32 %v2401, 16
        %v2405 = vshrl.u32 %v2401, 16
        %v2406 = vshll.u32 %v2402, 16
        %v2407 = vshrl.u32 %v2402, 16
        %vm2408 = vc.u32 %v2400, %v2404
        %v2409 = vsel %vm2408, 1, 0
        %v2410 = vadd.s32 %v2400, %v2404
        %v2411 = vadd.s32 %v2403, %v2409
        %vm2412 = vc.u32 %v2410, %v2406
        %v2413 = vsel %vm2412, 1, 0
        %v2414 = vadd.s32 %v2410, %v2406
        %v2415 = vadd.s32 %v2411, %v2413
        %v2416 = vadd.s32 %v2415, %v2405
        %v2417 = vadd.s32 %v2416, %v2407
        %v2418 = vmul.u32 %v2373, %v2364
        %v2419 = vadd.s32 %v2395, %v2414
        %vm2420 = vc.u32 %v2395, %v2414
        %v2421 = vadd.s32 %v2417, 1
        %v2422 = vsel %vm2420, %v2421, %v2417
        %v2423 = vadd.s32 %v2418, %v2422
        %v2424 = vadd.s32 %v2423, 536870912
        %v2425 = vshrl.u32 %v2424, 30
        %v2426 = vshll.u32 %v2425, 30
        %v2427 = vsub.s32 %v2423, %v2426
        %vm2428 = vcmp.lt.s32.totalorder %v2427, 0
        %v2429 = vsub.s32 0, %v2427
        %v2430 = vsel %vm2428, %v2429, %v2427
        %v2431 = vclz %v2430
        %v2432 = vsub.s32 %v2431, 2
        %vm2433 = vcmp.gt.s32.totalorder 0, %v2432
        %v2434 = vsel %vm2433, 0, %v2432
        %v2435 = vsub.s32 32, %v2434
        %v2436 = vshll.u32 %v2427, %v2434
        %v2437 = vshrl.u32 %v2419, %v2435
        %v2438 = vor.u32 %v2436, %v2437
        %v2439 = vsub.s32 4294967266, %v2434
        %v2440 = vadd.s32 %v2439, 127
        %v2441 = vshll.u32 %v2440, 23
        %v2442 = vor.u32 4788187, %v2441
        %v2443 = vand.u32 2147483647, %v2442
        %v2445 = vcvt.s32.f32 %v2438
        %v2446 = vmul.f32 %v2445, %v2443
        %v2447 = vxor.u32 %v2446, 2147483648
        %v2448 = vsel %vm2327, %v2447, %v2446
        %v2449 = vsub.s32 4, %v2425
        %v2450 = vsel %vm2327, %v2449, %v2425
        %v2451 = vsel %vm2326, %v1528, %v2448
        %v2452 = vsel %vm2326, 0, %v2450
        %v2453 = vmul.f32 %v2451, %v2451
        %v2454 = vmul.f32 %v2453, -0.001358992
        %v2455 = vadd.f32 %v2454, 0.041655596
        %v2456 = vmul.f32 %v2453, %v2455
        %v2457 = vadd.f32 %v2456, -0.4999988
        %v2458 = vmul.f32 %v2453, %v2457
        %v2459 = vadd.f32 1.0, %v2458
        %v2460 = vmul.f32 %v2451, %v2451
        %v2461 = vmul.f32 %v2460, -0.00019511016
        %v2462 = vadd.f32 %v2461, 0.008332121
        %v2463 = vmul.f32 %v2460, %v2462
        %v2464 = vadd.f32 %v2463, -0.16666654
        %v2465 = vmul.f32 %v2460, %v2464
        %v2466 = vadd.f32 %v2465, 1.0
        %v2467 = vmul.f32 %v2466, %v2451
        %vm2468 = vweird.f32 %v1528
        %v2469 = vand.u32 %v2452, 3
        %vm2470 = vcmp.lt.s32.totalorder %v2469, 2
        %vm2471 = vcmp.eq.s32.totalorder %v2469, 0
        %v2472 = vxor.u32 %v2467, 2147483648
        %v2473 = vsel %vm2471, %v2459, %v2472
        %vm2474 = vcmp.eq.s32.totalorder %v2469, 2
        %v2475 = vxor.u32 %v2459, 2147483648
        %v2476 = vsel %vm2474, %v2475, %v2467
        %v2477 = vsel %vm2470, %v2473, %v2476
        %v2478 = vsel %vm2468, nan, %v2477
        %v2479 = vand.u32 2147483647, %v1529
        %vm2480 = vcmp.le.f32.partialorder %v2479, 0.7853982
        %vm2481 = vcmp.lt.s32.totalorder %v1529, 0
        %v2482 = vand.u32 %v1529, 2139095040
        %v2483 = vshrl.u32 %v2482, 23
        %v2484 = vsub.s32 %v2483, 127
        %v2485 = vand.u32 2147483647, %v1529
        %v2486 = vand.u32 %v2485, 8388607
        %v2487 = vor.u32 %v2486, 8388608
        %v2488 = vsub.s32 0, %v2487
        %v2489 = vadd.s32 %v2484, 1
        %vm2490 = vcmp.gt.s32.totalorder %v2489, 0
        %v2491 = vsel %vm2490, %v2489, 0
        %v2492 = vshrl.u32 %v2491, 5
        %v2493 = vand.u32 %v2491, 31
        %v2494 = vsub.s32 32, %v2493
        %v2495 = vshrl.u32 683565275, %v2494
        %v2496 = vshll.u32 683565275, %v2493
        %v2497 = vshrl.u32 2475754826, %v2494
        %v2498 = vor.u32 %v2496, %v2497
        %v2499 = vshll.u32 2475754826, %v2493
        %v2500 = vshrl.u32 2131351028, %v2494
        %v2501 = vor.u32 %v2499, %v2500
        %v2502 = vshll.u32 2131351028, %v2493
        %v2503 = vshrl.u32 2102212464, %v2494
        %v2504 = vor.u32 %v2502, %v2503
        %v2505 = vshll.u32 2102212464, %v2493
        %v2506 = vshrl.u32 920167782, %v2494
        %v2507 = vor.u32 %v2505, %v2506
        %v2508 = vshll.u32 920167782, %v2493
        %v2509 = vshrl.u32 1326507024, %v2494
        %v2510 = vor.u32 %v2508, %v2509
        %vm2511 = vcmp.lt.s32.totalorder %v2492, 1
        %vm2512 = vcmp.lt.s32.totalorder %v2492, 2
        %vm2513 = vcmp.lt.s32.totalorder %v2492, 3
        %vm2514 = vcmp.lt.s32.totalorder %v2492, 4
        %v2515 = vsel %vm2511, %v2495, %v2498
        %v2516 = vsel %vm2514, %v2504, 2102212464
        %v2517 = vsel %vm2513, %v2501, %v2516
        %v2518 = vsel %vm2512, %v2515, %v2517
        %v2519 = vsel %vm2511, %v2498, %v2501
        %v2520 = vsel %vm2514, %v2507, 920167782
        %v2521 = vsel %vm2513, %v2504, %v2520
        %v2522 = vsel %vm2512, %v2519, %v2521
        %v2523 = vsel %vm2511, %v2501, %v2504
        %v2524 = vsel %vm2514, %v2510, 1326507024
        %v2525 = vsel %vm2513, %v2507, %v2524
        %v2526 = vsel %vm2512, %v2523, %v2525
        %v2527 = vshll.u32 %v2487, 8
        %v2528 = vand.u32 %v2527, 65535
        %v2529 = vshrl.u32 %v2527, 16
        %v2530 = vand.u32 %v2526, 65535
        %v2531 = vshrl.u32 %v2526, 16
        %v2532 = vmul.u32 %v2528, %v2530
        %v2533 = vmul.u32 %v2528, %v2531
        %v2534 = vmul.u32 %v2529, %v2530
        %v2535 = vmul.u32 %v2529, %v2531
        %v2536 = vshll.u32 %v2533, 16
        %v2537 = vshrl.u32 %v2533, 16
        %v2538 = vshll.u32 %v2534, 16
        %v2539 = vshrl.u32 %v2534, 16
        %vm2540 = vc.u32 %v2532, %v2536
        %v2541 = vsel %vm2540, 1, 0
        %v2542 = vadd.s32 %v2532, %v2536
        %v2543 = vadd.s32 %v2535, %v2541
        %vm2544 = vc.u32 %v2542, %v2538
        %v2545 = vsel %vm2544, 1, 0
        %v2546 = vadd.s32 %v2542, %v2538
        %v2547 = vadd.s32 %v2543, %v2545
        %v2548 = vadd.s32 %v2547, %v2537
        %v2549 = vadd.s32 %v2548, %v2539
        %v2550 = vand.u32 %v2527, 65535
        %v2551 = vshrl.u32 %v2527, 16
        %v2552 = vand.u32 %v2522, 65535
        %v2553 = vshrl.u32 %v2522, 16
        %v2554 = vmul.u32 %v2550, %v2552
        %v2555 = vmul.u32 %v2550, %v2553
        %v2556 = vmul.u32 %v2551, %v2552
        %v2557 = vmul.u32 %v2551, %v2553
        %v2558 = vshll.u32 %v2555, 16
        %v2559 = vshrl.u32 %v2555, 16
        %v2560 = vshll.u32 %v2556, 16
        %v2561 = vshrl.u32 %v2556, 16
        %vm2562 = vc.u32 %v2554, %v2558
        %v2563 = vsel %vm2562, 1, 0
        %v2564 = vadd.s32 %v2554, %v2558
        %v2565 = vadd.s32 %v2557, %v2563
        %vm2566 = vc.u32 %v2564, %v2560
        %v2567 = vsel %vm2566, 1, 0
        %v2568 = vadd.s32 %v2564, %v2560
        %v2569 = vadd.s32 %v2565, %v2567
        %v2570 = vadd.s32 %v2569, %v2559
        %v2571 = vadd.s32 %v2570, %v2561
        %v2572 = vmul.u32 %v2527, %v2518
        %v2573 = vadd.s32 %v2549, %v2568
        %vm2574 = vc.u32 %v2549, %v2568
        %v2575 = vadd.s32 %v2571, 1
        %v2576 = vsel %vm2574, %v2575, %v2571
        %v2577 = vadd.s32 %v2572, %v2576
        %v2578 = vadd.s32 %v2577, 536870912
        %v2579 = vshrl.u32 %v2578, 30
        %v2580 = vshll.u32 %v2579, 30
        %v2581 = vsub.s32 %v2577, %v2580
        %vm2582 = vcmp.lt.s32.totalorder %v2581, 0
        %v2583 = vsub.s32 0, %v2581
        %v2584 = vsel %vm2582, %v2583, %v2581
        %v2585 = vclz %v2584
        %v2586 = vsub.s32 %v2585, 2
        %vm2587 = vcmp.gt.s32.totalorder 0, %v2586
        %v2588 = vsel %vm2587, 0, %v2586
        %v2589 = vsub.s32 32, %v2588
        %v2590 = vshll.u32 %v2581, %v2588
        %v2591 = vshrl.u32 %v2573, %v2589
        %v2592 = vor.u32 %v2590, %v2591
        %v2593 = vsub.s32 4294967266, %v2588
        %v2594 = vadd.s32 %v2593, 127
        %v2595 = vshll.u32 %v2594, 23
        %v2596 = vor.u32 4788187, %v2595
        %v2597 = vand.u32 2147483647, %v2596
        %v2599 = vcvt.s32.f32 %v2592
        %v2600 = vmul.f32 %v2599, %v2597
        %v2601 = vxor.u32 %v2600, 2147483648
        %v2602 = vsel %vm2481, %v2601, %v2600
        %v2603 = vsub.s32 4, %v2579
        %v2604 = vsel %vm2481, %v2603, %v2579
        %v2605 = vsel %vm2480, %v1529, %v2602
        %v2606 = vsel %vm2480, 0, %v2604
        %v2607 = vmul.f32 %v2605, %v2605
        %v2608 = vmul.f32 %v2607, -0.001358992
        %v2609 = vadd.f32 %v2608, 0.041655596
        %v2610 = vmul.f32 %v2607, %v2609
        %v2611 = vadd.f32 %v2610, -0.4999988
        %v2612 = vmul.f32 %v2607, %v2611
        %v2613 = vadd.f32 1.0, %v2612
        %v2614 = vmul.f32 %v2605, %v2605
        %v2615 = vmul.f32 %v2614, -0.00019511016
        %v2616 = vadd.f32 %v2615, 0.008332121
        %v2617 = vmul.f32 %v2614, %v2616
        %v2618 = vadd.f32 %v2617, -0.16666654
        %v2619 = vmul.f32 %v2614, %v2618
        %v2620 = vadd.f32 %v2619, 1.0
        %v2621 = vmul.f32 %v2620, %v2605
        %vm2622 = vweird.f32 %v1529
        %v2623 = vand.u32 %v2606, 3
        %vm2624 = vcmp.lt.s32.totalorder %v2623, 2
        %vm2625 = vcmp.eq.s32.totalorder %v2623, 0
        %v2626 = vxor.u32 %v2621, 2147483648
        %v2627 = vsel %vm2625, %v2613, %v2626
        %vm2628 = vcmp.eq.s32.totalorder %v2623, 2
        %v2629 = vxor.u32 %v2613, 2147483648
        %v2630 = vsel %vm2628, %v2629, %v2621
        %v2631 = vsel %vm2624, %v2627, %v2630
        %v2632 = vsel %vm2622, nan, %v2631
        %v2633 = vand.u32 2147483647, %v1530
        %vm2634 = vcmp.le.f32.partialorder %v2633, 0.7853982
        %vm2635 = vcmp.lt.s32.totalorder %v1530, 0
        %v2636 = vand.u32 %v1530, 2139095040
        %v2637 = vshrl.u32 %v2636, 23
        %v2638 = vsub.s32 %v2637, 127
        %v2639 = vand.u32 2147483647, %v1530
        %v2640 = vand.u32 %v2639, 8388607
        %v2641 = vor.u32 %v2640, 8388608
        %v2642 = vsub.s32 0, %v2641
        %v2643 = vadd.s32 %v2638, 1
        %vm2644 = vcmp.gt.s32.totalorder %v2643, 0
        %v2645 = vsel %vm2644, %v2643, 0
        %v2646 = vshrl.u32 %v2645, 5
        %v2647 = vand.u32 %v2645, 31
        %v2648 = vsub.s32 32, %v2647
        %v2649 = vshrl.u32 683565275, %v2648
        %v2650 = vshll.u32 683565275, %v2647
        %v2651 = vshrl.u32 2475754826, %v2648
        %v2652 = vor.u32 %v2650, %v2651
        %v2653 = vshll.u32 2475754826, %v2647
        %v2654 = vshrl.u32 2131351028, %v2648
        %v2655 = vor.u32 %v2653, %v2654
        %v2656 = vshll.u32 2131351028, %v2647
        %v2657 = vshrl.u32 2102212464, %v2648
        %v2658 = vor.u32 %v2656, %v2657
        %v2659 = vshll.u32 2102212464, %v2647
        %v2660 = vshrl.u32 920167782, %v2648
        %v2661 = vor.u32 %v2659, %v2660
        %v2662 = vshll.u32 920167782, %v2647
        %v2663 = vshrl.u32 1326507024, %v2648
        %v2664 = vor.u32 %v2662, %v2663
        %vm2665 = vcmp.lt.s32.totalorder %v2646, 1
        %vm2666 = vcmp.lt.s32.totalorder %v2646, 2
        %vm2667 = vcmp.lt.s32.totalorder %v2646, 3
        %vm2668 = vcmp.lt.s32.totalorder %v2646, 4
        %v2669 = vsel %vm2665, %v2649, %v2652
        %v2670 = vsel %vm2668, %v2658, 2102212464
        %v2671 = vsel %vm2667, %v2655, %v2670
        %v2672 = vsel %vm2666, %v2669, %v2671
        %v2673 = vsel %vm2665, %v2652, %v2655
        %v2674 = vsel %vm2668, %v2661, 920167782
        %v2675 = vsel %vm2667, %v2658, %v2674
        %v2676 = vsel %vm2666, %v2673, %v2675
        %v2677 = vsel %vm2665, %v2655, %v2658
        %v2678 = vsel %vm2668, %v2664, 1326507024
        %v2679 = vsel %vm2667, %v2661, %v2678
        %v2680 = vsel %vm2666, %v2677, %v2679
        %v2681 = vshll.u32 %v2641, 8
        %v2682 = vand.u32 %v2681, 65535
        %v2683 = vshrl.u32 %v2681, 16
        %v2684 = vand.u32 %v2680, 65535
        %v2685 = vshrl.u32 %v2680, 16
        %v2686 = vmul.u32 %v2682, %v2684
        %v2687 = vmul.u32 %v2682, %v2685
        %v2688 = vmul.u32 %v2683, %v2684
        %v2689 = vmul.u32 %v2683, %v2685
        %v2690 = vshll.u32 %v2687, 16
        %v2691 = vshrl.u32 %v2687, 16
        %v2692 = vshll.u32 %v2688, 16
        %v2693 = vshrl.u32 %v2688, 16
        %vm2694 = vc.u32 %v2686, %v2690
        %v2695 = vsel %vm2694, 1, 0
        %v2696 = vadd.s32 %v2686, %v2690
        %v2697 = vadd.s32 %v2689, %v2695
        %vm2698 = vc.u32 %v2696, %v2692
        %v2699 = vsel %vm2698, 1, 0
        %v2700 = vadd.s32 %v2696, %v2692
        %v2701 = vadd.s32 %v2697, %v2699
        %v2702 = vadd.s32 %v2701, %v2691
        %v2703 = vadd.s32 %v2702, %v2693
        %v2704 = vand.u32 %v2681, 65535
        %v2705 = vshrl.u32 %v2681, 16
        %v2706 = vand.u32 %v2676, 65535
        %v2707 = vshrl.u32 %v2676, 16
        %v2708 = vmul.u32 %v2704, %v2706
        %v2709 = vmul.u32 %v2704, %v2707
        %v2710 = vmul.u32 %v2705, %v2706
        %v2711 = vmul.u32 %v2705, %v2707
        %v2712 = vshll.u32 %v2709, 16
        %v2713 = vshrl.u32 %v2709, 16
        %v2714 = vshll.u32 %v2710, 16
        %v2715 = vshrl.u32 %v2710, 16
        %vm2716 = vc.u32 %v2708, %v2712
        %v2717 = vsel %vm2716, 1, 0
        %v2718 = vadd.s32 %v2708, %v2712
        %v2719 = vadd.s32 %v2711, %v2717
        %vm2720 = vc.u32 %v2718, %v2714
        %v2721 = vsel %vm2720, 1, 0
        %v2722 = vadd.s32 %v2718, %v2714
        %v2723 = vadd.s32 %v2719, %v2721
        %v2724 = vadd.s32 %v2723, %v2713
        %v2725 = vadd.s32 %v2724, %v2715
        %v2726 = vmul.u32 %v2681, %v2672
        %v2727 = vadd.s32 %v2703, %v2722
        %vm2728 = vc.u32 %v2703, %v2722
        %v2729 = vadd.s32 %v2725, 1
        %v2730 = vsel %vm2728, %v2729, %v2725
        %v2731 = vadd.s32 %v2726, %v2730
        %v2732 = vadd.s32 %v2731, 536870912
        %v2733 = vshrl.u32 %v2732, 30
        %v2734 = vshll.u32 %v2733, 30
        %v2735 = vsub.s32 %v2731, %v2734
        %vm2736 = vcmp.lt.s32.totalorder %v2735, 0
        %v2737 = vsub.s32 0, %v2735
        %v2738 = vsel %vm2736, %v2737, %v2735
        %v2739 = vclz %v2738
        %v2740 = vsub.s32 %v2739, 2
        %vm2741 = vcmp.gt.s32.totalorder 0, %v2740
        %v2742 = vsel %vm2741, 0, %v2740
        %v2743 = vsub.s32 32, %v2742
        %v2744 = vshll.u32 %v2735, %v2742
        %v2745 = vshrl.u32 %v2727, %v2743
        %v2746 = vor.u32 %v2744, %v2745
        %v2747 = vsub.s32 4294967266, %v2742
        %v2748 = vadd.s32 %v2747, 127
        %v2749 = vshll.u32 %v2748, 23
        %v2750 = vor.u32 4788187, %v2749
        %v2751 = vand.u32 2147483647, %v2750
        %v2753 = vcvt.s32.f32 %v2746
        %v2754 = vmul.f32 %v2753, %v2751
        %v2755 = vxor.u32 %v2754, 2147483648
        %v2756 = vsel %vm2635, %v2755, %v2754
        %v2757 = vsub.s32 4, %v2733
        %v2758 = vsel %vm2635, %v2757, %v2733
        %v2759 = vsel %vm2634, %v1530, %v2756
        %v2760 = vsel %vm2634, 0, %v2758
        %v2761 = vmul.f32 %v2759, %v2759
        %v2762 = vmul.f32 %v2761, -0.001358992
        %v2763 = vadd.f32 %v2762, 0.041655596
        %v2764 = vmul.f32 %v2761, %v2763
        %v2765 = vadd.f32 %v2764, -0.4999988
        %v2766 = vmul.f32 %v2761, %v2765
        %v2767 = vadd.f32 1.0, %v2766
        %v2768 = vmul.f32 %v2759, %v2759
        %v2769 = vmul.f32 %v2768, -0.00019511016
        %v2770 = vadd.f32 %v2769, 0.008332121
        %v2771 = vmul.f32 %v2768, %v2770
        %v2772 = vadd.f32 %v2771, -0.16666654
        %v2773 = vmul.f32 %v2768, %v2772
        %v2774 = vadd.f32 %v2773, 1.0
        %v2775 = vmul.f32 %v2774, %v2759
        %vm2776 = vweird.f32 %v1530
        %v2777 = vand.u32 %v2760, 3
        %vm2778 = vcmp.lt.s32.totalorder %v2777, 2
        %vm2779 = vcmp.eq.s32.totalorder %v2777, 0
        %v2780 = vxor.u32 %v2775, 2147483648
        %v2781 = vsel %vm2779, %v2767, %v2780
        %vm2782 = vcmp.eq.s32.totalorder %v2777, 2
        %v2783 = vxor.u32 %v2767, 2147483648
        %v2784 = vsel %vm2782, %v2783, %v2775
        %v2785 = vsel %vm2778, %v2781, %v2784
        %v2786 = vsel %vm2776, nan, %v2785
        %v2787 = vand.u32 2147483647, %v1531
        %vm2788 = vcmp.le.f32.partialorder %v2787, 0.7853982
        %vm2789 = vcmp.lt.s32.totalorder %v1531, 0
        %v2790 = vand.u32 %v1531, 2139095040
        %v2791 = vshrl.u32 %v2790, 23
        %v2792 = vsub.s32 %v2791, 127
        %v2793 = vand.u32 2147483647, %v1531
        %v2794 = vand.u32 %v2793, 8388607
        %v2795 = vor.u32 %v2794, 8388608
        %v2796 = vsub.s32 0, %v2795
        %v2797 = vadd.s32 %v2792, 1
        %vm2798 = vcmp.gt.s32.totalorder %v2797, 0
        %v2799 = vsel %vm2798, %v2797, 0
        %v2800 = vshrl.u32 %v2799, 5
        %v2801 = vand.u32 %v2799, 31
        %v2802 = vsub.s32 32, %v2801
        %v2803 = vshrl.u32 683565275, %v2802
        %v2804 = vshll.u32 683565275, %v2801
        %v2805 = vshrl.u32 2475754826, %v2802
        %v2806 = vor.u32 %v2804, %v2805
        %v2807 = vshll.u32 2475754826, %v2801
        %v2808 = vshrl.u32 2131351028, %v2802
        %v2809 = vor.u32 %v2807, %v2808
        %v2810 = vshll.u32 2131351028, %v2801
        %v2811 = vshrl.u32 2102212464, %v2802
        %v2812 = vor.u32 %v2810, %v2811
        %v2813 = vshll.u32 2102212464, %v2801
        %v2814 = vshrl.u32 920167782, %v2802
        %v2815 = vor.u32 %v2813, %v2814
        %v2816 = vshll.u32 920167782, %v2801
        %v2817 = vshrl.u32 1326507024, %v2802
        %v2818 = vor.u32 %v2816, %v2817
        %vm2819 = vcmp.lt.s32.totalorder %v2800, 1
        %vm2820 = vcmp.lt.s32.totalorder %v2800, 2
        %vm2821 = vcmp.lt.s32.totalorder %v2800, 3
        %vm2822 = vcmp.lt.s32.totalorder %v2800, 4
        %v2823 = vsel %vm2819, %v2803, %v2806
        %v2824 = vsel %vm2822, %v2812, 2102212464
        %v2825 = vsel %vm2821, %v2809, %v2824
        %v2826 = vsel %vm2820, %v2823, %v2825
        %v2827 = vsel %vm2819, %v2806, %v2809
        %v2828 = vsel %vm2822, %v2815, 920167782
        %v2829 = vsel %vm2821, %v2812, %v2828
        %v2830 = vsel %vm2820, %v2827, %v2829
        %v2831 = vsel %vm2819, %v2809, %v2812
        %v2832 = vsel %vm2822, %v2818, 1326507024
        %v2833 = vsel %vm2821, %v2815, %v2832
        %v2834 = vsel %vm2820, %v2831, %v2833
        %v2835 = vshll.u32 %v2795, 8
        %v2836 = vand.u32 %v2835, 65535
        %v2837 = vshrl.u32 %v2835, 16
        %v2838 = vand.u32 %v2834, 65535
        %v2839 = vshrl.u32 %v2834, 16
        %v2840 = vmul.u32 %v2836, %v2838
        %v2841 = vmul.u32 %v2836, %v2839
        %v2842 = vmul.u32 %v2837, %v2838
        %v2843 = vmul.u32 %v2837, %v2839
        %v2844 = vshll.u32 %v2841, 16
        %v2845 = vshrl.u32 %v2841, 16
        %v2846 = vshll.u32 %v2842, 16
        %v2847 = vshrl.u32 %v2842, 16
        %vm2848 = vc.u32 %v2840, %v2844
        %v2849 = vsel %vm2848, 1, 0
        %v2850 = vadd.s32 %v2840, %v2844
        %v2851 = vadd.s32 %v2843, %v2849
        %vm2852 = vc.u32 %v2850, %v2846
        %v2853 = vsel %vm2852, 1, 0
        %v2854 = vadd.s32 %v2850, %v2846
        %v2855 = vadd.s32 %v2851, %v2853
        %v2856 = vadd.s32 %v2855, %v2845
        %v2857 = vadd.s32 %v2856, %v2847
        %v2858 = vand.u32 %v2835, 65535
        %v2859 = vshrl.u32 %v2835, 16
        %v2860 = vand.u32 %v2830, 65535
        %v2861 = vshrl.u32 %v2830, 16
        %v2862 = vmul.u32 %v2858, %v2860
        %v2863 = vmul.u32 %v2858, %v2861
        %v2864 = vmul.u32 %v2859, %v2860
        %v2865 = vmul.u32 %v2859, %v2861
        %v2866 = vshll.u32 %v2863, 16
        %v2867 = vshrl.u32 %v2863, 16
        %v2868 = vshll.u32 %v2864, 16
        %v2869 = vshrl.u32 %v2864, 16
        %vm2870 = vc.u32 %v2862, %v2866
        %v2871 = vsel %vm2870, 1, 0
        %v2872 = vadd.s32 %v2862, %v2866
        %v2873 = vadd.s32 %v2865, %v2871
        %vm2874 = vc.u32 %v2872, %v2868
        %v2875 = vsel %vm2874, 1, 0
        %v2876 = vadd.s32 %v2872, %v2868
        %v2877 = vadd.s32 %v2873, %v2875
        %v2878 = vadd.s32 %v2877, %v2867
        %v2879 = vadd.s32 %v2878, %v2869
        %v2880 = vmul.u32 %v2835, %v2826
        %v2881 = vadd.s32 %v2857, %v2876
        %vm2882 = vc.u32 %v2857, %v2876
        %v2883 = vadd.s32 %v2879, 1
        %v2884 = vsel %vm2882, %v2883, %v2879
        %v2885 = vadd.s32 %v2880, %v2884
        %v2886 = vadd.s32 %v2885, 536870912
        %v2887 = vshrl.u32 %v2886, 30
        %v2888 = vshll.u32 %v2887, 30
        %v2889 = vsub.s32 %v2885, %v2888
        %vm2890 = vcmp.lt.s32.totalorder %v2889, 0
        %v2891 = vsub.s32 0, %v2889
        %v2892 = vsel %vm2890, %v2891, %v2889
        %v2893 = vclz %v2892
        %v2894 = vsub.s32 %v2893, 2
        %vm2895 = vcmp.gt.s32.totalorder 0, %v2894
        %v2896 = vsel %vm2895, 0, %v2894
        %v2897 = vsub.s32 32, %v2896
        %v2898 = vshll.u32 %v2889, %v2896
        %v2899 = vshrl.u32 %v2881, %v2897
        %v2900 = vor.u32 %v2898, %v2899
        %v2901 = vsub.s32 4294967266, %v2896
        %v2902 = vadd.s32 %v2901, 127
        %v2903 = vshll.u32 %v2902, 23
        %v2904 = vor.u32 4788187, %v2903
        %v2905 = vand.u32 2147483647, %v2904
        %v2907 = vcvt.s32.f32 %v2900
        %v2908 = vmul.f32 %v2907, %v2905
        %v2909 = vxor.u32 %v2908, 2147483648
        %v2910 = vsel %vm2789, %v2909, %v2908
        %v2911 = vsub.s32 4, %v2887
        %v2912 = vsel %vm2789, %v2911, %v2887
        %v2913 = vsel %vm2788, %v1531, %v2910
        %v2914 = vsel %vm2788, 0, %v2912
        %v2915 = vmul.f32 %v2913, %v2913
        %v2916 = vmul.f32 %v2915, -0.001358992
        %v2917 = vadd.f32 %v2916, 0.041655596
        %v2918 = vmul.f32 %v2915, %v2917
        %v2919 = vadd.f32 %v2918, -0.4999988
        %v2920 = vmul.f32 %v2915, %v2919
        %v2921 = vadd.f32 1.0, %v2920
        %v2922 = vmul.f32 %v2913, %v2913
        %v2923 = vmul.f32 %v2922, -0.00019511016
        %v2924 = vadd.f32 %v2923, 0.008332121
        %v2925 = vmul.f32 %v2922, %v2924
        %v2926 = vadd.f32 %v2925, -0.16666654
        %v2927 = vmul.f32 %v2922, %v2926
        %v2928 = vadd.f32 %v2927, 1.0
        %v2929 = vmul.f32 %v2928, %v2913
        %vm2930 = vweird.f32 %v1531
        %v2931 = vand.u32 %v2914, 3
        %vm2932 = vcmp.lt.s32.totalorder %v2931, 2
        %vm2933 = vcmp.eq.s32.totalorder %v2931, 0
        %v2934 = vxor.u32 %v2929, 2147483648
        %v2935 = vsel %vm2933, %v2921, %v2934
        %vm2936 = vcmp.eq.s32.totalorder %v2931, 2
        %v2937 = vxor.u32 %v2921, 2147483648
        %v2938 = vsel %vm2936, %v2937, %v2929
        %v2939 = vsel %vm2932, %v2935, %v2938
        %v2940 = vsel %vm2930, nan, %v2939
        %v2941 = vand.u32 2147483647, %v1532
        %vm2942 = vcmp.le.f32.partialorder %v2941, 0.7853982
        %vm2943 = vcmp.lt.s32.totalorder %v1532, 0
        %v2944 = vand.u32 %v1532, 2139095040
        %v2945 = vshrl.u32 %v2944, 23
        %v2946 = vsub.s32 %v2945, 127
        %v2947 = vand.u32 2147483647, %v1532
        %v2948 = vand.u32 %v2947, 8388607
        %v2949 = vor.u32 %v2948, 8388608
        %v2950 = vsub.s32 0, %v2949
        %v2951 = vadd.s32 %v2946, 1
        %vm2952 = vcmp.gt.s32.totalorder %v2951, 0
        %v2953 = vsel %vm2952, %v2951, 0
        %v2954 = vshrl.u32 %v2953, 5
        %v2955 = vand.u32 %v2953, 31
        %v2956 = vsub.s32 32, %v2955
        %v2957 = vshrl.u32 683565275, %v2956
        %v2958 = vshll.u32 683565275, %v2955
        %v2959 = vshrl.u32 2475754826, %v2956
        %v2960 = vor.u32 %v2958, %v2959
        %v2961 = vshll.u32 2475754826, %v2955
        %v2962 = vshrl.u32 2131351028, %v2956
        %v2963 = vor.u32 %v2961, %v2962
        %v2964 = vshll.u32 2131351028, %v2955
        %v2965 = vshrl.u32 2102212464, %v2956
        %v2966 = vor.u32 %v2964, %v2965
        %v2967 = vshll.u32 2102212464, %v2955
        %v2968 = vshrl.u32 920167782, %v2956
        %v2969 = vor.u32 %v2967, %v2968
        %v2970 = vshll.u32 920167782, %v2955
        %v2971 = vshrl.u32 1326507024, %v2956
        %v2972 = vor.u32 %v2970, %v2971
        %vm2973 = vcmp.lt.s32.totalorder %v2954, 1
        %vm2974 = vcmp.lt.s32.totalorder %v2954, 2
        %vm2975 = vcmp.lt.s32.totalorder %v2954, 3
        %vm2976 = vcmp.lt.s32.totalorder %v2954, 4
        %v2977 = vsel %vm2973, %v2957, %v2960
        %v2978 = vsel %vm2976, %v2966, 2102212464
        %v2979 = vsel %vm2975, %v2963, %v2978
        %v2980 = vsel %vm2974, %v2977, %v2979
        %v2981 = vsel %vm2973, %v2960, %v2963
        %v2982 = vsel %vm2976, %v2969, 920167782
        %v2983 = vsel %vm2975, %v2966, %v2982
        %v2984 = vsel %vm2974, %v2981, %v2983
        %v2985 = vsel %vm2973, %v2963, %v2966
        %v2986 = vsel %vm2976, %v2972, 1326507024
        %v2987 = vsel %vm2975, %v2969, %v2986
        %v2988 = vsel %vm2974, %v2985, %v2987
        %v2989 = vshll.u32 %v2949, 8
        %v2990 = vand.u32 %v2989, 65535
        %v2991 = vshrl.u32 %v2989, 16
        %v2992 = vand.u32 %v2988, 65535
        %v2993 = vshrl.u32 %v2988, 16
        %v2994 = vmul.u32 %v2990, %v2992
        %v2995 = vmul.u32 %v2990, %v2993
        %v2996 = vmul.u32 %v2991, %v2992
        %v2997 = vmul.u32 %v2991, %v2993
        %v2998 = vshll.u32 %v2995, 16
        %v2999 = vshrl.u32 %v2995, 16
        %v3000 = vshll.u32 %v2996, 16
        %v3001 = vshrl.u32 %v2996, 16
        %vm3002 = vc.u32 %v2994, %v2998
        %v3003 = vsel %vm3002, 1, 0
        %v3004 = vadd.s32 %v2994, %v2998
        %v3005 = vadd.s32 %v2997, %v3003
        %vm3006 = vc.u32 %v3004, %v3000
        %v3007 = vsel %vm3006, 1, 0
        %v3008 = vadd.s32 %v3004, %v3000
        %v3009 = vadd.s32 %v3005, %v3007
        %v3010 = vadd.s32 %v3009, %v2999
        %v3011 = vadd.s32 %v3010, %v3001
        %v3012 = vand.u32 %v2989, 65535
        %v3013 = vshrl.u32 %v2989, 16
        %v3014 = vand.u32 %v2984, 65535
        %v3015 = vshrl.u32 %v2984, 16
        %v3016 = vmul.u32 %v3012, %v3014
        %v3017 = vmul.u32 %v3012, %v3015
        %v3018 = vmul.u32 %v3013, %v3014
        %v3019 = vmul.u32 %v3013, %v3015
        %v3020 = vshll.u32 %v3017, 16
        %v3021 = vshrl.u32 %v3017, 16
        %v3022 = vshll.u32 %v3018, 16
        %v3023 = vshrl.u32 %v3018, 16
        %vm3024 = vc.u32 %v3016, %v3020
        %v3025 = vsel %vm3024, 1, 0
        %v3026 = vadd.s32 %v3016, %v3020
        %v3027 = vadd.s32 %v3019, %v3025
        %vm3028 = vc.u32 %v3026, %v3022
        %v3029 = vsel %vm3028, 1, 0
        %v3030 = vadd.s32 %v3026, %v3022
        %v3031 = vadd.s32 %v3027, %v3029
        %v3032 = vadd.s32 %v3031, %v3021
        %v3033 = vadd.s32 %v3032, %v3023
        %v3034 = vmul.u32 %v2989, %v2980
        %v3035 = vadd.s32 %v3011, %v3030
        %vm3036 = vc.u32 %v3011, %v3030
        %v3037 = vadd.s32 %v3033, 1
        %v3038 = vsel %vm3036, %v3037, %v3033
        %v3039 = vadd.s32 %v3034, %v3038
        %v3040 = vadd.s32 %v3039, 536870912
        %v3041 = vshrl.u32 %v3040, 30
        %v3042 = vshll.u32 %v3041, 30
        %v3043 = vsub.s32 %v3039, %v3042
        %vm3044 = vcmp.lt.s32.totalorder %v3043, 0
        %v3045 = vsub.s32 0, %v3043
        %v3046 = vsel %vm3044, %v3045, %v3043
        %v3047 = vclz %v3046
        %v3048 = vsub.s32 %v3047, 2
        %vm3049 = vcmp.gt.s32.totalorder 0, %v3048
        %v3050 = vsel %vm3049, 0, %v3048
        %v3051 = vsub.s32 32, %v3050
        %v3052 = vshll.u32 %v3043, %v3050
        %v3053 = vshrl.u32 %v3035, %v3051
        %v3054 = vor.u32 %v3052, %v3053
        %v3055 = vsub.s32 4294967266, %v3050
        %v3056 = vadd.s32 %v3055, 127
        %v3057 = vshll.u32 %v3056, 23
        %v3058 = vor.u32 4788187, %v3057
        %v3059 = vand.u32 2147483647, %v3058
        %v3061 = vcvt.s32.f32 %v3054
        %v3062 = vmul.f32 %v3061, %v3059
        %v3063 = vxor.u32 %v3062, 2147483648
        %v3064 = vsel %vm2943, %v3063, %v3062
        %v3065 = vsub.s32 4, %v3041
        %v3066 = vsel %vm2943, %v3065, %v3041
        %v3067 = vsel %vm2942, %v1532, %v3064
        %v3068 = vsel %vm2942, 0, %v3066
        %v3069 = vmul.f32 %v3067, %v3067
        %v3070 = vmul.f32 %v3069, -0.001358992
        %v3071 = vadd.f32 %v3070, 0.041655596
        %v3072 = vmul.f32 %v3069, %v3071
        %v3073 = vadd.f32 %v3072, -0.4999988
        %v3074 = vmul.f32 %v3069, %v3073
        %v3075 = vadd.f32 1.0, %v3074
        %v3076 = vmul.f32 %v3067, %v3067
        %v3077 = vmul.f32 %v3076, -0.00019511016
        %v3078 = vadd.f32 %v3077, 0.008332121
        %v3079 = vmul.f32 %v3076, %v3078
        %v3080 = vadd.f32 %v3079, -0.16666654
        %v3081 = vmul.f32 %v3076, %v3080
        %v3082 = vadd.f32 %v3081, 1.0
        %v3083 = vmul.f32 %v3082, %v3067
        %vm3084 = vweird.f32 %v1532
        %v3085 = vand.u32 %v3068, 3
        %vm3086 = vcmp.lt.s32.totalorder %v3085, 2
        %vm3087 = vcmp.eq.s32.totalorder %v3085, 0
        %v3088 = vxor.u32 %v3083, 2147483648
        %v3089 = vsel %vm3087, %v3075, %v3088
        %vm3090 = vcmp.eq.s32.totalorder %v3085, 2
        %v3091 = vxor.u32 %v3075, 2147483648
        %v3092 = vsel %vm3090, %v3091, %v3083
        %v3093 = vsel %vm3086, %v3089, %v3092
        %v3094 = vsel %vm3084, nan, %v3093
        %v3095 = vand.u32 2147483647, %v1533
        %vm3096 = vcmp.le.f32.partialorder %v3095, 0.7853982
        %vm3097 = vcmp.lt.s32.totalorder %v1533, 0
        %v3098 = vand.u32 %v1533, 2139095040
        %v3099 = vshrl.u32 %v3098, 23
        %v3100 = vsub.s32 %v3099, 127
        %v3101 = vand.u32 2147483647, %v1533
        %v3102 = vand.u32 %v3101, 8388607
        %v3103 = vor.u32 %v3102, 8388608
        %v3104 = vsub.s32 0, %v3103
        %v3105 = vadd.s32 %v3100, 1
        %vm3106 = vcmp.gt.s32.totalorder %v3105, 0
        %v3107 = vsel %vm3106, %v3105, 0
        %v3108 = vshrl.u32 %v3107, 5
        %v3109 = vand.u32 %v3107, 31
        %v3110 = vsub.s32 32, %v3109
        %v3111 = vshrl.u32 683565275, %v3110
        %v3112 = vshll.u32 683565275, %v3109
        %v3113 = vshrl.u32 2475754826, %v3110
        %v3114 = vor.u32 %v3112, %v3113
        %v3115 = vshll.u32 2475754826, %v3109
        %v3116 = vshrl.u32 2131351028, %v3110
        %v3117 = vor.u32 %v3115, %v3116
        %v3118 = vshll.u32 2131351028, %v3109
        %v3119 = vshrl.u32 2102212464, %v3110
        %v3120 = vor.u32 %v3118, %v3119
        %v3121 = vshll.u32 2102212464, %v3109
        %v3122 = vshrl.u32 920167782, %v3110
        %v3123 = vor.u32 %v3121, %v3122
        %v3124 = vshll.u32 920167782, %v3109
        %v3125 = vshrl.u32 1326507024, %v3110
        %v3126 = vor.u32 %v3124, %v3125
        %vm3127 = vcmp.lt.s32.totalorder %v3108, 1
        %vm3128 = vcmp.lt.s32.totalorder %v3108, 2
        %vm3129 = vcmp.lt.s32.totalorder %v3108, 3
        %vm3130 = vcmp.lt.s32.totalorder %v3108, 4
        %v3131 = vsel %vm3127, %v3111, %v3114
        %v3132 = vsel %vm3130, %v3120, 2102212464
        %v3133 = vsel %vm3129, %v3117, %v3132
        %v3134 = vsel %vm3128, %v3131, %v3133
        %v3135 = vsel %vm3127, %v3114, %v3117
        %v3136 = vsel %vm3130, %v3123, 920167782
        %v3137 = vsel %vm3129, %v3120, %v3136
        %v3138 = vsel %vm3128, %v3135, %v3137
        %v3139 = vsel %vm3127, %v3117, %v3120
        %v3140 = vsel %vm3130, %v3126, 1326507024
        %v3141 = vsel %vm3129, %v3123, %v3140
        %v3142 = vsel %vm3128, %v3139, %v3141
        %v3143 = vshll.u32 %v3103, 8
        %v3144 = vand.u32 %v3143, 65535
        %v3145 = vshrl.u32 %v3143, 16
        %v3146 = vand.u32 %v3142, 65535
        %v3147 = vshrl.u32 %v3142, 16
        %v3148 = vmul.u32 %v3144, %v3146
        %v3149 = vmul.u32 %v3144, %v3147
        %v3150 = vmul.u32 %v3145, %v3146
        %v3151 = vmul.u32 %v3145, %v3147
        %v3152 = vshll.u32 %v3149, 16
        %v3153 = vshrl.u32 %v3149, 16
        %v3154 = vshll.u32 %v3150, 16
        %v3155 = vshrl.u32 %v3150, 16
        %vm3156 = vc.u32 %v3148, %v3152
        %v3157 = vsel %vm3156, 1, 0
        %v3158 = vadd.s32 %v3148, %v3152
        %v3159 = vadd.s32 %v3151, %v3157
        %vm3160 = vc.u32 %v3158, %v3154
        %v3161 = vsel %vm3160, 1, 0
        %v3162 = vadd.s32 %v3158, %v3154
        %v3163 = vadd.s32 %v3159, %v3161
        %v3164 = vadd.s32 %v3163, %v3153
        %v3165 = vadd.s32 %v3164, %v3155
        %v3166 = vand.u32 %v3143, 65535
        %v3167 = vshrl.u32 %v3143, 16
        %v3168 = vand.u32 %v3138, 65535
        %v3169 = vshrl.u32 %v3138, 16
        %v3170 = vmul.u32 %v3166, %v3168
        %v3171 = vmul.u32 %v3166, %v3169
        %v3172 = vmul.u32 %v3167, %v3168
        %v3173 = vmul.u32 %v3167, %v3169
        %v3174 = vshll.u32 %v3171, 16
        %v3175 = vshrl.u32 %v3171, 16
        %v3176 = vshll.u32 %v3172, 16
        %v3177 = vshrl.u32 %v3172, 16
        %vm3178 = vc.u32 %v3170, %v3174
        %v3179 = vsel %vm3178, 1, 0
        %v3180 = vadd.s32 %v3170, %v3174
        %v3181 = vadd.s32 %v3173, %v3179
        %vm3182 = vc.u32 %v3180, %v3176
        %v3183 = vsel %vm3182, 1, 0
        %v3184 = vadd.s32 %v3180, %v3176
        %v3185 = vadd.s32 %v3181, %v3183
        %v3186 = vadd.s32 %v3185, %v3175
        %v3187 = vadd.s32 %v3186, %v3177
        %v3188 = vmul.u32 %v3143, %v3134
        %v3189 = vadd.s32 %v3165, %v3184
        %vm3190 = vc.u32 %v3165, %v3184
        %v3191 = vadd.s32 %v3187, 1
        %v3192 = vsel %vm3190, %v3191, %v3187
        %v3193 = vadd.s32 %v3188, %v3192
        %v3194 = vadd.s32 %v3193, 536870912
        %v3195 = vshrl.u32 %v3194, 30
        %v3196 = vshll.u32 %v3195, 30
        %v3197 = vsub.s32 %v3193, %v3196
        %vm3198 = vcmp.lt.s32.totalorder %v3197, 0
        %v3199 = vsub.s32 0, %v3197
        %v3200 = vsel %vm3198, %v3199, %v3197
        %v3201 = vclz %v3200
        %v3202 = vsub.s32 %v3201, 2
        %vm3203 = vcmp.gt.s32.totalorder 0, %v3202
        %v3204 = vsel %vm3203, 0, %v3202
        %v3205 = vsub.s32 32, %v3204
        %v3206 = vshll.u32 %v3197, %v3204
        %v3207 = vshrl.u32 %v3189, %v3205
        %v3208 = vor.u32 %v3206, %v3207
        %v3209 = vsub.s32 4294967266, %v3204
        %v3210 = vadd.s32 %v3209, 127
        %v3211 = vshll.u32 %v3210, 23
        %v3212 = vor.u32 4788187, %v3211
        %v3213 = vand.u32 2147483647, %v3212
        %v3215 = vcvt.s32.f32 %v3208
        %v3216 = vmul.f32 %v3215, %v3213
        %v3217 = vxor.u32 %v3216, 2147483648
        %v3218 = vsel %vm3097, %v3217, %v3216
        %v3219 = vsub.s32 4, %v3195
        %v3220 = vsel %vm3097, %v3219, %v3195
        %v3221 = vsel %vm3096, %v1533, %v3218
        %v3222 = vsel %vm3096, 0, %v3220
        %v3223 = vmul.f32 %v3221, %v3221
        %v3224 = vmul.f32 %v3223, -0.001358992
        %v3225 = vadd.f32 %v3224, 0.041655596
        %v3226 = vmul.f32 %v3223, %v3225
        %v3227 = vadd.f32 %v3226, -0.4999988
        %v3228 = vmul.f32 %v3223, %v3227
        %v3229 = vadd.f32 1.0, %v3228
        %v3230 = vmul.f32 %v3221, %v3221
        %v3231 = vmul.f32 %v3230, -0.00019511016
        %v3232 = vadd.f32 %v3231, 0.008332121
        %v3233 = vmul.f32 %v3230, %v3232
        %v3234 = vadd.f32 %v3233, -0.16666654
        %v3235 = vmul.f32 %v3230, %v3234
        %v3236 = vadd.f32 %v3235, 1.0
        %v3237 = vmul.f32 %v3236, %v3221
        %vm3238 = vweird.f32 %v1533
        %v3239 = vand.u32 %v3222, 3
        %vm3240 = vcmp.lt.s32.totalorder %v3239, 2
        %vm3241 = vcmp.eq.s32.totalorder %v3239, 0
        %v3242 = vxor.u32 %v3237, 2147483648
        %v3243 = vsel %vm3241, %v3229, %v3242
        %vm3244 = vcmp.eq.s32.totalorder %v3239, 2
        %v3245 = vxor.u32 %v3229, 2147483648
        %v3246 = vsel %vm3244, %v3245, %v3237
        %v3247 = vsel %vm3240, %v3243, %v3246
        %v3248 = vsel %vm3238, nan, %v3247
        %v3249 = vand.u32 2147483647, %v1534
        %vm3250 = vcmp.le.f32.partialorder %v3249, 0.7853982
        %vm3251 = vcmp.lt.s32.totalorder %v1534, 0
        %v3252 = vand.u32 %v1534, 2139095040
        %v3253 = vshrl.u32 %v3252, 23
        %v3254 = vsub.s32 %v3253, 127
        %v3255 = vand.u32 2147483647, %v1534
        %v3256 = vand.u32 %v3255, 8388607
        %v3257 = vor.u32 %v3256, 8388608
        %v3258 = vsub.s32 0, %v3257
        %v3259 = vadd.s32 %v3254, 1
        %vm3260 = vcmp.gt.s32.totalorder %v3259, 0
        %v3261 = vsel %vm3260, %v3259, 0
        %v3262 = vshrl.u32 %v3261, 5
        %v3263 = vand.u32 %v3261, 31
        %v3264 = vsub.s32 32, %v3263
        %v3265 = vshrl.u32 683565275, %v3264
        %v3266 = vshll.u32 683565275, %v3263
        %v3267 = vshrl.u32 2475754826, %v3264
        %v3268 = vor.u32 %v3266, %v3267
        %v3269 = vshll.u32 2475754826, %v3263
        %v3270 = vshrl.u32 2131351028, %v3264
        %v3271 = vor.u32 %v3269, %v3270
        %v3272 = vshll.u32 2131351028, %v3263
        %v3273 = vshrl.u32 2102212464, %v3264
        %v3274 = vor.u32 %v3272, %v3273
        %v3275 = vshll.u32 2102212464, %v3263
        %v3276 = vshrl.u32 920167782, %v3264
        %v3277 = vor.u32 %v3275, %v3276
        %v3278 = vshll.u32 920167782, %v3263
        %v3279 = vshrl.u32 1326507024, %v3264
        %v3280 = vor.u32 %v3278, %v3279
        %vm3281 = vcmp.lt.s32.totalorder %v3262, 1
        %vm3282 = vcmp.lt.s32.totalorder %v3262, 2
        %vm3283 = vcmp.lt.s32.totalorder %v3262, 3
        %vm3284 = vcmp.lt.s32.totalorder %v3262, 4
        %v3285 = vsel %vm3281, %v3265, %v3268
        %v3286 = vsel %vm3284, %v3274, 2102212464
        %v3287 = vsel %vm3283, %v3271, %v3286
        %v3288 = vsel %vm3282, %v3285, %v3287
        %v3289 = vsel %vm3281, %v3268, %v3271
        %v3290 = vsel %vm3284, %v3277, 920167782
        %v3291 = vsel %vm3283, %v3274, %v3290
        %v3292 = vsel %vm3282, %v3289, %v3291
        %v3293 = vsel %vm3281, %v3271, %v3274
        %v3294 = vsel %vm3284, %v3280, 1326507024
        %v3295 = vsel %vm3283, %v3277, %v3294
        %v3296 = vsel %vm3282, %v3293, %v3295
        %v3297 = vshll.u32 %v3257, 8
        %v3298 = vand.u32 %v3297, 65535
        %v3299 = vshrl.u32 %v3297, 16
        %v3300 = vand.u32 %v3296, 65535
        %v3301 = vshrl.u32 %v3296, 16
        %v3302 = vmul.u32 %v3298, %v3300
        %v3303 = vmul.u32 %v3298, %v3301
        %v3304 = vmul.u32 %v3299, %v3300
        %v3305 = vmul.u32 %v3299, %v3301
        %v3306 = vshll.u32 %v3303, 16
        %v3307 = vshrl.u32 %v3303, 16
        %v3308 = vshll.u32 %v3304, 16
        %v3309 = vshrl.u32 %v3304, 16
        %vm3310 = vc.u32 %v3302, %v3306
        %v3311 = vsel %vm3310, 1, 0
        %v3312 = vadd.s32 %v3302, %v3306
        %v3313 = vadd.s32 %v3305, %v3311
        %vm3314 = vc.u32 %v3312, %v3308
        %v3315 = vsel %vm3314, 1, 0
        %v3316 = vadd.s32 %v3312, %v3308
        %v3317 = vadd.s32 %v3313, %v3315
        %v3318 = vadd.s32 %v3317, %v3307
        %v3319 = vadd.s32 %v3318, %v3309
        %v3320 = vand.u32 %v3297, 65535
        %v3321 = vshrl.u32 %v3297, 16
        %v3322 = vand.u32 %v3292, 65535
        %v3323 = vshrl.u32 %v3292, 16
        %v3324 = vmul.u32 %v3320, %v3322
        %v3325 = vmul.u32 %v3320, %v3323
        %v3326 = vmul.u32 %v3321, %v3322
        %v3327 = vmul.u32 %v3321, %v3323
        %v3328 = vshll.u32 %v3325, 16
        %v3329 = vshrl.u32 %v3325, 16
        %v3330 = vshll.u32 %v3326, 16
        %v3331 = vshrl.u32 %v3326, 16
        %vm3332 = vc.u32 %v3324, %v3328
        %v3333 = vsel %vm3332, 1, 0
        %v3334 = vadd.s32 %v3324, %v3328
        %v3335 = vadd.s32 %v3327, %v3333
        %vm3336 = vc.u32 %v3334, %v3330
        %v3337 = vsel %vm3336, 1, 0
        %v3338 = vadd.s32 %v3334, %v3330
        %v3339 = vadd.s32 %v3335, %v3337
        %v3340 = vadd.s32 %v3339, %v3329
        %v3341 = vadd.s32 %v3340, %v3331
        %v3342 = vmul.u32 %v3297, %v3288
        %v3343 = vadd.s32 %v3319, %v3338
        %vm3344 = vc.u32 %v3319, %v3338
        %v3345 = vadd.s32 %v3341, 1
        %v3346 = vsel %vm3344, %v3345, %v3341
        %v3347 = vadd.s32 %v3342, %v3346
        %v3348 = vadd.s32 %v3347, 536870912
        %v3349 = vshrl.u32 %v3348, 30
        %v3350 = vshll.u32 %v3349, 30
        %v3351 = vsub.s32 %v3347, %v3350
        %vm3352 = vcmp.lt.s32.totalorder %v3351, 0
        %v3353 = vsub.s32 0, %v3351
        %v3354 = vsel %vm3352, %v3353, %v3351
        %v3355 = vclz %v3354
        %v3356 = vsub.s32 %v3355, 2
        %vm3357 = vcmp.gt.s32.totalorder 0, %v3356
        %v3358 = vsel %vm3357, 0, %v3356
        %v3359 = vsub.s32 32, %v3358
        %v3360 = vshll.u32 %v3351, %v3358
        %v3361 = vshrl.u32 %v3343, %v3359
        %v3362 = vor.u32 %v3360, %v3361
        %v3363 = vsub.s32 4294967266, %v3358
        %v3364 = vadd.s32 %v3363, 127
        %v3365 = vshll.u32 %v3364, 23
        %v3366 = vor.u32 4788187, %v3365
        %v3367 = vand.u32 2147483647, %v3366
        %v3369 = vcvt.s32.f32 %v3362
        %v3370 = vmul.f32 %v3369, %v3367
        %v3371 = vxor.u32 %v3370, 2147483648
        %v3372 = vsel %vm3251, %v3371, %v3370
        %v3373 = vsub.s32 4, %v3349
        %v3374 = vsel %vm3251, %v3373, %v3349
        %v3375 = vsel %vm3250, %v1534, %v3372
        %v3376 = vsel %vm3250, 0, %v3374
        %v3377 = vmul.f32 %v3375, %v3375
        %v3378 = vmul.f32 %v3377, -0.001358992
        %v3379 = vadd.f32 %v3378, 0.041655596
        %v3380 = vmul.f32 %v3377, %v3379
        %v3381 = vadd.f32 %v3380, -0.4999988
        %v3382 = vmul.f32 %v3377, %v3381
        %v3383 = vadd.f32 1.0, %v3382
        %v3384 = vmul.f32 %v3375, %v3375
        %v3385 = vmul.f32 %v3384, -0.00019511016
        %v3386 = vadd.f32 %v3385, 0.008332121
        %v3387 = vmul.f32 %v3384, %v3386
        %v3388 = vadd.f32 %v3387, -0.16666654
        %v3389 = vmul.f32 %v3384, %v3388
        %v3390 = vadd.f32 %v3389, 1.0
        %v3391 = vmul.f32 %v3390, %v3375
        %vm3392 = vweird.f32 %v1534
        %v3393 = vand.u32 %v3376, 3
        %vm3394 = vcmp.lt.s32.totalorder %v3393, 2
        %vm3395 = vcmp.eq.s32.totalorder %v3393, 0
        %v3396 = vxor.u32 %v3391, 2147483648
        %v3397 = vsel %vm3395, %v3383, %v3396
        %vm3398 = vcmp.eq.s32.totalorder %v3393, 2
        %v3399 = vxor.u32 %v3383, 2147483648
        %v3400 = vsel %vm3398, %v3399, %v3391
        %v3401 = vsel %vm3394, %v3397, %v3400
        %v3402 = vsel %vm3392, nan, %v3401
        %v3403 = vand.u32 2147483647, %v1535
        %vm3404 = vcmp.le.f32.partialorder %v3403, 0.7853982
        %vm3405 = vcmp.lt.s32.totalorder %v1535, 0
        %v3406 = vand.u32 %v1535, 2139095040
        %v3407 = vshrl.u32 %v3406, 23
        %v3408 = vsub.s32 %v3407, 127
        %v3409 = vand.u32 2147483647, %v1535
        %v3410 = vand.u32 %v3409, 8388607
        %v3411 = vor.u32 %v3410, 8388608
        %v3412 = vsub.s32 0, %v3411
        %v3413 = vadd.s32 %v3408, 1
        %vm3414 = vcmp.gt.s32.totalorder %v3413, 0
        %v3415 = vsel %vm3414, %v3413, 0
        %v3416 = vshrl.u32 %v3415, 5
        %v3417 = vand.u32 %v3415, 31
        %v3418 = vsub.s32 32, %v3417
        %v3419 = vshrl.u32 683565275, %v3418
        %v3420 = vshll.u32 683565275, %v3417
        %v3421 = vshrl.u32 2475754826, %v3418
        %v3422 = vor.u32 %v3420, %v3421
        %v3423 = vshll.u32 2475754826, %v3417
        %v3424 = vshrl.u32 2131351028, %v3418
        %v3425 = vor.u32 %v3423, %v3424
        %v3426 = vshll.u32 2131351028, %v3417
        %v3427 = vshrl.u32 2102212464, %v3418
        %v3428 = vor.u32 %v3426, %v3427
        %v3429 = vshll.u32 2102212464, %v3417
        %v3430 = vshrl.u32 920167782, %v3418
        %v3431 = vor.u32 %v3429, %v3430
        %v3432 = vshll.u32 920167782, %v3417
        %v3433 = vshrl.u32 1326507024, %v3418
        %v3434 = vor.u32 %v3432, %v3433
        %vm3435 = vcmp.lt.s32.totalorder %v3416, 1
        %vm3436 = vcmp.lt.s32.totalorder %v3416, 2
        %vm3437 = vcmp.lt.s32.totalorder %v3416, 3
        %vm3438 = vcmp.lt.s32.totalorder %v3416, 4
        %v3439 = vsel %vm3435, %v3419, %v3422
        %v3440 = vsel %vm3438, %v3428, 2102212464
        %v3441 = vsel %vm3437, %v3425, %v3440
        %v3442 = vsel %vm3436, %v3439, %v3441
        %v3443 = vsel %vm3435, %v3422, %v3425
        %v3444 = vsel %vm3438, %v3431, 920167782
        %v3445 = vsel %vm3437, %v3428, %v3444
        %v3446 = vsel %vm3436, %v3443, %v3445
        %v3447 = vsel %vm3435, %v3425, %v3428
        %v3448 = vsel %vm3438, %v3434, 1326507024
        %v3449 = vsel %vm3437, %v3431, %v3448
        %v3450 = vsel %vm3436, %v3447, %v3449
        %v3451 = vshll.u32 %v3411, 8
        %v3452 = vand.u32 %v3451, 65535
        %v3453 = vshrl.u32 %v3451, 16
        %v3454 = vand.u32 %v3450, 65535
        %v3455 = vshrl.u32 %v3450, 16
        %v3456 = vmul.u32 %v3452, %v3454
        %v3457 = vmul.u32 %v3452, %v3455
        %v3458 = vmul.u32 %v3453, %v3454
        %v3459 = vmul.u32 %v3453, %v3455
        %v3460 = vshll.u32 %v3457, 16
        %v3461 = vshrl.u32 %v3457, 16
        %v3462 = vshll.u32 %v3458, 16
        %v3463 = vshrl.u32 %v3458, 16
        %vm3464 = vc.u32 %v3456, %v3460
        %v3465 = vsel %vm3464, 1, 0
        %v3466 = vadd.s32 %v3456, %v3460
        %v3467 = vadd.s32 %v3459, %v3465
        %vm3468 = vc.u32 %v3466, %v3462
        %v3469 = vsel %vm3468, 1, 0
        %v3470 = vadd.s32 %v3466, %v3462
        %v3471 = vadd.s32 %v3467, %v3469
        %v3472 = vadd.s32 %v3471, %v3461
        %v3473 = vadd.s32 %v3472, %v3463
        %v3474 = vand.u32 %v3451, 65535
        %v3475 = vshrl.u32 %v3451, 16
        %v3476 = vand.u32 %v3446, 65535
        %v3477 = vshrl.u32 %v3446, 16
        %v3478 = vmul.u32 %v3474, %v3476
        %v3479 = vmul.u32 %v3474, %v3477
        %v3480 = vmul.u32 %v3475, %v3476
        %v3481 = vmul.u32 %v3475, %v3477
        %v3482 = vshll.u32 %v3479, 16
        %v3483 = vshrl.u32 %v3479, 16
        %v3484 = vshll.u32 %v3480, 16
        %v3485 = vshrl.u32 %v3480, 16
        %vm3486 = vc.u32 %v3478, %v3482
        %v3487 = vsel %vm3486, 1, 0
        %v3488 = vadd.s32 %v3478, %v3482
        %v3489 = vadd.s32 %v3481, %v3487
        %vm3490 = vc.u32 %v3488, %v3484
        %v3491 = vsel %vm3490, 1, 0
        %v3492 = vadd.s32 %v3488, %v3484
        %v3493 = vadd.s32 %v3489, %v3491
        %v3494 = vadd.s32 %v3493, %v3483
        %v3495 = vadd.s32 %v3494, %v3485
        %v3496 = vmul.u32 %v3451, %v3442
        %v3497 = vadd.s32 %v3473, %v3492
        %vm3498 = vc.u32 %v3473, %v3492
        %v3499 = vadd.s32 %v3495, 1
        %v3500 = vsel %vm3498, %v3499, %v3495
        %v3501 = vadd.s32 %v3496, %v3500
        %v3502 = vadd.s32 %v3501, 536870912
        %v3503 = vshrl.u32 %v3502, 30
        %v3504 = vshll.u32 %v3503, 30
        %v3505 = vsub.s32 %v3501, %v3504
        %vm3506 = vcmp.lt.s32.totalorder %v3505, 0
        %v3507 = vsub.s32 0, %v3505
        %v3508 = vsel %vm3506, %v3507, %v3505
        %v3509 = vclz %v3508
        %v3510 = vsub.s32 %v3509, 2
        %vm3511 = vcmp.gt.s32.totalorder 0, %v3510
        %v3512 = vsel %vm3511, 0, %v3510
        %v3513 = vsub.s32 32, %v3512
        %v3514 = vshll.u32 %v3505, %v3512
        %v3515 = vshrl.u32 %v3497, %v3513
        %v3516 = vor.u32 %v3514, %v3515
        %v3517 = vsub.s32 4294967266, %v3512
        %v3518 = vadd.s32 %v3517, 127
        %v3519 = vshll.u32 %v3518, 23
        %v3520 = vor.u32 4788187, %v3519
        %v3521 = vand.u32 2147483647, %v3520
        %v3523 = vcvt.s32.f32 %v3516
        %v3524 = vmul.f32 %v3523, %v3521
        %v3525 = vxor.u32 %v3524, 2147483648
        %v3526 = vsel %vm3405, %v3525, %v3524
        %v3527 = vsub.s32 4, %v3503
        %v3528 = vsel %vm3405, %v3527, %v3503
        %v3529 = vsel %vm3404, %v1535, %v3526
        %v3530 = vsel %vm3404, 0, %v3528
        %v3531 = vmul.f32 %v3529, %v3529
        %v3532 = vmul.f32 %v3531, -0.001358992
        %v3533 = vadd.f32 %v3532, 0.041655596
        %v3534 = vmul.f32 %v3531, %v3533
        %v3535 = vadd.f32 %v3534, -0.4999988
        %v3536 = vmul.f32 %v3531, %v3535
        %v3537 = vadd.f32 1.0, %v3536
        %v3538 = vmul.f32 %v3529, %v3529
        %v3539 = vmul.f32 %v3538, -0.00019511016
        %v3540 = vadd.f32 %v3539, 0.008332121
        %v3541 = vmul.f32 %v3538, %v3540
        %v3542 = vadd.f32 %v3541, -0.16666654
        %v3543 = vmul.f32 %v3538, %v3542
        %v3544 = vadd.f32 %v3543, 1.0
        %v3545 = vmul.f32 %v3544, %v3529
        %vm3546 = vweird.f32 %v1535
        %v3547 = vand.u32 %v3530, 3
        %vm3548 = vcmp.lt.s32.totalorder %v3547, 2
        %vm3549 = vcmp.eq.s32.totalorder %v3547, 0
        %v3550 = vxor.u32 %v3545, 2147483648
        %v3551 = vsel %vm3549, %v3537, %v3550
        %vm3552 = vcmp.eq.s32.totalorder %v3547, 2
        %v3553 = vxor.u32 %v3537, 2147483648
        %v3554 = vsel %vm3552, %v3553, %v3545
        %v3555 = vsel %vm3548, %v3551, %v3554
        %v3556 = vsel %vm3546, nan, %v3555
        %v3557 = vand.u32 2147483647, %v1536
        %vm3558 = vcmp.le.f32.partialorder %v3557, 0.7853982
        %vm3559 = vcmp.lt.s32.totalorder %v1536, 0
        %v3560 = vand.u32 %v1536, 2139095040
        %v3561 = vshrl.u32 %v3560, 23
        %v3562 = vsub.s32 %v3561, 127
        %v3563 = vand.u32 2147483647, %v1536
        %v3564 = vand.u32 %v3563, 8388607
        %v3565 = vor.u32 %v3564, 8388608
        %v3566 = vsub.s32 0, %v3565
        %v3567 = vadd.s32 %v3562, 1
        %vm3568 = vcmp.gt.s32.totalorder %v3567, 0
        %v3569 = vsel %vm3568, %v3567, 0
        %v3570 = vshrl.u32 %v3569, 5
        %v3571 = vand.u32 %v3569, 31
        %v3572 = vsub.s32 32, %v3571
        %v3573 = vshrl.u32 683565275, %v3572
        %v3574 = vshll.u32 683565275, %v3571
        %v3575 = vshrl.u32 2475754826, %v3572
        %v3576 = vor.u32 %v3574, %v3575
        %v3577 = vshll.u32 2475754826, %v3571
        %v3578 = vshrl.u32 2131351028, %v3572
        %v3579 = vor.u32 %v3577, %v3578
        %v3580 = vshll.u32 2131351028, %v3571
        %v3581 = vshrl.u32 2102212464, %v3572
        %v3582 = vor.u32 %v3580, %v3581
        %v3583 = vshll.u32 2102212464, %v3571
        %v3584 = vshrl.u32 920167782, %v3572
        %v3585 = vor.u32 %v3583, %v3584
        %v3586 = vshll.u32 920167782, %v3571
        %v3587 = vshrl.u32 1326507024, %v3572
        %v3588 = vor.u32 %v3586, %v3587
        %vm3589 = vcmp.lt.s32.totalorder %v3570, 1
        %vm3590 = vcmp.lt.s32.totalorder %v3570, 2
        %vm3591 = vcmp.lt.s32.totalorder %v3570, 3
        %vm3592 = vcmp.lt.s32.totalorder %v3570, 4
        %v3593 = vsel %vm3589, %v3573, %v3576
        %v3594 = vsel %vm3592, %v3582, 2102212464
        %v3595 = vsel %vm3591, %v3579, %v3594
        %v3596 = vsel %vm3590, %v3593, %v3595
        %v3597 = vsel %vm3589, %v3576, %v3579
        %v3598 = vsel %vm3592, %v3585, 920167782
        %v3599 = vsel %vm3591, %v3582, %v3598
        %v3600 = vsel %vm3590, %v3597, %v3599
        %v3601 = vsel %vm3589, %v3579, %v3582
        %v3602 = vsel %vm3592, %v3588, 1326507024
        %v3603 = vsel %vm3591, %v3585, %v3602
        %v3604 = vsel %vm3590, %v3601, %v3603
        %v3605 = vshll.u32 %v3565, 8
        %v3606 = vand.u32 %v3605, 65535
        %v3607 = vshrl.u32 %v3605, 16
        %v3608 = vand.u32 %v3604, 65535
        %v3609 = vshrl.u32 %v3604, 16
        %v3610 = vmul.u32 %v3606, %v3608
        %v3611 = vmul.u32 %v3606, %v3609
        %v3612 = vmul.u32 %v3607, %v3608
        %v3613 = vmul.u32 %v3607, %v3609
        %v3614 = vshll.u32 %v3611, 16
        %v3615 = vshrl.u32 %v3611, 16
        %v3616 = vshll.u32 %v3612, 16
        %v3617 = vshrl.u32 %v3612, 16
        %vm3618 = vc.u32 %v3610, %v3614
        %v3619 = vsel %vm3618, 1, 0
        %v3620 = vadd.s32 %v3610, %v3614
        %v3621 = vadd.s32 %v3613, %v3619
        %vm3622 = vc.u32 %v3620, %v3616
        %v3623 = vsel %vm3622, 1, 0
        %v3624 = vadd.s32 %v3620, %v3616
        %v3625 = vadd.s32 %v3621, %v3623
        %v3626 = vadd.s32 %v3625, %v3615
        %v3627 = vadd.s32 %v3626, %v3617
        %v3628 = vand.u32 %v3605, 65535
        %v3629 = vshrl.u32 %v3605, 16
        %v3630 = vand.u32 %v3600, 65535
        %v3631 = vshrl.u32 %v3600, 16
        %v3632 = vmul.u32 %v3628, %v3630
        %v3633 = vmul.u32 %v3628, %v3631
        %v3634 = vmul.u32 %v3629, %v3630
        %v3635 = vmul.u32 %v3629, %v3631
        %v3636 = vshll.u32 %v3633, 16
        %v3637 = vshrl.u32 %v3633, 16
        %v3638 = vshll.u32 %v3634, 16
        %v3639 = vshrl.u32 %v3634, 16
        %vm3640 = vc.u32 %v3632, %v3636
        %v3641 = vsel %vm3640, 1, 0
        %v3642 = vadd.s32 %v3632, %v3636
        %v3643 = vadd.s32 %v3635, %v3641
        %vm3644 = vc.u32 %v3642, %v3638
        %v3645 = vsel %vm3644, 1, 0
        %v3646 = vadd.s32 %v3642, %v3638
        %v3647 = vadd.s32 %v3643, %v3645
        %v3648 = vadd.s32 %v3647, %v3637
        %v3649 = vadd.s32 %v3648, %v3639
        %v3650 = vmul.u32 %v3605, %v3596
        %v3651 = vadd.s32 %v3627, %v3646
        %vm3652 = vc.u32 %v3627, %v3646
        %v3653 = vadd.s32 %v3649, 1
        %v3654 = vsel %vm3652, %v3653, %v3649
        %v3655 = vadd.s32 %v3650, %v3654
        %v3656 = vadd.s32 %v3655, 536870912
        %v3657 = vshrl.u32 %v3656, 30
        %v3658 = vshll.u32 %v3657, 30
        %v3659 = vsub.s32 %v3655, %v3658
        %vm3660 = vcmp.lt.s32.totalorder %v3659, 0
        %v3661 = vsub.s32 0, %v3659
        %v3662 = vsel %vm3660, %v3661, %v3659
        %v3663 = vclz %v3662
        %v3664 = vsub.s32 %v3663, 2
        %vm3665 = vcmp.gt.s32.totalorder 0, %v3664
        %v3666 = vsel %vm3665, 0, %v3664
        %v3667 = vsub.s32 32, %v3666
        %v3668 = vshll.u32 %v3659, %v3666
        %v3669 = vshrl.u32 %v3651, %v3667
        %v3670 = vor.u32 %v3668, %v3669
        %v3671 = vsub.s32 4294967266, %v3666
        %v3672 = vadd.s32 %v3671, 127
        %v3673 = vshll.u32 %v3672, 23
        %v3674 = vor.u32 4788187, %v3673
        %v3675 = vand.u32 2147483647, %v3674
        %v3677 = vcvt.s32.f32 %v3670
        %v3678 = vmul.f32 %v3677, %v3675
        %v3679 = vxor.u32 %v3678, 2147483648
        %v3680 = vsel %vm3559, %v3679, %v3678
        %v3681 = vsub.s32 4, %v3657
        %v3682 = vsel %vm3559, %v3681, %v3657
        %v3683 = vsel %vm3558, %v1536, %v3680
        %v3684 = vsel %vm3558, 0, %v3682
        %v3685 = vmul.f32 %v3683, %v3683
        %v3686 = vmul.f32 %v3685, -0.001358992
        %v3687 = vadd.f32 %v3686, 0.041655596
        %v3688 = vmul.f32 %v3685, %v3687
        %v3689 = vadd.f32 %v3688, -0.4999988
        %v3690 = vmul.f32 %v3685, %v3689
        %v3691 = vadd.f32 1.0, %v3690
        %v3692 = vmul.f32 %v3683, %v3683
        %v3693 = vmul.f32 %v3692, -0.00019511016
        %v3694 = vadd.f32 %v3693, 0.008332121
        %v3695 = vmul.f32 %v3692, %v3694
        %v3696 = vadd.f32 %v3695, -0.16666654
        %v3697 = vmul.f32 %v3692, %v3696
        %v3698 = vadd.f32 %v3697, 1.0
        %v3699 = vmul.f32 %v3698, %v3683
        %vm3700 = vweird.f32 %v1536
        %v3701 = vand.u32 %v3684, 3
        %vm3702 = vcmp.lt.s32.totalorder %v3701, 2
        %vm3703 = vcmp.eq.s32.totalorder %v3701, 0
        %v3704 = vxor.u32 %v3699, 2147483648
        %v3705 = vsel %vm3703, %v3691, %v3704
        %vm3706 = vcmp.eq.s32.totalorder %v3701, 2
        %v3707 = vxor.u32 %v3691, 2147483648
        %v3708 = vsel %vm3706, %v3707, %v3699
        %v3709 = vsel %vm3702, %v3705, %v3708
        %v3710 = vsel %vm3700, nan, %v3709
        %v3711 = vand.u32 2147483647, %v1537
        %vm3712 = vcmp.le.f32.partialorder %v3711, 0.7853982
        %vm3713 = vcmp.lt.s32.totalorder %v1537, 0
        %v3714 = vand.u32 %v1537, 2139095040
        %v3715 = vshrl.u32 %v3714, 23
        %v3716 = vsub.s32 %v3715, 127
        %v3717 = vand.u32 2147483647, %v1537
        %v3718 = vand.u32 %v3717, 8388607
        %v3719 = vor.u32 %v3718, 8388608
        %v3720 = vsub.s32 0, %v3719
        %v3721 = vadd.s32 %v3716, 1
        %vm3722 = vcmp.gt.s32.totalorder %v3721, 0
        %v3723 = vsel %vm3722, %v3721, 0
        %v3724 = vshrl.u32 %v3723, 5
        %v3725 = vand.u32 %v3723, 31
        %v3726 = vsub.s32 32, %v3725
        %v3727 = vshrl.u32 683565275, %v3726
        %v3728 = vshll.u32 683565275, %v3725
        %v3729 = vshrl.u32 2475754826, %v3726
        %v3730 = vor.u32 %v3728, %v3729
        %v3731 = vshll.u32 2475754826, %v3725
        %v3732 = vshrl.u32 2131351028, %v3726
        %v3733 = vor.u32 %v3731, %v3732
        %v3734 = vshll.u32 2131351028, %v3725
        %v3735 = vshrl.u32 2102212464, %v3726
        %v3736 = vor.u32 %v3734, %v3735
        %v3737 = vshll.u32 2102212464, %v3725
        %v3738 = vshrl.u32 920167782, %v3726
        %v3739 = vor.u32 %v3737, %v3738
        %v3740 = vshll.u32 920167782, %v3725
        %v3741 = vshrl.u32 1326507024, %v3726
        %v3742 = vor.u32 %v3740, %v3741
        %vm3743 = vcmp.lt.s32.totalorder %v3724, 1
        %vm3744 = vcmp.lt.s32.totalorder %v3724, 2
        %vm3745 = vcmp.lt.s32.totalorder %v3724, 3
        %vm3746 = vcmp.lt.s32.totalorder %v3724, 4
        %v3747 = vsel %vm3743, %v3727, %v3730
        %v3748 = vsel %vm3746, %v3736, 2102212464
        %v3749 = vsel %vm3745, %v3733, %v3748
        %v3750 = vsel %vm3744, %v3747, %v3749
        %v3751 = vsel %vm3743, %v3730, %v3733
        %v3752 = vsel %vm3746, %v3739, 920167782
        %v3753 = vsel %vm3745, %v3736, %v3752
        %v3754 = vsel %vm3744, %v3751, %v3753
        %v3755 = vsel %vm3743, %v3733, %v3736
        %v3756 = vsel %vm3746, %v3742, 1326507024
        %v3757 = vsel %vm3745, %v3739, %v3756
        %v3758 = vsel %vm3744, %v3755, %v3757
        %v3759 = vshll.u32 %v3719, 8
        %v3760 = vand.u32 %v3759, 65535
        %v3761 = vshrl.u32 %v3759, 16
        %v3762 = vand.u32 %v3758, 65535
        %v3763 = vshrl.u32 %v3758, 16
        %v3764 = vmul.u32 %v3760, %v3762
        %v3765 = vmul.u32 %v3760, %v3763
        %v3766 = vmul.u32 %v3761, %v3762
        %v3767 = vmul.u32 %v3761, %v3763
        %v3768 = vshll.u32 %v3765, 16
        %v3769 = vshrl.u32 %v3765, 16
        %v3770 = vshll.u32 %v3766, 16
        %v3771 = vshrl.u32 %v3766, 16
        %vm3772 = vc.u32 %v3764, %v3768
        %v3773 = vsel %vm3772, 1, 0
        %v3774 = vadd.s32 %v3764, %v3768
        %v3775 = vadd.s32 %v3767, %v3773
        %vm3776 = vc.u32 %v3774, %v3770
        %v3777 = vsel %vm3776, 1, 0
        %v3778 = vadd.s32 %v3774, %v3770
        %v3779 = vadd.s32 %v3775, %v3777
        %v3780 = vadd.s32 %v3779, %v3769
        %v3781 = vadd.s32 %v3780, %v3771
        %v3782 = vand.u32 %v3759, 65535
        %v3783 = vshrl.u32 %v3759, 16
        %v3784 = vand.u32 %v3754, 65535
        %v3785 = vshrl.u32 %v3754, 16
        %v3786 = vmul.u32 %v3782, %v3784
        %v3787 = vmul.u32 %v3782, %v3785
        %v3788 = vmul.u32 %v3783, %v3784
        %v3789 = vmul.u32 %v3783, %v3785
        %v3790 = vshll.u32 %v3787, 16
        %v3791 = vshrl.u32 %v3787, 16
        %v3792 = vshll.u32 %v3788, 16
        %v3793 = vshrl.u32 %v3788, 16
        %vm3794 = vc.u32 %v3786, %v3790
        %v3795 = vsel %vm3794, 1, 0
        %v3796 = vadd.s32 %v3786, %v3790
        %v3797 = vadd.s32 %v3789, %v3795
        %vm3798 = vc.u32 %v3796, %v3792
        %v3799 = vsel %vm3798, 1, 0
        %v3800 = vadd.s32 %v3796, %v3792
        %v3801 = vadd.s32 %v3797, %v3799
        %v3802 = vadd.s32 %v3801, %v3791
        %v3803 = vadd.s32 %v3802, %v3793
        %v3804 = vmul.u32 %v3759, %v3750
        %v3805 = vadd.s32 %v3781, %v3800
        %vm3806 = vc.u32 %v3781, %v3800
        %v3807 = vadd.s32 %v3803, 1
        %v3808 = vsel %vm3806, %v3807, %v3803
        %v3809 = vadd.s32 %v3804, %v3808
        %v3810 = vadd.s32 %v3809, 536870912
        %v3811 = vshrl.u32 %v3810, 30
        %v3812 = vshll.u32 %v3811, 30
        %v3813 = vsub.s32 %v3809, %v3812
        %vm3814 = vcmp.lt.s32.totalorder %v3813, 0
        %v3815 = vsub.s32 0, %v3813
        %v3816 = vsel %vm3814, %v3815, %v3813
        %v3817 = vclz %v3816
        %v3818 = vsub.s32 %v3817, 2
        %vm3819 = vcmp.gt.s32.totalorder 0, %v3818
        %v3820 = vsel %vm3819, 0, %v3818
        %v3821 = vsub.s32 32, %v3820
        %v3822 = vshll.u32 %v3813, %v3820
        %v3823 = vshrl.u32 %v3805, %v3821
        %v3824 = vor.u32 %v3822, %v3823
        %v3825 = vsub.s32 4294967266, %v3820
        %v3826 = vadd.s32 %v3825, 127
        %v3827 = vshll.u32 %v3826, 23
        %v3828 = vor.u32 4788187, %v3827
        %v3829 = vand.u32 2147483647, %v3828
        %v3831 = vcvt.s32.f32 %v3824
        %v3832 = vmul.f32 %v3831, %v3829
        %v3833 = vxor.u32 %v3832, 2147483648
        %v3834 = vsel %vm3713, %v3833, %v3832
        %v3835 = vsub.s32 4, %v3811
        %v3836 = vsel %vm3713, %v3835, %v3811
        %v3837 = vsel %vm3712, %v1537, %v3834
        %v3838 = vsel %vm3712, 0, %v3836
        %v3839 = vmul.f32 %v3837, %v3837
        %v3840 = vmul.f32 %v3839, -0.001358992
        %v3841 = vadd.f32 %v3840, 0.041655596
        %v3842 = vmul.f32 %v3839, %v3841
        %v3843 = vadd.f32 %v3842, -0.4999988
        %v3844 = vmul.f32 %v3839, %v3843
        %v3845 = vadd.f32 1.0, %v3844
        %v3846 = vmul.f32 %v3837, %v3837
        %v3847 = vmul.f32 %v3846, -0.00019511016
        %v3848 = vadd.f32 %v3847, 0.008332121
        %v3849 = vmul.f32 %v3846, %v3848
        %v3850 = vadd.f32 %v3849, -0.16666654
        %v3851 = vmul.f32 %v3846, %v3850
        %v3852 = vadd.f32 %v3851, 1.0
        %v3853 = vmul.f32 %v3852, %v3837
        %vm3854 = vweird.f32 %v1537
        %v3855 = vand.u32 %v3838, 3
        %vm3856 = vcmp.lt.s32.totalorder %v3855, 2
        %vm3857 = vcmp.eq.s32.totalorder %v3855, 0
        %v3858 = vxor.u32 %v3853, 2147483648
        %v3859 = vsel %vm3857, %v3845, %v3858
        %vm3860 = vcmp.eq.s32.totalorder %v3855, 2
        %v3861 = vxor.u32 %v3845, 2147483648
        %v3862 = vsel %vm3860, %v3861, %v3853
        %v3863 = vsel %vm3856, %v3859, %v3862
        %v3864 = vsel %vm3854, nan, %v3863
        %v3865 = vand.u32 2147483647, %v1538
        %vm3866 = vcmp.le.f32.partialorder %v3865, 0.7853982
        %vm3867 = vcmp.lt.s32.totalorder %v1538, 0
        %v3868 = vand.u32 %v1538, 2139095040
        %v3869 = vshrl.u32 %v3868, 23
        %v3870 = vsub.s32 %v3869, 127
        %v3871 = vand.u32 2147483647, %v1538
        %v3872 = vand.u32 %v3871, 8388607
        %v3873 = vor.u32 %v3872, 8388608
        %v3874 = vsub.s32 0, %v3873
        %v3875 = vadd.s32 %v3870, 1
        %vm3876 = vcmp.gt.s32.totalorder %v3875, 0
        %v3877 = vsel %vm3876, %v3875, 0
        %v3878 = vshrl.u32 %v3877, 5
        %v3879 = vand.u32 %v3877, 31
        %v3880 = vsub.s32 32, %v3879
        %v3881 = vshrl.u32 683565275, %v3880
        %v3882 = vshll.u32 683565275, %v3879
        %v3883 = vshrl.u32 2475754826, %v3880
        %v3884 = vor.u32 %v3882, %v3883
        %v3885 = vshll.u32 2475754826, %v3879
        %v3886 = vshrl.u32 2131351028, %v3880
        %v3887 = vor.u32 %v3885, %v3886
        %v3888 = vshll.u32 2131351028, %v3879
        %v3889 = vshrl.u32 2102212464, %v3880
        %v3890 = vor.u32 %v3888, %v3889
        %v3891 = vshll.u32 2102212464, %v3879
        %v3892 = vshrl.u32 920167782, %v3880
        %v3893 = vor.u32 %v3891, %v3892
        %v3894 = vshll.u32 920167782, %v3879
        %v3895 = vshrl.u32 1326507024, %v3880
        %v3896 = vor.u32 %v3894, %v3895
        %vm3897 = vcmp.lt.s32.totalorder %v3878, 1
        %vm3898 = vcmp.lt.s32.totalorder %v3878, 2
        %vm3899 = vcmp.lt.s32.totalorder %v3878, 3
        %vm3900 = vcmp.lt.s32.totalorder %v3878, 4
        %v3901 = vsel %vm3897, %v3881, %v3884
        %v3902 = vsel %vm3900, %v3890, 2102212464
        %v3903 = vsel %vm3899, %v3887, %v3902
        %v3904 = vsel %vm3898, %v3901, %v3903
        %v3905 = vsel %vm3897, %v3884, %v3887
        %v3906 = vsel %vm3900, %v3893, 920167782
        %v3907 = vsel %vm3899, %v3890, %v3906
        %v3908 = vsel %vm3898, %v3905, %v3907
        %v3909 = vsel %vm3897, %v3887, %v3890
        %v3910 = vsel %vm3900, %v3896, 1326507024
        %v3911 = vsel %vm3899, %v3893, %v3910
        %v3912 = vsel %vm3898, %v3909, %v3911
        %v3913 = vshll.u32 %v3873, 8
        %v3914 = vand.u32 %v3913, 65535
        %v3915 = vshrl.u32 %v3913, 16
        %v3916 = vand.u32 %v3912, 65535
        %v3917 = vshrl.u32 %v3912, 16
        %v3918 = vmul.u32 %v3914, %v3916
        %v3919 = vmul.u32 %v3914, %v3917
        %v3920 = vmul.u32 %v3915, %v3916
        %v3921 = vmul.u32 %v3915, %v3917
        %v3922 = vshll.u32 %v3919, 16
        %v3923 = vshrl.u32 %v3919, 16
        %v3924 = vshll.u32 %v3920, 16
        %v3925 = vshrl.u32 %v3920, 16
        %vm3926 = vc.u32 %v3918, %v3922
        %v3927 = vsel %vm3926, 1, 0
        %v3928 = vadd.s32 %v3918, %v3922
        %v3929 = vadd.s32 %v3921, %v3927
        %vm3930 = vc.u32 %v3928, %v3924
        %v3931 = vsel %vm3930, 1, 0
        %v3932 = vadd.s32 %v3928, %v3924
        %v3933 = vadd.s32 %v3929, %v3931
        %v3934 = vadd.s32 %v3933, %v3923
        %v3935 = vadd.s32 %v3934, %v3925
        %v3936 = vand.u32 %v3913, 65535
        %v3937 = vshrl.u32 %v3913, 16
        %v3938 = vand.u32 %v3908, 65535
        %v3939 = vshrl.u32 %v3908, 16
        %v3940 = vmul.u32 %v3936, %v3938
        %v3941 = vmul.u32 %v3936, %v3939
        %v3942 = vmul.u32 %v3937, %v3938
        %v3943 = vmul.u32 %v3937, %v3939
        %v3944 = vshll.u32 %v3941, 16
        %v3945 = vshrl.u32 %v3941, 16
        %v3946 = vshll.u32 %v3942, 16
        %v3947 = vshrl.u32 %v3942, 16
        %vm3948 = vc.u32 %v3940, %v3944
        %v3949 = vsel %vm3948, 1, 0
        %v3950 = vadd.s32 %v3940, %v3944
        %v3951 = vadd.s32 %v3943, %v3949
        %vm3952 = vc.u32 %v3950, %v3946
        %v3953 = vsel %vm3952, 1, 0
        %v3954 = vadd.s32 %v3950, %v3946
        %v3955 = vadd.s32 %v3951, %v3953
        %v3956 = vadd.s32 %v3955, %v3945
        %v3957 = vadd.s32 %v3956, %v3947
        %v3958 = vmul.u32 %v3913, %v3904
        %v3959 = vadd.s32 %v3935, %v3954
        %vm3960 = vc.u32 %v3935, %v3954
        %v3961 = vadd.s32 %v3957, 1
        %v3962 = vsel %vm3960, %v3961, %v3957
        %v3963 = vadd.s32 %v3958, %v3962
        %v3964 = vadd.s32 %v3963, 536870912
        %v3965 = vshrl.u32 %v3964, 30
        %v3966 = vshll.u32 %v3965, 30
        %v3967 = vsub.s32 %v3963, %v3966
        %vm3968 = vcmp.lt.s32.totalorder %v3967, 0
        %v3969 = vsub.s32 0, %v3967
        %v3970 = vsel %vm3968, %v3969, %v3967
        %v3971 = vclz %v3970
        %v3972 = vsub.s32 %v3971, 2
        %vm3973 = vcmp.gt.s32.totalorder 0, %v3972
        %v3974 = vsel %vm3973, 0, %v3972
        %v3975 = vsub.s32 32, %v3974
        %v3976 = vshll.u32 %v3967, %v3974
        %v3977 = vshrl.u32 %v3959, %v3975
        %v3978 = vor.u32 %v3976, %v3977
        %v3979 = vsub.s32 4294967266, %v3974
        %v3980 = vadd.s32 %v3979, 127
        %v3981 = vshll.u32 %v3980, 23
        %v3982 = vor.u32 4788187, %v3981
        %v3983 = vand.u32 2147483647, %v3982
        %v3985 = vcvt.s32.f32 %v3978
        %v3986 = vmul.f32 %v3985, %v3983
        %v3987 = vxor.u32 %v3986, 2147483648
        %v3988 = vsel %vm3867, %v3987, %v3986
        %v3989 = vsub.s32 4, %v3965
        %v3990 = vsel %vm3867, %v3989, %v3965
        %v3991 = vsel %vm3866, %v1538, %v3988
        %v3992 = vsel %vm3866, 0, %v3990
        %v3993 = vmul.f32 %v3991, %v3991
        %v3994 = vmul.f32 %v3993, -0.001358992
        %v3995 = vadd.f32 %v3994, 0.041655596
        %v3996 = vmul.f32 %v3993, %v3995
        %v3997 = vadd.f32 %v3996, -0.4999988
        %v3998 = vmul.f32 %v3993, %v3997
        %v3999 = vadd.f32 1.0, %v3998
        %v4000 = vmul.f32 %v3991, %v3991
        %v4001 = vmul.f32 %v4000, -0.00019511016
        %v4002 = vadd.f32 %v4001, 0.008332121
        %v4003 = vmul.f32 %v4000, %v4002
        %v4004 = vadd.f32 %v4003, -0.16666654
        %v4005 = vmul.f32 %v4000, %v4004
        %v4006 = vadd.f32 %v4005, 1.0
        %v4007 = vmul.f32 %v4006, %v3991
        %vm4008 = vweird.f32 %v1538
        %v4009 = vand.u32 %v3992, 3
        %vm4010 = vcmp.lt.s32.totalorder %v4009, 2
        %vm4011 = vcmp.eq.s32.totalorder %v4009, 0
        %v4012 = vxor.u32 %v4007, 2147483648
        %v4013 = vsel %vm4011, %v3999, %v4012
        %vm4014 = vcmp.eq.s32.totalorder %v4009, 2
        %v4015 = vxor.u32 %v3999, 2147483648
        %v4016 = vsel %vm4014, %v4015, %v4007
        %v4017 = vsel %vm4010, %v4013, %v4016
        %v4018 = vsel %vm4008, nan, %v4017
        %v4019 = vand.u32 2147483647, %v1539
        %vm4020 = vcmp.le.f32.partialorder %v4019, 0.7853982
        %vm4021 = vcmp.lt.s32.totalorder %v1539, 0
        %v4022 = vand.u32 %v1539, 2139095040
        %v4023 = vshrl.u32 %v4022, 23
        %v4024 = vsub.s32 %v4023, 127
        %v4025 = vand.u32 2147483647, %v1539
        %v4026 = vand.u32 %v4025, 8388607
        %v4027 = vor.u32 %v4026, 8388608
        %v4028 = vsub.s32 0, %v4027
        %v4029 = vadd.s32 %v4024, 1
        %vm4030 = vcmp.gt.s32.totalorder %v4029, 0
        %v4031 = vsel %vm4030, %v4029, 0
        %v4032 = vshrl.u32 %v4031, 5
        %v4033 = vand.u32 %v4031, 31
        %v4034 = vsub.s32 32, %v4033
        %v4035 = vshrl.u32 683565275, %v4034
        %v4036 = vshll.u32 683565275, %v4033
        %v4037 = vshrl.u32 2475754826, %v4034
        %v4038 = vor.u32 %v4036, %v4037
        %v4039 = vshll.u32 2475754826, %v4033
        %v4040 = vshrl.u32 2131351028, %v4034
        %v4041 = vor.u32 %v4039, %v4040
        %v4042 = vshll.u32 2131351028, %v4033
        %v4043 = vshrl.u32 2102212464, %v4034
        %v4044 = vor.u32 %v4042, %v4043
        %v4045 = vshll.u32 2102212464, %v4033
        %v4046 = vshrl.u32 920167782, %v4034
        %v4047 = vor.u32 %v4045, %v4046
        %v4048 = vshll.u32 920167782, %v4033
        %v4049 = vshrl.u32 1326507024, %v4034
        %v4050 = vor.u32 %v4048, %v4049
        %vm4051 = vcmp.lt.s32.totalorder %v4032, 1
        %vm4052 = vcmp.lt.s32.totalorder %v4032, 2
        %vm4053 = vcmp.lt.s32.totalorder %v4032, 3
        %vm4054 = vcmp.lt.s32.totalorder %v4032, 4
        %v4055 = vsel %vm4051, %v4035, %v4038
        %v4056 = vsel %vm4054, %v4044, 2102212464
        %v4057 = vsel %vm4053, %v4041, %v4056
        %v4058 = vsel %vm4052, %v4055, %v4057
        %v4059 = vsel %vm4051, %v4038, %v4041
        %v4060 = vsel %vm4054, %v4047, 920167782
        %v4061 = vsel %vm4053, %v4044, %v4060
        %v4062 = vsel %vm4052, %v4059, %v4061
        %v4063 = vsel %vm4051, %v4041, %v4044
        %v4064 = vsel %vm4054, %v4050, 1326507024
        %v4065 = vsel %vm4053, %v4047, %v4064
        %v4066 = vsel %vm4052, %v4063, %v4065
        %v4067 = vshll.u32 %v4027, 8
        %v4068 = vand.u32 %v4067, 65535
        %v4069 = vshrl.u32 %v4067, 16
        %v4070 = vand.u32 %v4066, 65535
        %v4071 = vshrl.u32 %v4066, 16
        %v4072 = vmul.u32 %v4068, %v4070
        %v4073 = vmul.u32 %v4068, %v4071
        %v4074 = vmul.u32 %v4069, %v4070
        %v4075 = vmul.u32 %v4069, %v4071
        %v4076 = vshll.u32 %v4073, 16
        %v4077 = vshrl.u32 %v4073, 16
        %v4078 = vshll.u32 %v4074, 16
        %v4079 = vshrl.u32 %v4074, 16
        %vm4080 = vc.u32 %v4072, %v4076
        %v4081 = vsel %vm4080, 1, 0
        %v4082 = vadd.s32 %v4072, %v4076
        %v4083 = vadd.s32 %v4075, %v4081
        %vm4084 = vc.u32 %v4082, %v4078
        %v4085 = vsel %vm4084, 1, 0
        %v4086 = vadd.s32 %v4082, %v4078
        %v4087 = vadd.s32 %v4083, %v4085
        %v4088 = vadd.s32 %v4087, %v4077
        %v4089 = vadd.s32 %v4088, %v4079
        %v4090 = vand.u32 %v4067, 65535
        %v4091 = vshrl.u32 %v4067, 16
        %v4092 = vand.u32 %v4062, 65535
        %v4093 = vshrl.u32 %v4062, 16
        %v4094 = vmul.u32 %v4090, %v4092
        %v4095 = vmul.u32 %v4090, %v4093
        %v4096 = vmul.u32 %v4091, %v4092
        %v4097 = vmul.u32 %v4091, %v4093
        %v4098 = vshll.u32 %v4095, 16
        %v4099 = vshrl.u32 %v4095, 16
        %v4100 = vshll.u32 %v4096, 16
        %v4101 = vshrl.u32 %v4096, 16
        %vm4102 = vc.u32 %v4094, %v4098
        %v4103 = vsel %vm4102, 1, 0
        %v4104 = vadd.s32 %v4094, %v4098
        %v4105 = vadd.s32 %v4097, %v4103
        %vm4106 = vc.u32 %v4104, %v4100
        %v4107 = vsel %vm4106, 1, 0
        %v4108 = vadd.s32 %v4104, %v4100
        %v4109 = vadd.s32 %v4105, %v4107
        %v4110 = vadd.s32 %v4109, %v4099
        %v4111 = vadd.s32 %v4110, %v4101
        %v4112 = vmul.u32 %v4067, %v4058
        %v4113 = vadd.s32 %v4089, %v4108
        %vm4114 = vc.u32 %v4089, %v4108
        %v4115 = vadd.s32 %v4111, 1
        %v4116 = vsel %vm4114, %v4115, %v4111
        %v4117 = vadd.s32 %v4112, %v4116
        %v4118 = vadd.s32 %v4117, 536870912
        %v4119 = vshrl.u32 %v4118, 30
        %v4120 = vshll.u32 %v4119, 30
        %v4121 = vsub.s32 %v4117, %v4120
        %vm4122 = vcmp.lt.s32.totalorder %v4121, 0
        %v4123 = vsub.s32 0, %v4121
        %v4124 = vsel %vm4122, %v4123, %v4121
        %v4125 = vclz %v4124
        %v4126 = vsub.s32 %v4125, 2
        %vm4127 = vcmp.gt.s32.totalorder 0, %v4126
        %v4128 = vsel %vm4127, 0, %v4126
        %v4129 = vsub.s32 32, %v4128
        %v4130 = vshll.u32 %v4121, %v4128
        %v4131 = vshrl.u32 %v4113, %v4129
        %v4132 = vor.u32 %v4130, %v4131
        %v4133 = vsub.s32 4294967266, %v4128
        %v4134 = vadd.s32 %v4133, 127
        %v4135 = vshll.u32 %v4134, 23
        %v4136 = vor.u32 4788187, %v4135
        %v4137 = vand.u32 2147483647, %v4136
        %v4139 = vcvt.s32.f32 %v4132
        %v4140 = vmul.f32 %v4139, %v4137
        %v4141 = vxor.u32 %v4140, 2147483648
        %v4142 = vsel %vm4021, %v4141, %v4140
        %v4143 = vsub.s32 4, %v4119
        %v4144 = vsel %vm4021, %v4143, %v4119
        %v4145 = vsel %vm4020, %v1539, %v4142
        %v4146 = vsel %vm4020, 0, %v4144
        %v4147 = vmul.f32 %v4145, %v4145
        %v4148 = vmul.f32 %v4147, -0.001358992
        %v4149 = vadd.f32 %v4148, 0.041655596
        %v4150 = vmul.f32 %v4147, %v4149
        %v4151 = vadd.f32 %v4150, -0.4999988
        %v4152 = vmul.f32 %v4147, %v4151
        %v4153 = vadd.f32 1.0, %v4152
        %v4154 = vmul.f32 %v4145, %v4145
        %v4155 = vmul.f32 %v4154, -0.00019511016
        %v4156 = vadd.f32 %v4155, 0.008332121
        %v4157 = vmul.f32 %v4154, %v4156
        %v4158 = vadd.f32 %v4157, -0.16666654
        %v4159 = vmul.f32 %v4154, %v4158
        %v4160 = vadd.f32 %v4159, 1.0
        %v4161 = vmul.f32 %v4160, %v4145
        %vm4162 = vweird.f32 %v1539
        %v4163 = vand.u32 %v4146, 3
        %vm4164 = vcmp.lt.s32.totalorder %v4163, 2
        %vm4165 = vcmp.eq.s32.totalorder %v4163, 0
        %v4166 = vxor.u32 %v4161, 2147483648
        %v4167 = vsel %vm4165, %v4153, %v4166
        %vm4168 = vcmp.eq.s32.totalorder %v4163, 2
        %v4169 = vxor.u32 %v4153, 2147483648
        %v4170 = vsel %vm4168, %v4169, %v4161
        %v4171 = vsel %vm4164, %v4167, %v4170
        %v4172 = vsel %vm4162, nan, %v4171
        %v4173 = vand.u32 2147483647, %v1540
        %vm4174 = vcmp.le.f32.partialorder %v4173, 0.7853982
        %vm4175 = vcmp.lt.s32.totalorder %v1540, 0
        %v4176 = vand.u32 %v1540, 2139095040
        %v4177 = vshrl.u32 %v4176, 23
        %v4178 = vsub.s32 %v4177, 127
        %v4179 = vand.u32 2147483647, %v1540
        %v4180 = vand.u32 %v4179, 8388607
        %v4181 = vor.u32 %v4180, 8388608
        %v4182 = vsub.s32 0, %v4181
        %v4183 = vadd.s32 %v4178, 1
        %vm4184 = vcmp.gt.s32.totalorder %v4183, 0
        %v4185 = vsel %vm4184, %v4183, 0
        %v4186 = vshrl.u32 %v4185, 5
        %v4187 = vand.u32 %v4185, 31
        %v4188 = vsub.s32 32, %v4187
        %v4189 = vshrl.u32 683565275, %v4188
        %v4190 = vshll.u32 683565275, %v4187
        %v4191 = vshrl.u32 2475754826, %v4188
        %v4192 = vor.u32 %v4190, %v4191
        %v4193 = vshll.u32 2475754826, %v4187
        %v4194 = vshrl.u32 2131351028, %v4188
        %v4195 = vor.u32 %v4193, %v4194
        %v4196 = vshll.u32 2131351028, %v4187
        %v4197 = vshrl.u32 2102212464, %v4188
        %v4198 = vor.u32 %v4196, %v4197
        %v4199 = vshll.u32 2102212464, %v4187
        %v4200 = vshrl.u32 920167782, %v4188
        %v4201 = vor.u32 %v4199, %v4200
        %v4202 = vshll.u32 920167782, %v4187
        %v4203 = vshrl.u32 1326507024, %v4188
        %v4204 = vor.u32 %v4202, %v4203
        %vm4205 = vcmp.lt.s32.totalorder %v4186, 1
        %vm4206 = vcmp.lt.s32.totalorder %v4186, 2
        %vm4207 = vcmp.lt.s32.totalorder %v4186, 3
        %vm4208 = vcmp.lt.s32.totalorder %v4186, 4
        %v4209 = vsel %vm4205, %v4189, %v4192
        %v4210 = vsel %vm4208, %v4198, 2102212464
        %v4211 = vsel %vm4207, %v4195, %v4210
        %v4212 = vsel %vm4206, %v4209, %v4211
        %v4213 = vsel %vm4205, %v4192, %v4195
        %v4214 = vsel %vm4208, %v4201, 920167782
        %v4215 = vsel %vm4207, %v4198, %v4214
        %v4216 = vsel %vm4206, %v4213, %v4215
        %v4217 = vsel %vm4205, %v4195, %v4198
        %v4218 = vsel %vm4208, %v4204, 1326507024
        %v4219 = vsel %vm4207, %v4201, %v4218
        %v4220 = vsel %vm4206, %v4217, %v4219
        %v4221 = vshll.u32 %v4181, 8
        %v4222 = vand.u32 %v4221, 65535
        %v4223 = vshrl.u32 %v4221, 16
        %v4224 = vand.u32 %v4220, 65535
        %v4225 = vshrl.u32 %v4220, 16
        %v4226 = vmul.u32 %v4222, %v4224
        %v4227 = vmul.u32 %v4222, %v4225
        %v4228 = vmul.u32 %v4223, %v4224
        %v4229 = vmul.u32 %v4223, %v4225
        %v4230 = vshll.u32 %v4227, 16
        %v4231 = vshrl.u32 %v4227, 16
        %v4232 = vshll.u32 %v4228, 16
        %v4233 = vshrl.u32 %v4228, 16
        %vm4234 = vc.u32 %v4226, %v4230
        %v4235 = vsel %vm4234, 1, 0
        %v4236 = vadd.s32 %v4226, %v4230
        %v4237 = vadd.s32 %v4229, %v4235
        %vm4238 = vc.u32 %v4236, %v4232
        %v4239 = vsel %vm4238, 1, 0
        %v4240 = vadd.s32 %v4236, %v4232
        %v4241 = vadd.s32 %v4237, %v4239
        %v4242 = vadd.s32 %v4241, %v4231
        %v4243 = vadd.s32 %v4242, %v4233
        %v4244 = vand.u32 %v4221, 65535
        %v4245 = vshrl.u32 %v4221, 16
        %v4246 = vand.u32 %v4216, 65535
        %v4247 = vshrl.u32 %v4216, 16
        %v4248 = vmul.u32 %v4244, %v4246
        %v4249 = vmul.u32 %v4244, %v4247
        %v4250 = vmul.u32 %v4245, %v4246
        %v4251 = vmul.u32 %v4245, %v4247
        %v4252 = vshll.u32 %v4249, 16
        %v4253 = vshrl.u32 %v4249, 16
        %v4254 = vshll.u32 %v4250, 16
        %v4255 = vshrl.u32 %v4250, 16
        %vm4256 = vc.u32 %v4248, %v4252
        %v4257 = vsel %vm4256, 1, 0
        %v4258 = vadd.s32 %v4248, %v4252
        %v4259 = vadd.s32 %v4251, %v4257
        %vm4260 = vc.u32 %v4258, %v4254
        %v4261 = vsel %vm4260, 1, 0
        %v4262 = vadd.s32 %v4258, %v4254
        %v4263 = vadd.s32 %v4259, %v4261
        %v4264 = vadd.s32 %v4263, %v4253
        %v4265 = vadd.s32 %v4264, %v4255
        %v4266 = vmul.u32 %v4221, %v4212
        %v4267 = vadd.s32 %v4243, %v4262
        %vm4268 = vc.u32 %v4243, %v4262
        %v4269 = vadd.s32 %v4265, 1
        %v4270 = vsel %vm4268, %v4269, %v4265
        %v4271 = vadd.s32 %v4266, %v4270
        %v4272 = vadd.s32 %v4271, 536870912
        %v4273 = vshrl.u32 %v4272, 30
        %v4274 = vshll.u32 %v4273, 30
        %v4275 = vsub.s32 %v4271, %v4274
        %vm4276 = vcmp.lt.s32.totalorder %v4275, 0
        %v4277 = vsub.s32 0, %v4275
        %v4278 = vsel %vm4276, %v4277, %v4275
        %v4279 = vclz %v4278
        %v4280 = vsub.s32 %v4279, 2
        %vm4281 = vcmp.gt.s32.totalorder 0, %v4280
        %v4282 = vsel %vm4281, 0, %v4280
        %v4283 = vsub.s32 32, %v4282
        %v4284 = vshll.u32 %v4275, %v4282
        %v4285 = vshrl.u32 %v4267, %v4283
        %v4286 = vor.u32 %v4284, %v4285
        %v4287 = vsub.s32 4294967266, %v4282
        %v4288 = vadd.s32 %v4287, 127
        %v4289 = vshll.u32 %v4288, 23
        %v4290 = vor.u32 4788187, %v4289
        %v4291 = vand.u32 2147483647, %v4290
        %v4293 = vcvt.s32.f32 %v4286
        %v4294 = vmul.f32 %v4293, %v4291
        %v4295 = vxor.u32 %v4294, 2147483648
        %v4296 = vsel %vm4175, %v4295, %v4294
        %v4297 = vsub.s32 4, %v4273
        %v4298 = vsel %vm4175, %v4297, %v4273
        %v4299 = vsel %vm4174, %v1540, %v4296
        %v4300 = vsel %vm4174, 0, %v4298
        %v4301 = vmul.f32 %v4299, %v4299
        %v4302 = vmul.f32 %v4301, -0.001358992
        %v4303 = vadd.f32 %v4302, 0.041655596
        %v4304 = vmul.f32 %v4301, %v4303
        %v4305 = vadd.f32 %v4304, -0.4999988
        %v4306 = vmul.f32 %v4301, %v4305
        %v4307 = vadd.f32 1.0, %v4306
        %v4308 = vmul.f32 %v4299, %v4299
        %v4309 = vmul.f32 %v4308, -0.00019511016
        %v4310 = vadd.f32 %v4309, 0.008332121
        %v4311 = vmul.f32 %v4308, %v4310
        %v4312 = vadd.f32 %v4311, -0.16666654
        %v4313 = vmul.f32 %v4308, %v4312
        %v4314 = vadd.f32 %v4313, 1.0
        %v4315 = vmul.f32 %v4314, %v4299
        %vm4316 = vweird.f32 %v1540
        %v4317 = vand.u32 %v4300, 3
        %vm4318 = vcmp.lt.s32.totalorder %v4317, 2
        %vm4319 = vcmp.eq.s32.totalorder %v4317, 0
        %v4320 = vxor.u32 %v4315, 2147483648
        %v4321 = vsel %vm4319, %v4307, %v4320
        %vm4322 = vcmp.eq.s32.totalorder %v4317, 2
        %v4323 = vxor.u32 %v4307, 2147483648
        %v4324 = vsel %vm4322, %v4323, %v4315
        %v4325 = vsel %vm4318, %v4321, %v4324
        %v4326 = vsel %vm4316, nan, %v4325
        %v4327 = vand.u32 2147483647, %v1541
        %vm4328 = vcmp.le.f32.partialorder %v4327, 0.7853982
        %vm4329 = vcmp.lt.s32.totalorder %v1541, 0
        %v4330 = vand.u32 %v1541, 2139095040
        %v4331 = vshrl.u32 %v4330, 23
        %v4332 = vsub.s32 %v4331, 127
        %v4333 = vand.u32 2147483647, %v1541
        %v4334 = vand.u32 %v4333, 8388607
        %v4335 = vor.u32 %v4334, 8388608
        %v4336 = vsub.s32 0, %v4335
        %v4337 = vadd.s32 %v4332, 1
        %vm4338 = vcmp.gt.s32.totalorder %v4337, 0
        %v4339 = vsel %vm4338, %v4337, 0
        %v4340 = vshrl.u32 %v4339, 5
        %v4341 = vand.u32 %v4339, 31
        %v4342 = vsub.s32 32, %v4341
        %v4343 = vshrl.u32 683565275, %v4342
        %v4344 = vshll.u32 683565275, %v4341
        %v4345 = vshrl.u32 2475754826, %v4342
        %v4346 = vor.u32 %v4344, %v4345
        %v4347 = vshll.u32 2475754826, %v4341
        %v4348 = vshrl.u32 2131351028, %v4342
        %v4349 = vor.u32 %v4347, %v4348
        %v4350 = vshll.u32 2131351028, %v4341
        %v4351 = vshrl.u32 2102212464, %v4342
        %v4352 = vor.u32 %v4350, %v4351
        %v4353 = vshll.u32 2102212464, %v4341
        %v4354 = vshrl.u32 920167782, %v4342
        %v4355 = vor.u32 %v4353, %v4354
        %v4356 = vshll.u32 920167782, %v4341
        %v4357 = vshrl.u32 1326507024, %v4342
        %v4358 = vor.u32 %v4356, %v4357
        %vm4359 = vcmp.lt.s32.totalorder %v4340, 1
        %vm4360 = vcmp.lt.s32.totalorder %v4340, 2
        %vm4361 = vcmp.lt.s32.totalorder %v4340, 3
        %vm4362 = vcmp.lt.s32.totalorder %v4340, 4
        %v4363 = vsel %vm4359, %v4343, %v4346
        %v4364 = vsel %vm4362, %v4352, 2102212464
        %v4365 = vsel %vm4361, %v4349, %v4364
        %v4366 = vsel %vm4360, %v4363, %v4365
        %v4367 = vsel %vm4359, %v4346, %v4349
        %v4368 = vsel %vm4362, %v4355, 920167782
        %v4369 = vsel %vm4361, %v4352, %v4368
        %v4370 = vsel %vm4360, %v4367, %v4369
        %v4371 = vsel %vm4359, %v4349, %v4352
        %v4372 = vsel %vm4362, %v4358, 1326507024
        %v4373 = vsel %vm4361, %v4355, %v4372
        %v4374 = vsel %vm4360, %v4371, %v4373
        %v4375 = vshll.u32 %v4335, 8
        %v4376 = vand.u32 %v4375, 65535
        %v4377 = vshrl.u32 %v4375, 16
        %v4378 = vand.u32 %v4374, 65535
        %v4379 = vshrl.u32 %v4374, 16
        %v4380 = vmul.u32 %v4376, %v4378
        %v4381 = vmul.u32 %v4376, %v4379
        %v4382 = vmul.u32 %v4377, %v4378
        %v4383 = vmul.u32 %v4377, %v4379
        %v4384 = vshll.u32 %v4381, 16
        %v4385 = vshrl.u32 %v4381, 16
        %v4386 = vshll.u32 %v4382, 16
        %v4387 = vshrl.u32 %v4382, 16
        %vm4388 = vc.u32 %v4380, %v4384
        %v4389 = vsel %vm4388, 1, 0
        %v4390 = vadd.s32 %v4380, %v4384
        %v4391 = vadd.s32 %v4383, %v4389
        %vm4392 = vc.u32 %v4390, %v4386
        %v4393 = vsel %vm4392, 1, 0
        %v4394 = vadd.s32 %v4390, %v4386
        %v4395 = vadd.s32 %v4391, %v4393
        %v4396 = vadd.s32 %v4395, %v4385
        %v4397 = vadd.s32 %v4396, %v4387
        %v4398 = vand.u32 %v4375, 65535
        %v4399 = vshrl.u32 %v4375, 16
        %v4400 = vand.u32 %v4370, 65535
        %v4401 = vshrl.u32 %v4370, 16
        %v4402 = vmul.u32 %v4398, %v4400
        %v4403 = vmul.u32 %v4398, %v4401
        %v4404 = vmul.u32 %v4399, %v4400
        %v4405 = vmul.u32 %v4399, %v4401
        %v4406 = vshll.u32 %v4403, 16
        %v4407 = vshrl.u32 %v4403, 16
        %v4408 = vshll.u32 %v4404, 16
        %v4409 = vshrl.u32 %v4404, 16
        %vm4410 = vc.u32 %v4402, %v4406
        %v4411 = vsel %vm4410, 1, 0
        %v4412 = vadd.s32 %v4402, %v4406
        %v4413 = vadd.s32 %v4405, %v4411
        %vm4414 = vc.u32 %v4412, %v4408
        %v4415 = vsel %vm4414, 1, 0
        %v4416 = vadd.s32 %v4412, %v4408
        %v4417 = vadd.s32 %v4413, %v4415
        %v4418 = vadd.s32 %v4417, %v4407
        %v4419 = vadd.s32 %v4418, %v4409
        %v4420 = vmul.u32 %v4375, %v4366
        %v4421 = vadd.s32 %v4397, %v4416
        %vm4422 = vc.u32 %v4397, %v4416
        %v4423 = vadd.s32 %v4419, 1
        %v4424 = vsel %vm4422, %v4423, %v4419
        %v4425 = vadd.s32 %v4420, %v4424
        %v4426 = vadd.s32 %v4425, 536870912
        %v4427 = vshrl.u32 %v4426, 30
        %v4428 = vshll.u32 %v4427, 30
        %v4429 = vsub.s32 %v4425, %v4428
        %vm4430 = vcmp.lt.s32.totalorder %v4429, 0
        %v4431 = vsub.s32 0, %v4429
        %v4432 = vsel %vm4430, %v4431, %v4429
        %v4433 = vclz %v4432
        %v4434 = vsub.s32 %v4433, 2
        %vm4435 = vcmp.gt.s32.totalorder 0, %v4434
        %v4436 = vsel %vm4435, 0, %v4434
        %v4437 = vsub.s32 32, %v4436
        %v4438 = vshll.u32 %v4429, %v4436
        %v4439 = vshrl.u32 %v4421, %v4437
        %v4440 = vor.u32 %v4438, %v4439
        %v4441 = vsub.s32 4294967266, %v4436
        %v4442 = vadd.s32 %v4441, 127
        %v4443 = vshll.u32 %v4442, 23
        %v4444 = vor.u32 4788187, %v4443
        %v4445 = vand.u32 2147483647, %v4444
        %v4447 = vcvt.s32.f32 %v4440
        %v4448 = vmul.f32 %v4447, %v4445
        %v4449 = vxor.u32 %v4448, 2147483648
        %v4450 = vsel %vm4329, %v4449, %v4448
        %v4451 = vsub.s32 4, %v4427
        %v4452 = vsel %vm4329, %v4451, %v4427
        %v4453 = vsel %vm4328, %v1541, %v4450
        %v4454 = vsel %vm4328, 0, %v4452
        %v4455 = vmul.f32 %v4453, %v4453
        %v4456 = vmul.f32 %v4455, -0.001358992
        %v4457 = vadd.f32 %v4456, 0.041655596
        %v4458 = vmul.f32 %v4455, %v4457
        %v4459 = vadd.f32 %v4458, -0.4999988
        %v4460 = vmul.f32 %v4455, %v4459
        %v4461 = vadd.f32 1.0, %v4460
        %v4462 = vmul.f32 %v4453, %v4453
        %v4463 = vmul.f32 %v4462, -0.00019511016
        %v4464 = vadd.f32 %v4463, 0.008332121
        %v4465 = vmul.f32 %v4462, %v4464
        %v4466 = vadd.f32 %v4465, -0.16666654
        %v4467 = vmul.f32 %v4462, %v4466
        %v4468 = vadd.f32 %v4467, 1.0
        %v4469 = vmul.f32 %v4468, %v4453
        %vm4470 = vweird.f32 %v1541
        %v4471 = vand.u32 %v4454, 3
        %vm4472 = vcmp.lt.s32.totalorder %v4471, 2
        %vm4473 = vcmp.eq.s32.totalorder %v4471, 0
        %v4474 = vxor.u32 %v4469, 2147483648
        %v4475 = vsel %vm4473, %v4461, %v4474
        %vm4476 = vcmp.eq.s32.totalorder %v4471, 2
        %v4477 = vxor.u32 %v4461, 2147483648
        %v4478 = vsel %vm4476, %v4477, %v4469
        %v4479 = vsel %vm4472, %v4475, %v4478
        %v4480 = vsel %vm4470, nan, %v4479
        %v4481 = vand.u32 2147483647, %v1542
        %vm4482 = vcmp.le.f32.partialorder %v4481, 0.7853982
        %vm4483 = vcmp.lt.s32.totalorder %v1542, 0
        %v4484 = vand.u32 %v1542, 2139095040
        %v4485 = vshrl.u32 %v4484, 23
        %v4486 = vsub.s32 %v4485, 127
        %v4487 = vand.u32 2147483647, %v1542
        %v4488 = vand.u32 %v4487, 8388607
        %v4489 = vor.u32 %v4488, 8388608
        %v4490 = vsub.s32 0, %v4489
        %v4491 = vadd.s32 %v4486, 1
        %vm4492 = vcmp.gt.s32.totalorder %v4491, 0
        %v4493 = vsel %vm4492, %v4491, 0
        %v4494 = vshrl.u32 %v4493, 5
        %v4495 = vand.u32 %v4493, 31
        %v4496 = vsub.s32 32, %v4495
        %v4497 = vshrl.u32 683565275, %v4496
        %v4498 = vshll.u32 683565275, %v4495
        %v4499 = vshrl.u32 2475754826, %v4496
        %v4500 = vor.u32 %v4498, %v4499
        %v4501 = vshll.u32 2475754826, %v4495
        %v4502 = vshrl.u32 2131351028, %v4496
        %v4503 = vor.u32 %v4501, %v4502
        %v4504 = vshll.u32 2131351028, %v4495
        %v4505 = vshrl.u32 2102212464, %v4496
        %v4506 = vor.u32 %v4504, %v4505
        %v4507 = vshll.u32 2102212464, %v4495
        %v4508 = vshrl.u32 920167782, %v4496
        %v4509 = vor.u32 %v4507, %v4508
        %v4510 = vshll.u32 920167782, %v4495
        %v4511 = vshrl.u32 1326507024, %v4496
        %v4512 = vor.u32 %v4510, %v4511
        %vm4513 = vcmp.lt.s32.totalorder %v4494, 1
        %vm4514 = vcmp.lt.s32.totalorder %v4494, 2
        %vm4515 = vcmp.lt.s32.totalorder %v4494, 3
        %vm4516 = vcmp.lt.s32.totalorder %v4494, 4
        %v4517 = vsel %vm4513, %v4497, %v4500
        %v4518 = vsel %vm4516, %v4506, 2102212464
        %v4519 = vsel %vm4515, %v4503, %v4518
        %v4520 = vsel %vm4514, %v4517, %v4519
        %v4521 = vsel %vm4513, %v4500, %v4503
        %v4522 = vsel %vm4516, %v4509, 920167782
        %v4523 = vsel %vm4515, %v4506, %v4522
        %v4524 = vsel %vm4514, %v4521, %v4523
        %v4525 = vsel %vm4513, %v4503, %v4506
        %v4526 = vsel %vm4516, %v4512, 1326507024
        %v4527 = vsel %vm4515, %v4509, %v4526
        %v4528 = vsel %vm4514, %v4525, %v4527
        %v4529 = vshll.u32 %v4489, 8
        %v4530 = vand.u32 %v4529, 65535
        %v4531 = vshrl.u32 %v4529, 16
        %v4532 = vand.u32 %v4528, 65535
        %v4533 = vshrl.u32 %v4528, 16
        %v4534 = vmul.u32 %v4530, %v4532
        %v4535 = vmul.u32 %v4530, %v4533
        %v4536 = vmul.u32 %v4531, %v4532
        %v4537 = vmul.u32 %v4531, %v4533
        %v4538 = vshll.u32 %v4535, 16
        %v4539 = vshrl.u32 %v4535, 16
        %v4540 = vshll.u32 %v4536, 16
        %v4541 = vshrl.u32 %v4536, 16
        %vm4542 = vc.u32 %v4534, %v4538
        %v4543 = vsel %vm4542, 1, 0
        %v4544 = vadd.s32 %v4534, %v4538
        %v4545 = vadd.s32 %v4537, %v4543
        %vm4546 = vc.u32 %v4544, %v4540
        %v4547 = vsel %vm4546, 1, 0
        %v4548 = vadd.s32 %v4544, %v4540
        %v4549 = vadd.s32 %v4545, %v4547
        %v4550 = vadd.s32 %v4549, %v4539
        %v4551 = vadd.s32 %v4550, %v4541
        %v4552 = vand.u32 %v4529, 65535
        %v4553 = vshrl.u32 %v4529, 16
        %v4554 = vand.u32 %v4524, 65535
        %v4555 = vshrl.u32 %v4524, 16
        %v4556 = vmul.u32 %v4552, %v4554
        %v4557 = vmul.u32 %v4552, %v4555
        %v4558 = vmul.u32 %v4553, %v4554
        %v4559 = vmul.u32 %v4553, %v4555
        %v4560 = vshll.u32 %v4557, 16
        %v4561 = vshrl.u32 %v4557, 16
        %v4562 = vshll.u32 %v4558, 16
        %v4563 = vshrl.u32 %v4558, 16
        %vm4564 = vc.u32 %v4556, %v4560
        %v4565 = vsel %vm4564, 1, 0
        %v4566 = vadd.s32 %v4556, %v4560
        %v4567 = vadd.s32 %v4559, %v4565
        %vm4568 = vc.u32 %v4566, %v4562
        %v4569 = vsel %vm4568, 1, 0
        %v4570 = vadd.s32 %v4566, %v4562
        %v4571 = vadd.s32 %v4567, %v4569
        %v4572 = vadd.s32 %v4571, %v4561
        %v4573 = vadd.s32 %v4572, %v4563
        %v4574 = vmul.u32 %v4529, %v4520
        %v4575 = vadd.s32 %v4551, %v4570
        %vm4576 = vc.u32 %v4551, %v4570
        %v4577 = vadd.s32 %v4573, 1
        %v4578 = vsel %vm4576, %v4577, %v4573
        %v4579 = vadd.s32 %v4574, %v4578
        %v4580 = vadd.s32 %v4579, 536870912
        %v4581 = vshrl.u32 %v4580, 30
        %v4582 = vshll.u32 %v4581, 30
        %v4583 = vsub.s32 %v4579, %v4582
        %vm4584 = vcmp.lt.s32.totalorder %v4583, 0
        %v4585 = vsub.s32 0, %v4583
        %v4586 = vsel %vm4584, %v4585, %v4583
        %v4587 = vclz %v4586
        %v4588 = vsub.s32 %v4587, 2
        %vm4589 = vcmp.gt.s32.totalorder 0, %v4588
        %v4590 = vsel %vm4589, 0, %v4588
        %v4591 = vsub.s32 32, %v4590
        %v4592 = vshll.u32 %v4583, %v4590
        %v4593 = vshrl.u32 %v4575, %v4591
        %v4594 = vor.u32 %v4592, %v4593
        %v4595 = vsub.s32 4294967266, %v4590
        %v4596 = vadd.s32 %v4595, 127
        %v4597 = vshll.u32 %v4596, 23
        %v4598 = vor.u32 4788187, %v4597
        %v4599 = vand.u32 2147483647, %v4598
        %v4601 = vcvt.s32.f32 %v4594
        %v4602 = vmul.f32 %v4601, %v4599
        %v4603 = vxor.u32 %v4602, 2147483648
        %v4604 = vsel %vm4483, %v4603, %v4602
        %v4605 = vsub.s32 4, %v4581
        %v4606 = vsel %vm4483, %v4605, %v4581
        %v4607 = vsel %vm4482, %v1542, %v4604
        %v4608 = vsel %vm4482, 0, %v4606
        %v4609 = vmul.f32 %v4607, %v4607
        %v4610 = vmul.f32 %v4609, -0.001358992
        %v4611 = vadd.f32 %v4610, 0.041655596
        %v4612 = vmul.f32 %v4609, %v4611
        %v4613 = vadd.f32 %v4612, -0.4999988
        %v4614 = vmul.f32 %v4609, %v4613
        %v4615 = vadd.f32 1.0, %v4614
        %v4616 = vmul.f32 %v4607, %v4607
        %v4617 = vmul.f32 %v4616, -0.00019511016
        %v4618 = vadd.f32 %v4617, 0.008332121
        %v4619 = vmul.f32 %v4616, %v4618
        %v4620 = vadd.f32 %v4619, -0.16666654
        %v4621 = vmul.f32 %v4616, %v4620
        %v4622 = vadd.f32 %v4621, 1.0
        %v4623 = vmul.f32 %v4622, %v4607
        %vm4624 = vweird.f32 %v1542
        %v4625 = vand.u32 %v4608, 3
        %vm4626 = vcmp.lt.s32.totalorder %v4625, 2
        %vm4627 = vcmp.eq.s32.totalorder %v4625, 0
        %v4628 = vxor.u32 %v4623, 2147483648
        %v4629 = vsel %vm4627, %v4615, %v4628
        %vm4630 = vcmp.eq.s32.totalorder %v4625, 2
        %v4631 = vxor.u32 %v4615, 2147483648
        %v4632 = vsel %vm4630, %v4631, %v4623
        %v4633 = vsel %vm4626, %v4629, %v4632
        %v4634 = vsel %vm4624, nan, %v4633
        %v4635 = vand.u32 2147483647, %v1543
        %vm4636 = vcmp.le.f32.partialorder %v4635, 0.7853982
        %vm4637 = vcmp.lt.s32.totalorder %v1543, 0
        %v4638 = vand.u32 %v1543, 2139095040
        %v4639 = vshrl.u32 %v4638, 23
        %v4640 = vsub.s32 %v4639, 127
        %v4641 = vand.u32 2147483647, %v1543
        %v4642 = vand.u32 %v4641, 8388607
        %v4643 = vor.u32 %v4642, 8388608
        %v4644 = vsub.s32 0, %v4643
        %v4645 = vadd.s32 %v4640, 1
        %vm4646 = vcmp.gt.s32.totalorder %v4645, 0
        %v4647 = vsel %vm4646, %v4645, 0
        %v4648 = vshrl.u32 %v4647, 5
        %v4649 = vand.u32 %v4647, 31
        %v4650 = vsub.s32 32, %v4649
        %v4651 = vshrl.u32 683565275, %v4650
        %v4652 = vshll.u32 683565275, %v4649
        %v4653 = vshrl.u32 2475754826, %v4650
        %v4654 = vor.u32 %v4652, %v4653
        %v4655 = vshll.u32 2475754826, %v4649
        %v4656 = vshrl.u32 2131351028, %v4650
        %v4657 = vor.u32 %v4655, %v4656
        %v4658 = vshll.u32 2131351028, %v4649
        %v4659 = vshrl.u32 2102212464, %v4650
        %v4660 = vor.u32 %v4658, %v4659
        %v4661 = vshll.u32 2102212464, %v4649
        %v4662 = vshrl.u32 920167782, %v4650
        %v4663 = vor.u32 %v4661, %v4662
        %v4664 = vshll.u32 920167782, %v4649
        %v4665 = vshrl.u32 1326507024, %v4650
        %v4666 = vor.u32 %v4664, %v4665
        %vm4667 = vcmp.lt.s32.totalorder %v4648, 1
        %vm4668 = vcmp.lt.s32.totalorder %v4648, 2
        %vm4669 = vcmp.lt.s32.totalorder %v4648, 3
        %vm4670 = vcmp.lt.s32.totalorder %v4648, 4
        %v4671 = vsel %vm4667, %v4651, %v4654
        %v4672 = vsel %vm4670, %v4660, 2102212464
        %v4673 = vsel %vm4669, %v4657, %v4672
        %v4674 = vsel %vm4668, %v4671, %v4673
        %v4675 = vsel %vm4667, %v4654, %v4657
        %v4676 = vsel %vm4670, %v4663, 920167782
        %v4677 = vsel %vm4669, %v4660, %v4676
        %v4678 = vsel %vm4668, %v4675, %v4677
        %v4679 = vsel %vm4667, %v4657, %v4660
        %v4680 = vsel %vm4670, %v4666, 1326507024
        %v4681 = vsel %vm4669, %v4663, %v4680
        %v4682 = vsel %vm4668, %v4679, %v4681
        %v4683 = vshll.u32 %v4643, 8
        %v4684 = vand.u32 %v4683, 65535
        %v4685 = vshrl.u32 %v4683, 16
        %v4686 = vand.u32 %v4682, 65535
        %v4687 = vshrl.u32 %v4682, 16
        %v4688 = vmul.u32 %v4684, %v4686
        %v4689 = vmul.u32 %v4684, %v4687
        %v4690 = vmul.u32 %v4685, %v4686
        %v4691 = vmul.u32 %v4685, %v4687
        %v4692 = vshll.u32 %v4689, 16
        %v4693 = vshrl.u32 %v4689, 16
        %v4694 = vshll.u32 %v4690, 16
        %v4695 = vshrl.u32 %v4690, 16
        %vm4696 = vc.u32 %v4688, %v4692
        %v4697 = vsel %vm4696, 1, 0
        %v4698 = vadd.s32 %v4688, %v4692
        %v4699 = vadd.s32 %v4691, %v4697
        %vm4700 = vc.u32 %v4698, %v4694
        %v4701 = vsel %vm4700, 1, 0
        %v4702 = vadd.s32 %v4698, %v4694
        %v4703 = vadd.s32 %v4699, %v4701
        %v4704 = vadd.s32 %v4703, %v4693
        %v4705 = vadd.s32 %v4704, %v4695
        %v4706 = vand.u32 %v4683, 65535
        %v4707 = vshrl.u32 %v4683, 16
        %v4708 = vand.u32 %v4678, 65535
        %v4709 = vshrl.u32 %v4678, 16
        %v4710 = vmul.u32 %v4706, %v4708
        %v4711 = vmul.u32 %v4706, %v4709
        %v4712 = vmul.u32 %v4707, %v4708
        %v4713 = vmul.u32 %v4707, %v4709
        %v4714 = vshll.u32 %v4711, 16
        %v4715 = vshrl.u32 %v4711, 16
        %v4716 = vshll.u32 %v4712, 16
        %v4717 = vshrl.u32 %v4712, 16
        %vm4718 = vc.u32 %v4710, %v4714
        %v4719 = vsel %vm4718, 1, 0
        %v4720 = vadd.s32 %v4710, %v4714
        %v4721 = vadd.s32 %v4713, %v4719
        %vm4722 = vc.u32 %v4720, %v4716
        %v4723 = vsel %vm4722, 1, 0
        %v4724 = vadd.s32 %v4720, %v4716
        %v4725 = vadd.s32 %v4721, %v4723
        %v4726 = vadd.s32 %v4725, %v4715
        %v4727 = vadd.s32 %v4726, %v4717
        %v4728 = vmul.u32 %v4683, %v4674
        %v4729 = vadd.s32 %v4705, %v4724
        %vm4730 = vc.u32 %v4705, %v4724
        %v4731 = vadd.s32 %v4727, 1
        %v4732 = vsel %vm4730, %v4731, %v4727
        %v4733 = vadd.s32 %v4728, %v4732
        %v4734 = vadd.s32 %v4733, 536870912
        %v4735 = vshrl.u32 %v4734, 30
        %v4736 = vshll.u32 %v4735, 30
        %v4737 = vsub.s32 %v4733, %v4736
        %vm4738 = vcmp.lt.s32.totalorder %v4737, 0
        %v4739 = vsub.s32 0, %v4737
        %v4740 = vsel %vm4738, %v4739, %v4737
        %v4741 = vclz %v4740
        %v4742 = vsub.s32 %v4741, 2
        %vm4743 = vcmp.gt.s32.totalorder 0, %v4742
        %v4744 = vsel %vm4743, 0, %v4742
        %v4745 = vsub.s32 32, %v4744
        %v4746 = vshll.u32 %v4737, %v4744
        %v4747 = vshrl.u32 %v4729, %v4745
        %v4748 = vor.u32 %v4746, %v4747
        %v4749 = vsub.s32 4294967266, %v4744
        %v4750 = vadd.s32 %v4749, 127
        %v4751 = vshll.u32 %v4750, 23
        %v4752 = vor.u32 4788187, %v4751
        %v4753 = vand.u32 2147483647, %v4752
        %v4755 = vcvt.s32.f32 %v4748
        %v4756 = vmul.f32 %v4755, %v4753
        %v4757 = vxor.u32 %v4756, 2147483648
        %v4758 = vsel %vm4637, %v4757, %v4756
        %v4759 = vsub.s32 4, %v4735
        %v4760 = vsel %vm4637, %v4759, %v4735
        %v4761 = vsel %vm4636, %v1543, %v4758
        %v4762 = vsel %vm4636, 0, %v4760
        %v4763 = vmul.f32 %v4761, %v4761
        %v4764 = vmul.f32 %v4763, -0.001358992
        %v4765 = vadd.f32 %v4764, 0.041655596
        %v4766 = vmul.f32 %v4763, %v4765
        %v4767 = vadd.f32 %v4766, -0.4999988
        %v4768 = vmul.f32 %v4763, %v4767
        %v4769 = vadd.f32 1.0, %v4768
        %v4770 = vmul.f32 %v4761, %v4761
        %v4771 = vmul.f32 %v4770, -0.00019511016
        %v4772 = vadd.f32 %v4771, 0.008332121
        %v4773 = vmul.f32 %v4770, %v4772
        %v4774 = vadd.f32 %v4773, -0.16666654
        %v4775 = vmul.f32 %v4770, %v4774
        %v4776 = vadd.f32 %v4775, 1.0
        %v4777 = vmul.f32 %v4776, %v4761
        %vm4778 = vweird.f32 %v1543
        %v4779 = vand.u32 %v4762, 3
        %vm4780 = vcmp.lt.s32.totalorder %v4779, 2
        %vm4781 = vcmp.eq.s32.totalorder %v4779, 0
        %v4782 = vxor.u32 %v4777, 2147483648
        %v4783 = vsel %vm4781, %v4769, %v4782
        %vm4784 = vcmp.eq.s32.totalorder %v4779, 2
        %v4785 = vxor.u32 %v4769, 2147483648
        %v4786 = vsel %vm4784, %v4785, %v4777
        %v4787 = vsel %vm4780, %v4783, %v4786
        %v4788 = vsel %vm4778, nan, %v4787
        %v4789 = vand.u32 2147483647, %v1544
        %vm4790 = vcmp.le.f32.partialorder %v4789, 0.7853982
        %vm4791 = vcmp.lt.s32.totalorder %v1544, 0
        %v4792 = vand.u32 %v1544, 2139095040
        %v4793 = vshrl.u32 %v4792, 23
        %v4794 = vsub.s32 %v4793, 127
        %v4795 = vand.u32 2147483647, %v1544
        %v4796 = vand.u32 %v4795, 8388607
        %v4797 = vor.u32 %v4796, 8388608
        %v4798 = vsub.s32 0, %v4797
        %v4799 = vadd.s32 %v4794, 1
        %vm4800 = vcmp.gt.s32.totalorder %v4799, 0
        %v4801 = vsel %vm4800, %v4799, 0
        %v4802 = vshrl.u32 %v4801, 5
        %v4803 = vand.u32 %v4801, 31
        %v4804 = vsub.s32 32, %v4803
        %v4805 = vshrl.u32 683565275, %v4804
        %v4806 = vshll.u32 683565275, %v4803
        %v4807 = vshrl.u32 2475754826, %v4804
        %v4808 = vor.u32 %v4806, %v4807
        %v4809 = vshll.u32 2475754826, %v4803
        %v4810 = vshrl.u32 2131351028, %v4804
        %v4811 = vor.u32 %v4809, %v4810
        %v4812 = vshll.u32 2131351028, %v4803
        %v4813 = vshrl.u32 2102212464, %v4804
        %v4814 = vor.u32 %v4812, %v4813
        %v4815 = vshll.u32 2102212464, %v4803
        %v4816 = vshrl.u32 920167782, %v4804
        %v4817 = vor.u32 %v4815, %v4816
        %v4818 = vshll.u32 920167782, %v4803
        %v4819 = vshrl.u32 1326507024, %v4804
        %v4820 = vor.u32 %v4818, %v4819
        %vm4821 = vcmp.lt.s32.totalorder %v4802, 1
        %vm4822 = vcmp.lt.s32.totalorder %v4802, 2
        %vm4823 = vcmp.lt.s32.totalorder %v4802, 3
        %vm4824 = vcmp.lt.s32.totalorder %v4802, 4
        %v4825 = vsel %vm4821, %v4805, %v4808
        %v4826 = vsel %vm4824, %v4814, 2102212464
        %v4827 = vsel %vm4823, %v4811, %v4826
        %v4828 = vsel %vm4822, %v4825, %v4827
        %v4829 = vsel %vm4821, %v4808, %v4811
        %v4830 = vsel %vm4824, %v4817, 920167782
        %v4831 = vsel %vm4823, %v4814, %v4830
        %v4832 = vsel %vm4822, %v4829, %v4831
        %v4833 = vsel %vm4821, %v4811, %v4814
        %v4834 = vsel %vm4824, %v4820, 1326507024
        %v4835 = vsel %vm4823, %v4817, %v4834
        %v4836 = vsel %vm4822, %v4833, %v4835
        %v4837 = vshll.u32 %v4797, 8
        %v4838 = vand.u32 %v4837, 65535
        %v4839 = vshrl.u32 %v4837, 16
        %v4840 = vand.u32 %v4836, 65535
        %v4841 = vshrl.u32 %v4836, 16
        %v4842 = vmul.u32 %v4838, %v4840
        %v4843 = vmul.u32 %v4838, %v4841
        %v4844 = vmul.u32 %v4839, %v4840
        %v4845 = vmul.u32 %v4839, %v4841
        %v4846 = vshll.u32 %v4843, 16
        %v4847 = vshrl.u32 %v4843, 16
        %v4848 = vshll.u32 %v4844, 16
        %v4849 = vshrl.u32 %v4844, 16
        %vm4850 = vc.u32 %v4842, %v4846
        %v4851 = vsel %vm4850, 1, 0
        %v4852 = vadd.s32 %v4842, %v4846
        %v4853 = vadd.s32 %v4845, %v4851
        %vm4854 = vc.u32 %v4852, %v4848
        %v4855 = vsel %vm4854, 1, 0
        %v4856 = vadd.s32 %v4852, %v4848
        %v4857 = vadd.s32 %v4853, %v4855
        %v4858 = vadd.s32 %v4857, %v4847
        %v4859 = vadd.s32 %v4858, %v4849
        %v4860 = vand.u32 %v4837, 65535
        %v4861 = vshrl.u32 %v4837, 16
        %v4862 = vand.u32 %v4832, 65535
        %v4863 = vshrl.u32 %v4832, 16
        %v4864 = vmul.u32 %v4860, %v4862
        %v4865 = vmul.u32 %v4860, %v4863
        %v4866 = vmul.u32 %v4861, %v4862
        %v4867 = vmul.u32 %v4861, %v4863
        %v4868 = vshll.u32 %v4865, 16
        %v4869 = vshrl.u32 %v4865, 16
        %v4870 = vshll.u32 %v4866, 16
        %v4871 = vshrl.u32 %v4866, 16
        %vm4872 = vc.u32 %v4864, %v4868
        %v4873 = vsel %vm4872, 1, 0
        %v4874 = vadd.s32 %v4864, %v4868
        %v4875 = vadd.s32 %v4867, %v4873
        %vm4876 = vc.u32 %v4874, %v4870
        %v4877 = vsel %vm4876, 1, 0
        %v4878 = vadd.s32 %v4874, %v4870
        %v4879 = vadd.s32 %v4875, %v4877
        %v4880 = vadd.s32 %v4879, %v4869
        %v4881 = vadd.s32 %v4880, %v4871
        %v4882 = vmul.u32 %v4837, %v4828
        %v4883 = vadd.s32 %v4859, %v4878
        %vm4884 = vc.u32 %v4859, %v4878
        %v4885 = vadd.s32 %v4881, 1
        %v4886 = vsel %vm4884, %v4885, %v4881
        %v4887 = vadd.s32 %v4882, %v4886
        %v4888 = vadd.s32 %v4887, 536870912
        %v4889 = vshrl.u32 %v4888, 30
        %v4890 = vshll.u32 %v4889, 30
        %v4891 = vsub.s32 %v4887, %v4890
        %vm4892 = vcmp.lt.s32.totalorder %v4891, 0
        %v4893 = vsub.s32 0, %v4891
        %v4894 = vsel %vm4892, %v4893, %v4891
        %v4895 = vclz %v4894
        %v4896 = vsub.s32 %v4895, 2
        %vm4897 = vcmp.gt.s32.totalorder 0, %v4896
        %v4898 = vsel %vm4897, 0, %v4896
        %v4899 = vsub.s32 32, %v4898
        %v4900 = vshll.u32 %v4891, %v4898
        %v4901 = vshrl.u32 %v4883, %v4899
        %v4902 = vor.u32 %v4900, %v4901
        %v4903 = vsub.s32 4294967266, %v4898
        %v4904 = vadd.s32 %v4903, 127
        %v4905 = vshll.u32 %v4904, 23
        %v4906 = vor.u32 4788187, %v4905
        %v4907 = vand.u32 2147483647, %v4906
        %v4909 = vcvt.s32.f32 %v4902
        %v4910 = vmul.f32 %v4909, %v4907
        %v4911 = vxor.u32 %v4910, 2147483648
        %v4912 = vsel %vm4791, %v4911, %v4910
        %v4913 = vsub.s32 4, %v4889
        %v4914 = vsel %vm4791, %v4913, %v4889
        %v4915 = vsel %vm4790, %v1544, %v4912
        %v4916 = vsel %vm4790, 0, %v4914
        %v4917 = vmul.f32 %v4915, %v4915
        %v4918 = vmul.f32 %v4917, -0.001358992
        %v4919 = vadd.f32 %v4918, 0.041655596
        %v4920 = vmul.f32 %v4917, %v4919
        %v4921 = vadd.f32 %v4920, -0.4999988
        %v4922 = vmul.f32 %v4917, %v4921
        %v4923 = vadd.f32 1.0, %v4922
        %v4924 = vmul.f32 %v4915, %v4915
        %v4925 = vmul.f32 %v4924, -0.00019511016
        %v4926 = vadd.f32 %v4925, 0.008332121
        %v4927 = vmul.f32 %v4924, %v4926
        %v4928 = vadd.f32 %v4927, -0.16666654
        %v4929 = vmul.f32 %v4924, %v4928
        %v4930 = vadd.f32 %v4929, 1.0
        %v4931 = vmul.f32 %v4930, %v4915
        %vm4932 = vweird.f32 %v1544
        %v4933 = vand.u32 %v4916, 3
        %vm4934 = vcmp.lt.s32.totalorder %v4933, 2
        %vm4935 = vcmp.eq.s32.totalorder %v4933, 0
        %v4936 = vxor.u32 %v4931, 2147483648
        %v4937 = vsel %vm4935, %v4923, %v4936
        %vm4938 = vcmp.eq.s32.totalorder %v4933, 2
        %v4939 = vxor.u32 %v4923, 2147483648
        %v4940 = vsel %vm4938, %v4939, %v4931
        %v4941 = vsel %vm4934, %v4937, %v4940
        %v4942 = vsel %vm4932, nan, %v4941
        %v4943 = vand.u32 2147483647, %v1545
        %vm4944 = vcmp.le.f32.partialorder %v4943, 0.7853982
        %vm4945 = vcmp.lt.s32.totalorder %v1545, 0
        %v4946 = vand.u32 %v1545, 2139095040
        %v4947 = vshrl.u32 %v4946, 23
        %v4948 = vsub.s32 %v4947, 127
        %v4949 = vand.u32 2147483647, %v1545
        %v4950 = vand.u32 %v4949, 8388607
        %v4951 = vor.u32 %v4950, 8388608
        %v4952 = vsub.s32 0, %v4951
        %v4953 = vadd.s32 %v4948, 1
        %vm4954 = vcmp.gt.s32.totalorder %v4953, 0
        %v4955 = vsel %vm4954, %v4953, 0
        %v4956 = vshrl.u32 %v4955, 5
        %v4957 = vand.u32 %v4955, 31
        %v4958 = vsub.s32 32, %v4957
        %v4959 = vshrl.u32 683565275, %v4958
        %v4960 = vshll.u32 683565275, %v4957
        %v4961 = vshrl.u32 2475754826, %v4958
        %v4962 = vor.u32 %v4960, %v4961
        %v4963 = vshll.u32 2475754826, %v4957
        %v4964 = vshrl.u32 2131351028, %v4958
        %v4965 = vor.u32 %v4963, %v4964
        %v4966 = vshll.u32 2131351028, %v4957
        %v4967 = vshrl.u32 2102212464, %v4958
        %v4968 = vor.u32 %v4966, %v4967
        %v4969 = vshll.u32 2102212464, %v4957
        %v4970 = vshrl.u32 920167782, %v4958
        %v4971 = vor.u32 %v4969, %v4970
        %v4972 = vshll.u32 920167782, %v4957
        %v4973 = vshrl.u32 1326507024, %v4958
        %v4974 = vor.u32 %v4972, %v4973
        %vm4975 = vcmp.lt.s32.totalorder %v4956, 1
        %vm4976 = vcmp.lt.s32.totalorder %v4956, 2
        %vm4977 = vcmp.lt.s32.totalorder %v4956, 3
        %vm4978 = vcmp.lt.s32.totalorder %v4956, 4
        %v4979 = vsel %vm4975, %v4959, %v4962
        %v4980 = vsel %vm4978, %v4968, 2102212464
        %v4981 = vsel %vm4977, %v4965, %v4980
        %v4982 = vsel %vm4976, %v4979, %v4981
        %v4983 = vsel %vm4975, %v4962, %v4965
        %v4984 = vsel %vm4978, %v4971, 920167782
        %v4985 = vsel %vm4977, %v4968, %v4984
        %v4986 = vsel %vm4976, %v4983, %v4985
        %v4987 = vsel %vm4975, %v4965, %v4968
        %v4988 = vsel %vm4978, %v4974, 1326507024
        %v4989 = vsel %vm4977, %v4971, %v4988
        %v4990 = vsel %vm4976, %v4987, %v4989
        %v4991 = vshll.u32 %v4951, 8
        %v4992 = vand.u32 %v4991, 65535
        %v4993 = vshrl.u32 %v4991, 16
        %v4994 = vand.u32 %v4990, 65535
        %v4995 = vshrl.u32 %v4990, 16
        %v4996 = vmul.u32 %v4992, %v4994
        %v4997 = vmul.u32 %v4992, %v4995
        %v4998 = vmul.u32 %v4993, %v4994
        %v4999 = vmul.u32 %v4993, %v4995
        %v5000 = vshll.u32 %v4997, 16
        %v5001 = vshrl.u32 %v4997, 16
        %v5002 = vshll.u32 %v4998, 16
        %v5003 = vshrl.u32 %v4998, 16
        %vm5004 = vc.u32 %v4996, %v5000
        %v5005 = vsel %vm5004, 1, 0
        %v5006 = vadd.s32 %v4996, %v5000
        %v5007 = vadd.s32 %v4999, %v5005
        %vm5008 = vc.u32 %v5006, %v5002
        %v5009 = vsel %vm5008, 1, 0
        %v5010 = vadd.s32 %v5006, %v5002
        %v5011 = vadd.s32 %v5007, %v5009
        %v5012 = vadd.s32 %v5011, %v5001
        %v5013 = vadd.s32 %v5012, %v5003
        %v5014 = vand.u32 %v4991, 65535
        %v5015 = vshrl.u32 %v4991, 16
        %v5016 = vand.u32 %v4986, 65535
        %v5017 = vshrl.u32 %v4986, 16
        %v5018 = vmul.u32 %v5014, %v5016
        %v5019 = vmul.u32 %v5014, %v5017
        %v5020 = vmul.u32 %v5015, %v5016
        %v5021 = vmul.u32 %v5015, %v5017
        %v5022 = vshll.u32 %v5019, 16
        %v5023 = vshrl.u32 %v5019, 16
        %v5024 = vshll.u32 %v5020, 16
        %v5025 = vshrl.u32 %v5020, 16
        %vm5026 = vc.u32 %v5018, %v5022
        %v5027 = vsel %vm5026, 1, 0
        %v5028 = vadd.s32 %v5018, %v5022
        %v5029 = vadd.s32 %v5021, %v5027
        %vm5030 = vc.u32 %v5028, %v5024
        %v5031 = vsel %vm5030, 1, 0
        %v5032 = vadd.s32 %v5028, %v5024
        %v5033 = vadd.s32 %v5029, %v5031
        %v5034 = vadd.s32 %v5033, %v5023
        %v5035 = vadd.s32 %v5034, %v5025
        %v5036 = vmul.u32 %v4991, %v4982
        %v5037 = vadd.s32 %v5013, %v5032
        %vm5038 = vc.u32 %v5013, %v5032
        %v5039 = vadd.s32 %v5035, 1
        %v5040 = vsel %vm5038, %v5039, %v5035
        %v5041 = vadd.s32 %v5036, %v5040
        %v5042 = vadd.s32 %v5041, 536870912
        %v5043 = vshrl.u32 %v5042, 30
        %v5044 = vshll.u32 %v5043, 30
        %v5045 = vsub.s32 %v5041, %v5044
        %vm5046 = vcmp.lt.s32.totalorder %v5045, 0
        %v5047 = vsub.s32 0, %v5045
        %v5048 = vsel %vm5046, %v5047, %v5045
        %v5049 = vclz %v5048
        %v5050 = vsub.s32 %v5049, 2
        %vm5051 = vcmp.gt.s32.totalorder 0, %v5050
        %v5052 = vsel %vm5051, 0, %v5050
        %v5053 = vsub.s32 32, %v5052
        %v5054 = vshll.u32 %v5045, %v5052
        %v5055 = vshrl.u32 %v5037, %v5053
        %v5056 = vor.u32 %v5054, %v5055
        %v5057 = vsub.s32 4294967266, %v5052
        %v5058 = vadd.s32 %v5057, 127
        %v5059 = vshll.u32 %v5058, 23
        %v5060 = vor.u32 4788187, %v5059
        %v5061 = vand.u32 2147483647, %v5060
        %v5063 = vcvt.s32.f32 %v5056
        %v5064 = vmul.f32 %v5063, %v5061
        %v5065 = vxor.u32 %v5064, 2147483648
        %v5066 = vsel %vm4945, %v5065, %v5064
        %v5067 = vsub.s32 4, %v5043
        %v5068 = vsel %vm4945, %v5067, %v5043
        %v5069 = vsel %vm4944, %v1545, %v5066
        %v5070 = vsel %vm4944, 0, %v5068
        %v5071 = vmul.f32 %v5069, %v5069
        %v5072 = vmul.f32 %v5071, -0.001358992
        %v5073 = vadd.f32 %v5072, 0.041655596
        %v5074 = vmul.f32 %v5071, %v5073
        %v5075 = vadd.f32 %v5074, -0.4999988
        %v5076 = vmul.f32 %v5071, %v5075
        %v5077 = vadd.f32 1.0, %v5076
        %v5078 = vmul.f32 %v5069, %v5069
        %v5079 = vmul.f32 %v5078, -0.00019511016
        %v5080 = vadd.f32 %v5079, 0.008332121
        %v5081 = vmul.f32 %v5078, %v5080
        %v5082 = vadd.f32 %v5081, -0.16666654
        %v5083 = vmul.f32 %v5078, %v5082
        %v5084 = vadd.f32 %v5083, 1.0
        %v5085 = vmul.f32 %v5084, %v5069
        %vm5086 = vweird.f32 %v1545
        %v5087 = vand.u32 %v5070, 3
        %vm5088 = vcmp.lt.s32.totalorder %v5087, 2
        %vm5089 = vcmp.eq.s32.totalorder %v5087, 0
        %v5090 = vxor.u32 %v5085, 2147483648
        %v5091 = vsel %vm5089, %v5077, %v5090
        %vm5092 = vcmp.eq.s32.totalorder %v5087, 2
        %v5093 = vxor.u32 %v5077, 2147483648
        %v5094 = vsel %vm5092, %v5093, %v5085
        %v5095 = vsel %vm5088, %v5091, %v5094
        %v5096 = vsel %vm5086, nan, %v5095
        %v5097 = vand.u32 2147483647, %v1546
        %vm5098 = vcmp.le.f32.partialorder %v5097, 0.7853982
        %vm5099 = vcmp.lt.s32.totalorder %v1546, 0
        %v5100 = vand.u32 %v1546, 2139095040
        %v5101 = vshrl.u32 %v5100, 23
        %v5102 = vsub.s32 %v5101, 127
        %v5103 = vand.u32 2147483647, %v1546
        %v5104 = vand.u32 %v5103, 8388607
        %v5105 = vor.u32 %v5104, 8388608
        %v5106 = vsub.s32 0, %v5105
        %v5107 = vadd.s32 %v5102, 1
        %vm5108 = vcmp.gt.s32.totalorder %v5107, 0
        %v5109 = vsel %vm5108, %v5107, 0
        %v5110 = vshrl.u32 %v5109, 5
        %v5111 = vand.u32 %v5109, 31
        %v5112 = vsub.s32 32, %v5111
        %v5113 = vshrl.u32 683565275, %v5112
        %v5114 = vshll.u32 683565275, %v5111
        %v5115 = vshrl.u32 2475754826, %v5112
        %v5116 = vor.u32 %v5114, %v5115
        %v5117 = vshll.u32 2475754826, %v5111
        %v5118 = vshrl.u32 2131351028, %v5112
        %v5119 = vor.u32 %v5117, %v5118
        %v5120 = vshll.u32 2131351028, %v5111
        %v5121 = vshrl.u32 2102212464, %v5112
        %v5122 = vor.u32 %v5120, %v5121
        %v5123 = vshll.u32 2102212464, %v5111
        %v5124 = vshrl.u32 920167782, %v5112
        %v5125 = vor.u32 %v5123, %v5124
        %v5126 = vshll.u32 920167782, %v5111
        %v5127 = vshrl.u32 1326507024, %v5112
        %v5128 = vor.u32 %v5126, %v5127
        %vm5129 = vcmp.lt.s32.totalorder %v5110, 1
        %vm5130 = vcmp.lt.s32.totalorder %v5110, 2
        %vm5131 = vcmp.lt.s32.totalorder %v5110, 3
        %vm5132 = vcmp.lt.s32.totalorder %v5110, 4
        %v5133 = vsel %vm5129, %v5113, %v5116
        %v5134 = vsel %vm5132, %v5122, 2102212464
        %v5135 = vsel %vm5131, %v5119, %v5134
        %v5136 = vsel %vm5130, %v5133, %v5135
        %v5137 = vsel %vm5129, %v5116, %v5119
        %v5138 = vsel %vm5132, %v5125, 920167782
        %v5139 = vsel %vm5131, %v5122, %v5138
        %v5140 = vsel %vm5130, %v5137, %v5139
        %v5141 = vsel %vm5129, %v5119, %v5122
        %v5142 = vsel %vm5132, %v5128, 1326507024
        %v5143 = vsel %vm5131, %v5125, %v5142
        %v5144 = vsel %vm5130, %v5141, %v5143
        %v5145 = vshll.u32 %v5105, 8
        %v5146 = vand.u32 %v5145, 65535
        %v5147 = vshrl.u32 %v5145, 16
        %v5148 = vand.u32 %v5144, 65535
        %v5149 = vshrl.u32 %v5144, 16
        %v5150 = vmul.u32 %v5146, %v5148
        %v5151 = vmul.u32 %v5146, %v5149
        %v5152 = vmul.u32 %v5147, %v5148
        %v5153 = vmul.u32 %v5147, %v5149
        %v5154 = vshll.u32 %v5151, 16
        %v5155 = vshrl.u32 %v5151, 16
        %v5156 = vshll.u32 %v5152, 16
        %v5157 = vshrl.u32 %v5152, 16
        %vm5158 = vc.u32 %v5150, %v5154
        %v5159 = vsel %vm5158, 1, 0
        %v5160 = vadd.s32 %v5150, %v5154
        %v5161 = vadd.s32 %v5153, %v5159
        %vm5162 = vc.u32 %v5160, %v5156
        %v5163 = vsel %vm5162, 1, 0
        %v5164 = vadd.s32 %v5160, %v5156
        %v5165 = vadd.s32 %v5161, %v5163
        %v5166 = vadd.s32 %v5165, %v5155
        %v5167 = vadd.s32 %v5166, %v5157
        %v5168 = vand.u32 %v5145, 65535
        %v5169 = vshrl.u32 %v5145, 16
        %v5170 = vand.u32 %v5140, 65535
        %v5171 = vshrl.u32 %v5140, 16
        %v5172 = vmul.u32 %v5168, %v5170
        %v5173 = vmul.u32 %v5168, %v5171
        %v5174 = vmul.u32 %v5169, %v5170
        %v5175 = vmul.u32 %v5169, %v5171
        %v5176 = vshll.u32 %v5173, 16
        %v5177 = vshrl.u32 %v5173, 16
        %v5178 = vshll.u32 %v5174, 16
        %v5179 = vshrl.u32 %v5174, 16
        %vm5180 = vc.u32 %v5172, %v5176
        %v5181 = vsel %vm5180, 1, 0
        %v5182 = vadd.s32 %v5172, %v5176
        %v5183 = vadd.s32 %v5175, %v5181
        %vm5184 = vc.u32 %v5182, %v5178
        %v5185 = vsel %vm5184, 1, 0
        %v5186 = vadd.s32 %v5182, %v5178
        %v5187 = vadd.s32 %v5183, %v5185
        %v5188 = vadd.s32 %v5187, %v5177
        %v5189 = vadd.s32 %v5188, %v5179
        %v5190 = vmul.u32 %v5145, %v5136
        %v5191 = vadd.s32 %v5167, %v5186
        %vm5192 = vc.u32 %v5167, %v5186
        %v5193 = vadd.s32 %v5189, 1
        %v5194 = vsel %vm5192, %v5193, %v5189
        %v5195 = vadd.s32 %v5190, %v5194
        %v5196 = vadd.s32 %v5195, 536870912
        %v5197 = vshrl.u32 %v5196, 30
        %v5198 = vshll.u32 %v5197, 30
        %v5199 = vsub.s32 %v5195, %v5198
        %vm5200 = vcmp.lt.s32.totalorder %v5199, 0
        %v5201 = vsub.s32 0, %v5199
        %v5202 = vsel %vm5200, %v5201, %v5199
        %v5203 = vclz %v5202
        %v5204 = vsub.s32 %v5203, 2
        %vm5205 = vcmp.gt.s32.totalorder 0, %v5204
        %v5206 = vsel %vm5205, 0, %v5204
        %v5207 = vsub.s32 32, %v5206
        %v5208 = vshll.u32 %v5199, %v5206
        %v5209 = vshrl.u32 %v5191, %v5207
        %v5210 = vor.u32 %v5208, %v5209
        %v5211 = vsub.s32 4294967266, %v5206
        %v5212 = vadd.s32 %v5211, 127
        %v5213 = vshll.u32 %v5212, 23
        %v5214 = vor.u32 4788187, %v5213
        %v5215 = vand.u32 2147483647, %v5214
        %v5217 = vcvt.s32.f32 %v5210
        %v5218 = vmul.f32 %v5217, %v5215
        %v5219 = vxor.u32 %v5218, 2147483648
        %v5220 = vsel %vm5099, %v5219, %v5218
        %v5221 = vsub.s32 4, %v5197
        %v5222 = vsel %vm5099, %v5221, %v5197
        %v5223 = vsel %vm5098, %v1546, %v5220
        %v5224 = vsel %vm5098, 0, %v5222
        %v5225 = vmul.f32 %v5223, %v5223
        %v5226 = vmul.f32 %v5225, -0.001358992
        %v5227 = vadd.f32 %v5226, 0.041655596
        %v5228 = vmul.f32 %v5225, %v5227
        %v5229 = vadd.f32 %v5228, -0.4999988
        %v5230 = vmul.f32 %v5225, %v5229
        %v5231 = vadd.f32 1.0, %v5230
        %v5232 = vmul.f32 %v5223, %v5223
        %v5233 = vmul.f32 %v5232, -0.00019511016
        %v5234 = vadd.f32 %v5233, 0.008332121
        %v5235 = vmul.f32 %v5232, %v5234
        %v5236 = vadd.f32 %v5235, -0.16666654
        %v5237 = vmul.f32 %v5232, %v5236
        %v5238 = vadd.f32 %v5237, 1.0
        %v5239 = vmul.f32 %v5238, %v5223
        %vm5240 = vweird.f32 %v1546
        %v5241 = vand.u32 %v5224, 3
        %vm5242 = vcmp.lt.s32.totalorder %v5241, 2
        %vm5243 = vcmp.eq.s32.totalorder %v5241, 0
        %v5244 = vxor.u32 %v5239, 2147483648
        %v5245 = vsel %vm5243, %v5231, %v5244
        %vm5246 = vcmp.eq.s32.totalorder %v5241, 2
        %v5247 = vxor.u32 %v5231, 2147483648
        %v5248 = vsel %vm5246, %v5247, %v5239
        %v5249 = vsel %vm5242, %v5245, %v5248
        %v5250 = vsel %vm5240, nan, %v5249
        %v5251 = vand.u32 2147483647, %v1547
        %vm5252 = vcmp.le.f32.partialorder %v5251, 0.7853982
        %vm5253 = vcmp.lt.s32.totalorder %v1547, 0
        %v5254 = vand.u32 %v1547, 2139095040
        %v5255 = vshrl.u32 %v5254, 23
        %v5256 = vsub.s32 %v5255, 127
        %v5257 = vand.u32 2147483647, %v1547
        %v5258 = vand.u32 %v5257, 8388607
        %v5259 = vor.u32 %v5258, 8388608
        %v5260 = vsub.s32 0, %v5259
        %v5261 = vadd.s32 %v5256, 1
        %vm5262 = vcmp.gt.s32.totalorder %v5261, 0
        %v5263 = vsel %vm5262, %v5261, 0
        %v5264 = vshrl.u32 %v5263, 5
        %v5265 = vand.u32 %v5263, 31
        %v5266 = vsub.s32 32, %v5265
        %v5267 = vshrl.u32 683565275, %v5266
        %v5268 = vshll.u32 683565275, %v5265
        %v5269 = vshrl.u32 2475754826, %v5266
        %v5270 = vor.u32 %v5268, %v5269
        %v5271 = vshll.u32 2475754826, %v5265
        %v5272 = vshrl.u32 2131351028, %v5266
        %v5273 = vor.u32 %v5271, %v5272
        %v5274 = vshll.u32 2131351028, %v5265
        %v5275 = vshrl.u32 2102212464, %v5266
        %v5276 = vor.u32 %v5274, %v5275
        %v5277 = vshll.u32 2102212464, %v5265
        %v5278 = vshrl.u32 920167782, %v5266
        %v5279 = vor.u32 %v5277, %v5278
        %v5280 = vshll.u32 920167782, %v5265
        %v5281 = vshrl.u32 1326507024, %v5266
        %v5282 = vor.u32 %v5280, %v5281
        %vm5283 = vcmp.lt.s32.totalorder %v5264, 1
        %vm5284 = vcmp.lt.s32.totalorder %v5264, 2
        %vm5285 = vcmp.lt.s32.totalorder %v5264, 3
        %vm5286 = vcmp.lt.s32.totalorder %v5264, 4
        %v5287 = vsel %vm5283, %v5267, %v5270
        %v5288 = vsel %vm5286, %v5276, 2102212464
        %v5289 = vsel %vm5285, %v5273, %v5288
        %v5290 = vsel %vm5284, %v5287, %v5289
        %v5291 = vsel %vm5283, %v5270, %v5273
        %v5292 = vsel %vm5286, %v5279, 920167782
        %v5293 = vsel %vm5285, %v5276, %v5292
        %v5294 = vsel %vm5284, %v5291, %v5293
        %v5295 = vsel %vm5283, %v5273, %v5276
        %v5296 = vsel %vm5286, %v5282, 1326507024
        %v5297 = vsel %vm5285, %v5279, %v5296
        %v5298 = vsel %vm5284, %v5295, %v5297
        %v5299 = vshll.u32 %v5259, 8
        %v5300 = vand.u32 %v5299, 65535
        %v5301 = vshrl.u32 %v5299, 16
        %v5302 = vand.u32 %v5298, 65535
        %v5303 = vshrl.u32 %v5298, 16
        %v5304 = vmul.u32 %v5300, %v5302
        %v5305 = vmul.u32 %v5300, %v5303
        %v5306 = vmul.u32 %v5301, %v5302
        %v5307 = vmul.u32 %v5301, %v5303
        %v5308 = vshll.u32 %v5305, 16
        %v5309 = vshrl.u32 %v5305, 16
        %v5310 = vshll.u32 %v5306, 16
        %v5311 = vshrl.u32 %v5306, 16
        %vm5312 = vc.u32 %v5304, %v5308
        %v5313 = vsel %vm5312, 1, 0
        %v5314 = vadd.s32 %v5304, %v5308
        %v5315 = vadd.s32 %v5307, %v5313
        %vm5316 = vc.u32 %v5314, %v5310
        %v5317 = vsel %vm5316, 1, 0
        %v5318 = vadd.s32 %v5314, %v5310
        %v5319 = vadd.s32 %v5315, %v5317
        %v5320 = vadd.s32 %v5319, %v5309
        %v5321 = vadd.s32 %v5320, %v5311
        %v5322 = vand.u32 %v5299, 65535
        %v5323 = vshrl.u32 %v5299, 16
        %v5324 = vand.u32 %v5294, 65535
        %v5325 = vshrl.u32 %v5294, 16
        %v5326 = vmul.u32 %v5322, %v5324
        %v5327 = vmul.u32 %v5322, %v5325
        %v5328 = vmul.u32 %v5323, %v5324
        %v5329 = vmul.u32 %v5323, %v5325
        %v5330 = vshll.u32 %v5327, 16
        %v5331 = vshrl.u32 %v5327, 16
        %v5332 = vshll.u32 %v5328, 16
        %v5333 = vshrl.u32 %v5328, 16
        %vm5334 = vc.u32 %v5326, %v5330
        %v5335 = vsel %vm5334, 1, 0
        %v5336 = vadd.s32 %v5326, %v5330
        %v5337 = vadd.s32 %v5329, %v5335
        %vm5338 = vc.u32 %v5336, %v5332
        %v5339 = vsel %vm5338, 1, 0
        %v5340 = vadd.s32 %v5336, %v5332
        %v5341 = vadd.s32 %v5337, %v5339
        %v5342 = vadd.s32 %v5341, %v5331
        %v5343 = vadd.s32 %v5342, %v5333
        %v5344 = vmul.u32 %v5299, %v5290
        %v5345 = vadd.s32 %v5321, %v5340
        %vm5346 = vc.u32 %v5321, %v5340
        %v5347 = vadd.s32 %v5343, 1
        %v5348 = vsel %vm5346, %v5347, %v5343
        %v5349 = vadd.s32 %v5344, %v5348
        %v5350 = vadd.s32 %v5349, 536870912
        %v5351 = vshrl.u32 %v5350, 30
        %v5352 = vshll.u32 %v5351, 30
        %v5353 = vsub.s32 %v5349, %v5352
        %vm5354 = vcmp.lt.s32.totalorder %v5353, 0
        %v5355 = vsub.s32 0, %v5353
        %v5356 = vsel %vm5354, %v5355, %v5353
        %v5357 = vclz %v5356
        %v5358 = vsub.s32 %v5357, 2
        %vm5359 = vcmp.gt.s32.totalorder 0, %v5358
        %v5360 = vsel %vm5359, 0, %v5358
        %v5361 = vsub.s32 32, %v5360
        %v5362 = vshll.u32 %v5353, %v5360
        %v5363 = vshrl.u32 %v5345, %v5361
        %v5364 = vor.u32 %v5362, %v5363
        %v5365 = vsub.s32 4294967266, %v5360
        %v5366 = vadd.s32 %v5365, 127
        %v5367 = vshll.u32 %v5366, 23
        %v5368 = vor.u32 4788187, %v5367
        %v5369 = vand.u32 2147483647, %v5368
        %v5371 = vcvt.s32.f32 %v5364
        %v5372 = vmul.f32 %v5371, %v5369
        %v5373 = vxor.u32 %v5372, 2147483648
        %v5374 = vsel %vm5253, %v5373, %v5372
        %v5375 = vsub.s32 4, %v5351
        %v5376 = vsel %vm5253, %v5375, %v5351
        %v5377 = vsel %vm5252, %v1547, %v5374
        %v5378 = vsel %vm5252, 0, %v5376
        %v5379 = vmul.f32 %v5377, %v5377
        %v5380 = vmul.f32 %v5379, -0.001358992
        %v5381 = vadd.f32 %v5380, 0.041655596
        %v5382 = vmul.f32 %v5379, %v5381
        %v5383 = vadd.f32 %v5382, -0.4999988
        %v5384 = vmul.f32 %v5379, %v5383
        %v5385 = vadd.f32 1.0, %v5384
        %v5386 = vmul.f32 %v5377, %v5377
        %v5387 = vmul.f32 %v5386, -0.00019511016
        %v5388 = vadd.f32 %v5387, 0.008332121
        %v5389 = vmul.f32 %v5386, %v5388
        %v5390 = vadd.f32 %v5389, -0.16666654
        %v5391 = vmul.f32 %v5386, %v5390
        %v5392 = vadd.f32 %v5391, 1.0
        %v5393 = vmul.f32 %v5392, %v5377
        %vm5394 = vweird.f32 %v1547
        %v5395 = vand.u32 %v5378, 3
        %vm5396 = vcmp.lt.s32.totalorder %v5395, 2
        %vm5397 = vcmp.eq.s32.totalorder %v5395, 0
        %v5398 = vxor.u32 %v5393, 2147483648
        %v5399 = vsel %vm5397, %v5385, %v5398
        %vm5400 = vcmp.eq.s32.totalorder %v5395, 2
        %v5401 = vxor.u32 %v5385, 2147483648
        %v5402 = vsel %vm5400, %v5401, %v5393
        %v5403 = vsel %vm5396, %v5399, %v5402
        %v5404 = vsel %vm5394, nan, %v5403
        %v5405 = vand.u32 2147483647, %v1548
        %vm5406 = vcmp.le.f32.partialorder %v5405, 0.7853982
        %vm5407 = vcmp.lt.s32.totalorder %v1548, 0
        %v5408 = vand.u32 %v1548, 2139095040
        %v5409 = vshrl.u32 %v5408, 23
        %v5410 = vsub.s32 %v5409, 127
        %v5411 = vand.u32 2147483647, %v1548
        %v5412 = vand.u32 %v5411, 8388607
        %v5413 = vor.u32 %v5412, 8388608
        %v5414 = vsub.s32 0, %v5413
        %v5415 = vadd.s32 %v5410, 1
        %vm5416 = vcmp.gt.s32.totalorder %v5415, 0
        %v5417 = vsel %vm5416, %v5415, 0
        %v5418 = vshrl.u32 %v5417, 5
        %v5419 = vand.u32 %v5417, 31
        %v5420 = vsub.s32 32, %v5419
        %v5421 = vshrl.u32 683565275, %v5420
        %v5422 = vshll.u32 683565275, %v5419
        %v5423 = vshrl.u32 2475754826, %v5420
        %v5424 = vor.u32 %v5422, %v5423
        %v5425 = vshll.u32 2475754826, %v5419
        %v5426 = vshrl.u32 2131351028, %v5420
        %v5427 = vor.u32 %v5425, %v5426
        %v5428 = vshll.u32 2131351028, %v5419
        %v5429 = vshrl.u32 2102212464, %v5420
        %v5430 = vor.u32 %v5428, %v5429
        %v5431 = vshll.u32 2102212464, %v5419
        %v5432 = vshrl.u32 920167782, %v5420
        %v5433 = vor.u32 %v5431, %v5432
        %v5434 = vshll.u32 920167782, %v5419
        %v5435 = vshrl.u32 1326507024, %v5420
        %v5436 = vor.u32 %v5434, %v5435
        %vm5437 = vcmp.lt.s32.totalorder %v5418, 1
        %vm5438 = vcmp.lt.s32.totalorder %v5418, 2
        %vm5439 = vcmp.lt.s32.totalorder %v5418, 3
        %vm5440 = vcmp.lt.s32.totalorder %v5418, 4
        %v5441 = vsel %vm5437, %v5421, %v5424
        %v5442 = vsel %vm5440, %v5430, 2102212464
        %v5443 = vsel %vm5439, %v5427, %v5442
        %v5444 = vsel %vm5438, %v5441, %v5443
        %v5445 = vsel %vm5437, %v5424, %v5427
        %v5446 = vsel %vm5440, %v5433, 920167782
        %v5447 = vsel %vm5439, %v5430, %v5446
        %v5448 = vsel %vm5438, %v5445, %v5447
        %v5449 = vsel %vm5437, %v5427, %v5430
        %v5450 = vsel %vm5440, %v5436, 1326507024
        %v5451 = vsel %vm5439, %v5433, %v5450
        %v5452 = vsel %vm5438, %v5449, %v5451
        %v5453 = vshll.u32 %v5413, 8
        %v5454 = vand.u32 %v5453, 65535
        %v5455 = vshrl.u32 %v5453, 16
        %v5456 = vand.u32 %v5452, 65535
        %v5457 = vshrl.u32 %v5452, 16
        %v5458 = vmul.u32 %v5454, %v5456
        %v5459 = vmul.u32 %v5454, %v5457
        %v5460 = vmul.u32 %v5455, %v5456
        %v5461 = vmul.u32 %v5455, %v5457
        %v5462 = vshll.u32 %v5459, 16
        %v5463 = vshrl.u32 %v5459, 16
        %v5464 = vshll.u32 %v5460, 16
        %v5465 = vshrl.u32 %v5460, 16
        %vm5466 = vc.u32 %v5458, %v5462
        %v5467 = vsel %vm5466, 1, 0
        %v5468 = vadd.s32 %v5458, %v5462
        %v5469 = vadd.s32 %v5461, %v5467
        %vm5470 = vc.u32 %v5468, %v5464
        %v5471 = vsel %vm5470, 1, 0
        %v5472 = vadd.s32 %v5468, %v5464
        %v5473 = vadd.s32 %v5469, %v5471
        %v5474 = vadd.s32 %v5473, %v5463
        %v5475 = vadd.s32 %v5474, %v5465
        %v5476 = vand.u32 %v5453, 65535
        %v5477 = vshrl.u32 %v5453, 16
        %v5478 = vand.u32 %v5448, 65535
        %v5479 = vshrl.u32 %v5448, 16
        %v5480 = vmul.u32 %v5476, %v5478
        %v5481 = vmul.u32 %v5476, %v5479
        %v5482 = vmul.u32 %v5477, %v5478
        %v5483 = vmul.u32 %v5477, %v5479
        %v5484 = vshll.u32 %v5481, 16
        %v5485 = vshrl.u32 %v5481, 16
        %v5486 = vshll.u32 %v5482, 16
        %v5487 = vshrl.u32 %v5482, 16
        %vm5488 = vc.u32 %v5480, %v5484
        %v5489 = vsel %vm5488, 1, 0
        %v5490 = vadd.s32 %v5480, %v5484
        %v5491 = vadd.s32 %v5483, %v5489
        %vm5492 = vc.u32 %v5490, %v5486
        %v5493 = vsel %vm5492, 1, 0
        %v5494 = vadd.s32 %v5490, %v5486
        %v5495 = vadd.s32 %v5491, %v5493
        %v5496 = vadd.s32 %v5495, %v5485
        %v5497 = vadd.s32 %v5496, %v5487
        %v5498 = vmul.u32 %v5453, %v5444
        %v5499 = vadd.s32 %v5475, %v5494
        %vm5500 = vc.u32 %v5475, %v5494
        %v5501 = vadd.s32 %v5497, 1
        %v5502 = vsel %vm5500, %v5501, %v5497
        %v5503 = vadd.s32 %v5498, %v5502
        %v5504 = vadd.s32 %v5503, 536870912
        %v5505 = vshrl.u32 %v5504, 30
        %v5506 = vshll.u32 %v5505, 30
        %v5507 = vsub.s32 %v5503, %v5506
        %vm5508 = vcmp.lt.s32.totalorder %v5507, 0
        %v5509 = vsub.s32 0, %v5507
        %v5510 = vsel %vm5508, %v5509, %v5507
        %v5511 = vclz %v5510
        %v5512 = vsub.s32 %v5511, 2
        %vm5513 = vcmp.gt.s32.totalorder 0, %v5512
        %v5514 = vsel %vm5513, 0, %v5512
        %v5515 = vsub.s32 32, %v5514
        %v5516 = vshll.u32 %v5507, %v5514
        %v5517 = vshrl.u32 %v5499, %v5515
        %v5518 = vor.u32 %v5516, %v5517
        %v5519 = vsub.s32 4294967266, %v5514
        %v5520 = vadd.s32 %v5519, 127
        %v5521 = vshll.u32 %v5520, 23
        %v5522 = vor.u32 4788187, %v5521
        %v5523 = vand.u32 2147483647, %v5522
        %v5525 = vcvt.s32.f32 %v5518
        %v5526 = vmul.f32 %v5525, %v5523
        %v5527 = vxor.u32 %v5526, 2147483648
        %v5528 = vsel %vm5407, %v5527, %v5526
        %v5529 = vsub.s32 4, %v5505
        %v5530 = vsel %vm5407, %v5529, %v5505
        %v5531 = vsel %vm5406, %v1548, %v5528
        %v5532 = vsel %vm5406, 0, %v5530
        %v5533 = vmul.f32 %v5531, %v5531
        %v5534 = vmul.f32 %v5533, -0.001358992
        %v5535 = vadd.f32 %v5534, 0.041655596
        %v5536 = vmul.f32 %v5533, %v5535
        %v5537 = vadd.f32 %v5536, -0.4999988
        %v5538 = vmul.f32 %v5533, %v5537
        %v5539 = vadd.f32 1.0, %v5538
        %v5540 = vmul.f32 %v5531, %v5531
        %v5541 = vmul.f32 %v5540, -0.00019511016
        %v5542 = vadd.f32 %v5541, 0.008332121
        %v5543 = vmul.f32 %v5540, %v5542
        %v5544 = vadd.f32 %v5543, -0.16666654
        %v5545 = vmul.f32 %v5540, %v5544
        %v5546 = vadd.f32 %v5545, 1.0
        %v5547 = vmul.f32 %v5546, %v5531
        %vm5548 = vweird.f32 %v1548
        %v5549 = vand.u32 %v5532, 3
        %vm5550 = vcmp.lt.s32.totalorder %v5549, 2
        %vm5551 = vcmp.eq.s32.totalorder %v5549, 0
        %v5552 = vxor.u32 %v5547, 2147483648
        %v5553 = vsel %vm5551, %v5539, %v5552
        %vm5554 = vcmp.eq.s32.totalorder %v5549, 2
        %v5555 = vxor.u32 %v5539, 2147483648
        %v5556 = vsel %vm5554, %v5555, %v5547
        %v5557 = vsel %vm5550, %v5553, %v5556
        %v5558 = vsel %vm5548, nan, %v5557
        %v5559 = vand.u32 2147483647, %v1549
        %vm5560 = vcmp.le.f32.partialorder %v5559, 0.7853982
        %vm5561 = vcmp.lt.s32.totalorder %v1549, 0
        %v5562 = vand.u32 %v1549, 2139095040
        %v5563 = vshrl.u32 %v5562, 23
        %v5564 = vsub.s32 %v5563, 127
        %v5565 = vand.u32 2147483647, %v1549
        %v5566 = vand.u32 %v5565, 8388607
        %v5567 = vor.u32 %v5566, 8388608
        %v5568 = vsub.s32 0, %v5567
        %v5569 = vadd.s32 %v5564, 1
        %vm5570 = vcmp.gt.s32.totalorder %v5569, 0
        %v5571 = vsel %vm5570, %v5569, 0
        %v5572 = vshrl.u32 %v5571, 5
        %v5573 = vand.u32 %v5571, 31
        %v5574 = vsub.s32 32, %v5573
        %v5575 = vshrl.u32 683565275, %v5574
        %v5576 = vshll.u32 683565275, %v5573
        %v5577 = vshrl.u32 2475754826, %v5574
        %v5578 = vor.u32 %v5576, %v5577
        %v5579 = vshll.u32 2475754826, %v5573
        %v5580 = vshrl.u32 2131351028, %v5574
        %v5581 = vor.u32 %v5579, %v5580
        %v5582 = vshll.u32 2131351028, %v5573
        %v5583 = vshrl.u32 2102212464, %v5574
        %v5584 = vor.u32 %v5582, %v5583
        %v5585 = vshll.u32 2102212464, %v5573
        %v5586 = vshrl.u32 920167782, %v5574
        %v5587 = vor.u32 %v5585, %v5586
        %v5588 = vshll.u32 920167782, %v5573
        %v5589 = vshrl.u32 1326507024, %v5574
        %v5590 = vor.u32 %v5588, %v5589
        %vm5591 = vcmp.lt.s32.totalorder %v5572, 1
        %vm5592 = vcmp.lt.s32.totalorder %v5572, 2
        %vm5593 = vcmp.lt.s32.totalorder %v5572, 3
        %vm5594 = vcmp.lt.s32.totalorder %v5572, 4
        %v5595 = vsel %vm5591, %v5575, %v5578
        %v5596 = vsel %vm5594, %v5584, 2102212464
        %v5597 = vsel %vm5593, %v5581, %v5596
        %v5598 = vsel %vm5592, %v5595, %v5597
        %v5599 = vsel %vm5591, %v5578, %v5581
        %v5600 = vsel %vm5594, %v5587, 920167782
        %v5601 = vsel %vm5593, %v5584, %v5600
        %v5602 = vsel %vm5592, %v5599, %v5601
        %v5603 = vsel %vm5591, %v5581, %v5584
        %v5604 = vsel %vm5594, %v5590, 1326507024
        %v5605 = vsel %vm5593, %v5587, %v5604
        %v5606 = vsel %vm5592, %v5603, %v5605
        %v5607 = vshll.u32 %v5567, 8
        %v5608 = vand.u32 %v5607, 65535
        %v5609 = vshrl.u32 %v5607, 16
        %v5610 = vand.u32 %v5606, 65535
        %v5611 = vshrl.u32 %v5606, 16
        %v5612 = vmul.u32 %v5608, %v5610
        %v5613 = vmul.u32 %v5608, %v5611
        %v5614 = vmul.u32 %v5609, %v5610
        %v5615 = vmul.u32 %v5609, %v5611
        %v5616 = vshll.u32 %v5613, 16
        %v5617 = vshrl.u32 %v5613, 16
        %v5618 = vshll.u32 %v5614, 16
        %v5619 = vshrl.u32 %v5614, 16
        %vm5620 = vc.u32 %v5612, %v5616
        %v5621 = vsel %vm5620, 1, 0
        %v5622 = vadd.s32 %v5612, %v5616
        %v5623 = vadd.s32 %v5615, %v5621
        %vm5624 = vc.u32 %v5622, %v5618
        %v5625 = vsel %vm5624, 1, 0
        %v5626 = vadd.s32 %v5622, %v5618
        %v5627 = vadd.s32 %v5623, %v5625
        %v5628 = vadd.s32 %v5627, %v5617
        %v5629 = vadd.s32 %v5628, %v5619
        %v5630 = vand.u32 %v5607, 65535
        %v5631 = vshrl.u32 %v5607, 16
        %v5632 = vand.u32 %v5602, 65535
        %v5633 = vshrl.u32 %v5602, 16
        %v5634 = vmul.u32 %v5630, %v5632
        %v5635 = vmul.u32 %v5630, %v5633
        %v5636 = vmul.u32 %v5631, %v5632
        %v5637 = vmul.u32 %v5631, %v5633
        %v5638 = vshll.u32 %v5635, 16
        %v5639 = vshrl.u32 %v5635, 16
        %v5640 = vshll.u32 %v5636, 16
        %v5641 = vshrl.u32 %v5636, 16
        %vm5642 = vc.u32 %v5634, %v5638
        %v5643 = vsel %vm5642, 1, 0
        %v5644 = vadd.s32 %v5634, %v5638
        %v5645 = vadd.s32 %v5637, %v5643
        %vm5646 = vc.u32 %v5644, %v5640
        %v5647 = vsel %vm5646, 1, 0
        %v5648 = vadd.s32 %v5644, %v5640
        %v5649 = vadd.s32 %v5645, %v5647
        %v5650 = vadd.s32 %v5649, %v5639
        %v5651 = vadd.s32 %v5650, %v5641
        %v5652 = vmul.u32 %v5607, %v5598
        %v5653 = vadd.s32 %v5629, %v5648
        %vm5654 = vc.u32 %v5629, %v5648
        %v5655 = vadd.s32 %v5651, 1
        %v5656 = vsel %vm5654, %v5655, %v5651
        %v5657 = vadd.s32 %v5652, %v5656
        %v5658 = vadd.s32 %v5657, 536870912
        %v5659 = vshrl.u32 %v5658, 30
        %v5660 = vshll.u32 %v5659, 30
        %v5661 = vsub.s32 %v5657, %v5660
        %vm5662 = vcmp.lt.s32.totalorder %v5661, 0
        %v5663 = vsub.s32 0, %v5661
        %v5664 = vsel %vm5662, %v5663, %v5661
        %v5665 = vclz %v5664
        %v5666 = vsub.s32 %v5665, 2
        %vm5667 = vcmp.gt.s32.totalorder 0, %v5666
        %v5668 = vsel %vm5667, 0, %v5666
        %v5669 = vsub.s32 32, %v5668
        %v5670 = vshll.u32 %v5661, %v5668
        %v5671 = vshrl.u32 %v5653, %v5669
        %v5672 = vor.u32 %v5670, %v5671
        %v5673 = vsub.s32 4294967266, %v5668
        %v5674 = vadd.s32 %v5673, 127
        %v5675 = vshll.u32 %v5674, 23
        %v5676 = vor.u32 4788187, %v5675
        %v5677 = vand.u32 2147483647, %v5676
        %v5679 = vcvt.s32.f32 %v5672
        %v5680 = vmul.f32 %v5679, %v5677
        %v5681 = vxor.u32 %v5680, 2147483648
        %v5682 = vsel %vm5561, %v5681, %v5680
        %v5683 = vsub.s32 4, %v5659
        %v5684 = vsel %vm5561, %v5683, %v5659
        %v5685 = vsel %vm5560, %v1549, %v5682
        %v5686 = vsel %vm5560, 0, %v5684
        %v5687 = vmul.f32 %v5685, %v5685
        %v5688 = vmul.f32 %v5687, -0.001358992
        %v5689 = vadd.f32 %v5688, 0.041655596
        %v5690 = vmul.f32 %v5687, %v5689
        %v5691 = vadd.f32 %v5690, -0.4999988
        %v5692 = vmul.f32 %v5687, %v5691
        %v5693 = vadd.f32 1.0, %v5692
        %v5694 = vmul.f32 %v5685, %v5685
        %v5695 = vmul.f32 %v5694, -0.00019511016
        %v5696 = vadd.f32 %v5695, 0.008332121
        %v5697 = vmul.f32 %v5694, %v5696
        %v5698 = vadd.f32 %v5697, -0.16666654
        %v5699 = vmul.f32 %v5694, %v5698
        %v5700 = vadd.f32 %v5699, 1.0
        %v5701 = vmul.f32 %v5700, %v5685
        %vm5702 = vweird.f32 %v1549
        %v5703 = vand.u32 %v5686, 3
        %vm5704 = vcmp.lt.s32.totalorder %v5703, 2
        %vm5705 = vcmp.eq.s32.totalorder %v5703, 0
        %v5706 = vxor.u32 %v5701, 2147483648
        %v5707 = vsel %vm5705, %v5693, %v5706
        %vm5708 = vcmp.eq.s32.totalorder %v5703, 2
        %v5709 = vxor.u32 %v5693, 2147483648
        %v5710 = vsel %vm5708, %v5709, %v5701
        %v5711 = vsel %vm5704, %v5707, %v5710
        %v5712 = vsel %vm5702, nan, %v5711
        %v5713 = vand.u32 2147483647, %v1550
        %vm5714 = vcmp.le.f32.partialorder %v5713, 0.7853982
        %vm5715 = vcmp.lt.s32.totalorder %v1550, 0
        %v5716 = vand.u32 %v1550, 2139095040
        %v5717 = vshrl.u32 %v5716, 23
        %v5718 = vsub.s32 %v5717, 127
        %v5719 = vand.u32 2147483647, %v1550
        %v5720 = vand.u32 %v5719, 8388607
        %v5721 = vor.u32 %v5720, 8388608
        %v5722 = vsub.s32 0, %v5721
        %v5723 = vadd.s32 %v5718, 1
        %vm5724 = vcmp.gt.s32.totalorder %v5723, 0
        %v5725 = vsel %vm5724, %v5723, 0
        %v5726 = vshrl.u32 %v5725, 5
        %v5727 = vand.u32 %v5725, 31
        %v5728 = vsub.s32 32, %v5727
        %v5729 = vshrl.u32 683565275, %v5728
        %v5730 = vshll.u32 683565275, %v5727
        %v5731 = vshrl.u32 2475754826, %v5728
        %v5732 = vor.u32 %v5730, %v5731
        %v5733 = vshll.u32 2475754826, %v5727
        %v5734 = vshrl.u32 2131351028, %v5728
        %v5735 = vor.u32 %v5733, %v5734
        %v5736 = vshll.u32 2131351028, %v5727
        %v5737 = vshrl.u32 2102212464, %v5728
        %v5738 = vor.u32 %v5736, %v5737
        %v5739 = vshll.u32 2102212464, %v5727
        %v5740 = vshrl.u32 920167782, %v5728
        %v5741 = vor.u32 %v5739, %v5740
        %v5742 = vshll.u32 920167782, %v5727
        %v5743 = vshrl.u32 1326507024, %v5728
        %v5744 = vor.u32 %v5742, %v5743
        %vm5745 = vcmp.lt.s32.totalorder %v5726, 1
        %vm5746 = vcmp.lt.s32.totalorder %v5726, 2
        %vm5747 = vcmp.lt.s32.totalorder %v5726, 3
        %vm5748 = vcmp.lt.s32.totalorder %v5726, 4
        %v5749 = vsel %vm5745, %v5729, %v5732
        %v5750 = vsel %vm5748, %v5738, 2102212464
        %v5751 = vsel %vm5747, %v5735, %v5750
        %v5752 = vsel %vm5746, %v5749, %v5751
        %v5753 = vsel %vm5745, %v5732, %v5735
        %v5754 = vsel %vm5748, %v5741, 920167782
        %v5755 = vsel %vm5747, %v5738, %v5754
        %v5756 = vsel %vm5746, %v5753, %v5755
        %v5757 = vsel %vm5745, %v5735, %v5738
        %v5758 = vsel %vm5748, %v5744, 1326507024
        %v5759 = vsel %vm5747, %v5741, %v5758
        %v5760 = vsel %vm5746, %v5757, %v5759
        %v5761 = vshll.u32 %v5721, 8
        %v5762 = vand.u32 %v5761, 65535
        %v5763 = vshrl.u32 %v5761, 16
        %v5764 = vand.u32 %v5760, 65535
        %v5765 = vshrl.u32 %v5760, 16
        %v5766 = vmul.u32 %v5762, %v5764
        %v5767 = vmul.u32 %v5762, %v5765
        %v5768 = vmul.u32 %v5763, %v5764
        %v5769 = vmul.u32 %v5763, %v5765
        %v5770 = vshll.u32 %v5767, 16
        %v5771 = vshrl.u32 %v5767, 16
        %v5772 = vshll.u32 %v5768, 16
        %v5773 = vshrl.u32 %v5768, 16
        %vm5774 = vc.u32 %v5766, %v5770
        %v5775 = vsel %vm5774, 1, 0
        %v5776 = vadd.s32 %v5766, %v5770
        %v5777 = vadd.s32 %v5769, %v5775
        %vm5778 = vc.u32 %v5776, %v5772
        %v5779 = vsel %vm5778, 1, 0
        %v5780 = vadd.s32 %v5776, %v5772
        %v5781 = vadd.s32 %v5777, %v5779
        %v5782 = vadd.s32 %v5781, %v5771
        %v5783 = vadd.s32 %v5782, %v5773
        %v5784 = vand.u32 %v5761, 65535
        %v5785 = vshrl.u32 %v5761, 16
        %v5786 = vand.u32 %v5756, 65535
        %v5787 = vshrl.u32 %v5756, 16
        %v5788 = vmul.u32 %v5784, %v5786
        %v5789 = vmul.u32 %v5784, %v5787
        %v5790 = vmul.u32 %v5785, %v5786
        %v5791 = vmul.u32 %v5785, %v5787
        %v5792 = vshll.u32 %v5789, 16
        %v5793 = vshrl.u32 %v5789, 16
        %v5794 = vshll.u32 %v5790, 16
        %v5795 = vshrl.u32 %v5790, 16
        %vm5796 = vc.u32 %v5788, %v5792
        %v5797 = vsel %vm5796, 1, 0
        %v5798 = vadd.s32 %v5788, %v5792
        %v5799 = vadd.s32 %v5791, %v5797
        %vm5800 = vc.u32 %v5798, %v5794
        %v5801 = vsel %vm5800, 1, 0
        %v5802 = vadd.s32 %v5798, %v5794
        %v5803 = vadd.s32 %v5799, %v5801
        %v5804 = vadd.s32 %v5803, %v5793
        %v5805 = vadd.s32 %v5804, %v5795
        %v5806 = vmul.u32 %v5761, %v5752
        %v5807 = vadd.s32 %v5783, %v5802
        %vm5808 = vc.u32 %v5783, %v5802
        %v5809 = vadd.s32 %v5805, 1
        %v5810 = vsel %vm5808, %v5809, %v5805
        %v5811 = vadd.s32 %v5806, %v5810
        %v5812 = vadd.s32 %v5811, 536870912
        %v5813 = vshrl.u32 %v5812, 30
        %v5814 = vshll.u32 %v5813, 30
        %v5815 = vsub.s32 %v5811, %v5814
        %vm5816 = vcmp.lt.s32.totalorder %v5815, 0
        %v5817 = vsub.s32 0, %v5815
        %v5818 = vsel %vm5816, %v5817, %v5815
        %v5819 = vclz %v5818
        %v5820 = vsub.s32 %v5819, 2
        %vm5821 = vcmp.gt.s32.totalorder 0, %v5820
        %v5822 = vsel %vm5821, 0, %v5820
        %v5823 = vsub.s32 32, %v5822
        %v5824 = vshll.u32 %v5815, %v5822
        %v5825 = vshrl.u32 %v5807, %v5823
        %v5826 = vor.u32 %v5824, %v5825
        %v5827 = vsub.s32 4294967266, %v5822
        %v5828 = vadd.s32 %v5827, 127
        %v5829 = vshll.u32 %v5828, 23
        %v5830 = vor.u32 4788187, %v5829
        %v5831 = vand.u32 2147483647, %v5830
        %v5833 = vcvt.s32.f32 %v5826
        %v5834 = vmul.f32 %v5833, %v5831
        %v5835 = vxor.u32 %v5834, 2147483648
        %v5836 = vsel %vm5715, %v5835, %v5834
        %v5837 = vsub.s32 4, %v5813
        %v5838 = vsel %vm5715, %v5837, %v5813
        %v5839 = vsel %vm5714, %v1550, %v5836
        %v5840 = vsel %vm5714, 0, %v5838
        %v5841 = vmul.f32 %v5839, %v5839
        %v5842 = vmul.f32 %v5841, -0.001358992
        %v5843 = vadd.f32 %v5842, 0.041655596
        %v5844 = vmul.f32 %v5841, %v5843
        %v5845 = vadd.f32 %v5844, -0.4999988
        %v5846 = vmul.f32 %v5841, %v5845
        %v5847 = vadd.f32 1.0, %v5846
        %v5848 = vmul.f32 %v5839, %v5839
        %v5849 = vmul.f32 %v5848, -0.00019511016
        %v5850 = vadd.f32 %v5849, 0.008332121
        %v5851 = vmul.f32 %v5848, %v5850
        %v5852 = vadd.f32 %v5851, -0.16666654
        %v5853 = vmul.f32 %v5848, %v5852
        %v5854 = vadd.f32 %v5853, 1.0
        %v5855 = vmul.f32 %v5854, %v5839
        %vm5856 = vweird.f32 %v1550
        %v5857 = vand.u32 %v5840, 3
        %vm5858 = vcmp.lt.s32.totalorder %v5857, 2
        %vm5859 = vcmp.eq.s32.totalorder %v5857, 0
        %v5860 = vxor.u32 %v5855, 2147483648
        %v5861 = vsel %vm5859, %v5847, %v5860
        %vm5862 = vcmp.eq.s32.totalorder %v5857, 2
        %v5863 = vxor.u32 %v5847, 2147483648
        %v5864 = vsel %vm5862, %v5863, %v5855
        %v5865 = vsel %vm5858, %v5861, %v5864
        %v5866 = vsel %vm5856, nan, %v5865
        %v5867 = vand.u32 2147483647, %v1551
        %vm5868 = vcmp.le.f32.partialorder %v5867, 0.7853982
        %vm5869 = vcmp.lt.s32.totalorder %v1551, 0
        %v5870 = vand.u32 %v1551, 2139095040
        %v5871 = vshrl.u32 %v5870, 23
        %v5872 = vsub.s32 %v5871, 127
        %v5873 = vand.u32 2147483647, %v1551
        %v5874 = vand.u32 %v5873, 8388607
        %v5875 = vor.u32 %v5874, 8388608
        %v5876 = vsub.s32 0, %v5875
        %v5877 = vadd.s32 %v5872, 1
        %vm5878 = vcmp.gt.s32.totalorder %v5877, 0
        %v5879 = vsel %vm5878, %v5877, 0
        %v5880 = vshrl.u32 %v5879, 5
        %v5881 = vand.u32 %v5879, 31
        %v5882 = vsub.s32 32, %v5881
        %v5883 = vshrl.u32 683565275, %v5882
        %v5884 = vshll.u32 683565275, %v5881
        %v5885 = vshrl.u32 2475754826, %v5882
        %v5886 = vor.u32 %v5884, %v5885
        %v5887 = vshll.u32 2475754826, %v5881
        %v5888 = vshrl.u32 2131351028, %v5882
        %v5889 = vor.u32 %v5887, %v5888
        %v5890 = vshll.u32 2131351028, %v5881
        %v5891 = vshrl.u32 2102212464, %v5882
        %v5892 = vor.u32 %v5890, %v5891
        %v5893 = vshll.u32 2102212464, %v5881
        %v5894 = vshrl.u32 920167782, %v5882
        %v5895 = vor.u32 %v5893, %v5894
        %v5896 = vshll.u32 920167782, %v5881
        %v5897 = vshrl.u32 1326507024, %v5882
        %v5898 = vor.u32 %v5896, %v5897
        %vm5899 = vcmp.lt.s32.totalorder %v5880, 1
        %vm5900 = vcmp.lt.s32.totalorder %v5880, 2
        %vm5901 = vcmp.lt.s32.totalorder %v5880, 3
        %vm5902 = vcmp.lt.s32.totalorder %v5880, 4
        %v5903 = vsel %vm5899, %v5883, %v5886
        %v5904 = vsel %vm5902, %v5892, 2102212464
        %v5905 = vsel %vm5901, %v5889, %v5904
        %v5906 = vsel %vm5900, %v5903, %v5905
        %v5907 = vsel %vm5899, %v5886, %v5889
        %v5908 = vsel %vm5902, %v5895, 920167782
        %v5909 = vsel %vm5901, %v5892, %v5908
        %v5910 = vsel %vm5900, %v5907, %v5909
        %v5911 = vsel %vm5899, %v5889, %v5892
        %v5912 = vsel %vm5902, %v5898, 1326507024
        %v5913 = vsel %vm5901, %v5895, %v5912
        %v5914 = vsel %vm5900, %v5911, %v5913
        %v5915 = vshll.u32 %v5875, 8
        %v5916 = vand.u32 %v5915, 65535
        %v5917 = vshrl.u32 %v5915, 16
        %v5918 = vand.u32 %v5914, 65535
        %v5919 = vshrl.u32 %v5914, 16
        %v5920 = vmul.u32 %v5916, %v5918
        %v5921 = vmul.u32 %v5916, %v5919
        %v5922 = vmul.u32 %v5917, %v5918
        %v5923 = vmul.u32 %v5917, %v5919
        %v5924 = vshll.u32 %v5921, 16
        %v5925 = vshrl.u32 %v5921, 16
        %v5926 = vshll.u32 %v5922, 16
        %v5927 = vshrl.u32 %v5922, 16
        %vm5928 = vc.u32 %v5920, %v5924
        %v5929 = vsel %vm5928, 1, 0
        %v5930 = vadd.s32 %v5920, %v5924
        %v5931 = vadd.s32 %v5923, %v5929
        %vm5932 = vc.u32 %v5930, %v5926
        %v5933 = vsel %vm5932, 1, 0
        %v5934 = vadd.s32 %v5930, %v5926
        %v5935 = vadd.s32 %v5931, %v5933
        %v5936 = vadd.s32 %v5935, %v5925
        %v5937 = vadd.s32 %v5936, %v5927
        %v5938 = vand.u32 %v5915, 65535
        %v5939 = vshrl.u32 %v5915, 16
        %v5940 = vand.u32 %v5910, 65535
        %v5941 = vshrl.u32 %v5910, 16
        %v5942 = vmul.u32 %v5938, %v5940
        %v5943 = vmul.u32 %v5938, %v5941
        %v5944 = vmul.u32 %v5939, %v5940
        %v5945 = vmul.u32 %v5939, %v5941
        %v5946 = vshll.u32 %v5943, 16
        %v5947 = vshrl.u32 %v5943, 16
        %v5948 = vshll.u32 %v5944, 16
        %v5949 = vshrl.u32 %v5944, 16
        %vm5950 = vc.u32 %v5942, %v5946
        %v5951 = vsel %vm5950, 1, 0
        %v5952 = vadd.s32 %v5942, %v5946
        %v5953 = vadd.s32 %v5945, %v5951
        %vm5954 = vc.u32 %v5952, %v5948
        %v5955 = vsel %vm5954, 1, 0
        %v5956 = vadd.s32 %v5952, %v5948
        %v5957 = vadd.s32 %v5953, %v5955
        %v5958 = vadd.s32 %v5957, %v5947
        %v5959 = vadd.s32 %v5958, %v5949
        %v5960 = vmul.u32 %v5915, %v5906
        %v5961 = vadd.s32 %v5937, %v5956
        %vm5962 = vc.u32 %v5937, %v5956
        %v5963 = vadd.s32 %v5959, 1
        %v5964 = vsel %vm5962, %v5963, %v5959
        %v5965 = vadd.s32 %v5960, %v5964
        %v5966 = vadd.s32 %v5965, 536870912
        %v5967 = vshrl.u32 %v5966, 30
        %v5968 = vshll.u32 %v5967, 30
        %v5969 = vsub.s32 %v5965, %v5968
        %vm5970 = vcmp.lt.s32.totalorder %v5969, 0
        %v5971 = vsub.s32 0, %v5969
        %v5972 = vsel %vm5970, %v5971, %v5969
        %v5973 = vclz %v5972
        %v5974 = vsub.s32 %v5973, 2
        %vm5975 = vcmp.gt.s32.totalorder 0, %v5974
        %v5976 = vsel %vm5975, 0, %v5974
        %v5977 = vsub.s32 32, %v5976
        %v5978 = vshll.u32 %v5969, %v5976
        %v5979 = vshrl.u32 %v5961, %v5977
        %v5980 = vor.u32 %v5978, %v5979
        %v5981 = vsub.s32 4294967266, %v5976
        %v5982 = vadd.s32 %v5981, 127
        %v5983 = vshll.u32 %v5982, 23
        %v5984 = vor.u32 4788187, %v5983
        %v5985 = vand.u32 2147483647, %v5984
        %v5987 = vcvt.s32.f32 %v5980
        %v5988 = vmul.f32 %v5987, %v5985
        %v5989 = vxor.u32 %v5988, 2147483648
        %v5990 = vsel %vm5869, %v5989, %v5988
        %v5991 = vsub.s32 4, %v5967
        %v5992 = vsel %vm5869, %v5991, %v5967
        %v5993 = vsel %vm5868, %v1551, %v5990
        %v5994 = vsel %vm5868, 0, %v5992
        %v5995 = vmul.f32 %v5993, %v5993
        %v5996 = vmul.f32 %v5995, -0.001358992
        %v5997 = vadd.f32 %v5996, 0.041655596
        %v5998 = vmul.f32 %v5995, %v5997
        %v5999 = vadd.f32 %v5998, -0.4999988
        %v6000 = vmul.f32 %v5995, %v5999
        %v6001 = vadd.f32 1.0, %v6000
        %v6002 = vmul.f32 %v5993, %v5993
        %v6003 = vmul.f32 %v6002, -0.00019511016
        %v6004 = vadd.f32 %v6003, 0.008332121
        %v6005 = vmul.f32 %v6002, %v6004
        %v6006 = vadd.f32 %v6005, -0.16666654
        %v6007 = vmul.f32 %v6002, %v6006
        %v6008 = vadd.f32 %v6007, 1.0
        %v6009 = vmul.f32 %v6008, %v5993
        %vm6010 = vweird.f32 %v1551
        %v6011 = vand.u32 %v5994, 3
        %vm6012 = vcmp.lt.s32.totalorder %v6011, 2
        %vm6013 = vcmp.eq.s32.totalorder %v6011, 0
        %v6014 = vxor.u32 %v6009, 2147483648
        %v6015 = vsel %vm6013, %v6001, %v6014
        %vm6016 = vcmp.eq.s32.totalorder %v6011, 2
        %v6017 = vxor.u32 %v6001, 2147483648
        %v6018 = vsel %vm6016, %v6017, %v6009
        %v6019 = vsel %vm6012, %v6015, %v6018
        %v6020 = vsel %vm6010, nan, %v6019
        %v6021 = vand.u32 2147483647, %v1552
        %vm6022 = vcmp.le.f32.partialorder %v6021, 0.7853982
        %vm6023 = vcmp.lt.s32.totalorder %v1552, 0
        %v6024 = vand.u32 %v1552, 2139095040
        %v6025 = vshrl.u32 %v6024, 23
        %v6026 = vsub.s32 %v6025, 127
        %v6027 = vand.u32 2147483647, %v1552
        %v6028 = vand.u32 %v6027, 8388607
        %v6029 = vor.u32 %v6028, 8388608
        %v6030 = vsub.s32 0, %v6029
        %v6031 = vadd.s32 %v6026, 1
        %vm6032 = vcmp.gt.s32.totalorder %v6031, 0
        %v6033 = vsel %vm6032, %v6031, 0
        %v6034 = vshrl.u32 %v6033, 5
        %v6035 = vand.u32 %v6033, 31
        %v6036 = vsub.s32 32, %v6035
        %v6037 = vshrl.u32 683565275, %v6036
        %v6038 = vshll.u32 683565275, %v6035
        %v6039 = vshrl.u32 2475754826, %v6036
        %v6040 = vor.u32 %v6038, %v6039
        %v6041 = vshll.u32 2475754826, %v6035
        %v6042 = vshrl.u32 2131351028, %v6036
        %v6043 = vor.u32 %v6041, %v6042
        %v6044 = vshll.u32 2131351028, %v6035
        %v6045 = vshrl.u32 2102212464, %v6036
        %v6046 = vor.u32 %v6044, %v6045
        %v6047 = vshll.u32 2102212464, %v6035
        %v6048 = vshrl.u32 920167782, %v6036
        %v6049 = vor.u32 %v6047, %v6048
        %v6050 = vshll.u32 920167782, %v6035
        %v6051 = vshrl.u32 1326507024, %v6036
        %v6052 = vor.u32 %v6050, %v6051
        %vm6053 = vcmp.lt.s32.totalorder %v6034, 1
        %vm6054 = vcmp.lt.s32.totalorder %v6034, 2
        %vm6055 = vcmp.lt.s32.totalorder %v6034, 3
        %vm6056 = vcmp.lt.s32.totalorder %v6034, 4
        %v6057 = vsel %vm6053, %v6037, %v6040
        %v6058 = vsel %vm6056, %v6046, 2102212464
        %v6059 = vsel %vm6055, %v6043, %v6058
        %v6060 = vsel %vm6054, %v6057, %v6059
        %v6061 = vsel %vm6053, %v6040, %v6043
        %v6062 = vsel %vm6056, %v6049, 920167782
        %v6063 = vsel %vm6055, %v6046, %v6062
        %v6064 = vsel %vm6054, %v6061, %v6063
        %v6065 = vsel %vm6053, %v6043, %v6046
        %v6066 = vsel %vm6056, %v6052, 1326507024
        %v6067 = vsel %vm6055, %v6049, %v6066
        %v6068 = vsel %vm6054, %v6065, %v6067
        %v6069 = vshll.u32 %v6029, 8
        %v6070 = vand.u32 %v6069, 65535
        %v6071 = vshrl.u32 %v6069, 16
        %v6072 = vand.u32 %v6068, 65535
        %v6073 = vshrl.u32 %v6068, 16
        %v6074 = vmul.u32 %v6070, %v6072
        %v6075 = vmul.u32 %v6070, %v6073
        %v6076 = vmul.u32 %v6071, %v6072
        %v6077 = vmul.u32 %v6071, %v6073
        %v6078 = vshll.u32 %v6075, 16
        %v6079 = vshrl.u32 %v6075, 16
        %v6080 = vshll.u32 %v6076, 16
        %v6081 = vshrl.u32 %v6076, 16
        %vm6082 = vc.u32 %v6074, %v6078
        %v6083 = vsel %vm6082, 1, 0
        %v6084 = vadd.s32 %v6074, %v6078
        %v6085 = vadd.s32 %v6077, %v6083
        %vm6086 = vc.u32 %v6084, %v6080
        %v6087 = vsel %vm6086, 1, 0
        %v6088 = vadd.s32 %v6084, %v6080
        %v6089 = vadd.s32 %v6085, %v6087
        %v6090 = vadd.s32 %v6089, %v6079
        %v6091 = vadd.s32 %v6090, %v6081
        %v6092 = vand.u32 %v6069, 65535
        %v6093 = vshrl.u32 %v6069, 16
        %v6094 = vand.u32 %v6064, 65535
        %v6095 = vshrl.u32 %v6064, 16
        %v6096 = vmul.u32 %v6092, %v6094
        %v6097 = vmul.u32 %v6092, %v6095
        %v6098 = vmul.u32 %v6093, %v6094
        %v6099 = vmul.u32 %v6093, %v6095
        %v6100 = vshll.u32 %v6097, 16
        %v6101 = vshrl.u32 %v6097, 16
        %v6102 = vshll.u32 %v6098, 16
        %v6103 = vshrl.u32 %v6098, 16
        %vm6104 = vc.u32 %v6096, %v6100
        %v6105 = vsel %vm6104, 1, 0
        %v6106 = vadd.s32 %v6096, %v6100
        %v6107 = vadd.s32 %v6099, %v6105
        %vm6108 = vc.u32 %v6106, %v6102
        %v6109 = vsel %vm6108, 1, 0
        %v6110 = vadd.s32 %v6106, %v6102
        %v6111 = vadd.s32 %v6107, %v6109
        %v6112 = vadd.s32 %v6111, %v6101
        %v6113 = vadd.s32 %v6112, %v6103
        %v6114 = vmul.u32 %v6069, %v6060
        %v6115 = vadd.s32 %v6091, %v6110
        %vm6116 = vc.u32 %v6091, %v6110
        %v6117 = vadd.s32 %v6113, 1
        %v6118 = vsel %vm6116, %v6117, %v6113
        %v6119 = vadd.s32 %v6114, %v6118
        %v6120 = vadd.s32 %v6119, 536870912
        %v6121 = vshrl.u32 %v6120, 30
        %v6122 = vshll.u32 %v6121, 30
        %v6123 = vsub.s32 %v6119, %v6122
        %vm6124 = vcmp.lt.s32.totalorder %v6123, 0
        %v6125 = vsub.s32 0, %v6123
        %v6126 = vsel %vm6124, %v6125, %v6123
        %v6127 = vclz %v6126
        %v6128 = vsub.s32 %v6127, 2
        %vm6129 = vcmp.gt.s32.totalorder 0, %v6128
        %v6130 = vsel %vm6129, 0, %v6128
        %v6131 = vsub.s32 32, %v6130
        %v6132 = vshll.u32 %v6123, %v6130
        %v6133 = vshrl.u32 %v6115, %v6131
        %v6134 = vor.u32 %v6132, %v6133
        %v6135 = vsub.s32 4294967266, %v6130
        %v6136 = vadd.s32 %v6135, 127
        %v6137 = vshll.u32 %v6136, 23
        %v6138 = vor.u32 4788187, %v6137
        %v6139 = vand.u32 2147483647, %v6138
        %v6141 = vcvt.s32.f32 %v6134
        %v6142 = vmul.f32 %v6141, %v6139
        %v6143 = vxor.u32 %v6142, 2147483648
        %v6144 = vsel %vm6023, %v6143, %v6142
        %v6145 = vsub.s32 4, %v6121
        %v6146 = vsel %vm6023, %v6145, %v6121
        %v6147 = vsel %vm6022, %v1552, %v6144
        %v6148 = vsel %vm6022, 0, %v6146
        %v6149 = vmul.f32 %v6147, %v6147
        %v6150 = vmul.f32 %v6149, -0.001358992
        %v6151 = vadd.f32 %v6150, 0.041655596
        %v6152 = vmul.f32 %v6149, %v6151
        %v6153 = vadd.f32 %v6152, -0.4999988
        %v6154 = vmul.f32 %v6149, %v6153
        %v6155 = vadd.f32 1.0, %v6154
        %v6156 = vmul.f32 %v6147, %v6147
        %v6157 = vmul.f32 %v6156, -0.00019511016
        %v6158 = vadd.f32 %v6157, 0.008332121
        %v6159 = vmul.f32 %v6156, %v6158
        %v6160 = vadd.f32 %v6159, -0.16666654
        %v6161 = vmul.f32 %v6156, %v6160
        %v6162 = vadd.f32 %v6161, 1.0
        %v6163 = vmul.f32 %v6162, %v6147
        %vm6164 = vweird.f32 %v1552
        %v6165 = vand.u32 %v6148, 3
        %vm6166 = vcmp.lt.s32.totalorder %v6165, 2
        %vm6167 = vcmp.eq.s32.totalorder %v6165, 0
        %v6168 = vxor.u32 %v6163, 2147483648
        %v6169 = vsel %vm6167, %v6155, %v6168
        %vm6170 = vcmp.eq.s32.totalorder %v6165, 2
        %v6171 = vxor.u32 %v6155, 2147483648
        %v6172 = vsel %vm6170, %v6171, %v6163
        %v6173 = vsel %vm6166, %v6169, %v6172
        %v6174 = vsel %vm6164, nan, %v6173
        %v6175 = vand.u32 2147483647, %v1553
        %vm6176 = vcmp.le.f32.partialorder %v6175, 0.7853982
        %vm6177 = vcmp.lt.s32.totalorder %v1553, 0
        %v6178 = vand.u32 %v1553, 2139095040
        %v6179 = vshrl.u32 %v6178, 23
        %v6180 = vsub.s32 %v6179, 127
        %v6181 = vand.u32 2147483647, %v1553
        %v6182 = vand.u32 %v6181, 8388607
        %v6183 = vor.u32 %v6182, 8388608
        %v6184 = vsub.s32 0, %v6183
        %v6185 = vadd.s32 %v6180, 1
        %vm6186 = vcmp.gt.s32.totalorder %v6185, 0
        %v6187 = vsel %vm6186, %v6185, 0
        %v6188 = vshrl.u32 %v6187, 5
        %v6189 = vand.u32 %v6187, 31
        %v6190 = vsub.s32 32, %v6189
        %v6191 = vshrl.u32 683565275, %v6190
        %v6192 = vshll.u32 683565275, %v6189
        %v6193 = vshrl.u32 2475754826, %v6190
        %v6194 = vor.u32 %v6192, %v6193
        %v6195 = vshll.u32 2475754826, %v6189
        %v6196 = vshrl.u32 2131351028, %v6190
        %v6197 = vor.u32 %v6195, %v6196
        %v6198 = vshll.u32 2131351028, %v6189
        %v6199 = vshrl.u32 2102212464, %v6190
        %v6200 = vor.u32 %v6198, %v6199
        %v6201 = vshll.u32 2102212464, %v6189
        %v6202 = vshrl.u32 920167782, %v6190
        %v6203 = vor.u32 %v6201, %v6202
        %v6204 = vshll.u32 920167782, %v6189
        %v6205 = vshrl.u32 1326507024, %v6190
        %v6206 = vor.u32 %v6204, %v6205
        %vm6207 = vcmp.lt.s32.totalorder %v6188, 1
        %vm6208 = vcmp.lt.s32.totalorder %v6188, 2
        %vm6209 = vcmp.lt.s32.totalorder %v6188, 3
        %vm6210 = vcmp.lt.s32.totalorder %v6188, 4
        %v6211 = vsel %vm6207, %v6191, %v6194
        %v6212 = vsel %vm6210, %v6200, 2102212464
        %v6213 = vsel %vm6209, %v6197, %v6212
        %v6214 = vsel %vm6208, %v6211, %v6213
        %v6215 = vsel %vm6207, %v6194, %v6197
        %v6216 = vsel %vm6210, %v6203, 920167782
        %v6217 = vsel %vm6209, %v6200, %v6216
        %v6218 = vsel %vm6208, %v6215, %v6217
        %v6219 = vsel %vm6207, %v6197, %v6200
        %v6220 = vsel %vm6210, %v6206, 1326507024
        %v6221 = vsel %vm6209, %v6203, %v6220
        %v6222 = vsel %vm6208, %v6219, %v6221
        %v6223 = vshll.u32 %v6183, 8
        %v6224 = vand.u32 %v6223, 65535
        %v6225 = vshrl.u32 %v6223, 16
        %v6226 = vand.u32 %v6222, 65535
        %v6227 = vshrl.u32 %v6222, 16
        %v6228 = vmul.u32 %v6224, %v6226
        %v6229 = vmul.u32 %v6224, %v6227
        %v6230 = vmul.u32 %v6225, %v6226
        %v6231 = vmul.u32 %v6225, %v6227
        %v6232 = vshll.u32 %v6229, 16
        %v6233 = vshrl.u32 %v6229, 16
        %v6234 = vshll.u32 %v6230, 16
        %v6235 = vshrl.u32 %v6230, 16
        %vm6236 = vc.u32 %v6228, %v6232
        %v6237 = vsel %vm6236, 1, 0
        %v6238 = vadd.s32 %v6228, %v6232
        %v6239 = vadd.s32 %v6231, %v6237
        %vm6240 = vc.u32 %v6238, %v6234
        %v6241 = vsel %vm6240, 1, 0
        %v6242 = vadd.s32 %v6238, %v6234
        %v6243 = vadd.s32 %v6239, %v6241
        %v6244 = vadd.s32 %v6243, %v6233
        %v6245 = vadd.s32 %v6244, %v6235
        %v6246 = vand.u32 %v6223, 65535
        %v6247 = vshrl.u32 %v6223, 16
        %v6248 = vand.u32 %v6218, 65535
        %v6249 = vshrl.u32 %v6218, 16
        %v6250 = vmul.u32 %v6246, %v6248
        %v6251 = vmul.u32 %v6246, %v6249
        %v6252 = vmul.u32 %v6247, %v6248
        %v6253 = vmul.u32 %v6247, %v6249
        %v6254 = vshll.u32 %v6251, 16
        %v6255 = vshrl.u32 %v6251, 16
        %v6256 = vshll.u32 %v6252, 16
        %v6257 = vshrl.u32 %v6252, 16
        %vm6258 = vc.u32 %v6250, %v6254
        %v6259 = vsel %vm6258, 1, 0
        %v6260 = vadd.s32 %v6250, %v6254
        %v6261 = vadd.s32 %v6253, %v6259
        %vm6262 = vc.u32 %v6260, %v6256
        %v6263 = vsel %vm6262, 1, 0
        %v6264 = vadd.s32 %v6260, %v6256
        %v6265 = vadd.s32 %v6261, %v6263
        %v6266 = vadd.s32 %v6265, %v6255
        %v6267 = vadd.s32 %v6266, %v6257
        %v6268 = vmul.u32 %v6223, %v6214
        %v6269 = vadd.s32 %v6245, %v6264
        %vm6270 = vc.u32 %v6245, %v6264
        %v6271 = vadd.s32 %v6267, 1
        %v6272 = vsel %vm6270, %v6271, %v6267
        %v6273 = vadd.s32 %v6268, %v6272
        %v6274 = vadd.s32 %v6273, 536870912
        %v6275 = vshrl.u32 %v6274, 30
        %v6276 = vshll.u32 %v6275, 30
        %v6277 = vsub.s32 %v6273, %v6276
        %vm6278 = vcmp.lt.s32.totalorder %v6277, 0
        %v6279 = vsub.s32 0, %v6277
        %v6280 = vsel %vm6278, %v6279, %v6277
        %v6281 = vclz %v6280
        %v6282 = vsub.s32 %v6281, 2
        %vm6283 = vcmp.gt.s32.totalorder 0, %v6282
        %v6284 = vsel %vm6283, 0, %v6282
        %v6285 = vsub.s32 32, %v6284
        %v6286 = vshll.u32 %v6277, %v6284
        %v6287 = vshrl.u32 %v6269, %v6285
        %v6288 = vor.u32 %v6286, %v6287
        %v6289 = vsub.s32 4294967266, %v6284
        %v6290 = vadd.s32 %v6289, 127
        %v6291 = vshll.u32 %v6290, 23
        %v6292 = vor.u32 4788187, %v6291
        %v6293 = vand.u32 2147483647, %v6292
        %v6295 = vcvt.s32.f32 %v6288
        %v6296 = vmul.f32 %v6295, %v6293
        %v6297 = vxor.u32 %v6296, 2147483648
        %v6298 = vsel %vm6177, %v6297, %v6296
        %v6299 = vsub.s32 4, %v6275
        %v6300 = vsel %vm6177, %v6299, %v6275
        %v6301 = vsel %vm6176, %v1553, %v6298
        %v6302 = vsel %vm6176, 0, %v6300
        %v6303 = vmul.f32 %v6301, %v6301
        %v6304 = vmul.f32 %v6303, -0.001358992
        %v6305 = vadd.f32 %v6304, 0.041655596
        %v6306 = vmul.f32 %v6303, %v6305
        %v6307 = vadd.f32 %v6306, -0.4999988
        %v6308 = vmul.f32 %v6303, %v6307
        %v6309 = vadd.f32 1.0, %v6308
        %v6310 = vmul.f32 %v6301, %v6301
        %v6311 = vmul.f32 %v6310, -0.00019511016
        %v6312 = vadd.f32 %v6311, 0.008332121
        %v6313 = vmul.f32 %v6310, %v6312
        %v6314 = vadd.f32 %v6313, -0.16666654
        %v6315 = vmul.f32 %v6310, %v6314
        %v6316 = vadd.f32 %v6315, 1.0
        %v6317 = vmul.f32 %v6316, %v6301
        %vm6318 = vweird.f32 %v1553
        %v6319 = vand.u32 %v6302, 3
        %vm6320 = vcmp.lt.s32.totalorder %v6319, 2
        %vm6321 = vcmp.eq.s32.totalorder %v6319, 0
        %v6322 = vxor.u32 %v6317, 2147483648
        %v6323 = vsel %vm6321, %v6309, %v6322
        %vm6324 = vcmp.eq.s32.totalorder %v6319, 2
        %v6325 = vxor.u32 %v6309, 2147483648
        %v6326 = vsel %vm6324, %v6325, %v6317
        %v6327 = vsel %vm6320, %v6323, %v6326
        %v6328 = vsel %vm6318, nan, %v6327
        %v6329 = vand.u32 2147483647, %v1554
        %vm6330 = vcmp.le.f32.partialorder %v6329, 0.7853982
        %vm6331 = vcmp.lt.s32.totalorder %v1554, 0
        %v6332 = vand.u32 %v1554, 2139095040
        %v6333 = vshrl.u32 %v6332, 23
        %v6334 = vsub.s32 %v6333, 127
        %v6335 = vand.u32 2147483647, %v1554
        %v6336 = vand.u32 %v6335, 8388607
        %v6337 = vor.u32 %v6336, 8388608
        %v6338 = vsub.s32 0, %v6337
        %v6339 = vadd.s32 %v6334, 1
        %vm6340 = vcmp.gt.s32.totalorder %v6339, 0
        %v6341 = vsel %vm6340, %v6339, 0
        %v6342 = vshrl.u32 %v6341, 5
        %v6343 = vand.u32 %v6341, 31
        %v6344 = vsub.s32 32, %v6343
        %v6345 = vshrl.u32 683565275, %v6344
        %v6346 = vshll.u32 683565275, %v6343
        %v6347 = vshrl.u32 2475754826, %v6344
        %v6348 = vor.u32 %v6346, %v6347
        %v6349 = vshll.u32 2475754826, %v6343
        %v6350 = vshrl.u32 2131351028, %v6344
        %v6351 = vor.u32 %v6349, %v6350
        %v6352 = vshll.u32 2131351028, %v6343
        %v6353 = vshrl.u32 2102212464, %v6344
        %v6354 = vor.u32 %v6352, %v6353
        %v6355 = vshll.u32 2102212464, %v6343
        %v6356 = vshrl.u32 920167782, %v6344
        %v6357 = vor.u32 %v6355, %v6356
        %v6358 = vshll.u32 920167782, %v6343
        %v6359 = vshrl.u32 1326507024, %v6344
        %v6360 = vor.u32 %v6358, %v6359
        %vm6361 = vcmp.lt.s32.totalorder %v6342, 1
        %vm6362 = vcmp.lt.s32.totalorder %v6342, 2
        %vm6363 = vcmp.lt.s32.totalorder %v6342, 3
        %vm6364 = vcmp.lt.s32.totalorder %v6342, 4
        %v6365 = vsel %vm6361, %v6345, %v6348
        %v6366 = vsel %vm6364, %v6354, 2102212464
        %v6367 = vsel %vm6363, %v6351, %v6366
        %v6368 = vsel %vm6362, %v6365, %v6367
        %v6369 = vsel %vm6361, %v6348, %v6351
        %v6370 = vsel %vm6364, %v6357, 920167782
        %v6371 = vsel %vm6363, %v6354, %v6370
        %v6372 = vsel %vm6362, %v6369, %v6371
        %v6373 = vsel %vm6361, %v6351, %v6354
        %v6374 = vsel %vm6364, %v6360, 1326507024
        %v6375 = vsel %vm6363, %v6357, %v6374
        %v6376 = vsel %vm6362, %v6373, %v6375
        %v6377 = vshll.u32 %v6337, 8
        %v6378 = vand.u32 %v6377, 65535
        %v6379 = vshrl.u32 %v6377, 16
        %v6380 = vand.u32 %v6376, 65535
        %v6381 = vshrl.u32 %v6376, 16
        %v6382 = vmul.u32 %v6378, %v6380
        %v6383 = vmul.u32 %v6378, %v6381
        %v6384 = vmul.u32 %v6379, %v6380
        %v6385 = vmul.u32 %v6379, %v6381
        %v6386 = vshll.u32 %v6383, 16
        %v6387 = vshrl.u32 %v6383, 16
        %v6388 = vshll.u32 %v6384, 16
        %v6389 = vshrl.u32 %v6384, 16
        %vm6390 = vc.u32 %v6382, %v6386
        %v6391 = vsel %vm6390, 1, 0
        %v6392 = vadd.s32 %v6382, %v6386
        %v6393 = vadd.s32 %v6385, %v6391
        %vm6394 = vc.u32 %v6392, %v6388
        %v6395 = vsel %vm6394, 1, 0
        %v6396 = vadd.s32 %v6392, %v6388
        %v6397 = vadd.s32 %v6393, %v6395
        %v6398 = vadd.s32 %v6397, %v6387
        %v6399 = vadd.s32 %v6398, %v6389
        %v6400 = vand.u32 %v6377, 65535
        %v6401 = vshrl.u32 %v6377, 16
        %v6402 = vand.u32 %v6372, 65535
        %v6403 = vshrl.u32 %v6372, 16
        %v6404 = vmul.u32 %v6400, %v6402
        %v6405 = vmul.u32 %v6400, %v6403
        %v6406 = vmul.u32 %v6401, %v6402
        %v6407 = vmul.u32 %v6401, %v6403
        %v6408 = vshll.u32 %v6405, 16
        %v6409 = vshrl.u32 %v6405, 16
        %v6410 = vshll.u32 %v6406, 16
        %v6411 = vshrl.u32 %v6406, 16
        %vm6412 = vc.u32 %v6404, %v6408
        %v6413 = vsel %vm6412, 1, 0
        %v6414 = vadd.s32 %v6404, %v6408
        %v6415 = vadd.s32 %v6407, %v6413
        %vm6416 = vc.u32 %v6414, %v6410
        %v6417 = vsel %vm6416, 1, 0
        %v6418 = vadd.s32 %v6414, %v6410
        %v6419 = vadd.s32 %v6415, %v6417
        %v6420 = vadd.s32 %v6419, %v6409
        %v6421 = vadd.s32 %v6420, %v6411
        %v6422 = vmul.u32 %v6377, %v6368
        %v6423 = vadd.s32 %v6399, %v6418
        %vm6424 = vc.u32 %v6399, %v6418
        %v6425 = vadd.s32 %v6421, 1
        %v6426 = vsel %vm6424, %v6425, %v6421
        %v6427 = vadd.s32 %v6422, %v6426
        %v6428 = vadd.s32 %v6427, 536870912
        %v6429 = vshrl.u32 %v6428, 30
        %v6430 = vshll.u32 %v6429, 30
        %v6431 = vsub.s32 %v6427, %v6430
        %vm6432 = vcmp.lt.s32.totalorder %v6431, 0
        %v6433 = vsub.s32 0, %v6431
        %v6434 = vsel %vm6432, %v6433, %v6431
        %v6435 = vclz %v6434
        %v6436 = vsub.s32 %v6435, 2
        %vm6437 = vcmp.gt.s32.totalorder 0, %v6436
        %v6438 = vsel %vm6437, 0, %v6436
        %v6439 = vsub.s32 32, %v6438
        %v6440 = vshll.u32 %v6431, %v6438
        %v6441 = vshrl.u32 %v6423, %v6439
        %v6442 = vor.u32 %v6440, %v6441
        %v6443 = vsub.s32 4294967266, %v6438
        %v6444 = vadd.s32 %v6443, 127
        %v6445 = vshll.u32 %v6444, 23
        %v6446 = vor.u32 4788187, %v6445
        %v6447 = vand.u32 2147483647, %v6446
        %v6449 = vcvt.s32.f32 %v6442
        %v6450 = vmul.f32 %v6449, %v6447
        %v6451 = vxor.u32 %v6450, 2147483648
        %v6452 = vsel %vm6331, %v6451, %v6450
        %v6453 = vsub.s32 4, %v6429
        %v6454 = vsel %vm6331, %v6453, %v6429
        %v6455 = vsel %vm6330, %v1554, %v6452
        %v6456 = vsel %vm6330, 0, %v6454
        %v6457 = vmul.f32 %v6455, %v6455
        %v6458 = vmul.f32 %v6457, -0.001358992
        %v6459 = vadd.f32 %v6458, 0.041655596
        %v6460 = vmul.f32 %v6457, %v6459
        %v6461 = vadd.f32 %v6460, -0.4999988
        %v6462 = vmul.f32 %v6457, %v6461
        %v6463 = vadd.f32 1.0, %v6462
        %v6464 = vmul.f32 %v6455, %v6455
        %v6465 = vmul.f32 %v6464, -0.00019511016
        %v6466 = vadd.f32 %v6465, 0.008332121
        %v6467 = vmul.f32 %v6464, %v6466
        %v6468 = vadd.f32 %v6467, -0.16666654
        %v6469 = vmul.f32 %v6464, %v6468
        %v6470 = vadd.f32 %v6469, 1.0
        %v6471 = vmul.f32 %v6470, %v6455
        %vm6472 = vweird.f32 %v1554
        %v6473 = vand.u32 %v6456, 3
        %vm6474 = vcmp.lt.s32.totalorder %v6473, 2
        %vm6475 = vcmp.eq.s32.totalorder %v6473, 0
        %v6476 = vxor.u32 %v6471, 2147483648
        %v6477 = vsel %vm6475, %v6463, %v6476
        %vm6478 = vcmp.eq.s32.totalorder %v6473, 2
        %v6479 = vxor.u32 %v6463, 2147483648
        %v6480 = vsel %vm6478, %v6479, %v6471
        %v6481 = vsel %vm6474, %v6477, %v6480
        %v6482 = vsel %vm6472, nan, %v6481
        %v6483 = vand.u32 2147483647, %v1523
        %vm6484 = vcmp.le.f32.partialorder %v6483, 0.7853982
        %vm6485 = vcmp.lt.s32.totalorder %v1523, 0
        %v6486 = vand.u32 %v1523, 2139095040
        %v6487 = vshrl.u32 %v6486, 23
        %v6488 = vsub.s32 %v6487, 127
        %v6489 = vand.u32 2147483647, %v1523
        %v6490 = vand.u32 %v6489, 8388607
        %v6491 = vor.u32 %v6490, 8388608
        %v6492 = vsub.s32 0, %v6491
        %v6493 = vadd.s32 %v6488, 1
        %vm6494 = vcmp.gt.s32.totalorder %v6493, 0
        %v6495 = vsel %vm6494, %v6493, 0
        %v6496 = vshrl.u32 %v6495, 5
        %v6497 = vand.u32 %v6495, 31
        %v6498 = vsub.s32 32, %v6497
        %v6499 = vshrl.u32 683565275, %v6498
        %v6500 = vshll.u32 683565275, %v6497
        %v6501 = vshrl.u32 2475754826, %v6498
        %v6502 = vor.u32 %v6500, %v6501
        %v6503 = vshll.u32 2475754826, %v6497
        %v6504 = vshrl.u32 2131351028, %v6498
        %v6505 = vor.u32 %v6503, %v6504
        %v6506 = vshll.u32 2131351028, %v6497
        %v6507 = vshrl.u32 2102212464, %v6498
        %v6508 = vor.u32 %v6506, %v6507
        %v6509 = vshll.u32 2102212464, %v6497
        %v6510 = vshrl.u32 920167782, %v6498
        %v6511 = vor.u32 %v6509, %v6510
        %v6512 = vshll.u32 920167782, %v6497
        %v6513 = vshrl.u32 1326507024, %v6498
        %v6514 = vor.u32 %v6512, %v6513
        %vm6515 = vcmp.lt.s32.totalorder %v6496, 1
        %vm6516 = vcmp.lt.s32.totalorder %v6496, 2
        %vm6517 = vcmp.lt.s32.totalorder %v6496, 3
        %vm6518 = vcmp.lt.s32.totalorder %v6496, 4
        %v6519 = vsel %vm6515, %v6499, %v6502
        %v6520 = vsel %vm6518, %v6508, 2102212464
        %v6521 = vsel %vm6517, %v6505, %v6520
        %v6522 = vsel %vm6516, %v6519, %v6521
        %v6523 = vsel %vm6515, %v6502, %v6505
        %v6524 = vsel %vm6518, %v6511, 920167782
        %v6525 = vsel %vm6517, %v6508, %v6524
        %v6526 = vsel %vm6516, %v6523, %v6525
        %v6527 = vsel %vm6515, %v6505, %v6508
        %v6528 = vsel %vm6518, %v6514, 1326507024
        %v6529 = vsel %vm6517, %v6511, %v6528
        %v6530 = vsel %vm6516, %v6527, %v6529
        %v6531 = vshll.u32 %v6491, 8
        %v6532 = vand.u32 %v6531, 65535
        %v6533 = vshrl.u32 %v6531, 16
        %v6534 = vand.u32 %v6530, 65535
        %v6535 = vshrl.u32 %v6530, 16
        %v6536 = vmul.u32 %v6532, %v6534
        %v6537 = vmul.u32 %v6532, %v6535
        %v6538 = vmul.u32 %v6533, %v6534
        %v6539 = vmul.u32 %v6533, %v6535
        %v6540 = vshll.u32 %v6537, 16
        %v6541 = vshrl.u32 %v6537, 16
        %v6542 = vshll.u32 %v6538, 16
        %v6543 = vshrl.u32 %v6538, 16
        %vm6544 = vc.u32 %v6536, %v6540
        %v6545 = vsel %vm6544, 1, 0
        %v6546 = vadd.s32 %v6536, %v6540
        %v6547 = vadd.s32 %v6539, %v6545
        %vm6548 = vc.u32 %v6546, %v6542
        %v6549 = vsel %vm6548, 1, 0
        %v6550 = vadd.s32 %v6546, %v6542
        %v6551 = vadd.s32 %v6547, %v6549
        %v6552 = vadd.s32 %v6551, %v6541
        %v6553 = vadd.s32 %v6552, %v6543
        %v6554 = vand.u32 %v6531, 65535
        %v6555 = vshrl.u32 %v6531, 16
        %v6556 = vand.u32 %v6526, 65535
        %v6557 = vshrl.u32 %v6526, 16
        %v6558 = vmul.u32 %v6554, %v6556
        %v6559 = vmul.u32 %v6554, %v6557
        %v6560 = vmul.u32 %v6555, %v6556
        %v6561 = vmul.u32 %v6555, %v6557
        %v6562 = vshll.u32 %v6559, 16
        %v6563 = vshrl.u32 %v6559, 16
        %v6564 = vshll.u32 %v6560, 16
        %v6565 = vshrl.u32 %v6560, 16
        %vm6566 = vc.u32 %v6558, %v6562
        %v6567 = vsel %vm6566, 1, 0
        %v6568 = vadd.s32 %v6558, %v6562
        %v6569 = vadd.s32 %v6561, %v6567
        %vm6570 = vc.u32 %v6568, %v6564
        %v6571 = vsel %vm6570, 1, 0
        %v6572 = vadd.s32 %v6568, %v6564
        %v6573 = vadd.s32 %v6569, %v6571
        %v6574 = vadd.s32 %v6573, %v6563
        %v6575 = vadd.s32 %v6574, %v6565
        %v6576 = vmul.u32 %v6531, %v6522
        %v6577 = vadd.s32 %v6553, %v6572
        %vm6578 = vc.u32 %v6553, %v6572
        %v6579 = vadd.s32 %v6575, 1
        %v6580 = vsel %vm6578, %v6579, %v6575
        %v6581 = vadd.s32 %v6576, %v6580
        %v6582 = vadd.s32 %v6581, 536870912
        %v6583 = vshrl.u32 %v6582, 30
        %v6584 = vshll.u32 %v6583, 30
        %v6585 = vsub.s32 %v6581, %v6584
        %vm6586 = vcmp.lt.s32.totalorder %v6585, 0
        %v6587 = vsub.s32 0, %v6585
        %v6588 = vsel %vm6586, %v6587, %v6585
        %v6589 = vclz %v6588
        %v6590 = vsub.s32 %v6589, 2
        %vm6591 = vcmp.gt.s32.totalorder 0, %v6590
        %v6592 = vsel %vm6591, 0, %v6590
        %v6593 = vsub.s32 32, %v6592
        %v6594 = vshll.u32 %v6585, %v6592
        %v6595 = vshrl.u32 %v6577, %v6593
        %v6596 = vor.u32 %v6594, %v6595
        %v6597 = vsub.s32 4294967266, %v6592
        %v6598 = vadd.s32 %v6597, 127
        %v6599 = vshll.u32 %v6598, 23
        %v6600 = vor.u32 4788187, %v6599
        %v6601 = vand.u32 2147483647, %v6600
        %v6603 = vcvt.s32.f32 %v6596
        %v6604 = vmul.f32 %v6603, %v6601
        %v6605 = vxor.u32 %v6604, 2147483648
        %v6606 = vsel %vm6485, %v6605, %v6604
        %v6607 = vsub.s32 4, %v6583
        %v6608 = vsel %vm6485, %v6607, %v6583
        %v6609 = vsel %vm6484, %v1523, %v6606
        %v6610 = vsel %vm6484, 0, %v6608
        %v6611 = vmul.f32 %v6609, %v6609
        %v6612 = vmul.f32 %v6611, -0.001358992
        %v6613 = vadd.f32 %v6612, 0.041655596
        %v6614 = vmul.f32 %v6611, %v6613
        %v6615 = vadd.f32 %v6614, -0.4999988
        %v6616 = vmul.f32 %v6611, %v6615
        %v6617 = vadd.f32 1.0, %v6616
        %v6618 = vmul.f32 %v6609, %v6609
        %v6619 = vmul.f32 %v6618, -0.00019511016
        %v6620 = vadd.f32 %v6619, 0.008332121
        %v6621 = vmul.f32 %v6618, %v6620
        %v6622 = vadd.f32 %v6621, -0.16666654
        %v6623 = vmul.f32 %v6618, %v6622
        %v6624 = vadd.f32 %v6623, 1.0
        %v6625 = vmul.f32 %v6624, %v6609
        %vm6626 = vweird.f32 %v1523
        %v6627 = vadd.s32 %v6610, 3
        %v6628 = vand.u32 %v6627, 3
        %vm6629 = vcmp.lt.s32.totalorder %v6628, 2
        %vm6630 = vcmp.eq.s32.totalorder %v6628, 0
        %v6631 = vxor.u32 %v6625, 2147483648
        %v6632 = vsel %vm6630, %v6617, %v6631
        %vm6633 = vcmp.eq.s32.totalorder %v6628, 2
        %v6634 = vxor.u32 %v6617, 2147483648
        %v6635 = vsel %vm6633, %v6634, %v6625
        %v6636 = vsel %vm6629, %v6632, %v6635
        %v6637 = vsel %vm6626, nan, %v6636
        %v6638 = vand.u32 2147483647, %v1524
        %vm6639 = vcmp.le.f32.partialorder %v6638, 0.7853982
        %vm6640 = vcmp.lt.s32.totalorder %v1524, 0
        %v6641 = vand.u32 %v1524, 2139095040
        %v6642 = vshrl.u32 %v6641, 23
        %v6643 = vsub.s32 %v6642, 127
        %v6644 = vand.u32 2147483647, %v1524
        %v6645 = vand.u32 %v6644, 8388607
        %v6646 = vor.u32 %v6645, 8388608
        %v6647 = vsub.s32 0, %v6646
        %v6648 = vadd.s32 %v6643, 1
        %vm6649 = vcmp.gt.s32.totalorder %v6648, 0
        %v6650 = vsel %vm6649, %v6648, 0
        %v6651 = vshrl.u32 %v6650, 5
        %v6652 = vand.u32 %v6650, 31
        %v6653 = vsub.s32 32, %v6652
        %v6654 = vshrl.u32 683565275, %v6653
        %v6655 = vshll.u32 683565275, %v6652
        %v6656 = vshrl.u32 2475754826, %v6653
        %v6657 = vor.u32 %v6655, %v6656
        %v6658 = vshll.u32 2475754826, %v6652
        %v6659 = vshrl.u32 2131351028, %v6653
        %v6660 = vor.u32 %v6658, %v6659
        %v6661 = vshll.u32 2131351028, %v6652
        %v6662 = vshrl.u32 2102212464, %v6653
        %v6663 = vor.u32 %v6661, %v6662
        %v6664 = vshll.u32 2102212464, %v6652
        %v6665 = vshrl.u32 920167782, %v6653
        %v6666 = vor.u32 %v6664, %v6665
        %v6667 = vshll.u32 920167782, %v6652
        %v6668 = vshrl.u32 1326507024, %v6653
        %v6669 = vor.u32 %v6667, %v6668
        %vm6670 = vcmp.lt.s32.totalorder %v6651, 1
        %vm6671 = vcmp.lt.s32.totalorder %v6651, 2
        %vm6672 = vcmp.lt.s32.totalorder %v6651, 3
        %vm6673 = vcmp.lt.s32.totalorder %v6651, 4
        %v6674 = vsel %vm6670, %v6654, %v6657
        %v6675 = vsel %vm6673, %v6663, 2102212464
        %v6676 = vsel %vm6672, %v6660, %v6675
        %v6677 = vsel %vm6671, %v6674, %v6676
        %v6678 = vsel %vm6670, %v6657, %v6660
        %v6679 = vsel %vm6673, %v6666, 920167782
        %v6680 = vsel %vm6672, %v6663, %v6679
        %v6681 = vsel %vm6671, %v6678, %v6680
        %v6682 = vsel %vm6670, %v6660, %v6663
        %v6683 = vsel %vm6673, %v6669, 1326507024
        %v6684 = vsel %vm6672, %v6666, %v6683
        %v6685 = vsel %vm6671, %v6682, %v6684
        %v6686 = vshll.u32 %v6646, 8
        %v6687 = vand.u32 %v6686, 65535
        %v6688 = vshrl.u32 %v6686, 16
        %v6689 = vand.u32 %v6685, 65535
        %v6690 = vshrl.u32 %v6685, 16
        %v6691 = vmul.u32 %v6687, %v6689
        %v6692 = vmul.u32 %v6687, %v6690
        %v6693 = vmul.u32 %v6688, %v6689
        %v6694 = vmul.u32 %v6688, %v6690
        %v6695 = vshll.u32 %v6692, 16
        %v6696 = vshrl.u32 %v6692, 16
        %v6697 = vshll.u32 %v6693, 16
        %v6698 = vshrl.u32 %v6693, 16
        %vm6699 = vc.u32 %v6691, %v6695
        %v6700 = vsel %vm6699, 1, 0
        %v6701 = vadd.s32 %v6691, %v6695
        %v6702 = vadd.s32 %v6694, %v6700
        %vm6703 = vc.u32 %v6701, %v6697
        %v6704 = vsel %vm6703, 1, 0
        %v6705 = vadd.s32 %v6701, %v6697
        %v6706 = vadd.s32 %v6702, %v6704
        %v6707 = vadd.s32 %v6706, %v6696
        %v6708 = vadd.s32 %v6707, %v6698
        %v6709 = vand.u32 %v6686, 65535
        %v6710 = vshrl.u32 %v6686, 16
        %v6711 = vand.u32 %v6681, 65535
        %v6712 = vshrl.u32 %v6681, 16
        %v6713 = vmul.u32 %v6709, %v6711
        %v6714 = vmul.u32 %v6709, %v6712
        %v6715 = vmul.u32 %v6710, %v6711
        %v6716 = vmul.u32 %v6710, %v6712
        %v6717 = vshll.u32 %v6714, 16
        %v6718 = vshrl.u32 %v6714, 16
        %v6719 = vshll.u32 %v6715, 16
        %v6720 = vshrl.u32 %v6715, 16
        %vm6721 = vc.u32 %v6713, %v6717
        %v6722 = vsel %vm6721, 1, 0
        %v6723 = vadd.s32 %v6713, %v6717
        %v6724 = vadd.s32 %v6716, %v6722
        %vm6725 = vc.u32 %v6723, %v6719
        %v6726 = vsel %vm6725, 1, 0
        %v6727 = vadd.s32 %v6723, %v6719
        %v6728 = vadd.s32 %v6724, %v6726
        %v6729 = vadd.s32 %v6728, %v6718
        %v6730 = vadd.s32 %v6729, %v6720
        %v6731 = vmul.u32 %v6686, %v6677
        %v6732 = vadd.s32 %v6708, %v6727
        %vm6733 = vc.u32 %v6708, %v6727
        %v6734 = vadd.s32 %v6730, 1
        %v6735 = vsel %vm6733, %v6734, %v6730
        %v6736 = vadd.s32 %v6731, %v6735
        %v6737 = vadd.s32 %v6736, 536870912
        %v6738 = vshrl.u32 %v6737, 30
        %v6739 = vshll.u32 %v6738, 30
        %v6740 = vsub.s32 %v6736, %v6739
        %vm6741 = vcmp.lt.s32.totalorder %v6740, 0
        %v6742 = vsub.s32 0, %v6740
        %v6743 = vsel %vm6741, %v6742, %v6740
        %v6744 = vclz %v6743
        %v6745 = vsub.s32 %v6744, 2
        %vm6746 = vcmp.gt.s32.totalorder 0, %v6745
        %v6747 = vsel %vm6746, 0, %v6745
        %v6748 = vsub.s32 32, %v6747
        %v6749 = vshll.u32 %v6740, %v6747
        %v6750 = vshrl.u32 %v6732, %v6748
        %v6751 = vor.u32 %v6749, %v6750
        %v6752 = vsub.s32 4294967266, %v6747
        %v6753 = vadd.s32 %v6752, 127
        %v6754 = vshll.u32 %v6753, 23
        %v6755 = vor.u32 4788187, %v6754
        %v6756 = vand.u32 2147483647, %v6755
        %v6758 = vcvt.s32.f32 %v6751
        %v6759 = vmul.f32 %v6758, %v6756
        %v6760 = vxor.u32 %v6759, 2147483648
        %v6761 = vsel %vm6640, %v6760, %v6759
        %v6762 = vsub.s32 4, %v6738
        %v6763 = vsel %vm6640, %v6762, %v6738
        %v6764 = vsel %vm6639, %v1524, %v6761
        %v6765 = vsel %vm6639, 0, %v6763
        %v6766 = vmul.f32 %v6764, %v6764
        %v6767 = vmul.f32 %v6766, -0.001358992
        %v6768 = vadd.f32 %v6767, 0.041655596
        %v6769 = vmul.f32 %v6766, %v6768
        %v6770 = vadd.f32 %v6769, -0.4999988
        %v6771 = vmul.f32 %v6766, %v6770
        %v6772 = vadd.f32 1.0, %v6771
        %v6773 = vmul.f32 %v6764, %v6764
        %v6774 = vmul.f32 %v6773, -0.00019511016
        %v6775 = vadd.f32 %v6774, 0.008332121
        %v6776 = vmul.f32 %v6773, %v6775
        %v6777 = vadd.f32 %v6776, -0.16666654
        %v6778 = vmul.f32 %v6773, %v6777
        %v6779 = vadd.f32 %v6778, 1.0
        %v6780 = vmul.f32 %v6779, %v6764
        %vm6781 = vweird.f32 %v1524
        %v6782 = vadd.s32 %v6765, 3
        %v6783 = vand.u32 %v6782, 3
        %vm6784 = vcmp.lt.s32.totalorder %v6783, 2
        %vm6785 = vcmp.eq.s32.totalorder %v6783, 0
        %v6786 = vxor.u32 %v6780, 2147483648
        %v6787 = vsel %vm6785, %v6772, %v6786
        %vm6788 = vcmp.eq.s32.totalorder %v6783, 2
        %v6789 = vxor.u32 %v6772, 2147483648
        %v6790 = vsel %vm6788, %v6789, %v6780
        %v6791 = vsel %vm6784, %v6787, %v6790
        %v6792 = vsel %vm6781, nan, %v6791
        %v6793 = vand.u32 2147483647, %v1525
        %vm6794 = vcmp.le.f32.partialorder %v6793, 0.7853982
        %vm6795 = vcmp.lt.s32.totalorder %v1525, 0
        %v6796 = vand.u32 %v1525, 2139095040
        %v6797 = vshrl.u32 %v6796, 23
        %v6798 = vsub.s32 %v6797, 127
        %v6799 = vand.u32 2147483647, %v1525
        %v6800 = vand.u32 %v6799, 8388607
        %v6801 = vor.u32 %v6800, 8388608
        %v6802 = vsub.s32 0, %v6801
        %v6803 = vadd.s32 %v6798, 1
        %vm6804 = vcmp.gt.s32.totalorder %v6803, 0
        %v6805 = vsel %vm6804, %v6803, 0
        %v6806 = vshrl.u32 %v6805, 5
        %v6807 = vand.u32 %v6805, 31
        %v6808 = vsub.s32 32, %v6807
        %v6809 = vshrl.u32 683565275, %v6808
        %v6810 = vshll.u32 683565275, %v6807
        %v6811 = vshrl.u32 2475754826, %v6808
        %v6812 = vor.u32 %v6810, %v6811
        %v6813 = vshll.u32 2475754826, %v6807
        %v6814 = vshrl.u32 2131351028, %v6808
        %v6815 = vor.u32 %v6813, %v6814
        %v6816 = vshll.u32 2131351028, %v6807
        %v6817 = vshrl.u32 2102212464, %v6808
        %v6818 = vor.u32 %v6816, %v6817
        %v6819 = vshll.u32 2102212464, %v6807
        %v6820 = vshrl.u32 920167782, %v6808
        %v6821 = vor.u32 %v6819, %v6820
        %v6822 = vshll.u32 920167782, %v6807
        %v6823 = vshrl.u32 1326507024, %v6808
        %v6824 = vor.u32 %v6822, %v6823
        %vm6825 = vcmp.lt.s32.totalorder %v6806, 1
        %vm6826 = vcmp.lt.s32.totalorder %v6806, 2
        %vm6827 = vcmp.lt.s32.totalorder %v6806, 3
        %vm6828 = vcmp.lt.s32.totalorder %v6806, 4
        %v6829 = vsel %vm6825, %v6809, %v6812
        %v6830 = vsel %vm6828, %v6818, 2102212464
        %v6831 = vsel %vm6827, %v6815, %v6830
        %v6832 = vsel %vm6826, %v6829, %v6831
        %v6833 = vsel %vm6825, %v6812, %v6815
        %v6834 = vsel %vm6828, %v6821, 920167782
        %v6835 = vsel %vm6827, %v6818, %v6834
        %v6836 = vsel %vm6826, %v6833, %v6835
        %v6837 = vsel %vm6825, %v6815, %v6818
        %v6838 = vsel %vm6828, %v6824, 1326507024
        %v6839 = vsel %vm6827, %v6821, %v6838
        %v6840 = vsel %vm6826, %v6837, %v6839
        %v6841 = vshll.u32 %v6801, 8
        %v6842 = vand.u32 %v6841, 65535
        %v6843 = vshrl.u32 %v6841, 16
        %v6844 = vand.u32 %v6840, 65535
        %v6845 = vshrl.u32 %v6840, 16
        %v6846 = vmul.u32 %v6842, %v6844
        %v6847 = vmul.u32 %v6842, %v6845
        %v6848 = vmul.u32 %v6843, %v6844
        %v6849 = vmul.u32 %v6843, %v6845
        %v6850 = vshll.u32 %v6847, 16
        %v6851 = vshrl.u32 %v6847, 16
        %v6852 = vshll.u32 %v6848, 16
        %v6853 = vshrl.u32 %v6848, 16
        %vm6854 = vc.u32 %v6846, %v6850
        %v6855 = vsel %vm6854, 1, 0
        %v6856 = vadd.s32 %v6846, %v6850
        %v6857 = vadd.s32 %v6849, %v6855
        %vm6858 = vc.u32 %v6856, %v6852
        %v6859 = vsel %vm6858, 1, 0
        %v6860 = vadd.s32 %v6856, %v6852
        %v6861 = vadd.s32 %v6857, %v6859
        %v6862 = vadd.s32 %v6861, %v6851
        %v6863 = vadd.s32 %v6862, %v6853
        %v6864 = vand.u32 %v6841, 65535
        %v6865 = vshrl.u32 %v6841, 16
        %v6866 = vand.u32 %v6836, 65535
        %v6867 = vshrl.u32 %v6836, 16
        %v6868 = vmul.u32 %v6864, %v6866
        %v6869 = vmul.u32 %v6864, %v6867
        %v6870 = vmul.u32 %v6865, %v6866
        %v6871 = vmul.u32 %v6865, %v6867
        %v6872 = vshll.u32 %v6869, 16
        %v6873 = vshrl.u32 %v6869, 16
        %v6874 = vshll.u32 %v6870, 16
        %v6875 = vshrl.u32 %v6870, 16
        %vm6876 = vc.u32 %v6868, %v6872
        %v6877 = vsel %vm6876, 1, 0
        %v6878 = vadd.s32 %v6868, %v6872
        %v6879 = vadd.s32 %v6871, %v6877
        %vm6880 = vc.u32 %v6878, %v6874
        %v6881 = vsel %vm6880, 1, 0
        %v6882 = vadd.s32 %v6878, %v6874
        %v6883 = vadd.s32 %v6879, %v6881
        %v6884 = vadd.s32 %v6883, %v6873
        %v6885 = vadd.s32 %v6884, %v6875
        %v6886 = vmul.u32 %v6841, %v6832
        %v6887 = vadd.s32 %v6863, %v6882
        %vm6888 = vc.u32 %v6863, %v6882
        %v6889 = vadd.s32 %v6885, 1
        %v6890 = vsel %vm6888, %v6889, %v6885
        %v6891 = vadd.s32 %v6886, %v6890
        %v6892 = vadd.s32 %v6891, 536870912
        %v6893 = vshrl.u32 %v6892, 30
        %v6894 = vshll.u32 %v6893, 30
        %v6895 = vsub.s32 %v6891, %v6894
        %vm6896 = vcmp.lt.s32.totalorder %v6895, 0
        %v6897 = vsub.s32 0, %v6895
        %v6898 = vsel %vm6896, %v6897, %v6895
        %v6899 = vclz %v6898
        %v6900 = vsub.s32 %v6899, 2
        %vm6901 = vcmp.gt.s32.totalorder 0, %v6900
        %v6902 = vsel %vm6901, 0, %v6900
        %v6903 = vsub.s32 32, %v6902
        %v6904 = vshll.u32 %v6895, %v6902
        %v6905 = vshrl.u32 %v6887, %v6903
        %v6906 = vor.u32 %v6904, %v6905
        %v6907 = vsub.s32 4294967266, %v6902
        %v6908 = vadd.s32 %v6907, 127
        %v6909 = vshll.u32 %v6908, 23
        %v6910 = vor.u32 4788187, %v6909
        %v6911 = vand.u32 2147483647, %v6910
        %v6913 = vcvt.s32.f32 %v6906
        %v6914 = vmul.f32 %v6913, %v6911
        %v6915 = vxor.u32 %v6914, 2147483648
        %v6916 = vsel %vm6795, %v6915, %v6914
        %v6917 = vsub.s32 4, %v6893
        %v6918 = vsel %vm6795, %v6917, %v6893
        %v6919 = vsel %vm6794, %v1525, %v6916
        %v6920 = vsel %vm6794, 0, %v6918
        %v6921 = vmul.f32 %v6919, %v6919
        %v6922 = vmul.f32 %v6921, -0.001358992
        %v6923 = vadd.f32 %v6922, 0.041655596
        %v6924 = vmul.f32 %v6921, %v6923
        %v6925 = vadd.f32 %v6924, -0.4999988
        %v6926 = vmul.f32 %v6921, %v6925
        %v6927 = vadd.f32 1.0, %v6926
        %v6928 = vmul.f32 %v6919, %v6919
        %v6929 = vmul.f32 %v6928, -0.00019511016
        %v6930 = vadd.f32 %v6929, 0.008332121
        %v6931 = vmul.f32 %v6928, %v6930
        %v6932 = vadd.f32 %v6931, -0.16666654
        %v6933 = vmul.f32 %v6928, %v6932
        %v6934 = vadd.f32 %v6933, 1.0
        %v6935 = vmul.f32 %v6934, %v6919
        %vm6936 = vweird.f32 %v1525
        %v6937 = vadd.s32 %v6920, 3
        %v6938 = vand.u32 %v6937, 3
        %vm6939 = vcmp.lt.s32.totalorder %v6938, 2
        %vm6940 = vcmp.eq.s32.totalorder %v6938, 0
        %v6941 = vxor.u32 %v6935, 2147483648
        %v6942 = vsel %vm6940, %v6927, %v6941
        %vm6943 = vcmp.eq.s32.totalorder %v6938, 2
        %v6944 = vxor.u32 %v6927, 2147483648
        %v6945 = vsel %vm6943, %v6944, %v6935
        %v6946 = vsel %vm6939, %v6942, %v6945
        %v6947 = vsel %vm6936, nan, %v6946
        %v6948 = vand.u32 2147483647, %v1526
        %vm6949 = vcmp.le.f32.partialorder %v6948, 0.7853982
        %vm6950 = vcmp.lt.s32.totalorder %v1526, 0
        %v6951 = vand.u32 %v1526, 2139095040
        %v6952 = vshrl.u32 %v6951, 23
        %v6953 = vsub.s32 %v6952, 127
        %v6954 = vand.u32 2147483647, %v1526
        %v6955 = vand.u32 %v6954, 8388607
        %v6956 = vor.u32 %v6955, 8388608
        %v6957 = vsub.s32 0, %v6956
        %v6958 = vadd.s32 %v6953, 1
        %vm6959 = vcmp.gt.s32.totalorder %v6958, 0
        %v6960 = vsel %vm6959, %v6958, 0
        %v6961 = vshrl.u32 %v6960, 5
        %v6962 = vand.u32 %v6960, 31
        %v6963 = vsub.s32 32, %v6962
        %v6964 = vshrl.u32 683565275, %v6963
        %v6965 = vshll.u32 683565275, %v6962
        %v6966 = vshrl.u32 2475754826, %v6963
        %v6967 = vor.u32 %v6965, %v6966
        %v6968 = vshll.u32 2475754826, %v6962
        %v6969 = vshrl.u32 2131351028, %v6963
        %v6970 = vor.u32 %v6968, %v6969
        %v6971 = vshll.u32 2131351028, %v6962
        %v6972 = vshrl.u32 2102212464, %v6963
        %v6973 = vor.u32 %v6971, %v6972
        %v6974 = vshll.u32 2102212464, %v6962
        %v6975 = vshrl.u32 920167782, %v6963
        %v6976 = vor.u32 %v6974, %v6975
        %v6977 = vshll.u32 920167782, %v6962
        %v6978 = vshrl.u32 1326507024, %v6963
        %v6979 = vor.u32 %v6977, %v6978
        %vm6980 = vcmp.lt.s32.totalorder %v6961, 1
        %vm6981 = vcmp.lt.s32.totalorder %v6961, 2
        %vm6982 = vcmp.lt.s32.totalorder %v6961, 3
        %vm6983 = vcmp.lt.s32.totalorder %v6961, 4
        %v6984 = vsel %vm6980, %v6964, %v6967
        %v6985 = vsel %vm6983, %v6973, 2102212464
        %v6986 = vsel %vm6982, %v6970, %v6985
        %v6987 = vsel %vm6981, %v6984, %v6986
        %v6988 = vsel %vm6980, %v6967, %v6970
        %v6989 = vsel %vm6983, %v6976, 920167782
        %v6990 = vsel %vm6982, %v6973, %v6989
        %v6991 = vsel %vm6981, %v6988, %v6990
        %v6992 = vsel %vm6980, %v6970, %v6973
        %v6993 = vsel %vm6983, %v6979, 1326507024
        %v6994 = vsel %vm6982, %v6976, %v6993
        %v6995 = vsel %vm6981, %v6992, %v6994
        %v6996 = vshll.u32 %v6956, 8
        %v6997 = vand.u32 %v6996, 65535
        %v6998 = vshrl.u32 %v6996, 16
        %v6999 = vand.u32 %v6995, 65535
        %v7000 = vshrl.u32 %v6995, 16
        %v7001 = vmul.u32 %v6997, %v6999
        %v7002 = vmul.u32 %v6997, %v7000
        %v7003 = vmul.u32 %v6998, %v6999
        %v7004 = vmul.u32 %v6998, %v7000
        %v7005 = vshll.u32 %v7002, 16
        %v7006 = vshrl.u32 %v7002, 16
        %v7007 = vshll.u32 %v7003, 16
        %v7008 = vshrl.u32 %v7003, 16
        %vm7009 = vc.u32 %v7001, %v7005
        %v7010 = vsel %vm7009, 1, 0
        %v7011 = vadd.s32 %v7001, %v7005
        %v7012 = vadd.s32 %v7004, %v7010
        %vm7013 = vc.u32 %v7011, %v7007
        %v7014 = vsel %vm7013, 1, 0
        %v7015 = vadd.s32 %v7011, %v7007
        %v7016 = vadd.s32 %v7012, %v7014
        %v7017 = vadd.s32 %v7016, %v7006
        %v7018 = vadd.s32 %v7017, %v7008
        %v7019 = vand.u32 %v6996, 65535
        %v7020 = vshrl.u32 %v6996, 16
        %v7021 = vand.u32 %v6991, 65535
        %v7022 = vshrl.u32 %v6991, 16
        %v7023 = vmul.u32 %v7019, %v7021
        %v7024 = vmul.u32 %v7019, %v7022
        %v7025 = vmul.u32 %v7020, %v7021
        %v7026 = vmul.u32 %v7020, %v7022
        %v7027 = vshll.u32 %v7024, 16
        %v7028 = vshrl.u32 %v7024, 16
        %v7029 = vshll.u32 %v7025, 16
        %v7030 = vshrl.u32 %v7025, 16
        %vm7031 = vc.u32 %v7023, %v7027
        %v7032 = vsel %vm7031, 1, 0
        %v7033 = vadd.s32 %v7023, %v7027
        %v7034 = vadd.s32 %v7026, %v7032
        %vm7035 = vc.u32 %v7033, %v7029
        %v7036 = vsel %vm7035, 1, 0
        %v7037 = vadd.s32 %v7033, %v7029
        %v7038 = vadd.s32 %v7034, %v7036
        %v7039 = vadd.s32 %v7038, %v7028
        %v7040 = vadd.s32 %v7039, %v7030
        %v7041 = vmul.u32 %v6996, %v6987
        %v7042 = vadd.s32 %v7018, %v7037
        %vm7043 = vc.u32 %v7018, %v7037
        %v7044 = vadd.s32 %v7040, 1
        %v7045 = vsel %vm7043, %v7044, %v7040
        %v7046 = vadd.s32 %v7041, %v7045
        %v7047 = vadd.s32 %v7046, 536870912
        %v7048 = vshrl.u32 %v7047, 30
        %v7049 = vshll.u32 %v7048, 30
        %v7050 = vsub.s32 %v7046, %v7049
        %vm7051 = vcmp.lt.s32.totalorder %v7050, 0
        %v7052 = vsub.s32 0, %v7050
        %v7053 = vsel %vm7051, %v7052, %v7050
        %v7054 = vclz %v7053
        %v7055 = vsub.s32 %v7054, 2
        %vm7056 = vcmp.gt.s32.totalorder 0, %v7055
        %v7057 = vsel %vm7056, 0, %v7055
        %v7058 = vsub.s32 32, %v7057
        %v7059 = vshll.u32 %v7050, %v7057
        %v7060 = vshrl.u32 %v7042, %v7058
        %v7061 = vor.u32 %v7059, %v7060
        %v7062 = vsub.s32 4294967266, %v7057
        %v7063 = vadd.s32 %v7062, 127
        %v7064 = vshll.u32 %v7063, 23
        %v7065 = vor.u32 4788187, %v7064
        %v7066 = vand.u32 2147483647, %v7065
        %v7068 = vcvt.s32.f32 %v7061
        %v7069 = vmul.f32 %v7068, %v7066
        %v7070 = vxor.u32 %v7069, 2147483648
        %v7071 = vsel %vm6950, %v7070, %v7069
        %v7072 = vsub.s32 4, %v7048
        %v7073 = vsel %vm6950, %v7072, %v7048
        %v7074 = vsel %vm6949, %v1526, %v7071
        %v7075 = vsel %vm6949, 0, %v7073
        %v7076 = vmul.f32 %v7074, %v7074
        %v7077 = vmul.f32 %v7076, -0.001358992
        %v7078 = vadd.f32 %v7077, 0.041655596
        %v7079 = vmul.f32 %v7076, %v7078
        %v7080 = vadd.f32 %v7079, -0.4999988
        %v7081 = vmul.f32 %v7076, %v7080
        %v7082 = vadd.f32 1.0, %v7081
        %v7083 = vmul.f32 %v7074, %v7074
        %v7084 = vmul.f32 %v7083, -0.00019511016
        %v7085 = vadd.f32 %v7084, 0.008332121
        %v7086 = vmul.f32 %v7083, %v7085
        %v7087 = vadd.f32 %v7086, -0.16666654
        %v7088 = vmul.f32 %v7083, %v7087
        %v7089 = vadd.f32 %v7088, 1.0
        %v7090 = vmul.f32 %v7089, %v7074
        %vm7091 = vweird.f32 %v1526
        %v7092 = vadd.s32 %v7075, 3
        %v7093 = vand.u32 %v7092, 3
        %vm7094 = vcmp.lt.s32.totalorder %v7093, 2
        %vm7095 = vcmp.eq.s32.totalorder %v7093, 0
        %v7096 = vxor.u32 %v7090, 2147483648
        %v7097 = vsel %vm7095, %v7082, %v7096
        %vm7098 = vcmp.eq.s32.totalorder %v7093, 2
        %v7099 = vxor.u32 %v7082, 2147483648
        %v7100 = vsel %vm7098, %v7099, %v7090
        %v7101 = vsel %vm7094, %v7097, %v7100
        %v7102 = vsel %vm7091, nan, %v7101
        %v7103 = vand.u32 2147483647, %v1527
        %vm7104 = vcmp.le.f32.partialorder %v7103, 0.7853982
        %vm7105 = vcmp.lt.s32.totalorder %v1527, 0
        %v7106 = vand.u32 %v1527, 2139095040
        %v7107 = vshrl.u32 %v7106, 23
        %v7108 = vsub.s32 %v7107, 127
        %v7109 = vand.u32 2147483647, %v1527
        %v7110 = vand.u32 %v7109, 8388607
        %v7111 = vor.u32 %v7110, 8388608
        %v7112 = vsub.s32 0, %v7111
        %v7113 = vadd.s32 %v7108, 1
        %vm7114 = vcmp.gt.s32.totalorder %v7113, 0
        %v7115 = vsel %vm7114, %v7113, 0
        %v7116 = vshrl.u32 %v7115, 5
        %v7117 = vand.u32 %v7115, 31
        %v7118 = vsub.s32 32, %v7117
        %v7119 = vshrl.u32 683565275, %v7118
        %v7120 = vshll.u32 683565275, %v7117
        %v7121 = vshrl.u32 2475754826, %v7118
        %v7122 = vor.u32 %v7120, %v7121
        %v7123 = vshll.u32 2475754826, %v7117
        %v7124 = vshrl.u32 2131351028, %v7118
        %v7125 = vor.u32 %v7123, %v7124
        %v7126 = vshll.u32 2131351028, %v7117
        %v7127 = vshrl.u32 2102212464, %v7118
        %v7128 = vor.u32 %v7126, %v7127
        %v7129 = vshll.u32 2102212464, %v7117
        %v7130 = vshrl.u32 920167782, %v7118
        %v7131 = vor.u32 %v7129, %v7130
        %v7132 = vshll.u32 920167782, %v7117
        %v7133 = vshrl.u32 1326507024, %v7118
        %v7134 = vor.u32 %v7132, %v7133
        %vm7135 = vcmp.lt.s32.totalorder %v7116, 1
        %vm7136 = vcmp.lt.s32.totalorder %v7116, 2
        %vm7137 = vcmp.lt.s32.totalorder %v7116, 3
        %vm7138 = vcmp.lt.s32.totalorder %v7116, 4
        %v7139 = vsel %vm7135, %v7119, %v7122
        %v7140 = vsel %vm7138, %v7128, 2102212464
        %v7141 = vsel %vm7137, %v7125, %v7140
        %v7142 = vsel %vm7136, %v7139, %v7141
        %v7143 = vsel %vm7135, %v7122, %v7125
        %v7144 = vsel %vm7138, %v7131, 920167782
        %v7145 = vsel %vm7137, %v7128, %v7144
        %v7146 = vsel %vm7136, %v7143, %v7145
        %v7147 = vsel %vm7135, %v7125, %v7128
        %v7148 = vsel %vm7138, %v7134, 1326507024
        %v7149 = vsel %vm7137, %v7131, %v7148
        %v7150 = vsel %vm7136, %v7147, %v7149
        %v7151 = vshll.u32 %v7111, 8
        %v7152 = vand.u32 %v7151, 65535
        %v7153 = vshrl.u32 %v7151, 16
        %v7154 = vand.u32 %v7150, 65535
        %v7155 = vshrl.u32 %v7150, 16
        %v7156 = vmul.u32 %v7152, %v7154
        %v7157 = vmul.u32 %v7152, %v7155
        %v7158 = vmul.u32 %v7153, %v7154
        %v7159 = vmul.u32 %v7153, %v7155
        %v7160 = vshll.u32 %v7157, 16
        %v7161 = vshrl.u32 %v7157, 16
        %v7162 = vshll.u32 %v7158, 16
        %v7163 = vshrl.u32 %v7158, 16
        %vm7164 = vc.u32 %v7156, %v7160
        %v7165 = vsel %vm7164, 1, 0
        %v7166 = vadd.s32 %v7156, %v7160
        %v7167 = vadd.s32 %v7159, %v7165
        %vm7168 = vc.u32 %v7166, %v7162
        %v7169 = vsel %vm7168, 1, 0
        %v7170 = vadd.s32 %v7166, %v7162
        %v7171 = vadd.s32 %v7167, %v7169
        %v7172 = vadd.s32 %v7171, %v7161
        %v7173 = vadd.s32 %v7172, %v7163
        %v7174 = vand.u32 %v7151, 65535
        %v7175 = vshrl.u32 %v7151, 16
        %v7176 = vand.u32 %v7146, 65535
        %v7177 = vshrl.u32 %v7146, 16
        %v7178 = vmul.u32 %v7174, %v7176
        %v7179 = vmul.u32 %v7174, %v7177
        %v7180 = vmul.u32 %v7175, %v7176
        %v7181 = vmul.u32 %v7175, %v7177
        %v7182 = vshll.u32 %v7179, 16
        %v7183 = vshrl.u32 %v7179, 16
        %v7184 = vshll.u32 %v7180, 16
        %v7185 = vshrl.u32 %v7180, 16
        %vm7186 = vc.u32 %v7178, %v7182
        %v7187 = vsel %vm7186, 1, 0
        %v7188 = vadd.s32 %v7178, %v7182
        %v7189 = vadd.s32 %v7181, %v7187
        %vm7190 = vc.u32 %v7188, %v7184
        %v7191 = vsel %vm7190, 1, 0
        %v7192 = vadd.s32 %v7188, %v7184
        %v7193 = vadd.s32 %v7189, %v7191
        %v7194 = vadd.s32 %v7193, %v7183
        %v7195 = vadd.s32 %v7194, %v7185
        %v7196 = vmul.u32 %v7151, %v7142
        %v7197 = vadd.s32 %v7173, %v7192
        %vm7198 = vc.u32 %v7173, %v7192
        %v7199 = vadd.s32 %v7195, 1
        %v7200 = vsel %vm7198, %v7199, %v7195
        %v7201 = vadd.s32 %v7196, %v7200
        %v7202 = vadd.s32 %v7201, 536870912
        %v7203 = vshrl.u32 %v7202, 30
        %v7204 = vshll.u32 %v7203, 30
        %v7205 = vsub.s32 %v7201, %v7204
        %vm7206 = vcmp.lt.s32.totalorder %v7205, 0
        %v7207 = vsub.s32 0, %v7205
        %v7208 = vsel %vm7206, %v7207, %v7205
        %v7209 = vclz %v7208
        %v7210 = vsub.s32 %v7209, 2
        %vm7211 = vcmp.gt.s32.totalorder 0, %v7210
        %v7212 = vsel %vm7211, 0, %v7210
        %v7213 = vsub.s32 32, %v7212
        %v7214 = vshll.u32 %v7205, %v7212
        %v7215 = vshrl.u32 %v7197, %v7213
        %v7216 = vor.u32 %v7214, %v7215
        %v7217 = vsub.s32 4294967266, %v7212
        %v7218 = vadd.s32 %v7217, 127
        %v7219 = vshll.u32 %v7218, 23
        %v7220 = vor.u32 4788187, %v7219
        %v7221 = vand.u32 2147483647, %v7220
        %v7223 = vcvt.s32.f32 %v7216
        %v7224 = vmul.f32 %v7223, %v7221
        %v7225 = vxor.u32 %v7224, 2147483648
        %v7226 = vsel %vm7105, %v7225, %v7224
        %v7227 = vsub.s32 4, %v7203
        %v7228 = vsel %vm7105, %v7227, %v7203
        %v7229 = vsel %vm7104, %v1527, %v7226
        %v7230 = vsel %vm7104, 0, %v7228
        %v7231 = vmul.f32 %v7229, %v7229
        %v7232 = vmul.f32 %v7231, -0.001358992
        %v7233 = vadd.f32 %v7232, 0.041655596
        %v7234 = vmul.f32 %v7231, %v7233
        %v7235 = vadd.f32 %v7234, -0.4999988
        %v7236 = vmul.f32 %v7231, %v7235
        %v7237 = vadd.f32 1.0, %v7236
        %v7238 = vmul.f32 %v7229, %v7229
        %v7239 = vmul.f32 %v7238, -0.00019511016
        %v7240 = vadd.f32 %v7239, 0.008332121
        %v7241 = vmul.f32 %v7238, %v7240
        %v7242 = vadd.f32 %v7241, -0.16666654
        %v7243 = vmul.f32 %v7238, %v7242
        %v7244 = vadd.f32 %v7243, 1.0
        %v7245 = vmul.f32 %v7244, %v7229
        %vm7246 = vweird.f32 %v1527
        %v7247 = vadd.s32 %v7230, 3
        %v7248 = vand.u32 %v7247, 3
        %vm7249 = vcmp.lt.s32.totalorder %v7248, 2
        %vm7250 = vcmp.eq.s32.totalorder %v7248, 0
        %v7251 = vxor.u32 %v7245, 2147483648
        %v7252 = vsel %vm7250, %v7237, %v7251
        %vm7253 = vcmp.eq.s32.totalorder %v7248, 2
        %v7254 = vxor.u32 %v7237, 2147483648
        %v7255 = vsel %vm7253, %v7254, %v7245
        %v7256 = vsel %vm7249, %v7252, %v7255
        %v7257 = vsel %vm7246, nan, %v7256
        %v7258 = vand.u32 2147483647, %v1528
        %vm7259 = vcmp.le.f32.partialorder %v7258, 0.7853982
        %vm7260 = vcmp.lt.s32.totalorder %v1528, 0
        %v7261 = vand.u32 %v1528, 2139095040
        %v7262 = vshrl.u32 %v7261, 23
        %v7263 = vsub.s32 %v7262, 127
        %v7264 = vand.u32 2147483647, %v1528
        %v7265 = vand.u32 %v7264, 8388607
        %v7266 = vor.u32 %v7265, 8388608
        %v7267 = vsub.s32 0, %v7266
        %v7268 = vadd.s32 %v7263, 1
        %vm7269 = vcmp.gt.s32.totalorder %v7268, 0
        %v7270 = vsel %vm7269, %v7268, 0
        %v7271 = vshrl.u32 %v7270, 5
        %v7272 = vand.u32 %v7270, 31
        %v7273 = vsub.s32 32, %v7272
        %v7274 = vshrl.u32 683565275, %v7273
        %v7275 = vshll.u32 683565275, %v7272
        %v7276 = vshrl.u32 2475754826, %v7273
        %v7277 = vor.u32 %v7275, %v7276
        %v7278 = vshll.u32 2475754826, %v7272
        %v7279 = vshrl.u32 2131351028, %v7273
        %v7280 = vor.u32 %v7278, %v7279
        %v7281 = vshll.u32 2131351028, %v7272
        %v7282 = vshrl.u32 2102212464, %v7273
        %v7283 = vor.u32 %v7281, %v7282
        %v7284 = vshll.u32 2102212464, %v7272
        %v7285 = vshrl.u32 920167782, %v7273
        %v7286 = vor.u32 %v7284, %v7285
        %v7287 = vshll.u32 920167782, %v7272
        %v7288 = vshrl.u32 1326507024, %v7273
        %v7289 = vor.u32 %v7287, %v7288
        %vm7290 = vcmp.lt.s32.totalorder %v7271, 1
        %vm7291 = vcmp.lt.s32.totalorder %v7271, 2
        %vm7292 = vcmp.lt.s32.totalorder %v7271, 3
        %vm7293 = vcmp.lt.s32.totalorder %v7271, 4
        %v7294 = vsel %vm7290, %v7274, %v7277
        %v7295 = vsel %vm7293, %v7283, 2102212464
        %v7296 = vsel %vm7292, %v7280, %v7295
        %v7297 = vsel %vm7291, %v7294, %v7296
        %v7298 = vsel %vm7290, %v7277, %v7280
        %v7299 = vsel %vm7293, %v7286, 920167782
        %v7300 = vsel %vm7292, %v7283, %v7299
        %v7301 = vsel %vm7291, %v7298, %v7300
        %v7302 = vsel %vm7290, %v7280, %v7283
        %v7303 = vsel %vm7293, %v7289, 1326507024
        %v7304 = vsel %vm7292, %v7286, %v7303
        %v7305 = vsel %vm7291, %v7302, %v7304
        %v7306 = vshll.u32 %v7266, 8
        %v7307 = vand.u32 %v7306, 65535
        %v7308 = vshrl.u32 %v7306, 16
        %v7309 = vand.u32 %v7305, 65535
        %v7310 = vshrl.u32 %v7305, 16
        %v7311 = vmul.u32 %v7307, %v7309
        %v7312 = vmul.u32 %v7307, %v7310
        %v7313 = vmul.u32 %v7308, %v7309
        %v7314 = vmul.u32 %v7308, %v7310
        %v7315 = vshll.u32 %v7312, 16
        %v7316 = vshrl.u32 %v7312, 16
        %v7317 = vshll.u32 %v7313, 16
        %v7318 = vshrl.u32 %v7313, 16
        %vm7319 = vc.u32 %v7311, %v7315
        %v7320 = vsel %vm7319, 1, 0
        %v7321 = vadd.s32 %v7311, %v7315
        %v7322 = vadd.s32 %v7314, %v7320
        %vm7323 = vc.u32 %v7321, %v7317
        %v7324 = vsel %vm7323, 1, 0
        %v7325 = vadd.s32 %v7321, %v7317
        %v7326 = vadd.s32 %v7322, %v7324
        %v7327 = vadd.s32 %v7326, %v7316
        %v7328 = vadd.s32 %v7327, %v7318
        %v7329 = vand.u32 %v7306, 65535
        %v7330 = vshrl.u32 %v7306, 16
        %v7331 = vand.u32 %v7301, 65535
        %v7332 = vshrl.u32 %v7301, 16
        %v7333 = vmul.u32 %v7329, %v7331
        %v7334 = vmul.u32 %v7329, %v7332
        %v7335 = vmul.u32 %v7330, %v7331
        %v7336 = vmul.u32 %v7330, %v7332
        %v7337 = vshll.u32 %v7334, 16
        %v7338 = vshrl.u32 %v7334, 16
        %v7339 = vshll.u32 %v7335, 16
        %v7340 = vshrl.u32 %v7335, 16
        %vm7341 = vc.u32 %v7333, %v7337
        %v7342 = vsel %vm7341, 1, 0
        %v7343 = vadd.s32 %v7333, %v7337
        %v7344 = vadd.s32 %v7336, %v7342
        %vm7345 = vc.u32 %v7343, %v7339
        %v7346 = vsel %vm7345, 1, 0
        %v7347 = vadd.s32 %v7343, %v7339
        %v7348 = vadd.s32 %v7344, %v7346
        %v7349 = vadd.s32 %v7348, %v7338
        %v7350 = vadd.s32 %v7349, %v7340
        %v7351 = vmul.u32 %v7306, %v7297
        %v7352 = vadd.s32 %v7328, %v7347
        %vm7353 = vc.u32 %v7328, %v7347
        %v7354 = vadd.s32 %v7350, 1
        %v7355 = vsel %vm7353, %v7354, %v7350
        %v7356 = vadd.s32 %v7351, %v7355
        %v7357 = vadd.s32 %v7356, 536870912
        %v7358 = vshrl.u32 %v7357, 30
        %v7359 = vshll.u32 %v7358, 30
        %v7360 = vsub.s32 %v7356, %v7359
        %vm7361 = vcmp.lt.s32.totalorder %v7360, 0
        %v7362 = vsub.s32 0, %v7360
        %v7363 = vsel %vm7361, %v7362, %v7360
        %v7364 = vclz %v7363
        %v7365 = vsub.s32 %v7364, 2
        %vm7366 = vcmp.gt.s32.totalorder 0, %v7365
        %v7367 = vsel %vm7366, 0, %v7365
        %v7368 = vsub.s32 32, %v7367
        %v7369 = vshll.u32 %v7360, %v7367
        %v7370 = vshrl.u32 %v7352, %v7368
        %v7371 = vor.u32 %v7369, %v7370
        %v7372 = vsub.s32 4294967266, %v7367
        %v7373 = vadd.s32 %v7372, 127
        %v7374 = vshll.u32 %v7373, 23
        %v7375 = vor.u32 4788187, %v7374
        %v7376 = vand.u32 2147483647, %v7375
        %v7378 = vcvt.s32.f32 %v7371
        %v7379 = vmul.f32 %v7378, %v7376
        %v7380 = vxor.u32 %v7379, 2147483648
        %v7381 = vsel %vm7260, %v7380, %v7379
        %v7382 = vsub.s32 4, %v7358
        %v7383 = vsel %vm7260, %v7382, %v7358
        %v7384 = vsel %vm7259, %v1528, %v7381
        %v7385 = vsel %vm7259, 0, %v7383
        %v7386 = vmul.f32 %v7384, %v7384
        %v7387 = vmul.f32 %v7386, -0.001358992
        %v7388 = vadd.f32 %v7387, 0.041655596
        %v7389 = vmul.f32 %v7386, %v7388
        %v7390 = vadd.f32 %v7389, -0.4999988
        %v7391 = vmul.f32 %v7386, %v7390
        %v7392 = vadd.f32 1.0, %v7391
        %v7393 = vmul.f32 %v7384, %v7384
        %v7394 = vmul.f32 %v7393, -0.00019511016
        %v7395 = vadd.f32 %v7394, 0.008332121
        %v7396 = vmul.f32 %v7393, %v7395
        %v7397 = vadd.f32 %v7396, -0.16666654
        %v7398 = vmul.f32 %v7393, %v7397
        %v7399 = vadd.f32 %v7398, 1.0
        %v7400 = vmul.f32 %v7399, %v7384
        %vm7401 = vweird.f32 %v1528
        %v7402 = vadd.s32 %v7385, 3
        %v7403 = vand.u32 %v7402, 3
        %vm7404 = vcmp.lt.s32.totalorder %v7403, 2
        %vm7405 = vcmp.eq.s32.totalorder %v7403, 0
        %v7406 = vxor.u32 %v7400, 2147483648
        %v7407 = vsel %vm7405, %v7392, %v7406
        %vm7408 = vcmp.eq.s32.totalorder %v7403, 2
        %v7409 = vxor.u32 %v7392, 2147483648
        %v7410 = vsel %vm7408, %v7409, %v7400
        %v7411 = vsel %vm7404, %v7407, %v7410
        %v7412 = vsel %vm7401, nan, %v7411
        %v7413 = vand.u32 2147483647, %v1529
        %vm7414 = vcmp.le.f32.partialorder %v7413, 0.7853982
        %vm7415 = vcmp.lt.s32.totalorder %v1529, 0
        %v7416 = vand.u32 %v1529, 2139095040
        %v7417 = vshrl.u32 %v7416, 23
        %v7418 = vsub.s32 %v7417, 127
        %v7419 = vand.u32 2147483647, %v1529
        %v7420 = vand.u32 %v7419, 8388607
        %v7421 = vor.u32 %v7420, 8388608
        %v7422 = vsub.s32 0, %v7421
        %v7423 = vadd.s32 %v7418, 1
        %vm7424 = vcmp.gt.s32.totalorder %v7423, 0
        %v7425 = vsel %vm7424, %v7423, 0
        %v7426 = vshrl.u32 %v7425, 5
        %v7427 = vand.u32 %v7425, 31
        %v7428 = vsub.s32 32, %v7427
        %v7429 = vshrl.u32 683565275, %v7428
        %v7430 = vshll.u32 683565275, %v7427
        %v7431 = vshrl.u32 2475754826, %v7428
        %v7432 = vor.u32 %v7430, %v7431
        %v7433 = vshll.u32 2475754826, %v7427
        %v7434 = vshrl.u32 2131351028, %v7428
        %v7435 = vor.u32 %v7433, %v7434
        %v7436 = vshll.u32 2131351028, %v7427
        %v7437 = vshrl.u32 2102212464, %v7428
        %v7438 = vor.u32 %v7436, %v7437
        %v7439 = vshll.u32 2102212464, %v7427
        %v7440 = vshrl.u32 920167782, %v7428
        %v7441 = vor.u32 %v7439, %v7440
        %v7442 = vshll.u32 920167782, %v7427
        %v7443 = vshrl.u32 1326507024, %v7428
        %v7444 = vor.u32 %v7442, %v7443
        %vm7445 = vcmp.lt.s32.totalorder %v7426, 1
        %vm7446 = vcmp.lt.s32.totalorder %v7426, 2
        %vm7447 = vcmp.lt.s32.totalorder %v7426, 3
        %vm7448 = vcmp.lt.s32.totalorder %v7426, 4
        %v7449 = vsel %vm7445, %v7429, %v7432
        %v7450 = vsel %vm7448, %v7438, 2102212464
        %v7451 = vsel %vm7447, %v7435, %v7450
        %v7452 = vsel %vm7446, %v7449, %v7451
        %v7453 = vsel %vm7445, %v7432, %v7435
        %v7454 = vsel %vm7448, %v7441, 920167782
        %v7455 = vsel %vm7447, %v7438, %v7454
        %v7456 = vsel %vm7446, %v7453, %v7455
        %v7457 = vsel %vm7445, %v7435, %v7438
        %v7458 = vsel %vm7448, %v7444, 1326507024
        %v7459 = vsel %vm7447, %v7441, %v7458
        %v7460 = vsel %vm7446, %v7457, %v7459
        %v7461 = vshll.u32 %v7421, 8
        %v7462 = vand.u32 %v7461, 65535
        %v7463 = vshrl.u32 %v7461, 16
        %v7464 = vand.u32 %v7460, 65535
        %v7465 = vshrl.u32 %v7460, 16
        %v7466 = vmul.u32 %v7462, %v7464
        %v7467 = vmul.u32 %v7462, %v7465
        %v7468 = vmul.u32 %v7463, %v7464
        %v7469 = vmul.u32 %v7463, %v7465
        %v7470 = vshll.u32 %v7467, 16
        %v7471 = vshrl.u32 %v7467, 16
        %v7472 = vshll.u32 %v7468, 16
        %v7473 = vshrl.u32 %v7468, 16
        %vm7474 = vc.u32 %v7466, %v7470
        %v7475 = vsel %vm7474, 1, 0
        %v7476 = vadd.s32 %v7466, %v7470
        %v7477 = vadd.s32 %v7469, %v7475
        %vm7478 = vc.u32 %v7476, %v7472
        %v7479 = vsel %vm7478, 1, 0
        %v7480 = vadd.s32 %v7476, %v7472
        %v7481 = vadd.s32 %v7477, %v7479
        %v7482 = vadd.s32 %v7481, %v7471
        %v7483 = vadd.s32 %v7482, %v7473
        %v7484 = vand.u32 %v7461, 65535
        %v7485 = vshrl.u32 %v7461, 16
        %v7486 = vand.u32 %v7456, 65535
        %v7487 = vshrl.u32 %v7456, 16
        %v7488 = vmul.u32 %v7484, %v7486
        %v7489 = vmul.u32 %v7484, %v7487
        %v7490 = vmul.u32 %v7485, %v7486
        %v7491 = vmul.u32 %v7485, %v7487
        %v7492 = vshll.u32 %v7489, 16
        %v7493 = vshrl.u32 %v7489, 16
        %v7494 = vshll.u32 %v7490, 16
        %v7495 = vshrl.u32 %v7490, 16
        %vm7496 = vc.u32 %v7488, %v7492
        %v7497 = vsel %vm7496, 1, 0
        %v7498 = vadd.s32 %v7488, %v7492
        %v7499 = vadd.s32 %v7491, %v7497
        %vm7500 = vc.u32 %v7498, %v7494
        %v7501 = vsel %vm7500, 1, 0
        %v7502 = vadd.s32 %v7498, %v7494
        %v7503 = vadd.s32 %v7499, %v7501
        %v7504 = vadd.s32 %v7503, %v7493
        %v7505 = vadd.s32 %v7504, %v7495
        %v7506 = vmul.u32 %v7461, %v7452
        %v7507 = vadd.s32 %v7483, %v7502
        %vm7508 = vc.u32 %v7483, %v7502
        %v7509 = vadd.s32 %v7505, 1
        %v7510 = vsel %vm7508, %v7509, %v7505
        %v7511 = vadd.s32 %v7506, %v7510
        %v7512 = vadd.s32 %v7511, 536870912
        %v7513 = vshrl.u32 %v7512, 30
        %v7514 = vshll.u32 %v7513, 30
        %v7515 = vsub.s32 %v7511, %v7514
        %vm7516 = vcmp.lt.s32.totalorder %v7515, 0
        %v7517 = vsub.s32 0, %v7515
        %v7518 = vsel %vm7516, %v7517, %v7515
        %v7519 = vclz %v7518
        %v7520 = vsub.s32 %v7519, 2
        %vm7521 = vcmp.gt.s32.totalorder 0, %v7520
        %v7522 = vsel %vm7521, 0, %v7520
        %v7523 = vsub.s32 32, %v7522
        %v7524 = vshll.u32 %v7515, %v7522
        %v7525 = vshrl.u32 %v7507, %v7523
        %v7526 = vor.u32 %v7524, %v7525
        %v7527 = vsub.s32 4294967266, %v7522
        %v7528 = vadd.s32 %v7527, 127
        %v7529 = vshll.u32 %v7528, 23
        %v7530 = vor.u32 4788187, %v7529
        %v7531 = vand.u32 2147483647, %v7530
        %v7533 = vcvt.s32.f32 %v7526
        %v7534 = vmul.f32 %v7533, %v7531
        %v7535 = vxor.u32 %v7534, 2147483648
        %v7536 = vsel %vm7415, %v7535, %v7534
        %v7537 = vsub.s32 4, %v7513
        %v7538 = vsel %vm7415, %v7537, %v7513
        %v7539 = vsel %vm7414, %v1529, %v7536
        %v7540 = vsel %vm7414, 0, %v7538
        %v7541 = vmul.f32 %v7539, %v7539
        %v7542 = vmul.f32 %v7541, -0.001358992
        %v7543 = vadd.f32 %v7542, 0.041655596
        %v7544 = vmul.f32 %v7541, %v7543
        %v7545 = vadd.f32 %v7544, -0.4999988
        %v7546 = vmul.f32 %v7541, %v7545
        %v7547 = vadd.f32 1.0, %v7546
        %v7548 = vmul.f32 %v7539, %v7539
        %v7549 = vmul.f32 %v7548, -0.00019511016
        %v7550 = vadd.f32 %v7549, 0.008332121
        %v7551 = vmul.f32 %v7548, %v7550
        %v7552 = vadd.f32 %v7551, -0.16666654
        %v7553 = vmul.f32 %v7548, %v7552
        %v7554 = vadd.f32 %v7553, 1.0
        %v7555 = vmul.f32 %v7554, %v7539
        %vm7556 = vweird.f32 %v1529
        %v7557 = vadd.s32 %v7540, 3
        %v7558 = vand.u32 %v7557, 3
        %vm7559 = vcmp.lt.s32.totalorder %v7558, 2
        %vm7560 = vcmp.eq.s32.totalorder %v7558, 0
        %v7561 = vxor.u32 %v7555, 2147483648
        %v7562 = vsel %vm7560, %v7547, %v7561
        %vm7563 = vcmp.eq.s32.totalorder %v7558, 2
        %v7564 = vxor.u32 %v7547, 2147483648
        %v7565 = vsel %vm7563, %v7564, %v7555
        %v7566 = vsel %vm7559, %v7562, %v7565
        %v7567 = vsel %vm7556, nan, %v7566
        %v7568 = vand.u32 2147483647, %v1530
        %vm7569 = vcmp.le.f32.partialorder %v7568, 0.7853982
        %vm7570 = vcmp.lt.s32.totalorder %v1530, 0
        %v7571 = vand.u32 %v1530, 2139095040
        %v7572 = vshrl.u32 %v7571, 23
        %v7573 = vsub.s32 %v7572, 127
        %v7574 = vand.u32 2147483647, %v1530
        %v7575 = vand.u32 %v7574, 8388607
        %v7576 = vor.u32 %v7575, 8388608
        %v7577 = vsub.s32 0, %v7576
        %v7578 = vadd.s32 %v7573, 1
        %vm7579 = vcmp.gt.s32.totalorder %v7578, 0
        %v7580 = vsel %vm7579, %v7578, 0
        %v7581 = vshrl.u32 %v7580, 5
        %v7582 = vand.u32 %v7580, 31
        %v7583 = vsub.s32 32, %v7582
        %v7584 = vshrl.u32 683565275, %v7583
        %v7585 = vshll.u32 683565275, %v7582
        %v7586 = vshrl.u32 2475754826, %v7583
        %v7587 = vor.u32 %v7585, %v7586
        %v7588 = vshll.u32 2475754826, %v7582
        %v7589 = vshrl.u32 2131351028, %v7583
        %v7590 = vor.u32 %v7588, %v7589
        %v7591 = vshll.u32 2131351028, %v7582
        %v7592 = vshrl.u32 2102212464, %v7583
        %v7593 = vor.u32 %v7591, %v7592
        %v7594 = vshll.u32 2102212464, %v7582
        %v7595 = vshrl.u32 920167782, %v7583
        %v7596 = vor.u32 %v7594, %v7595
        %v7597 = vshll.u32 920167782, %v7582
        %v7598 = vshrl.u32 1326507024, %v7583
        %v7599 = vor.u32 %v7597, %v7598
        %vm7600 = vcmp.lt.s32.totalorder %v7581, 1
        %vm7601 = vcmp.lt.s32.totalorder %v7581, 2
        %vm7602 = vcmp.lt.s32.totalorder %v7581, 3
        %vm7603 = vcmp.lt.s32.totalorder %v7581, 4
        %v7604 = vsel %vm7600, %v7584, %v7587
        %v7605 = vsel %vm7603, %v7593, 2102212464
        %v7606 = vsel %vm7602, %v7590, %v7605
        %v7607 = vsel %vm7601, %v7604, %v7606
        %v7608 = vsel %vm7600, %v7587, %v7590
        %v7609 = vsel %vm7603, %v7596, 920167782
        %v7610 = vsel %vm7602, %v7593, %v7609
        %v7611 = vsel %vm7601, %v7608, %v7610
        %v7612 = vsel %vm7600, %v7590, %v7593
        %v7613 = vsel %vm7603, %v7599, 1326507024
        %v7614 = vsel %vm7602, %v7596, %v7613
        %v7615 = vsel %vm7601, %v7612, %v7614
        %v7616 = vshll.u32 %v7576, 8
        %v7617 = vand.u32 %v7616, 65535
        %v7618 = vshrl.u32 %v7616, 16
        %v7619 = vand.u32 %v7615, 65535
        %v7620 = vshrl.u32 %v7615, 16
        %v7621 = vmul.u32 %v7617, %v7619
        %v7622 = vmul.u32 %v7617, %v7620
        %v7623 = vmul.u32 %v7618, %v7619
        %v7624 = vmul.u32 %v7618, %v7620
        %v7625 = vshll.u32 %v7622, 16
        %v7626 = vshrl.u32 %v7622, 16
        %v7627 = vshll.u32 %v7623, 16
        %v7628 = vshrl.u32 %v7623, 16
        %vm7629 = vc.u32 %v7621, %v7625
        %v7630 = vsel %vm7629, 1, 0
        %v7631 = vadd.s32 %v7621, %v7625
        %v7632 = vadd.s32 %v7624, %v7630
        %vm7633 = vc.u32 %v7631, %v7627
        %v7634 = vsel %vm7633, 1, 0
        %v7635 = vadd.s32 %v7631, %v7627
        %v7636 = vadd.s32 %v7632, %v7634
        %v7637 = vadd.s32 %v7636, %v7626
        %v7638 = vadd.s32 %v7637, %v7628
        %v7639 = vand.u32 %v7616, 65535
        %v7640 = vshrl.u32 %v7616, 16
        %v7641 = vand.u32 %v7611, 65535
        %v7642 = vshrl.u32 %v7611, 16
        %v7643 = vmul.u32 %v7639, %v7641
        %v7644 = vmul.u32 %v7639, %v7642
        %v7645 = vmul.u32 %v7640, %v7641
        %v7646 = vmul.u32 %v7640, %v7642
        %v7647 = vshll.u32 %v7644, 16
        %v7648 = vshrl.u32 %v7644, 16
        %v7649 = vshll.u32 %v7645, 16
        %v7650 = vshrl.u32 %v7645, 16
        %vm7651 = vc.u32 %v7643, %v7647
        %v7652 = vsel %vm7651, 1, 0
        %v7653 = vadd.s32 %v7643, %v7647
        %v7654 = vadd.s32 %v7646, %v7652
        %vm7655 = vc.u32 %v7653, %v7649
        %v7656 = vsel %vm7655, 1, 0
        %v7657 = vadd.s32 %v7653, %v7649
        %v7658 = vadd.s32 %v7654, %v7656
        %v7659 = vadd.s32 %v7658, %v7648
        %v7660 = vadd.s32 %v7659, %v7650
        %v7661 = vmul.u32 %v7616, %v7607
        %v7662 = vadd.s32 %v7638, %v7657
        %vm7663 = vc.u32 %v7638, %v7657
        %v7664 = vadd.s32 %v7660, 1
        %v7665 = vsel %vm7663, %v7664, %v7660
        %v7666 = vadd.s32 %v7661, %v7665
        %v7667 = vadd.s32 %v7666, 536870912
        %v7668 = vshrl.u32 %v7667, 30
        %v7669 = vshll.u32 %v7668, 30
        %v7670 = vsub.s32 %v7666, %v7669
        %vm7671 = vcmp.lt.s32.totalorder %v7670, 0
        %v7672 = vsub.s32 0, %v7670
        %v7673 = vsel %vm7671, %v7672, %v7670
        %v7674 = vclz %v7673
        %v7675 = vsub.s32 %v7674, 2
        %vm7676 = vcmp.gt.s32.totalorder 0, %v7675
        %v7677 = vsel %vm7676, 0, %v7675
        %v7678 = vsub.s32 32, %v7677
        %v7679 = vshll.u32 %v7670, %v7677
        %v7680 = vshrl.u32 %v7662, %v7678
        %v7681 = vor.u32 %v7679, %v7680
        %v7682 = vsub.s32 4294967266, %v7677
        %v7683 = vadd.s32 %v7682, 127
        %v7684 = vshll.u32 %v7683, 23
        %v7685 = vor.u32 4788187, %v7684
        %v7686 = vand.u32 2147483647, %v7685
        %v7688 = vcvt.s32.f32 %v7681
        %v7689 = vmul.f32 %v7688, %v7686
        %v7690 = vxor.u32 %v7689, 2147483648
        %v7691 = vsel %vm7570, %v7690, %v7689
        %v7692 = vsub.s32 4, %v7668
        %v7693 = vsel %vm7570, %v7692, %v7668
        %v7694 = vsel %vm7569, %v1530, %v7691
        %v7695 = vsel %vm7569, 0, %v7693
        %v7696 = vmul.f32 %v7694, %v7694
        %v7697 = vmul.f32 %v7696, -0.001358992
        %v7698 = vadd.f32 %v7697, 0.041655596
        %v7699 = vmul.f32 %v7696, %v7698
        %v7700 = vadd.f32 %v7699, -0.4999988
        %v7701 = vmul.f32 %v7696, %v7700
        %v7702 = vadd.f32 1.0, %v7701
        %v7703 = vmul.f32 %v7694, %v7694
        %v7704 = vmul.f32 %v7703, -0.00019511016
        %v7705 = vadd.f32 %v7704, 0.008332121
        %v7706 = vmul.f32 %v7703, %v7705
        %v7707 = vadd.f32 %v7706, -0.16666654
        %v7708 = vmul.f32 %v7703, %v7707
        %v7709 = vadd.f32 %v7708, 1.0
        %v7710 = vmul.f32 %v7709, %v7694
        %vm7711 = vweird.f32 %v1530
        %v7712 = vadd.s32 %v7695, 3
        %v7713 = vand.u32 %v7712, 3
        %vm7714 = vcmp.lt.s32.totalorder %v7713, 2
        %vm7715 = vcmp.eq.s32.totalorder %v7713, 0
        %v7716 = vxor.u32 %v7710, 2147483648
        %v7717 = vsel %vm7715, %v7702, %v7716
        %vm7718 = vcmp.eq.s32.totalorder %v7713, 2
        %v7719 = vxor.u32 %v7702, 2147483648
        %v7720 = vsel %vm7718, %v7719, %v7710
        %v7721 = vsel %vm7714, %v7717, %v7720
        %v7722 = vsel %vm7711, nan, %v7721
        %v7723 = vand.u32 2147483647, %v1531
        %vm7724 = vcmp.le.f32.partialorder %v7723, 0.7853982
        %vm7725 = vcmp.lt.s32.totalorder %v1531, 0
        %v7726 = vand.u32 %v1531, 2139095040
        %v7727 = vshrl.u32 %v7726, 23
        %v7728 = vsub.s32 %v7727, 127
        %v7729 = vand.u32 2147483647, %v1531
        %v7730 = vand.u32 %v7729, 8388607
        %v7731 = vor.u32 %v7730, 8388608
        %v7732 = vsub.s32 0, %v7731
        %v7733 = vadd.s32 %v7728, 1
        %vm7734 = vcmp.gt.s32.totalorder %v7733, 0
        %v7735 = vsel %vm7734, %v7733, 0
        %v7736 = vshrl.u32 %v7735, 5
        %v7737 = vand.u32 %v7735, 31
        %v7738 = vsub.s32 32, %v7737
        %v7739 = vshrl.u32 683565275, %v7738
        %v7740 = vshll.u32 683565275, %v7737
        %v7741 = vshrl.u32 2475754826, %v7738
        %v7742 = vor.u32 %v7740, %v7741
        %v7743 = vshll.u32 2475754826, %v7737
        %v7744 = vshrl.u32 2131351028, %v7738
        %v7745 = vor.u32 %v7743, %v7744
        %v7746 = vshll.u32 2131351028, %v7737
        %v7747 = vshrl.u32 2102212464, %v7738
        %v7748 = vor.u32 %v7746, %v7747
        %v7749 = vshll.u32 2102212464, %v7737
        %v7750 = vshrl.u32 920167782, %v7738
        %v7751 = vor.u32 %v7749, %v7750
        %v7752 = vshll.u32 920167782, %v7737
        %v7753 = vshrl.u32 1326507024, %v7738
        %v7754 = vor.u32 %v7752, %v7753
        %vm7755 = vcmp.lt.s32.totalorder %v7736, 1
        %vm7756 = vcmp.lt.s32.totalorder %v7736, 2
        %vm7757 = vcmp.lt.s32.totalorder %v7736, 3
        %vm7758 = vcmp.lt.s32.totalorder %v7736, 4
        %v7759 = vsel %vm7755, %v7739, %v7742
        %v7760 = vsel %vm7758, %v7748, 2102212464
        %v7761 = vsel %vm7757, %v7745, %v7760
        %v7762 = vsel %vm7756, %v7759, %v7761
        %v7763 = vsel %vm7755, %v7742, %v7745
        %v7764 = vsel %vm7758, %v7751, 920167782
        %v7765 = vsel %vm7757, %v7748, %v7764
        %v7766 = vsel %vm7756, %v7763, %v7765
        %v7767 = vsel %vm7755, %v7745, %v7748
        %v7768 = vsel %vm7758, %v7754, 1326507024
        %v7769 = vsel %vm7757, %v7751, %v7768
        %v7770 = vsel %vm7756, %v7767, %v7769
        %v7771 = vshll.u32 %v7731, 8
        %v7772 = vand.u32 %v7771, 65535
        %v7773 = vshrl.u32 %v7771, 16
        %v7774 = vand.u32 %v7770, 65535
        %v7775 = vshrl.u32 %v7770, 16
        %v7776 = vmul.u32 %v7772, %v7774
        %v7777 = vmul.u32 %v7772, %v7775
        %v7778 = vmul.u32 %v7773, %v7774
        %v7779 = vmul.u32 %v7773, %v7775
        %v7780 = vshll.u32 %v7777, 16
        %v7781 = vshrl.u32 %v7777, 16
        %v7782 = vshll.u32 %v7778, 16
        %v7783 = vshrl.u32 %v7778, 16
        %vm7784 = vc.u32 %v7776, %v7780
        %v7785 = vsel %vm7784, 1, 0
        %v7786 = vadd.s32 %v7776, %v7780
        %v7787 = vadd.s32 %v7779, %v7785
        %vm7788 = vc.u32 %v7786, %v7782
        %v7789 = vsel %vm7788, 1, 0
        %v7790 = vadd.s32 %v7786, %v7782
        %v7791 = vadd.s32 %v7787, %v7789
        %v7792 = vadd.s32 %v7791, %v7781
        %v7793 = vadd.s32 %v7792, %v7783
        %v7794 = vand.u32 %v7771, 65535
        %v7795 = vshrl.u32 %v7771, 16
        %v7796 = vand.u32 %v7766, 65535
        %v7797 = vshrl.u32 %v7766, 16
        %v7798 = vmul.u32 %v7794, %v7796
        %v7799 = vmul.u32 %v7794, %v7797
        %v7800 = vmul.u32 %v7795, %v7796
        %v7801 = vmul.u32 %v7795, %v7797
        %v7802 = vshll.u32 %v7799, 16
        %v7803 = vshrl.u32 %v7799, 16
        %v7804 = vshll.u32 %v7800, 16
        %v7805 = vshrl.u32 %v7800, 16
        %vm7806 = vc.u32 %v7798, %v7802
        %v7807 = vsel %vm7806, 1, 0
        %v7808 = vadd.s32 %v7798, %v7802
        %v7809 = vadd.s32 %v7801, %v7807
        %vm7810 = vc.u32 %v7808, %v7804
        %v7811 = vsel %vm7810, 1, 0
        %v7812 = vadd.s32 %v7808, %v7804
        %v7813 = vadd.s32 %v7809, %v7811
        %v7814 = vadd.s32 %v7813, %v7803
        %v7815 = vadd.s32 %v7814, %v7805
        %v7816 = vmul.u32 %v7771, %v7762
        %v7817 = vadd.s32 %v7793, %v7812
        %vm7818 = vc.u32 %v7793, %v7812
        %v7819 = vadd.s32 %v7815, 1
        %v7820 = vsel %vm7818, %v7819, %v7815
        %v7821 = vadd.s32 %v7816, %v7820
        %v7822 = vadd.s32 %v7821, 536870912
        %v7823 = vshrl.u32 %v7822, 30
        %v7824 = vshll.u32 %v7823, 30
        %v7825 = vsub.s32 %v7821, %v7824
        %vm7826 = vcmp.lt.s32.totalorder %v7825, 0
        %v7827 = vsub.s32 0, %v7825
        %v7828 = vsel %vm7826, %v7827, %v7825
        %v7829 = vclz %v7828
        %v7830 = vsub.s32 %v7829, 2
        %vm7831 = vcmp.gt.s32.totalorder 0, %v7830
        %v7832 = vsel %vm7831, 0, %v7830
        %v7833 = vsub.s32 32, %v7832
        %v7834 = vshll.u32 %v7825, %v7832
        %v7835 = vshrl.u32 %v7817, %v7833
        %v7836 = vor.u32 %v7834, %v7835
        %v7837 = vsub.s32 4294967266, %v7832
        %v7838 = vadd.s32 %v7837, 127
        %v7839 = vshll.u32 %v7838, 23
        %v7840 = vor.u32 4788187, %v7839
        %v7841 = vand.u32 2147483647, %v7840
        %v7843 = vcvt.s32.f32 %v7836
        %v7844 = vmul.f32 %v7843, %v7841
        %v7845 = vxor.u32 %v7844, 2147483648
        %v7846 = vsel %vm7725, %v7845, %v7844
        %v7847 = vsub.s32 4, %v7823
        %v7848 = vsel %vm7725, %v7847, %v7823
        %v7849 = vsel %vm7724, %v1531, %v7846
        %v7850 = vsel %vm7724, 0, %v7848
        %v7851 = vmul.f32 %v7849, %v7849
        %v7852 = vmul.f32 %v7851, -0.001358992
        %v7853 = vadd.f32 %v7852, 0.041655596
        %v7854 = vmul.f32 %v7851, %v7853
        %v7855 = vadd.f32 %v7854, -0.4999988
        %v7856 = vmul.f32 %v7851, %v7855
        %v7857 = vadd.f32 1.0, %v7856
        %v7858 = vmul.f32 %v7849, %v7849
        %v7859 = vmul.f32 %v7858, -0.00019511016
        %v7860 = vadd.f32 %v7859, 0.008332121
        %v7861 = vmul.f32 %v7858, %v7860
        %v7862 = vadd.f32 %v7861, -0.16666654
        %v7863 = vmul.f32 %v7858, %v7862
        %v7864 = vadd.f32 %v7863, 1.0
        %v7865 = vmul.f32 %v7864, %v7849
        %vm7866 = vweird.f32 %v1531
        %v7867 = vadd.s32 %v7850, 3
        %v7868 = vand.u32 %v7867, 3
        %vm7869 = vcmp.lt.s32.totalorder %v7868, 2
        %vm7870 = vcmp.eq.s32.totalorder %v7868, 0
        %v7871 = vxor.u32 %v7865, 2147483648
        %v7872 = vsel %vm7870, %v7857, %v7871
        %vm7873 = vcmp.eq.s32.totalorder %v7868, 2
        %v7874 = vxor.u32 %v7857, 2147483648
        %v7875 = vsel %vm7873, %v7874, %v7865
        %v7876 = vsel %vm7869, %v7872, %v7875
        %v7877 = vsel %vm7866, nan, %v7876
        %v7878 = vand.u32 2147483647, %v1532
        %vm7879 = vcmp.le.f32.partialorder %v7878, 0.7853982
        %vm7880 = vcmp.lt.s32.totalorder %v1532, 0
        %v7881 = vand.u32 %v1532, 2139095040
        %v7882 = vshrl.u32 %v7881, 23
        %v7883 = vsub.s32 %v7882, 127
        %v7884 = vand.u32 2147483647, %v1532
        %v7885 = vand.u32 %v7884, 8388607
        %v7886 = vor.u32 %v7885, 8388608
        %v7887 = vsub.s32 0, %v7886
        %v7888 = vadd.s32 %v7883, 1
        %vm7889 = vcmp.gt.s32.totalorder %v7888, 0
        %v7890 = vsel %vm7889, %v7888, 0
        %v7891 = vshrl.u32 %v7890, 5
        %v7892 = vand.u32 %v7890, 31
        %v7893 = vsub.s32 32, %v7892
        %v7894 = vshrl.u32 683565275, %v7893
        %v7895 = vshll.u32 683565275, %v7892
        %v7896 = vshrl.u32 2475754826, %v7893
        %v7897 = vor.u32 %v7895, %v7896
        %v7898 = vshll.u32 2475754826, %v7892
        %v7899 = vshrl.u32 2131351028, %v7893
        %v7900 = vor.u32 %v7898, %v7899
        %v7901 = vshll.u32 2131351028, %v7892
        %v7902 = vshrl.u32 2102212464, %v7893
        %v7903 = vor.u32 %v7901, %v7902
        %v7904 = vshll.u32 2102212464, %v7892
        %v7905 = vshrl.u32 920167782, %v7893
        %v7906 = vor.u32 %v7904, %v7905
        %v7907 = vshll.u32 920167782, %v7892
        %v7908 = vshrl.u32 1326507024, %v7893
        %v7909 = vor.u32 %v7907, %v7908
        %vm7910 = vcmp.lt.s32.totalorder %v7891, 1
        %vm7911 = vcmp.lt.s32.totalorder %v7891, 2
        %vm7912 = vcmp.lt.s32.totalorder %v7891, 3
        %vm7913 = vcmp.lt.s32.totalorder %v7891, 4
        %v7914 = vsel %vm7910, %v7894, %v7897
        %v7915 = vsel %vm7913, %v7903, 2102212464
        %v7916 = vsel %vm7912, %v7900, %v7915
        %v7917 = vsel %vm7911, %v7914, %v7916
        %v7918 = vsel %vm7910, %v7897, %v7900
        %v7919 = vsel %vm7913, %v7906, 920167782
        %v7920 = vsel %vm7912, %v7903, %v7919
        %v7921 = vsel %vm7911, %v7918, %v7920
        %v7922 = vsel %vm7910, %v7900, %v7903
        %v7923 = vsel %vm7913, %v7909, 1326507024
        %v7924 = vsel %vm7912, %v7906, %v7923
        %v7925 = vsel %vm7911, %v7922, %v7924
        %v7926 = vshll.u32 %v7886, 8
        %v7927 = vand.u32 %v7926, 65535
        %v7928 = vshrl.u32 %v7926, 16
        %v7929 = vand.u32 %v7925, 65535
        %v7930 = vshrl.u32 %v7925, 16
        %v7931 = vmul.u32 %v7927, %v7929
        %v7932 = vmul.u32 %v7927, %v7930
        %v7933 = vmul.u32 %v7928, %v7929
        %v7934 = vmul.u32 %v7928, %v7930
        %v7935 = vshll.u32 %v7932, 16
        %v7936 = vshrl.u32 %v7932, 16
        %v7937 = vshll.u32 %v7933, 16
        %v7938 = vshrl.u32 %v7933, 16
        %vm7939 = vc.u32 %v7931, %v7935
        %v7940 = vsel %vm7939, 1, 0
        %v7941 = vadd.s32 %v7931, %v7935
        %v7942 = vadd.s32 %v7934, %v7940
        %vm7943 = vc.u32 %v7941, %v7937
        %v7944 = vsel %vm7943, 1, 0
        %v7945 = vadd.s32 %v7941, %v7937
        %v7946 = vadd.s32 %v7942, %v7944
        %v7947 = vadd.s32 %v7946, %v7936
        %v7948 = vadd.s32 %v7947, %v7938
        %v7949 = vand.u32 %v7926, 65535
        %v7950 = vshrl.u32 %v7926, 16
        %v7951 = vand.u32 %v7921, 65535
        %v7952 = vshrl.u32 %v7921, 16
        %v7953 = vmul.u32 %v7949, %v7951
        %v7954 = vmul.u32 %v7949, %v7952
        %v7955 = vmul.u32 %v7950, %v7951
        %v7956 = vmul.u32 %v7950, %v7952
        %v7957 = vshll.u32 %v7954, 16
        %v7958 = vshrl.u32 %v7954, 16
        %v7959 = vshll.u32 %v7955, 16
        %v7960 = vshrl.u32 %v7955, 16
        %vm7961 = vc.u32 %v7953, %v7957
        %v7962 = vsel %vm7961, 1, 0
        %v7963 = vadd.s32 %v7953, %v7957
        %v7964 = vadd.s32 %v7956, %v7962
        %vm7965 = vc.u32 %v7963, %v7959
        %v7966 = vsel %vm7965, 1, 0
        %v7967 = vadd.s32 %v7963, %v7959
        %v7968 = vadd.s32 %v7964, %v7966
        %v7969 = vadd.s32 %v7968, %v7958
        %v7970 = vadd.s32 %v7969, %v7960
        %v7971 = vmul.u32 %v7926, %v7917
        %v7972 = vadd.s32 %v7948, %v7967
        %vm7973 = vc.u32 %v7948, %v7967
        %v7974 = vadd.s32 %v7970, 1
        %v7975 = vsel %vm7973, %v7974, %v7970
        %v7976 = vadd.s32 %v7971, %v7975
        %v7977 = vadd.s32 %v7976, 536870912
        %v7978 = vshrl.u32 %v7977, 30
        %v7979 = vshll.u32 %v7978, 30
        %v7980 = vsub.s32 %v7976, %v7979
        %vm7981 = vcmp.lt.s32.totalorder %v7980, 0
        %v7982 = vsub.s32 0, %v7980
        %v7983 = vsel %vm7981, %v7982, %v7980
        %v7984 = vclz %v7983
        %v7985 = vsub.s32 %v7984, 2
        %vm7986 = vcmp.gt.s32.totalorder 0, %v7985
        %v7987 = vsel %vm7986, 0, %v7985
        %v7988 = vsub.s32 32, %v7987
        %v7989 = vshll.u32 %v7980, %v7987
        %v7990 = vshrl.u32 %v7972, %v7988
        %v7991 = vor.u32 %v7989, %v7990
        %v7992 = vsub.s32 4294967266, %v7987
        %v7993 = vadd.s32 %v7992, 127
        %v7994 = vshll.u32 %v7993, 23
        %v7995 = vor.u32 4788187, %v7994
        %v7996 = vand.u32 2147483647, %v7995
        %v7998 = vcvt.s32.f32 %v7991
        %v7999 = vmul.f32 %v7998, %v7996
        %v8000 = vxor.u32 %v7999, 2147483648
        %v8001 = vsel %vm7880, %v8000, %v7999
        %v8002 = vsub.s32 4, %v7978
        %v8003 = vsel %vm7880, %v8002, %v7978
        %v8004 = vsel %vm7879, %v1532, %v8001
        %v8005 = vsel %vm7879, 0, %v8003
        %v8006 = vmul.f32 %v8004, %v8004
        %v8007 = vmul.f32 %v8006, -0.001358992
        %v8008 = vadd.f32 %v8007, 0.041655596
        %v8009 = vmul.f32 %v8006, %v8008
        %v8010 = vadd.f32 %v8009, -0.4999988
        %v8011 = vmul.f32 %v8006, %v8010
        %v8012 = vadd.f32 1.0, %v8011
        %v8013 = vmul.f32 %v8004, %v8004
        %v8014 = vmul.f32 %v8013, -0.00019511016
        %v8015 = vadd.f32 %v8014, 0.008332121
        %v8016 = vmul.f32 %v8013, %v8015
        %v8017 = vadd.f32 %v8016, -0.16666654
        %v8018 = vmul.f32 %v8013, %v8017
        %v8019 = vadd.f32 %v8018, 1.0
        %v8020 = vmul.f32 %v8019, %v8004
        %vm8021 = vweird.f32 %v1532
        %v8022 = vadd.s32 %v8005, 3
        %v8023 = vand.u32 %v8022, 3
        %vm8024 = vcmp.lt.s32.totalorder %v8023, 2
        %vm8025 = vcmp.eq.s32.totalorder %v8023, 0
        %v8026 = vxor.u32 %v8020, 2147483648
        %v8027 = vsel %vm8025, %v8012, %v8026
        %vm8028 = vcmp.eq.s32.totalorder %v8023, 2
        %v8029 = vxor.u32 %v8012, 2147483648
        %v8030 = vsel %vm8028, %v8029, %v8020
        %v8031 = vsel %vm8024, %v8027, %v8030
        %v8032 = vsel %vm8021, nan, %v8031
        %v8033 = vand.u32 2147483647, %v1533
        %vm8034 = vcmp.le.f32.partialorder %v8033, 0.7853982
        %vm8035 = vcmp.lt.s32.totalorder %v1533, 0
        %v8036 = vand.u32 %v1533, 2139095040
        %v8037 = vshrl.u32 %v8036, 23
        %v8038 = vsub.s32 %v8037, 127
        %v8039 = vand.u32 2147483647, %v1533
        %v8040 = vand.u32 %v8039, 8388607
        %v8041 = vor.u32 %v8040, 8388608
        %v8042 = vsub.s32 0, %v8041
        %v8043 = vadd.s32 %v8038, 1
        %vm8044 = vcmp.gt.s32.totalorder %v8043, 0
        %v8045 = vsel %vm8044, %v8043, 0
        %v8046 = vshrl.u32 %v8045, 5
        %v8047 = vand.u32 %v8045, 31
        %v8048 = vsub.s32 32, %v8047
        %v8049 = vshrl.u32 683565275, %v8048
        %v8050 = vshll.u32 683565275, %v8047
        %v8051 = vshrl.u32 2475754826, %v8048
        %v8052 = vor.u32 %v8050, %v8051
        %v8053 = vshll.u32 2475754826, %v8047
        %v8054 = vshrl.u32 2131351028, %v8048
        %v8055 = vor.u32 %v8053, %v8054
        %v8056 = vshll.u32 2131351028, %v8047
        %v8057 = vshrl.u32 2102212464, %v8048
        %v8058 = vor.u32 %v8056, %v8057
        %v8059 = vshll.u32 2102212464, %v8047
        %v8060 = vshrl.u32 920167782, %v8048
        %v8061 = vor.u32 %v8059, %v8060
        %v8062 = vshll.u32 920167782, %v8047
        %v8063 = vshrl.u32 1326507024, %v8048
        %v8064 = vor.u32 %v8062, %v8063
        %vm8065 = vcmp.lt.s32.totalorder %v8046, 1
        %vm8066 = vcmp.lt.s32.totalorder %v8046, 2
        %vm8067 = vcmp.lt.s32.totalorder %v8046, 3
        %vm8068 = vcmp.lt.s32.totalorder %v8046, 4
        %v8069 = vsel %vm8065, %v8049, %v8052
        %v8070 = vsel %vm8068, %v8058, 2102212464
        %v8071 = vsel %vm8067, %v8055, %v8070
        %v8072 = vsel %vm8066, %v8069, %v8071
        %v8073 = vsel %vm8065, %v8052, %v8055
        %v8074 = vsel %vm8068, %v8061, 920167782
        %v8075 = vsel %vm8067, %v8058, %v8074
        %v8076 = vsel %vm8066, %v8073, %v8075
        %v8077 = vsel %vm8065, %v8055, %v8058
        %v8078 = vsel %vm8068, %v8064, 1326507024
        %v8079 = vsel %vm8067, %v8061, %v8078
        %v8080 = vsel %vm8066, %v8077, %v8079
        %v8081 = vshll.u32 %v8041, 8
        %v8082 = vand.u32 %v8081, 65535
        %v8083 = vshrl.u32 %v8081, 16
        %v8084 = vand.u32 %v8080, 65535
        %v8085 = vshrl.u32 %v8080, 16
        %v8086 = vmul.u32 %v8082, %v8084
        %v8087 = vmul.u32 %v8082, %v8085
        %v8088 = vmul.u32 %v8083, %v8084
        %v8089 = vmul.u32 %v8083, %v8085
        %v8090 = vshll.u32 %v8087, 16
        %v8091 = vshrl.u32 %v8087, 16
        %v8092 = vshll.u32 %v8088, 16
        %v8093 = vshrl.u32 %v8088, 16
        %vm8094 = vc.u32 %v8086, %v8090
        %v8095 = vsel %vm8094, 1, 0
        %v8096 = vadd.s32 %v8086, %v8090
        %v8097 = vadd.s32 %v8089, %v8095
        %vm8098 = vc.u32 %v8096, %v8092
        %v8099 = vsel %vm8098, 1, 0
        %v8100 = vadd.s32 %v8096, %v8092
        %v8101 = vadd.s32 %v8097, %v8099
        %v8102 = vadd.s32 %v8101, %v8091
        %v8103 = vadd.s32 %v8102, %v8093
        %v8104 = vand.u32 %v8081, 65535
        %v8105 = vshrl.u32 %v8081, 16
        %v8106 = vand.u32 %v8076, 65535
        %v8107 = vshrl.u32 %v8076, 16
        %v8108 = vmul.u32 %v8104, %v8106
        %v8109 = vmul.u32 %v8104, %v8107
        %v8110 = vmul.u32 %v8105, %v8106
        %v8111 = vmul.u32 %v8105, %v8107
        %v8112 = vshll.u32 %v8109, 16
        %v8113 = vshrl.u32 %v8109, 16
        %v8114 = vshll.u32 %v8110, 16
        %v8115 = vshrl.u32 %v8110, 16
        %vm8116 = vc.u32 %v8108, %v8112
        %v8117 = vsel %vm8116, 1, 0
        %v8118 = vadd.s32 %v8108, %v8112
        %v8119 = vadd.s32 %v8111, %v8117
        %vm8120 = vc.u32 %v8118, %v8114
        %v8121 = vsel %vm8120, 1, 0
        %v8122 = vadd.s32 %v8118, %v8114
        %v8123 = vadd.s32 %v8119, %v8121
        %v8124 = vadd.s32 %v8123, %v8113
        %v8125 = vadd.s32 %v8124, %v8115
        %v8126 = vmul.u32 %v8081, %v8072
        %v8127 = vadd.s32 %v8103, %v8122
        %vm8128 = vc.u32 %v8103, %v8122
        %v8129 = vadd.s32 %v8125, 1
        %v8130 = vsel %vm8128, %v8129, %v8125
        %v8131 = vadd.s32 %v8126, %v8130
        %v8132 = vadd.s32 %v8131, 536870912
        %v8133 = vshrl.u32 %v8132, 30
        %v8134 = vshll.u32 %v8133, 30
        %v8135 = vsub.s32 %v8131, %v8134
        %vm8136 = vcmp.lt.s32.totalorder %v8135, 0
        %v8137 = vsub.s32 0, %v8135
        %v8138 = vsel %vm8136, %v8137, %v8135
        %v8139 = vclz %v8138
        %v8140 = vsub.s32 %v8139, 2
        %vm8141 = vcmp.gt.s32.totalorder 0, %v8140
        %v8142 = vsel %vm8141, 0, %v8140
        %v8143 = vsub.s32 32, %v8142
        %v8144 = vshll.u32 %v8135, %v8142
        %v8145 = vshrl.u32 %v8127, %v8143
        %v8146 = vor.u32 %v8144, %v8145
        %v8147 = vsub.s32 4294967266, %v8142
        %v8148 = vadd.s32 %v8147, 127
        %v8149 = vshll.u32 %v8148, 23
        %v8150 = vor.u32 4788187, %v8149
        %v8151 = vand.u32 2147483647, %v8150
        %v8153 = vcvt.s32.f32 %v8146
        %v8154 = vmul.f32 %v8153, %v8151
        %v8155 = vxor.u32 %v8154, 2147483648
        %v8156 = vsel %vm8035, %v8155, %v8154
        %v8157 = vsub.s32 4, %v8133
        %v8158 = vsel %vm8035, %v8157, %v8133
        %v8159 = vsel %vm8034, %v1533, %v8156
        %v8160 = vsel %vm8034, 0, %v8158
        %v8161 = vmul.f32 %v8159, %v8159
        %v8162 = vmul.f32 %v8161, -0.001358992
        %v8163 = vadd.f32 %v8162, 0.041655596
        %v8164 = vmul.f32 %v8161, %v8163
        %v8165 = vadd.f32 %v8164, -0.4999988
        %v8166 = vmul.f32 %v8161, %v8165
        %v8167 = vadd.f32 1.0, %v8166
        %v8168 = vmul.f32 %v8159, %v8159
        %v8169 = vmul.f32 %v8168, -0.00019511016
        %v8170 = vadd.f32 %v8169, 0.008332121
        %v8171 = vmul.f32 %v8168, %v8170
        %v8172 = vadd.f32 %v8171, -0.16666654
        %v8173 = vmul.f32 %v8168, %v8172
        %v8174 = vadd.f32 %v8173, 1.0
        %v8175 = vmul.f32 %v8174, %v8159
        %vm8176 = vweird.f32 %v1533
        %v8177 = vadd.s32 %v8160, 3
        %v8178 = vand.u32 %v8177, 3
        %vm8179 = vcmp.lt.s32.totalorder %v8178, 2
        %vm8180 = vcmp.eq.s32.totalorder %v8178, 0
        %v8181 = vxor.u32 %v8175, 2147483648
        %v8182 = vsel %vm8180, %v8167, %v8181
        %vm8183 = vcmp.eq.s32.totalorder %v8178, 2
        %v8184 = vxor.u32 %v8167, 2147483648
        %v8185 = vsel %vm8183, %v8184, %v8175
        %v8186 = vsel %vm8179, %v8182, %v8185
        %v8187 = vsel %vm8176, nan, %v8186
        %v8188 = vand.u32 2147483647, %v1534
        %vm8189 = vcmp.le.f32.partialorder %v8188, 0.7853982
        %vm8190 = vcmp.lt.s32.totalorder %v1534, 0
        %v8191 = vand.u32 %v1534, 2139095040
        %v8192 = vshrl.u32 %v8191, 23
        %v8193 = vsub.s32 %v8192, 127
        %v8194 = vand.u32 2147483647, %v1534
        %v8195 = vand.u32 %v8194, 8388607
        %v8196 = vor.u32 %v8195, 8388608
        %v8197 = vsub.s32 0, %v8196
        %v8198 = vadd.s32 %v8193, 1
        %vm8199 = vcmp.gt.s32.totalorder %v8198, 0
        %v8200 = vsel %vm8199, %v8198, 0
        %v8201 = vshrl.u32 %v8200, 5
        %v8202 = vand.u32 %v8200, 31
        %v8203 = vsub.s32 32, %v8202
        %v8204 = vshrl.u32 683565275, %v8203
        %v8205 = vshll.u32 683565275, %v8202
        %v8206 = vshrl.u32 2475754826, %v8203
        %v8207 = vor.u32 %v8205, %v8206
        %v8208 = vshll.u32 2475754826, %v8202
        %v8209 = vshrl.u32 2131351028, %v8203
        %v8210 = vor.u32 %v8208, %v8209
        %v8211 = vshll.u32 2131351028, %v8202
        %v8212 = vshrl.u32 2102212464, %v8203
        %v8213 = vor.u32 %v8211, %v8212
        %v8214 = vshll.u32 2102212464, %v8202
        %v8215 = vshrl.u32 920167782, %v8203
        %v8216 = vor.u32 %v8214, %v8215
        %v8217 = vshll.u32 920167782, %v8202
        %v8218 = vshrl.u32 1326507024, %v8203
        %v8219 = vor.u32 %v8217, %v8218
        %vm8220 = vcmp.lt.s32.totalorder %v8201, 1
        %vm8221 = vcmp.lt.s32.totalorder %v8201, 2
        %vm8222 = vcmp.lt.s32.totalorder %v8201, 3
        %vm8223 = vcmp.lt.s32.totalorder %v8201, 4
        %v8224 = vsel %vm8220, %v8204, %v8207
        %v8225 = vsel %vm8223, %v8213, 2102212464
        %v8226 = vsel %vm8222, %v8210, %v8225
        %v8227 = vsel %vm8221, %v8224, %v8226
        %v8228 = vsel %vm8220, %v8207, %v8210
        %v8229 = vsel %vm8223, %v8216, 920167782
        %v8230 = vsel %vm8222, %v8213, %v8229
        %v8231 = vsel %vm8221, %v8228, %v8230
        %v8232 = vsel %vm8220, %v8210, %v8213
        %v8233 = vsel %vm8223, %v8219, 1326507024
        %v8234 = vsel %vm8222, %v8216, %v8233
        %v8235 = vsel %vm8221, %v8232, %v8234
        %v8236 = vshll.u32 %v8196, 8
        %v8237 = vand.u32 %v8236, 65535
        %v8238 = vshrl.u32 %v8236, 16
        %v8239 = vand.u32 %v8235, 65535
        %v8240 = vshrl.u32 %v8235, 16
        %v8241 = vmul.u32 %v8237, %v8239
        %v8242 = vmul.u32 %v8237, %v8240
        %v8243 = vmul.u32 %v8238, %v8239
        %v8244 = vmul.u32 %v8238, %v8240
        %v8245 = vshll.u32 %v8242, 16
        %v8246 = vshrl.u32 %v8242, 16
        %v8247 = vshll.u32 %v8243, 16
        %v8248 = vshrl.u32 %v8243, 16
        %vm8249 = vc.u32 %v8241, %v8245
        %v8250 = vsel %vm8249, 1, 0
        %v8251 = vadd.s32 %v8241, %v8245
        %v8252 = vadd.s32 %v8244, %v8250
        %vm8253 = vc.u32 %v8251, %v8247
        %v8254 = vsel %vm8253, 1, 0
        %v8255 = vadd.s32 %v8251, %v8247
        %v8256 = vadd.s32 %v8252, %v8254
        %v8257 = vadd.s32 %v8256, %v8246
        %v8258 = vadd.s32 %v8257, %v8248
        %v8259 = vand.u32 %v8236, 65535
        %v8260 = vshrl.u32 %v8236, 16
        %v8261 = vand.u32 %v8231, 65535
        %v8262 = vshrl.u32 %v8231, 16
        %v8263 = vmul.u32 %v8259, %v8261
        %v8264 = vmul.u32 %v8259, %v8262
        %v8265 = vmul.u32 %v8260, %v8261
        %v8266 = vmul.u32 %v8260, %v8262
        %v8267 = vshll.u32 %v8264, 16
        %v8268 = vshrl.u32 %v8264, 16
        %v8269 = vshll.u32 %v8265, 16
        %v8270 = vshrl.u32 %v8265, 16
        %vm8271 = vc.u32 %v8263, %v8267
        %v8272 = vsel %vm8271, 1, 0
        %v8273 = vadd.s32 %v8263, %v8267
        %v8274 = vadd.s32 %v8266, %v8272
        %vm8275 = vc.u32 %v8273, %v8269
        %v8276 = vsel %vm8275, 1, 0
        %v8277 = vadd.s32 %v8273, %v8269
        %v8278 = vadd.s32 %v8274, %v8276
        %v8279 = vadd.s32 %v8278, %v8268
        %v8280 = vadd.s32 %v8279, %v8270
        %v8281 = vmul.u32 %v8236, %v8227
        %v8282 = vadd.s32 %v8258, %v8277
        %vm8283 = vc.u32 %v8258, %v8277
        %v8284 = vadd.s32 %v8280, 1
        %v8285 = vsel %vm8283, %v8284, %v8280
        %v8286 = vadd.s32 %v8281, %v8285
        %v8287 = vadd.s32 %v8286, 536870912
        %v8288 = vshrl.u32 %v8287, 30
        %v8289 = vshll.u32 %v8288, 30
        %v8290 = vsub.s32 %v8286, %v8289
        %vm8291 = vcmp.lt.s32.totalorder %v8290, 0
        %v8292 = vsub.s32 0, %v8290
        %v8293 = vsel %vm8291, %v8292, %v8290
        %v8294 = vclz %v8293
        %v8295 = vsub.s32 %v8294, 2
        %vm8296 = vcmp.gt.s32.totalorder 0, %v8295
        %v8297 = vsel %vm8296, 0, %v8295
        %v8298 = vsub.s32 32, %v8297
        %v8299 = vshll.u32 %v8290, %v8297
        %v8300 = vshrl.u32 %v8282, %v8298
        %v8301 = vor.u32 %v8299, %v8300
        %v8302 = vsub.s32 4294967266, %v8297
        %v8303 = vadd.s32 %v8302, 127
        %v8304 = vshll.u32 %v8303, 23
        %v8305 = vor.u32 4788187, %v8304
        %v8306 = vand.u32 2147483647, %v8305
        %v8308 = vcvt.s32.f32 %v8301
        %v8309 = vmul.f32 %v8308, %v8306
        %v8310 = vxor.u32 %v8309, 2147483648
        %v8311 = vsel %vm8190, %v8310, %v8309
        %v8312 = vsub.s32 4, %v8288
        %v8313 = vsel %vm8190, %v8312, %v8288
        %v8314 = vsel %vm8189, %v1534, %v8311
        %v8315 = vsel %vm8189, 0, %v8313
        %v8316 = vmul.f32 %v8314, %v8314
        %v8317 = vmul.f32 %v8316, -0.001358992
        %v8318 = vadd.f32 %v8317, 0.041655596
        %v8319 = vmul.f32 %v8316, %v8318
        %v8320 = vadd.f32 %v8319, -0.4999988
        %v8321 = vmul.f32 %v8316, %v8320
        %v8322 = vadd.f32 1.0, %v8321
        %v8323 = vmul.f32 %v8314, %v8314
        %v8324 = vmul.f32 %v8323, -0.00019511016
        %v8325 = vadd.f32 %v8324, 0.008332121
        %v8326 = vmul.f32 %v8323, %v8325
        %v8327 = vadd.f32 %v8326, -0.16666654
        %v8328 = vmul.f32 %v8323, %v8327
        %v8329 = vadd.f32 %v8328, 1.0
        %v8330 = vmul.f32 %v8329, %v8314
        %vm8331 = vweird.f32 %v1534
        %v8332 = vadd.s32 %v8315, 3
        %v8333 = vand.u32 %v8332, 3
        %vm8334 = vcmp.lt.s32.totalorder %v8333, 2
        %vm8335 = vcmp.eq.s32.totalorder %v8333, 0
        %v8336 = vxor.u32 %v8330, 2147483648
        %v8337 = vsel %vm8335, %v8322, %v8336
        %vm8338 = vcmp.eq.s32.totalorder %v8333, 2
        %v8339 = vxor.u32 %v8322, 2147483648
        %v8340 = vsel %vm8338, %v8339, %v8330
        %v8341 = vsel %vm8334, %v8337, %v8340
        %v8342 = vsel %vm8331, nan, %v8341
        %v8343 = vand.u32 2147483647, %v1535
        %vm8344 = vcmp.le.f32.partialorder %v8343, 0.7853982
        %vm8345 = vcmp.lt.s32.totalorder %v1535, 0
        %v8346 = vand.u32 %v1535, 2139095040
        %v8347 = vshrl.u32 %v8346, 23
        %v8348 = vsub.s32 %v8347, 127
        %v8349 = vand.u32 2147483647, %v1535
        %v8350 = vand.u32 %v8349, 8388607
        %v8351 = vor.u32 %v8350, 8388608
        %v8352 = vsub.s32 0, %v8351
        %v8353 = vadd.s32 %v8348, 1
        %vm8354 = vcmp.gt.s32.totalorder %v8353, 0
        %v8355 = vsel %vm8354, %v8353, 0
        %v8356 = vshrl.u32 %v8355, 5
        %v8357 = vand.u32 %v8355, 31
        %v8358 = vsub.s32 32, %v8357
        %v8359 = vshrl.u32 683565275, %v8358
        %v8360 = vshll.u32 683565275, %v8357
        %v8361 = vshrl.u32 2475754826, %v8358
        %v8362 = vor.u32 %v8360, %v8361
        %v8363 = vshll.u32 2475754826, %v8357
        %v8364 = vshrl.u32 2131351028, %v8358
        %v8365 = vor.u32 %v8363, %v8364
        %v8366 = vshll.u32 2131351028, %v8357
        %v8367 = vshrl.u32 2102212464, %v8358
        %v8368 = vor.u32 %v8366, %v8367
        %v8369 = vshll.u32 2102212464, %v8357
        %v8370 = vshrl.u32 920167782, %v8358
        %v8371 = vor.u32 %v8369, %v8370
        %v8372 = vshll.u32 920167782, %v8357
        %v8373 = vshrl.u32 1326507024, %v8358
        %v8374 = vor.u32 %v8372, %v8373
        %vm8375 = vcmp.lt.s32.totalorder %v8356, 1
        %vm8376 = vcmp.lt.s32.totalorder %v8356, 2
        %vm8377 = vcmp.lt.s32.totalorder %v8356, 3
        %vm8378 = vcmp.lt.s32.totalorder %v8356, 4
        %v8379 = vsel %vm8375, %v8359, %v8362
        %v8380 = vsel %vm8378, %v8368, 2102212464
        %v8381 = vsel %vm8377, %v8365, %v8380
        %v8382 = vsel %vm8376, %v8379, %v8381
        %v8383 = vsel %vm8375, %v8362, %v8365
        %v8384 = vsel %vm8378, %v8371, 920167782
        %v8385 = vsel %vm8377, %v8368, %v8384
        %v8386 = vsel %vm8376, %v8383, %v8385
        %v8387 = vsel %vm8375, %v8365, %v8368
        %v8388 = vsel %vm8378, %v8374, 1326507024
        %v8389 = vsel %vm8377, %v8371, %v8388
        %v8390 = vsel %vm8376, %v8387, %v8389
        %v8391 = vshll.u32 %v8351, 8
        %v8392 = vand.u32 %v8391, 65535
        %v8393 = vshrl.u32 %v8391, 16
        %v8394 = vand.u32 %v8390, 65535
        %v8395 = vshrl.u32 %v8390, 16
        %v8396 = vmul.u32 %v8392, %v8394
        %v8397 = vmul.u32 %v8392, %v8395
        %v8398 = vmul.u32 %v8393, %v8394
        %v8399 = vmul.u32 %v8393, %v8395
        %v8400 = vshll.u32 %v8397, 16
        %v8401 = vshrl.u32 %v8397, 16
        %v8402 = vshll.u32 %v8398, 16
        %v8403 = vshrl.u32 %v8398, 16
        %vm8404 = vc.u32 %v8396, %v8400
        %v8405 = vsel %vm8404, 1, 0
        %v8406 = vadd.s32 %v8396, %v8400
        %v8407 = vadd.s32 %v8399, %v8405
        %vm8408 = vc.u32 %v8406, %v8402
        %v8409 = vsel %vm8408, 1, 0
        %v8410 = vadd.s32 %v8406, %v8402
        %v8411 = vadd.s32 %v8407, %v8409
        %v8412 = vadd.s32 %v8411, %v8401
        %v8413 = vadd.s32 %v8412, %v8403
        %v8414 = vand.u32 %v8391, 65535
        %v8415 = vshrl.u32 %v8391, 16
        %v8416 = vand.u32 %v8386, 65535
        %v8417 = vshrl.u32 %v8386, 16
        %v8418 = vmul.u32 %v8414, %v8416
        %v8419 = vmul.u32 %v8414, %v8417
        %v8420 = vmul.u32 %v8415, %v8416
        %v8421 = vmul.u32 %v8415, %v8417
        %v8422 = vshll.u32 %v8419, 16
        %v8423 = vshrl.u32 %v8419, 16
        %v8424 = vshll.u32 %v8420, 16
        %v8425 = vshrl.u32 %v8420, 16
        %vm8426 = vc.u32 %v8418, %v8422
        %v8427 = vsel %vm8426, 1, 0
        %v8428 = vadd.s32 %v8418, %v8422
        %v8429 = vadd.s32 %v8421, %v8427
        %vm8430 = vc.u32 %v8428, %v8424
        %v8431 = vsel %vm8430, 1, 0
        %v8432 = vadd.s32 %v8428, %v8424
        %v8433 = vadd.s32 %v8429, %v8431
        %v8434 = vadd.s32 %v8433, %v8423
        %v8435 = vadd.s32 %v8434, %v8425
        %v8436 = vmul.u32 %v8391, %v8382
        %v8437 = vadd.s32 %v8413, %v8432
        %vm8438 = vc.u32 %v8413, %v8432
        %v8439 = vadd.s32 %v8435, 1
        %v8440 = vsel %vm8438, %v8439, %v8435
        %v8441 = vadd.s32 %v8436, %v8440
        %v8442 = vadd.s32 %v8441, 536870912
        %v8443 = vshrl.u32 %v8442, 30
        %v8444 = vshll.u32 %v8443, 30
        %v8445 = vsub.s32 %v8441, %v8444
        %vm8446 = vcmp.lt.s32.totalorder %v8445, 0
        %v8447 = vsub.s32 0, %v8445
        %v8448 = vsel %vm8446, %v8447, %v8445
        %v8449 = vclz %v8448
        %v8450 = vsub.s32 %v8449, 2
        %vm8451 = vcmp.gt.s32.totalorder 0, %v8450
        %v8452 = vsel %vm8451, 0, %v8450
        %v8453 = vsub.s32 32, %v8452
        %v8454 = vshll.u32 %v8445, %v8452
        %v8455 = vshrl.u32 %v8437, %v8453
        %v8456 = vor.u32 %v8454, %v8455
        %v8457 = vsub.s32 4294967266, %v8452
        %v8458 = vadd.s32 %v8457, 127
        %v8459 = vshll.u32 %v8458, 23
        %v8460 = vor.u32 4788187, %v8459
        %v8461 = vand.u32 2147483647, %v8460
        %v8463 = vcvt.s32.f32 %v8456
        %v8464 = vmul.f32 %v8463, %v8461
        %v8465 = vxor.u32 %v8464, 2147483648
        %v8466 = vsel %vm8345, %v8465, %v8464
        %v8467 = vsub.s32 4, %v8443
        %v8468 = vsel %vm8345, %v8467, %v8443
        %v8469 = vsel %vm8344, %v1535, %v8466
        %v8470 = vsel %vm8344, 0, %v8468
        %v8471 = vmul.f32 %v8469, %v8469
        %v8472 = vmul.f32 %v8471, -0.001358992
        %v8473 = vadd.f32 %v8472, 0.041655596
        %v8474 = vmul.f32 %v8471, %v8473
        %v8475 = vadd.f32 %v8474, -0.4999988
        %v8476 = vmul.f32 %v8471, %v8475
        %v8477 = vadd.f32 1.0, %v8476
        %v8478 = vmul.f32 %v8469, %v8469
        %v8479 = vmul.f32 %v8478, -0.00019511016
        %v8480 = vadd.f32 %v8479, 0.008332121
        %v8481 = vmul.f32 %v8478, %v8480
        %v8482 = vadd.f32 %v8481, -0.16666654
        %v8483 = vmul.f32 %v8478, %v8482
        %v8484 = vadd.f32 %v8483, 1.0
        %v8485 = vmul.f32 %v8484, %v8469
        %vm8486 = vweird.f32 %v1535
        %v8487 = vadd.s32 %v8470, 3
        %v8488 = vand.u32 %v8487, 3
        %vm8489 = vcmp.lt.s32.totalorder %v8488, 2
        %vm8490 = vcmp.eq.s32.totalorder %v8488, 0
        %v8491 = vxor.u32 %v8485, 2147483648
        %v8492 = vsel %vm8490, %v8477, %v8491
        %vm8493 = vcmp.eq.s32.totalorder %v8488, 2
        %v8494 = vxor.u32 %v8477, 2147483648
        %v8495 = vsel %vm8493, %v8494, %v8485
        %v8496 = vsel %vm8489, %v8492, %v8495
        %v8497 = vsel %vm8486, nan, %v8496
        %v8498 = vand.u32 2147483647, %v1536
        %vm8499 = vcmp.le.f32.partialorder %v8498, 0.7853982
        %vm8500 = vcmp.lt.s32.totalorder %v1536, 0
        %v8501 = vand.u32 %v1536, 2139095040
        %v8502 = vshrl.u32 %v8501, 23
        %v8503 = vsub.s32 %v8502, 127
        %v8504 = vand.u32 2147483647, %v1536
        %v8505 = vand.u32 %v8504, 8388607
        %v8506 = vor.u32 %v8505, 8388608
        %v8507 = vsub.s32 0, %v8506
        %v8508 = vadd.s32 %v8503, 1
        %vm8509 = vcmp.gt.s32.totalorder %v8508, 0
        %v8510 = vsel %vm8509, %v8508, 0
        %v8511 = vshrl.u32 %v8510, 5
        %v8512 = vand.u32 %v8510, 31
        %v8513 = vsub.s32 32, %v8512
        %v8514 = vshrl.u32 683565275, %v8513
        %v8515 = vshll.u32 683565275, %v8512
        %v8516 = vshrl.u32 2475754826, %v8513
        %v8517 = vor.u32 %v8515, %v8516
        %v8518 = vshll.u32 2475754826, %v8512
        %v8519 = vshrl.u32 2131351028, %v8513
        %v8520 = vor.u32 %v8518, %v8519
        %v8521 = vshll.u32 2131351028, %v8512
        %v8522 = vshrl.u32 2102212464, %v8513
        %v8523 = vor.u32 %v8521, %v8522
        %v8524 = vshll.u32 2102212464, %v8512
        %v8525 = vshrl.u32 920167782, %v8513
        %v8526 = vor.u32 %v8524, %v8525
        %v8527 = vshll.u32 920167782, %v8512
        %v8528 = vshrl.u32 1326507024, %v8513
        %v8529 = vor.u32 %v8527, %v8528
        %vm8530 = vcmp.lt.s32.totalorder %v8511, 1
        %vm8531 = vcmp.lt.s32.totalorder %v8511, 2
        %vm8532 = vcmp.lt.s32.totalorder %v8511, 3
        %vm8533 = vcmp.lt.s32.totalorder %v8511, 4
        %v8534 = vsel %vm8530, %v8514, %v8517
        %v8535 = vsel %vm8533, %v8523, 2102212464
        %v8536 = vsel %vm8532, %v8520, %v8535
        %v8537 = vsel %vm8531, %v8534, %v8536
        %v8538 = vsel %vm8530, %v8517, %v8520
        %v8539 = vsel %vm8533, %v8526, 920167782
        %v8540 = vsel %vm8532, %v8523, %v8539
        %v8541 = vsel %vm8531, %v8538, %v8540
        %v8542 = vsel %vm8530, %v8520, %v8523
        %v8543 = vsel %vm8533, %v8529, 1326507024
        %v8544 = vsel %vm8532, %v8526, %v8543
        %v8545 = vsel %vm8531, %v8542, %v8544
        %v8546 = vshll.u32 %v8506, 8
        %v8547 = vand.u32 %v8546, 65535
        %v8548 = vshrl.u32 %v8546, 16
        %v8549 = vand.u32 %v8545, 65535
        %v8550 = vshrl.u32 %v8545, 16
        %v8551 = vmul.u32 %v8547, %v8549
        %v8552 = vmul.u32 %v8547, %v8550
        %v8553 = vmul.u32 %v8548, %v8549
        %v8554 = vmul.u32 %v8548, %v8550
        %v8555 = vshll.u32 %v8552, 16
        %v8556 = vshrl.u32 %v8552, 16
        %v8557 = vshll.u32 %v8553, 16
        %v8558 = vshrl.u32 %v8553, 16
        %vm8559 = vc.u32 %v8551, %v8555
        %v8560 = vsel %vm8559, 1, 0
        %v8561 = vadd.s32 %v8551, %v8555
        %v8562 = vadd.s32 %v8554, %v8560
        %vm8563 = vc.u32 %v8561, %v8557
        %v8564 = vsel %vm8563, 1, 0
        %v8565 = vadd.s32 %v8561, %v8557
        %v8566 = vadd.s32 %v8562, %v8564
        %v8567 = vadd.s32 %v8566, %v8556
        %v8568 = vadd.s32 %v8567, %v8558
        %v8569 = vand.u32 %v8546, 65535
        %v8570 = vshrl.u32 %v8546, 16
        %v8571 = vand.u32 %v8541, 65535
        %v8572 = vshrl.u32 %v8541, 16
        %v8573 = vmul.u32 %v8569, %v8571
        %v8574 = vmul.u32 %v8569, %v8572
        %v8575 = vmul.u32 %v8570, %v8571
        %v8576 = vmul.u32 %v8570, %v8572
        %v8577 = vshll.u32 %v8574, 16
        %v8578 = vshrl.u32 %v8574, 16
        %v8579 = vshll.u32 %v8575, 16
        %v8580 = vshrl.u32 %v8575, 16
        %vm8581 = vc.u32 %v8573, %v8577
        %v8582 = vsel %vm8581, 1, 0
        %v8583 = vadd.s32 %v8573, %v8577
        %v8584 = vadd.s32 %v8576, %v8582
        %vm8585 = vc.u32 %v8583, %v8579
        %v8586 = vsel %vm8585, 1, 0
        %v8587 = vadd.s32 %v8583, %v8579
        %v8588 = vadd.s32 %v8584, %v8586
        %v8589 = vadd.s32 %v8588, %v8578
        %v8590 = vadd.s32 %v8589, %v8580
        %v8591 = vmul.u32 %v8546, %v8537
        %v8592 = vadd.s32 %v8568, %v8587
        %vm8593 = vc.u32 %v8568, %v8587
        %v8594 = vadd.s32 %v8590, 1
        %v8595 = vsel %vm8593, %v8594, %v8590
        %v8596 = vadd.s32 %v8591, %v8595
        %v8597 = vadd.s32 %v8596, 536870912
        %v8598 = vshrl.u32 %v8597, 30
        %v8599 = vshll.u32 %v8598, 30
        %v8600 = vsub.s32 %v8596, %v8599
        %vm8601 = vcmp.lt.s32.totalorder %v8600, 0
        %v8602 = vsub.s32 0, %v8600
        %v8603 = vsel %vm8601, %v8602, %v8600
        %v8604 = vclz %v8603
        %v8605 = vsub.s32 %v8604, 2
        %vm8606 = vcmp.gt.s32.totalorder 0, %v8605
        %v8607 = vsel %vm8606, 0, %v8605
        %v8608 = vsub.s32 32, %v8607
        %v8609 = vshll.u32 %v8600, %v8607
        %v8610 = vshrl.u32 %v8592, %v8608
        %v8611 = vor.u32 %v8609, %v8610
        %v8612 = vsub.s32 4294967266, %v8607
        %v8613 = vadd.s32 %v8612, 127
        %v8614 = vshll.u32 %v8613, 23
        %v8615 = vor.u32 4788187, %v8614
        %v8616 = vand.u32 2147483647, %v8615
        %v8618 = vcvt.s32.f32 %v8611
        %v8619 = vmul.f32 %v8618, %v8616
        %v8620 = vxor.u32 %v8619, 2147483648
        %v8621 = vsel %vm8500, %v8620, %v8619
        %v8622 = vsub.s32 4, %v8598
        %v8623 = vsel %vm8500, %v8622, %v8598
        %v8624 = vsel %vm8499, %v1536, %v8621
        %v8625 = vsel %vm8499, 0, %v8623
        %v8626 = vmul.f32 %v8624, %v8624
        %v8627 = vmul.f32 %v8626, -0.001358992
        %v8628 = vadd.f32 %v8627, 0.041655596
        %v8629 = vmul.f32 %v8626, %v8628
        %v8630 = vadd.f32 %v8629, -0.4999988
        %v8631 = vmul.f32 %v8626, %v8630
        %v8632 = vadd.f32 1.0, %v8631
        %v8633 = vmul.f32 %v8624, %v8624
        %v8634 = vmul.f32 %v8633, -0.00019511016
        %v8635 = vadd.f32 %v8634, 0.008332121
        %v8636 = vmul.f32 %v8633, %v8635
        %v8637 = vadd.f32 %v8636, -0.16666654
        %v8638 = vmul.f32 %v8633, %v8637
        %v8639 = vadd.f32 %v8638, 1.0
        %v8640 = vmul.f32 %v8639, %v8624
        %vm8641 = vweird.f32 %v1536
        %v8642 = vadd.s32 %v8625, 3
        %v8643 = vand.u32 %v8642, 3
        %vm8644 = vcmp.lt.s32.totalorder %v8643, 2
        %vm8645 = vcmp.eq.s32.totalorder %v8643, 0
        %v8646 = vxor.u32 %v8640, 2147483648
        %v8647 = vsel %vm8645, %v8632, %v8646
        %vm8648 = vcmp.eq.s32.totalorder %v8643, 2
        %v8649 = vxor.u32 %v8632, 2147483648
        %v8650 = vsel %vm8648, %v8649, %v8640
        %v8651 = vsel %vm8644, %v8647, %v8650
        %v8652 = vsel %vm8641, nan, %v8651
        %v8653 = vand.u32 2147483647, %v1537
        %vm8654 = vcmp.le.f32.partialorder %v8653, 0.7853982
        %vm8655 = vcmp.lt.s32.totalorder %v1537, 0
        %v8656 = vand.u32 %v1537, 2139095040
        %v8657 = vshrl.u32 %v8656, 23
        %v8658 = vsub.s32 %v8657, 127
        %v8659 = vand.u32 2147483647, %v1537
        %v8660 = vand.u32 %v8659, 8388607
        %v8661 = vor.u32 %v8660, 8388608
        %v8662 = vsub.s32 0, %v8661
        %v8663 = vadd.s32 %v8658, 1
        %vm8664 = vcmp.gt.s32.totalorder %v8663, 0
        %v8665 = vsel %vm8664, %v8663, 0
        %v8666 = vshrl.u32 %v8665, 5
        %v8667 = vand.u32 %v8665, 31
        %v8668 = vsub.s32 32, %v8667
        %v8669 = vshrl.u32 683565275, %v8668
        %v8670 = vshll.u32 683565275, %v8667
        %v8671 = vshrl.u32 2475754826, %v8668
        %v8672 = vor.u32 %v8670, %v8671
        %v8673 = vshll.u32 2475754826, %v8667
        %v8674 = vshrl.u32 2131351028, %v8668
        %v8675 = vor.u32 %v8673, %v8674
        %v8676 = vshll.u32 2131351028, %v8667
        %v8677 = vshrl.u32 2102212464, %v8668
        %v8678 = vor.u32 %v8676, %v8677
        %v8679 = vshll.u32 2102212464, %v8667
        %v8680 = vshrl.u32 920167782, %v8668
        %v8681 = vor.u32 %v8679, %v8680
        %v8682 = vshll.u32 920167782, %v8667
        %v8683 = vshrl.u32 1326507024, %v8668
        %v8684 = vor.u32 %v8682, %v8683
        %vm8685 = vcmp.lt.s32.totalorder %v8666, 1
        %vm8686 = vcmp.lt.s32.totalorder %v8666, 2
        %vm8687 = vcmp.lt.s32.totalorder %v8666, 3
        %vm8688 = vcmp.lt.s32.totalorder %v8666, 4
        %v8689 = vsel %vm8685, %v8669, %v8672
        %v8690 = vsel %vm8688, %v8678, 2102212464
        %v8691 = vsel %vm8687, %v8675, %v8690
        %v8692 = vsel %vm8686, %v8689, %v8691
        %v8693 = vsel %vm8685, %v8672, %v8675
        %v8694 = vsel %vm8688, %v8681, 920167782
        %v8695 = vsel %vm8687, %v8678, %v8694
        %v8696 = vsel %vm8686, %v8693, %v8695
        %v8697 = vsel %vm8685, %v8675, %v8678
        %v8698 = vsel %vm8688, %v8684, 1326507024
        %v8699 = vsel %vm8687, %v8681, %v8698
        %v8700 = vsel %vm8686, %v8697, %v8699
        %v8701 = vshll.u32 %v8661, 8
        %v8702 = vand.u32 %v8701, 65535
        %v8703 = vshrl.u32 %v8701, 16
        %v8704 = vand.u32 %v8700, 65535
        %v8705 = vshrl.u32 %v8700, 16
        %v8706 = vmul.u32 %v8702, %v8704
        %v8707 = vmul.u32 %v8702, %v8705
        %v8708 = vmul.u32 %v8703, %v8704
        %v8709 = vmul.u32 %v8703, %v8705
        %v8710 = vshll.u32 %v8707, 16
        %v8711 = vshrl.u32 %v8707, 16
        %v8712 = vshll.u32 %v8708, 16
        %v8713 = vshrl.u32 %v8708, 16
        %vm8714 = vc.u32 %v8706, %v8710
        %v8715 = vsel %vm8714, 1, 0
        %v8716 = vadd.s32 %v8706, %v8710
        %v8717 = vadd.s32 %v8709, %v8715
        %vm8718 = vc.u32 %v8716, %v8712
        %v8719 = vsel %vm8718, 1, 0
        %v8720 = vadd.s32 %v8716, %v8712
        %v8721 = vadd.s32 %v8717, %v8719
        %v8722 = vadd.s32 %v8721, %v8711
        %v8723 = vadd.s32 %v8722, %v8713
        %v8724 = vand.u32 %v8701, 65535
        %v8725 = vshrl.u32 %v8701, 16
        %v8726 = vand.u32 %v8696, 65535
        %v8727 = vshrl.u32 %v8696, 16
        %v8728 = vmul.u32 %v8724, %v8726
        %v8729 = vmul.u32 %v8724, %v8727
        %v8730 = vmul.u32 %v8725, %v8726
        %v8731 = vmul.u32 %v8725, %v8727
        %v8732 = vshll.u32 %v8729, 16
        %v8733 = vshrl.u32 %v8729, 16
        %v8734 = vshll.u32 %v8730, 16
        %v8735 = vshrl.u32 %v8730, 16
        %vm8736 = vc.u32 %v8728, %v8732
        %v8737 = vsel %vm8736, 1, 0
        %v8738 = vadd.s32 %v8728, %v8732
        %v8739 = vadd.s32 %v8731, %v8737
        %vm8740 = vc.u32 %v8738, %v8734
        %v8741 = vsel %vm8740, 1, 0
        %v8742 = vadd.s32 %v8738, %v8734
        %v8743 = vadd.s32 %v8739, %v8741
        %v8744 = vadd.s32 %v8743, %v8733
        %v8745 = vadd.s32 %v8744, %v8735
        %v8746 = vmul.u32 %v8701, %v8692
        %v8747 = vadd.s32 %v8723, %v8742
        %vm8748 = vc.u32 %v8723, %v8742
        %v8749 = vadd.s32 %v8745, 1
        %v8750 = vsel %vm8748, %v8749, %v8745
        %v8751 = vadd.s32 %v8746, %v8750
        %v8752 = vadd.s32 %v8751, 536870912
        %v8753 = vshrl.u32 %v8752, 30
        %v8754 = vshll.u32 %v8753, 30
        %v8755 = vsub.s32 %v8751, %v8754
        %vm8756 = vcmp.lt.s32.totalorder %v8755, 0
        %v8757 = vsub.s32 0, %v8755
        %v8758 = vsel %vm8756, %v8757, %v8755
        %v8759 = vclz %v8758
        %v8760 = vsub.s32 %v8759, 2
        %vm8761 = vcmp.gt.s32.totalorder 0, %v8760
        %v8762 = vsel %vm8761, 0, %v8760
        %v8763 = vsub.s32 32, %v8762
        %v8764 = vshll.u32 %v8755, %v8762
        %v8765 = vshrl.u32 %v8747, %v8763
        %v8766 = vor.u32 %v8764, %v8765
        %v8767 = vsub.s32 4294967266, %v8762
        %v8768 = vadd.s32 %v8767, 127
        %v8769 = vshll.u32 %v8768, 23
        %v8770 = vor.u32 4788187, %v8769
        %v8771 = vand.u32 2147483647, %v8770
        %v8773 = vcvt.s32.f32 %v8766
        %v8774 = vmul.f32 %v8773, %v8771
        %v8775 = vxor.u32 %v8774, 2147483648
        %v8776 = vsel %vm8655, %v8775, %v8774
        %v8777 = vsub.s32 4, %v8753
        %v8778 = vsel %vm8655, %v8777, %v8753
        %v8779 = vsel %vm8654, %v1537, %v8776
        %v8780 = vsel %vm8654, 0, %v8778
        %v8781 = vmul.f32 %v8779, %v8779
        %v8782 = vmul.f32 %v8781, -0.001358992
        %v8783 = vadd.f32 %v8782, 0.041655596
        %v8784 = vmul.f32 %v8781, %v8783
        %v8785 = vadd.f32 %v8784, -0.4999988
        %v8786 = vmul.f32 %v8781, %v8785
        %v8787 = vadd.f32 1.0, %v8786
        %v8788 = vmul.f32 %v8779, %v8779
        %v8789 = vmul.f32 %v8788, -0.00019511016
        %v8790 = vadd.f32 %v8789, 0.008332121
        %v8791 = vmul.f32 %v8788, %v8790
        %v8792 = vadd.f32 %v8791, -0.16666654
        %v8793 = vmul.f32 %v8788, %v8792
        %v8794 = vadd.f32 %v8793, 1.0
        %v8795 = vmul.f32 %v8794, %v8779
        %vm8796 = vweird.f32 %v1537
        %v8797 = vadd.s32 %v8780, 3
        %v8798 = vand.u32 %v8797, 3
        %vm8799 = vcmp.lt.s32.totalorder %v8798, 2
        %vm8800 = vcmp.eq.s32.totalorder %v8798, 0
        %v8801 = vxor.u32 %v8795, 2147483648
        %v8802 = vsel %vm8800, %v8787, %v8801
        %vm8803 = vcmp.eq.s32.totalorder %v8798, 2
        %v8804 = vxor.u32 %v8787, 2147483648
        %v8805 = vsel %vm8803, %v8804, %v8795
        %v8806 = vsel %vm8799, %v8802, %v8805
        %v8807 = vsel %vm8796, nan, %v8806
        %v8808 = vand.u32 2147483647, %v1538
        %vm8809 = vcmp.le.f32.partialorder %v8808, 0.7853982
        %vm8810 = vcmp.lt.s32.totalorder %v1538, 0
        %v8811 = vand.u32 %v1538, 2139095040
        %v8812 = vshrl.u32 %v8811, 23
        %v8813 = vsub.s32 %v8812, 127
        %v8814 = vand.u32 2147483647, %v1538
        %v8815 = vand.u32 %v8814, 8388607
        %v8816 = vor.u32 %v8815, 8388608
        %v8817 = vsub.s32 0, %v8816
        %v8818 = vadd.s32 %v8813, 1
        %vm8819 = vcmp.gt.s32.totalorder %v8818, 0
        %v8820 = vsel %vm8819, %v8818, 0
        %v8821 = vshrl.u32 %v8820, 5
        %v8822 = vand.u32 %v8820, 31
        %v8823 = vsub.s32 32, %v8822
        %v8824 = vshrl.u32 683565275, %v8823
        %v8825 = vshll.u32 683565275, %v8822
        %v8826 = vshrl.u32 2475754826, %v8823
        %v8827 = vor.u32 %v8825, %v8826
        %v8828 = vshll.u32 2475754826, %v8822
        %v8829 = vshrl.u32 2131351028, %v8823
        %v8830 = vor.u32 %v8828, %v8829
        %v8831 = vshll.u32 2131351028, %v8822
        %v8832 = vshrl.u32 2102212464, %v8823
        %v8833 = vor.u32 %v8831, %v8832
        %v8834 = vshll.u32 2102212464, %v8822
        %v8835 = vshrl.u32 920167782, %v8823
        %v8836 = vor.u32 %v8834, %v8835
        %v8837 = vshll.u32 920167782, %v8822
        %v8838 = vshrl.u32 1326507024, %v8823
        %v8839 = vor.u32 %v8837, %v8838
        %vm8840 = vcmp.lt.s32.totalorder %v8821, 1
        %vm8841 = vcmp.lt.s32.totalorder %v8821, 2
        %vm8842 = vcmp.lt.s32.totalorder %v8821, 3
        %vm8843 = vcmp.lt.s32.totalorder %v8821, 4
        %v8844 = vsel %vm8840, %v8824, %v8827
        %v8845 = vsel %vm8843, %v8833, 2102212464
        %v8846 = vsel %vm8842, %v8830, %v8845
        %v8847 = vsel %vm8841, %v8844, %v8846
        %v8848 = vsel %vm8840, %v8827, %v8830
        %v8849 = vsel %vm8843, %v8836, 920167782
        %v8850 = vsel %vm8842, %v8833, %v8849
        %v8851 = vsel %vm8841, %v8848, %v8850
        %v8852 = vsel %vm8840, %v8830, %v8833
        %v8853 = vsel %vm8843, %v8839, 1326507024
        %v8854 = vsel %vm8842, %v8836, %v8853
        %v8855 = vsel %vm8841, %v8852, %v8854
        %v8856 = vshll.u32 %v8816, 8
        %v8857 = vand.u32 %v8856, 65535
        %v8858 = vshrl.u32 %v8856, 16
        %v8859 = vand.u32 %v8855, 65535
        %v8860 = vshrl.u32 %v8855, 16
        %v8861 = vmul.u32 %v8857, %v8859
        %v8862 = vmul.u32 %v8857, %v8860
        %v8863 = vmul.u32 %v8858, %v8859
        %v8864 = vmul.u32 %v8858, %v8860
        %v8865 = vshll.u32 %v8862, 16
        %v8866 = vshrl.u32 %v8862, 16
        %v8867 = vshll.u32 %v8863, 16
        %v8868 = vshrl.u32 %v8863, 16
        %vm8869 = vc.u32 %v8861, %v8865
        %v8870 = vsel %vm8869, 1, 0
        %v8871 = vadd.s32 %v8861, %v8865
        %v8872 = vadd.s32 %v8864, %v8870
        %vm8873 = vc.u32 %v8871, %v8867
        %v8874 = vsel %vm8873, 1, 0
        %v8875 = vadd.s32 %v8871, %v8867
        %v8876 = vadd.s32 %v8872, %v8874
        %v8877 = vadd.s32 %v8876, %v8866
        %v8878 = vadd.s32 %v8877, %v8868
        %v8879 = vand.u32 %v8856, 65535
        %v8880 = vshrl.u32 %v8856, 16
        %v8881 = vand.u32 %v8851, 65535
        %v8882 = vshrl.u32 %v8851, 16
        %v8883 = vmul.u32 %v8879, %v8881
        %v8884 = vmul.u32 %v8879, %v8882
        %v8885 = vmul.u32 %v8880, %v8881
        %v8886 = vmul.u32 %v8880, %v8882
        %v8887 = vshll.u32 %v8884, 16
        %v8888 = vshrl.u32 %v8884, 16
        %v8889 = vshll.u32 %v8885, 16
        %v8890 = vshrl.u32 %v8885, 16
        %vm8891 = vc.u32 %v8883, %v8887
        %v8892 = vsel %vm8891, 1, 0
        %v8893 = vadd.s32 %v8883, %v8887
        %v8894 = vadd.s32 %v8886, %v8892
        %vm8895 = vc.u32 %v8893, %v8889
        %v8896 = vsel %vm8895, 1, 0
        %v8897 = vadd.s32 %v8893, %v8889
        %v8898 = vadd.s32 %v8894, %v8896
        %v8899 = vadd.s32 %v8898, %v8888
        %v8900 = vadd.s32 %v8899, %v8890
        %v8901 = vmul.u32 %v8856, %v8847
        %v8902 = vadd.s32 %v8878, %v8897
        %vm8903 = vc.u32 %v8878, %v8897
        %v8904 = vadd.s32 %v8900, 1
        %v8905 = vsel %vm8903, %v8904, %v8900
        %v8906 = vadd.s32 %v8901, %v8905
        %v8907 = vadd.s32 %v8906, 536870912
        %v8908 = vshrl.u32 %v8907, 30
        %v8909 = vshll.u32 %v8908, 30
        %v8910 = vsub.s32 %v8906, %v8909
        %vm8911 = vcmp.lt.s32.totalorder %v8910, 0
        %v8912 = vsub.s32 0, %v8910
        %v8913 = vsel %vm8911, %v8912, %v8910
        %v8914 = vclz %v8913
        %v8915 = vsub.s32 %v8914, 2
        %vm8916 = vcmp.gt.s32.totalorder 0, %v8915
        %v8917 = vsel %vm8916, 0, %v8915
        %v8918 = vsub.s32 32, %v8917
        %v8919 = vshll.u32 %v8910, %v8917
        %v8920 = vshrl.u32 %v8902, %v8918
        %v8921 = vor.u32 %v8919, %v8920
        %v8922 = vsub.s32 4294967266, %v8917
        %v8923 = vadd.s32 %v8922, 127
        %v8924 = vshll.u32 %v8923, 23
        %v8925 = vor.u32 4788187, %v8924
        %v8926 = vand.u32 2147483647, %v8925
        %v8928 = vcvt.s32.f32 %v8921
        %v8929 = vmul.f32 %v8928, %v8926
        %v8930 = vxor.u32 %v8929, 2147483648
        %v8931 = vsel %vm8810, %v8930, %v8929
        %v8932 = vsub.s32 4, %v8908
        %v8933 = vsel %vm8810, %v8932, %v8908
        %v8934 = vsel %vm8809, %v1538, %v8931
        %v8935 = vsel %vm8809, 0, %v8933
        %v8936 = vmul.f32 %v8934, %v8934
        %v8937 = vmul.f32 %v8936, -0.001358992
        %v8938 = vadd.f32 %v8937, 0.041655596
        %v8939 = vmul.f32 %v8936, %v8938
        %v8940 = vadd.f32 %v8939, -0.4999988
        %v8941 = vmul.f32 %v8936, %v8940
        %v8942 = vadd.f32 1.0, %v8941
        %v8943 = vmul.f32 %v8934, %v8934
        %v8944 = vmul.f32 %v8943, -0.00019511016
        %v8945 = vadd.f32 %v8944, 0.008332121
        %v8946 = vmul.f32 %v8943, %v8945
        %v8947 = vadd.f32 %v8946, -0.16666654
        %v8948 = vmul.f32 %v8943, %v8947
        %v8949 = vadd.f32 %v8948, 1.0
        %v8950 = vmul.f32 %v8949, %v8934
        %vm8951 = vweird.f32 %v1538
        %v8952 = vadd.s32 %v8935, 3
        %v8953 = vand.u32 %v8952, 3
        %vm8954 = vcmp.lt.s32.totalorder %v8953, 2
        %vm8955 = vcmp.eq.s32.totalorder %v8953, 0
        %v8956 = vxor.u32 %v8950, 2147483648
        %v8957 = vsel %vm8955, %v8942, %v8956
        %vm8958 = vcmp.eq.s32.totalorder %v8953, 2
        %v8959 = vxor.u32 %v8942, 2147483648
        %v8960 = vsel %vm8958, %v8959, %v8950
        %v8961 = vsel %vm8954, %v8957, %v8960
        %v8962 = vsel %vm8951, nan, %v8961
        %v8963 = vand.u32 2147483647, %v1539
        %vm8964 = vcmp.le.f32.partialorder %v8963, 0.7853982
        %vm8965 = vcmp.lt.s32.totalorder %v1539, 0
        %v8966 = vand.u32 %v1539, 2139095040
        %v8967 = vshrl.u32 %v8966, 23
        %v8968 = vsub.s32 %v8967, 127
        %v8969 = vand.u32 2147483647, %v1539
        %v8970 = vand.u32 %v8969, 8388607
        %v8971 = vor.u32 %v8970, 8388608
        %v8972 = vsub.s32 0, %v8971
        %v8973 = vadd.s32 %v8968, 1
        %vm8974 = vcmp.gt.s32.totalorder %v8973, 0
        %v8975 = vsel %vm8974, %v8973, 0
        %v8976 = vshrl.u32 %v8975, 5
        %v8977 = vand.u32 %v8975, 31
        %v8978 = vsub.s32 32, %v8977
        %v8979 = vshrl.u32 683565275, %v8978
        %v8980 = vshll.u32 683565275, %v8977
        %v8981 = vshrl.u32 2475754826, %v8978
        %v8982 = vor.u32 %v8980, %v8981
        %v8983 = vshll.u32 2475754826, %v8977
        %v8984 = vshrl.u32 2131351028, %v8978
        %v8985 = vor.u32 %v8983, %v8984
        %v8986 = vshll.u32 2131351028, %v8977
        %v8987 = vshrl.u32 2102212464, %v8978
        %v8988 = vor.u32 %v8986, %v8987
        %v8989 = vshll.u32 2102212464, %v8977
        %v8990 = vshrl.u32 920167782, %v8978
        %v8991 = vor.u32 %v8989, %v8990
        %v8992 = vshll.u32 920167782, %v8977
        %v8993 = vshrl.u32 1326507024, %v8978
        %v8994 = vor.u32 %v8992, %v8993
        %vm8995 = vcmp.lt.s32.totalorder %v8976, 1
        %vm8996 = vcmp.lt.s32.totalorder %v8976, 2
        %vm8997 = vcmp.lt.s32.totalorder %v8976, 3
        %vm8998 = vcmp.lt.s32.totalorder %v8976, 4
        %v8999 = vsel %vm8995, %v8979, %v8982
        %v9000 = vsel %vm8998, %v8988, 2102212464
        %v9001 = vsel %vm8997, %v8985, %v9000
        %v9002 = vsel %vm8996, %v8999, %v9001
        %v9003 = vsel %vm8995, %v8982, %v8985
        %v9004 = vsel %vm8998, %v8991, 920167782
        %v9005 = vsel %vm8997, %v8988, %v9004
        %v9006 = vsel %vm8996, %v9003, %v9005
        %v9007 = vsel %vm8995, %v8985, %v8988
        %v9008 = vsel %vm8998, %v8994, 1326507024
        %v9009 = vsel %vm8997, %v8991, %v9008
        %v9010 = vsel %vm8996, %v9007, %v9009
        %v9011 = vshll.u32 %v8971, 8
        %v9012 = vand.u32 %v9011, 65535
        %v9013 = vshrl.u32 %v9011, 16
        %v9014 = vand.u32 %v9010, 65535
        %v9015 = vshrl.u32 %v9010, 16
        %v9016 = vmul.u32 %v9012, %v9014
        %v9017 = vmul.u32 %v9012, %v9015
        %v9018 = vmul.u32 %v9013, %v9014
        %v9019 = vmul.u32 %v9013, %v9015
        %v9020 = vshll.u32 %v9017, 16
        %v9021 = vshrl.u32 %v9017, 16
        %v9022 = vshll.u32 %v9018, 16
        %v9023 = vshrl.u32 %v9018, 16
        %vm9024 = vc.u32 %v9016, %v9020
        %v9025 = vsel %vm9024, 1, 0
        %v9026 = vadd.s32 %v9016, %v9020
        %v9027 = vadd.s32 %v9019, %v9025
        %vm9028 = vc.u32 %v9026, %v9022
        %v9029 = vsel %vm9028, 1, 0
        %v9030 = vadd.s32 %v9026, %v9022
        %v9031 = vadd.s32 %v9027, %v9029
        %v9032 = vadd.s32 %v9031, %v9021
        %v9033 = vadd.s32 %v9032, %v9023
        %v9034 = vand.u32 %v9011, 65535
        %v9035 = vshrl.u32 %v9011, 16
        %v9036 = vand.u32 %v9006, 65535
        %v9037 = vshrl.u32 %v9006, 16
        %v9038 = vmul.u32 %v9034, %v9036
        %v9039 = vmul.u32 %v9034, %v9037
        %v9040 = vmul.u32 %v9035, %v9036
        %v9041 = vmul.u32 %v9035, %v9037
        %v9042 = vshll.u32 %v9039, 16
        %v9043 = vshrl.u32 %v9039, 16
        %v9044 = vshll.u32 %v9040, 16
        %v9045 = vshrl.u32 %v9040, 16
        %vm9046 = vc.u32 %v9038, %v9042
        %v9047 = vsel %vm9046, 1, 0
        %v9048 = vadd.s32 %v9038, %v9042
        %v9049 = vadd.s32 %v9041, %v9047
        %vm9050 = vc.u32 %v9048, %v9044
        %v9051 = vsel %vm9050, 1, 0
        %v9052 = vadd.s32 %v9048, %v9044
        %v9053 = vadd.s32 %v9049, %v9051
        %v9054 = vadd.s32 %v9053, %v9043
        %v9055 = vadd.s32 %v9054, %v9045
        %v9056 = vmul.u32 %v9011, %v9002
        %v9057 = vadd.s32 %v9033, %v9052
        %vm9058 = vc.u32 %v9033, %v9052
        %v9059 = vadd.s32 %v9055, 1
        %v9060 = vsel %vm9058, %v9059, %v9055
        %v9061 = vadd.s32 %v9056, %v9060
        %v9062 = vadd.s32 %v9061, 536870912
        %v9063 = vshrl.u32 %v9062, 30
        %v9064 = vshll.u32 %v9063, 30
        %v9065 = vsub.s32 %v9061, %v9064
        %vm9066 = vcmp.lt.s32.totalorder %v9065, 0
        %v9067 = vsub.s32 0, %v9065
        %v9068 = vsel %vm9066, %v9067, %v9065
        %v9069 = vclz %v9068
        %v9070 = vsub.s32 %v9069, 2
        %vm9071 = vcmp.gt.s32.totalorder 0, %v9070
        %v9072 = vsel %vm9071, 0, %v9070
        %v9073 = vsub.s32 32, %v9072
        %v9074 = vshll.u32 %v9065, %v9072
        %v9075 = vshrl.u32 %v9057, %v9073
        %v9076 = vor.u32 %v9074, %v9075
        %v9077 = vsub.s32 4294967266, %v9072
        %v9078 = vadd.s32 %v9077, 127
        %v9079 = vshll.u32 %v9078, 23
        %v9080 = vor.u32 4788187, %v9079
        %v9081 = vand.u32 2147483647, %v9080
        %v9083 = vcvt.s32.f32 %v9076
        %v9084 = vmul.f32 %v9083, %v9081
        %v9085 = vxor.u32 %v9084, 2147483648
        %v9086 = vsel %vm8965, %v9085, %v9084
        %v9087 = vsub.s32 4, %v9063
        %v9088 = vsel %vm8965, %v9087, %v9063
        %v9089 = vsel %vm8964, %v1539, %v9086
        %v9090 = vsel %vm8964, 0, %v9088
        %v9091 = vmul.f32 %v9089, %v9089
        %v9092 = vmul.f32 %v9091, -0.001358992
        %v9093 = vadd.f32 %v9092, 0.041655596
        %v9094 = vmul.f32 %v9091, %v9093
        %v9095 = vadd.f32 %v9094, -0.4999988
        %v9096 = vmul.f32 %v9091, %v9095
        %v9097 = vadd.f32 1.0, %v9096
        %v9098 = vmul.f32 %v9089, %v9089
        %v9099 = vmul.f32 %v9098, -0.00019511016
        %v9100 = vadd.f32 %v9099, 0.008332121
        %v9101 = vmul.f32 %v9098, %v9100
        %v9102 = vadd.f32 %v9101, -0.16666654
        %v9103 = vmul.f32 %v9098, %v9102
        %v9104 = vadd.f32 %v9103, 1.0
        %v9105 = vmul.f32 %v9104, %v9089
        %vm9106 = vweird.f32 %v1539
        %v9107 = vadd.s32 %v9090, 3
        %v9108 = vand.u32 %v9107, 3
        %vm9109 = vcmp.lt.s32.totalorder %v9108, 2
        %vm9110 = vcmp.eq.s32.totalorder %v9108, 0
        %v9111 = vxor.u32 %v9105, 2147483648
        %v9112 = vsel %vm9110, %v9097, %v9111
        %vm9113 = vcmp.eq.s32.totalorder %v9108, 2
        %v9114 = vxor.u32 %v9097, 2147483648
        %v9115 = vsel %vm9113, %v9114, %v9105
        %v9116 = vsel %vm9109, %v9112, %v9115
        %v9117 = vsel %vm9106, nan, %v9116
        %v9118 = vand.u32 2147483647, %v1540
        %vm9119 = vcmp.le.f32.partialorder %v9118, 0.7853982
        %vm9120 = vcmp.lt.s32.totalorder %v1540, 0
        %v9121 = vand.u32 %v1540, 2139095040
        %v9122 = vshrl.u32 %v9121, 23
        %v9123 = vsub.s32 %v9122, 127
        %v9124 = vand.u32 2147483647, %v1540
        %v9125 = vand.u32 %v9124, 8388607
        %v9126 = vor.u32 %v9125, 8388608
        %v9127 = vsub.s32 0, %v9126
        %v9128 = vadd.s32 %v9123, 1
        %vm9129 = vcmp.gt.s32.totalorder %v9128, 0
        %v9130 = vsel %vm9129, %v9128, 0
        %v9131 = vshrl.u32 %v9130, 5
        %v9132 = vand.u32 %v9130, 31
        %v9133 = vsub.s32 32, %v9132
        %v9134 = vshrl.u32 683565275, %v9133
        %v9135 = vshll.u32 683565275, %v9132
        %v9136 = vshrl.u32 2475754826, %v9133
        %v9137 = vor.u32 %v9135, %v9136
        %v9138 = vshll.u32 2475754826, %v9132
        %v9139 = vshrl.u32 2131351028, %v9133
        %v9140 = vor.u32 %v9138, %v9139
        %v9141 = vshll.u32 2131351028, %v9132
        %v9142 = vshrl.u32 2102212464, %v9133
        %v9143 = vor.u32 %v9141, %v9142
        %v9144 = vshll.u32 2102212464, %v9132
        %v9145 = vshrl.u32 920167782, %v9133
        %v9146 = vor.u32 %v9144, %v9145
        %v9147 = vshll.u32 920167782, %v9132
        %v9148 = vshrl.u32 1326507024, %v9133
        %v9149 = vor.u32 %v9147, %v9148
        %vm9150 = vcmp.lt.s32.totalorder %v9131, 1
        %vm9151 = vcmp.lt.s32.totalorder %v9131, 2
        %vm9152 = vcmp.lt.s32.totalorder %v9131, 3
        %vm9153 = vcmp.lt.s32.totalorder %v9131, 4
        %v9154 = vsel %vm9150, %v9134, %v9137
        %v9155 = vsel %vm9153, %v9143, 2102212464
        %v9156 = vsel %vm9152, %v9140, %v9155
        %v9157 = vsel %vm9151, %v9154, %v9156
        %v9158 = vsel %vm9150, %v9137, %v9140
        %v9159 = vsel %vm9153, %v9146, 920167782
        %v9160 = vsel %vm9152, %v9143, %v9159
        %v9161 = vsel %vm9151, %v9158, %v9160
        %v9162 = vsel %vm9150, %v9140, %v9143
        %v9163 = vsel %vm9153, %v9149, 1326507024
        %v9164 = vsel %vm9152, %v9146, %v9163
        %v9165 = vsel %vm9151, %v9162, %v9164
        %v9166 = vshll.u32 %v9126, 8
        %v9167 = vand.u32 %v9166, 65535
        %v9168 = vshrl.u32 %v9166, 16
        %v9169 = vand.u32 %v9165, 65535
        %v9170 = vshrl.u32 %v9165, 16
        %v9171 = vmul.u32 %v9167, %v9169
        %v9172 = vmul.u32 %v9167, %v9170
        %v9173 = vmul.u32 %v9168, %v9169
        %v9174 = vmul.u32 %v9168, %v9170
        %v9175 = vshll.u32 %v9172, 16
        %v9176 = vshrl.u32 %v9172, 16
        %v9177 = vshll.u32 %v9173, 16
        %v9178 = vshrl.u32 %v9173, 16
        %vm9179 = vc.u32 %v9171, %v9175
        %v9180 = vsel %vm9179, 1, 0
        %v9181 = vadd.s32 %v9171, %v9175
        %v9182 = vadd.s32 %v9174, %v9180
        %vm9183 = vc.u32 %v9181, %v9177
        %v9184 = vsel %vm9183, 1, 0
        %v9185 = vadd.s32 %v9181, %v9177
        %v9186 = vadd.s32 %v9182, %v9184
        %v9187 = vadd.s32 %v9186, %v9176
        %v9188 = vadd.s32 %v9187, %v9178
        %v9189 = vand.u32 %v9166, 65535
        %v9190 = vshrl.u32 %v9166, 16
        %v9191 = vand.u32 %v9161, 65535
        %v9192 = vshrl.u32 %v9161, 16
        %v9193 = vmul.u32 %v9189, %v9191
        %v9194 = vmul.u32 %v9189, %v9192
        %v9195 = vmul.u32 %v9190, %v9191
        %v9196 = vmul.u32 %v9190, %v9192
        %v9197 = vshll.u32 %v9194, 16
        %v9198 = vshrl.u32 %v9194, 16
        %v9199 = vshll.u32 %v9195, 16
        %v9200 = vshrl.u32 %v9195, 16
        %vm9201 = vc.u32 %v9193, %v9197
        %v9202 = vsel %vm9201, 1, 0
        %v9203 = vadd.s32 %v9193, %v9197
        %v9204 = vadd.s32 %v9196, %v9202
        %vm9205 = vc.u32 %v9203, %v9199
        %v9206 = vsel %vm9205, 1, 0
        %v9207 = vadd.s32 %v9203, %v9199
        %v9208 = vadd.s32 %v9204, %v9206
        %v9209 = vadd.s32 %v9208, %v9198
        %v9210 = vadd.s32 %v9209, %v9200
        %v9211 = vmul.u32 %v9166, %v9157
        %v9212 = vadd.s32 %v9188, %v9207
        %vm9213 = vc.u32 %v9188, %v9207
        %v9214 = vadd.s32 %v9210, 1
        %v9215 = vsel %vm9213, %v9214, %v9210
        %v9216 = vadd.s32 %v9211, %v9215
        %v9217 = vadd.s32 %v9216, 536870912
        %v9218 = vshrl.u32 %v9217, 30
        %v9219 = vshll.u32 %v9218, 30
        %v9220 = vsub.s32 %v9216, %v9219
        %vm9221 = vcmp.lt.s32.totalorder %v9220, 0
        %v9222 = vsub.s32 0, %v9220
        %v9223 = vsel %vm9221, %v9222, %v9220
        %v9224 = vclz %v9223
        %v9225 = vsub.s32 %v9224, 2
        %vm9226 = vcmp.gt.s32.totalorder 0, %v9225
        %v9227 = vsel %vm9226, 0, %v9225
        %v9228 = vsub.s32 32, %v9227
        %v9229 = vshll.u32 %v9220, %v9227
        %v9230 = vshrl.u32 %v9212, %v9228
        %v9231 = vor.u32 %v9229, %v9230
        %v9232 = vsub.s32 4294967266, %v9227
        %v9233 = vadd.s32 %v9232, 127
        %v9234 = vshll.u32 %v9233, 23
        %v9235 = vor.u32 4788187, %v9234
        %v9236 = vand.u32 2147483647, %v9235
        %v9238 = vcvt.s32.f32 %v9231
        %v9239 = vmul.f32 %v9238, %v9236
        %v9240 = vxor.u32 %v9239, 2147483648
        %v9241 = vsel %vm9120, %v9240, %v9239
        %v9242 = vsub.s32 4, %v9218
        %v9243 = vsel %vm9120, %v9242, %v9218
        %v9244 = vsel %vm9119, %v1540, %v9241
        %v9245 = vsel %vm9119, 0, %v9243
        %v9246 = vmul.f32 %v9244, %v9244
        %v9247 = vmul.f32 %v9246, -0.001358992
        %v9248 = vadd.f32 %v9247, 0.041655596
        %v9249 = vmul.f32 %v9246, %v9248
        %v9250 = vadd.f32 %v9249, -0.4999988
        %v9251 = vmul.f32 %v9246, %v9250
        %v9252 = vadd.f32 1.0, %v9251
        %v9253 = vmul.f32 %v9244, %v9244
        %v9254 = vmul.f32 %v9253, -0.00019511016
        %v9255 = vadd.f32 %v9254, 0.008332121
        %v9256 = vmul.f32 %v9253, %v9255
        %v9257 = vadd.f32 %v9256, -0.16666654
        %v9258 = vmul.f32 %v9253, %v9257
        %v9259 = vadd.f32 %v9258, 1.0
        %v9260 = vmul.f32 %v9259, %v9244
        %vm9261 = vweird.f32 %v1540
        %v9262 = vadd.s32 %v9245, 3
        %v9263 = vand.u32 %v9262, 3
        %vm9264 = vcmp.lt.s32.totalorder %v9263, 2
        %vm9265 = vcmp.eq.s32.totalorder %v9263, 0
        %v9266 = vxor.u32 %v9260, 2147483648
        %v9267 = vsel %vm9265, %v9252, %v9266
        %vm9268 = vcmp.eq.s32.totalorder %v9263, 2
        %v9269 = vxor.u32 %v9252, 2147483648
        %v9270 = vsel %vm9268, %v9269, %v9260
        %v9271 = vsel %vm9264, %v9267, %v9270
        %v9272 = vsel %vm9261, nan, %v9271
        %v9273 = vand.u32 2147483647, %v1541
        %vm9274 = vcmp.le.f32.partialorder %v9273, 0.7853982
        %vm9275 = vcmp.lt.s32.totalorder %v1541, 0
        %v9276 = vand.u32 %v1541, 2139095040
        %v9277 = vshrl.u32 %v9276, 23
        %v9278 = vsub.s32 %v9277, 127
        %v9279 = vand.u32 2147483647, %v1541
        %v9280 = vand.u32 %v9279, 8388607
        %v9281 = vor.u32 %v9280, 8388608
        %v9282 = vsub.s32 0, %v9281
        %v9283 = vadd.s32 %v9278, 1
        %vm9284 = vcmp.gt.s32.totalorder %v9283, 0
        %v9285 = vsel %vm9284, %v9283, 0
        %v9286 = vshrl.u32 %v9285, 5
        %v9287 = vand.u32 %v9285, 31
        %v9288 = vsub.s32 32, %v9287
        %v9289 = vshrl.u32 683565275, %v9288
        %v9290 = vshll.u32 683565275, %v9287
        %v9291 = vshrl.u32 2475754826, %v9288
        %v9292 = vor.u32 %v9290, %v9291
        %v9293 = vshll.u32 2475754826, %v9287
        %v9294 = vshrl.u32 2131351028, %v9288
        %v9295 = vor.u32 %v9293, %v9294
        %v9296 = vshll.u32 2131351028, %v9287
        %v9297 = vshrl.u32 2102212464, %v9288
        %v9298 = vor.u32 %v9296, %v9297
        %v9299 = vshll.u32 2102212464, %v9287
        %v9300 = vshrl.u32 920167782, %v9288
        %v9301 = vor.u32 %v9299, %v9300
        %v9302 = vshll.u32 920167782, %v9287
        %v9303 = vshrl.u32 1326507024, %v9288
        %v9304 = vor.u32 %v9302, %v9303
        %vm9305 = vcmp.lt.s32.totalorder %v9286, 1
        %vm9306 = vcmp.lt.s32.totalorder %v9286, 2
        %vm9307 = vcmp.lt.s32.totalorder %v9286, 3
        %vm9308 = vcmp.lt.s32.totalorder %v9286, 4
        %v9309 = vsel %vm9305, %v9289, %v9292
        %v9310 = vsel %vm9308, %v9298, 2102212464
        %v9311 = vsel %vm9307, %v9295, %v9310
        %v9312 = vsel %vm9306, %v9309, %v9311
        %v9313 = vsel %vm9305, %v9292, %v9295
        %v9314 = vsel %vm9308, %v9301, 920167782
        %v9315 = vsel %vm9307, %v9298, %v9314
        %v9316 = vsel %vm9306, %v9313, %v9315
        %v9317 = vsel %vm9305, %v9295, %v9298
        %v9318 = vsel %vm9308, %v9304, 1326507024
        %v9319 = vsel %vm9307, %v9301, %v9318
        %v9320 = vsel %vm9306, %v9317, %v9319
        %v9321 = vshll.u32 %v9281, 8
        %v9322 = vand.u32 %v9321, 65535
        %v9323 = vshrl.u32 %v9321, 16
        %v9324 = vand.u32 %v9320, 65535
        %v9325 = vshrl.u32 %v9320, 16
        %v9326 = vmul.u32 %v9322, %v9324
        %v9327 = vmul.u32 %v9322, %v9325
        %v9328 = vmul.u32 %v9323, %v9324
        %v9329 = vmul.u32 %v9323, %v9325
        %v9330 = vshll.u32 %v9327, 16
        %v9331 = vshrl.u32 %v9327, 16
        %v9332 = vshll.u32 %v9328, 16
        %v9333 = vshrl.u32 %v9328, 16
        %vm9334 = vc.u32 %v9326, %v9330
        %v9335 = vsel %vm9334, 1, 0
        %v9336 = vadd.s32 %v9326, %v9330
        %v9337 = vadd.s32 %v9329, %v9335
        %vm9338 = vc.u32 %v9336, %v9332
        %v9339 = vsel %vm9338, 1, 0
        %v9340 = vadd.s32 %v9336, %v9332
        %v9341 = vadd.s32 %v9337, %v9339
        %v9342 = vadd.s32 %v9341, %v9331
        %v9343 = vadd.s32 %v9342, %v9333
        %v9344 = vand.u32 %v9321, 65535
        %v9345 = vshrl.u32 %v9321, 16
        %v9346 = vand.u32 %v9316, 65535
        %v9347 = vshrl.u32 %v9316, 16
        %v9348 = vmul.u32 %v9344, %v9346
        %v9349 = vmul.u32 %v9344, %v9347
        %v9350 = vmul.u32 %v9345, %v9346
        %v9351 = vmul.u32 %v9345, %v9347
        %v9352 = vshll.u32 %v9349, 16
        %v9353 = vshrl.u32 %v9349, 16
        %v9354 = vshll.u32 %v9350, 16
        %v9355 = vshrl.u32 %v9350, 16
        %vm9356 = vc.u32 %v9348, %v9352
        %v9357 = vsel %vm9356, 1, 0
        %v9358 = vadd.s32 %v9348, %v9352
        %v9359 = vadd.s32 %v9351, %v9357
        %vm9360 = vc.u32 %v9358, %v9354
        %v9361 = vsel %vm9360, 1, 0
        %v9362 = vadd.s32 %v9358, %v9354
        %v9363 = vadd.s32 %v9359, %v9361
        %v9364 = vadd.s32 %v9363, %v9353
        %v9365 = vadd.s32 %v9364, %v9355
        %v9366 = vmul.u32 %v9321, %v9312
        %v9367 = vadd.s32 %v9343, %v9362
        %vm9368 = vc.u32 %v9343, %v9362
        %v9369 = vadd.s32 %v9365, 1
        %v9370 = vsel %vm9368, %v9369, %v9365
        %v9371 = vadd.s32 %v9366, %v9370
        %v9372 = vadd.s32 %v9371, 536870912
        %v9373 = vshrl.u32 %v9372, 30
        %v9374 = vshll.u32 %v9373, 30
        %v9375 = vsub.s32 %v9371, %v9374
        %vm9376 = vcmp.lt.s32.totalorder %v9375, 0
        %v9377 = vsub.s32 0, %v9375
        %v9378 = vsel %vm9376, %v9377, %v9375
        %v9379 = vclz %v9378
        %v9380 = vsub.s32 %v9379, 2
        %vm9381 = vcmp.gt.s32.totalorder 0, %v9380
        %v9382 = vsel %vm9381, 0, %v9380
        %v9383 = vsub.s32 32, %v9382
        %v9384 = vshll.u32 %v9375, %v9382
        %v9385 = vshrl.u32 %v9367, %v9383
        %v9386 = vor.u32 %v9384, %v9385
        %v9387 = vsub.s32 4294967266, %v9382
        %v9388 = vadd.s32 %v9387, 127
        %v9389 = vshll.u32 %v9388, 23
        %v9390 = vor.u32 4788187, %v9389
        %v9391 = vand.u32 2147483647, %v9390
        %v9393 = vcvt.s32.f32 %v9386
        %v9394 = vmul.f32 %v9393, %v9391
        %v9395 = vxor.u32 %v9394, 2147483648
        %v9396 = vsel %vm9275, %v9395, %v9394
        %v9397 = vsub.s32 4, %v9373
        %v9398 = vsel %vm9275, %v9397, %v9373
        %v9399 = vsel %vm9274, %v1541, %v9396
        %v9400 = vsel %vm9274, 0, %v9398
        %v9401 = vmul.f32 %v9399, %v9399
        %v9402 = vmul.f32 %v9401, -0.001358992
        %v9403 = vadd.f32 %v9402, 0.041655596
        %v9404 = vmul.f32 %v9401, %v9403
        %v9405 = vadd.f32 %v9404, -0.4999988
        %v9406 = vmul.f32 %v9401, %v9405
        %v9407 = vadd.f32 1.0, %v9406
        %v9408 = vmul.f32 %v9399, %v9399
        %v9409 = vmul.f32 %v9408, -0.00019511016
        %v9410 = vadd.f32 %v9409, 0.008332121
        %v9411 = vmul.f32 %v9408, %v9410
        %v9412 = vadd.f32 %v9411, -0.16666654
        %v9413 = vmul.f32 %v9408, %v9412
        %v9414 = vadd.f32 %v9413, 1.0
        %v9415 = vmul.f32 %v9414, %v9399
        %vm9416 = vweird.f32 %v1541
        %v9417 = vadd.s32 %v9400, 3
        %v9418 = vand.u32 %v9417, 3
        %vm9419 = vcmp.lt.s32.totalorder %v9418, 2
        %vm9420 = vcmp.eq.s32.totalorder %v9418, 0
        %v9421 = vxor.u32 %v9415, 2147483648
        %v9422 = vsel %vm9420, %v9407, %v9421
        %vm9423 = vcmp.eq.s32.totalorder %v9418, 2
        %v9424 = vxor.u32 %v9407, 2147483648
        %v9425 = vsel %vm9423, %v9424, %v9415
        %v9426 = vsel %vm9419, %v9422, %v9425
        %v9427 = vsel %vm9416, nan, %v9426
        %v9428 = vand.u32 2147483647, %v1542
        %vm9429 = vcmp.le.f32.partialorder %v9428, 0.7853982
        %vm9430 = vcmp.lt.s32.totalorder %v1542, 0
        %v9431 = vand.u32 %v1542, 2139095040
        %v9432 = vshrl.u32 %v9431, 23
        %v9433 = vsub.s32 %v9432, 127
        %v9434 = vand.u32 2147483647, %v1542
        %v9435 = vand.u32 %v9434, 8388607
        %v9436 = vor.u32 %v9435, 8388608
        %v9437 = vsub.s32 0, %v9436
        %v9438 = vadd.s32 %v9433, 1
        %vm9439 = vcmp.gt.s32.totalorder %v9438, 0
        %v9440 = vsel %vm9439, %v9438, 0
        %v9441 = vshrl.u32 %v9440, 5
        %v9442 = vand.u32 %v9440, 31
        %v9443 = vsub.s32 32, %v9442
        %v9444 = vshrl.u32 683565275, %v9443
        %v9445 = vshll.u32 683565275, %v9442
        %v9446 = vshrl.u32 2475754826, %v9443
        %v9447 = vor.u32 %v9445, %v9446
        %v9448 = vshll.u32 2475754826, %v9442
        %v9449 = vshrl.u32 2131351028, %v9443
        %v9450 = vor.u32 %v9448, %v9449
        %v9451 = vshll.u32 2131351028, %v9442
        %v9452 = vshrl.u32 2102212464, %v9443
        %v9453 = vor.u32 %v9451, %v9452
        %v9454 = vshll.u32 2102212464, %v9442
        %v9455 = vshrl.u32 920167782, %v9443
        %v9456 = vor.u32 %v9454, %v9455
        %v9457 = vshll.u32 920167782, %v9442
        %v9458 = vshrl.u32 1326507024, %v9443
        %v9459 = vor.u32 %v9457, %v9458
        %vm9460 = vcmp.lt.s32.totalorder %v9441, 1
        %vm9461 = vcmp.lt.s32.totalorder %v9441, 2
        %vm9462 = vcmp.lt.s32.totalorder %v9441, 3
        %vm9463 = vcmp.lt.s32.totalorder %v9441, 4
        %v9464 = vsel %vm9460, %v9444, %v9447
        %v9465 = vsel %vm9463, %v9453, 2102212464
        %v9466 = vsel %vm9462, %v9450, %v9465
        %v9467 = vsel %vm9461, %v9464, %v9466
        %v9468 = vsel %vm9460, %v9447, %v9450
        %v9469 = vsel %vm9463, %v9456, 920167782
        %v9470 = vsel %vm9462, %v9453, %v9469
        %v9471 = vsel %vm9461, %v9468, %v9470
        %v9472 = vsel %vm9460, %v9450, %v9453
        %v9473 = vsel %vm9463, %v9459, 1326507024
        %v9474 = vsel %vm9462, %v9456, %v9473
        %v9475 = vsel %vm9461, %v9472, %v9474
        %v9476 = vshll.u32 %v9436, 8
        %v9477 = vand.u32 %v9476, 65535
        %v9478 = vshrl.u32 %v9476, 16
        %v9479 = vand.u32 %v9475, 65535
        %v9480 = vshrl.u32 %v9475, 16
        %v9481 = vmul.u32 %v9477, %v9479
        %v9482 = vmul.u32 %v9477, %v9480
        %v9483 = vmul.u32 %v9478, %v9479
        %v9484 = vmul.u32 %v9478, %v9480
        %v9485 = vshll.u32 %v9482, 16
        %v9486 = vshrl.u32 %v9482, 16
        %v9487 = vshll.u32 %v9483, 16
        %v9488 = vshrl.u32 %v9483, 16
        %vm9489 = vc.u32 %v9481, %v9485
        %v9490 = vsel %vm9489, 1, 0
        %v9491 = vadd.s32 %v9481, %v9485
        %v9492 = vadd.s32 %v9484, %v9490
        %vm9493 = vc.u32 %v9491, %v9487
        %v9494 = vsel %vm9493, 1, 0
        %v9495 = vadd.s32 %v9491, %v9487
        %v9496 = vadd.s32 %v9492, %v9494
        %v9497 = vadd.s32 %v9496, %v9486
        %v9498 = vadd.s32 %v9497, %v9488
        %v9499 = vand.u32 %v9476, 65535
        %v9500 = vshrl.u32 %v9476, 16
        %v9501 = vand.u32 %v9471, 65535
        %v9502 = vshrl.u32 %v9471, 16
        %v9503 = vmul.u32 %v9499, %v9501
        %v9504 = vmul.u32 %v9499, %v9502
        %v9505 = vmul.u32 %v9500, %v9501
        %v9506 = vmul.u32 %v9500, %v9502
        %v9507 = vshll.u32 %v9504, 16
        %v9508 = vshrl.u32 %v9504, 16
        %v9509 = vshll.u32 %v9505, 16
        %v9510 = vshrl.u32 %v9505, 16
        %vm9511 = vc.u32 %v9503, %v9507
        %v9512 = vsel %vm9511, 1, 0
        %v9513 = vadd.s32 %v9503, %v9507
        %v9514 = vadd.s32 %v9506, %v9512
        %vm9515 = vc.u32 %v9513, %v9509
        %v9516 = vsel %vm9515, 1, 0
        %v9517 = vadd.s32 %v9513, %v9509
        %v9518 = vadd.s32 %v9514, %v9516
        %v9519 = vadd.s32 %v9518, %v9508
        %v9520 = vadd.s32 %v9519, %v9510
        %v9521 = vmul.u32 %v9476, %v9467
        %v9522 = vadd.s32 %v9498, %v9517
        %vm9523 = vc.u32 %v9498, %v9517
        %v9524 = vadd.s32 %v9520, 1
        %v9525 = vsel %vm9523, %v9524, %v9520
        %v9526 = vadd.s32 %v9521, %v9525
        %v9527 = vadd.s32 %v9526, 536870912
        %v9528 = vshrl.u32 %v9527, 30
        %v9529 = vshll.u32 %v9528, 30
        %v9530 = vsub.s32 %v9526, %v9529
        %vm9531 = vcmp.lt.s32.totalorder %v9530, 0
        %v9532 = vsub.s32 0, %v9530
        %v9533 = vsel %vm9531, %v9532, %v9530
        %v9534 = vclz %v9533
        %v9535 = vsub.s32 %v9534, 2
        %vm9536 = vcmp.gt.s32.totalorder 0, %v9535
        %v9537 = vsel %vm9536, 0, %v9535
        %v9538 = vsub.s32 32, %v9537
        %v9539 = vshll.u32 %v9530, %v9537
        %v9540 = vshrl.u32 %v9522, %v9538
        %v9541 = vor.u32 %v9539, %v9540
        %v9542 = vsub.s32 4294967266, %v9537
        %v9543 = vadd.s32 %v9542, 127
        %v9544 = vshll.u32 %v9543, 23
        %v9545 = vor.u32 4788187, %v9544
        %v9546 = vand.u32 2147483647, %v9545
        %v9548 = vcvt.s32.f32 %v9541
        %v9549 = vmul.f32 %v9548, %v9546
        %v9550 = vxor.u32 %v9549, 2147483648
        %v9551 = vsel %vm9430, %v9550, %v9549
        %v9552 = vsub.s32 4, %v9528
        %v9553 = vsel %vm9430, %v9552, %v9528
        %v9554 = vsel %vm9429, %v1542, %v9551
        %v9555 = vsel %vm9429, 0, %v9553
        %v9556 = vmul.f32 %v9554, %v9554
        %v9557 = vmul.f32 %v9556, -0.001358992
        %v9558 = vadd.f32 %v9557, 0.041655596
        %v9559 = vmul.f32 %v9556, %v9558
        %v9560 = vadd.f32 %v9559, -0.4999988
        %v9561 = vmul.f32 %v9556, %v9560
        %v9562 = vadd.f32 1.0, %v9561
        %v9563 = vmul.f32 %v9554, %v9554
        %v9564 = vmul.f32 %v9563, -0.00019511016
        %v9565 = vadd.f32 %v9564, 0.008332121
        %v9566 = vmul.f32 %v9563, %v9565
        %v9567 = vadd.f32 %v9566, -0.16666654
        %v9568 = vmul.f32 %v9563, %v9567
        %v9569 = vadd.f32 %v9568, 1.0
        %v9570 = vmul.f32 %v9569, %v9554
        %vm9571 = vweird.f32 %v1542
        %v9572 = vadd.s32 %v9555, 3
        %v9573 = vand.u32 %v9572, 3
        %vm9574 = vcmp.lt.s32.totalorder %v9573, 2
        %vm9575 = vcmp.eq.s32.totalorder %v9573, 0
        %v9576 = vxor.u32 %v9570, 2147483648
        %v9577 = vsel %vm9575, %v9562, %v9576
        %vm9578 = vcmp.eq.s32.totalorder %v9573, 2
        %v9579 = vxor.u32 %v9562, 2147483648
        %v9580 = vsel %vm9578, %v9579, %v9570
        %v9581 = vsel %vm9574, %v9577, %v9580
        %v9582 = vsel %vm9571, nan, %v9581
        %v9583 = vand.u32 2147483647, %v1543
        %vm9584 = vcmp.le.f32.partialorder %v9583, 0.7853982
        %vm9585 = vcmp.lt.s32.totalorder %v1543, 0
        %v9586 = vand.u32 %v1543, 2139095040
        %v9587 = vshrl.u32 %v9586, 23
        %v9588 = vsub.s32 %v9587, 127
        %v9589 = vand.u32 2147483647, %v1543
        %v9590 = vand.u32 %v9589, 8388607
        %v9591 = vor.u32 %v9590, 8388608
        %v9592 = vsub.s32 0, %v9591
        %v9593 = vadd.s32 %v9588, 1
        %vm9594 = vcmp.gt.s32.totalorder %v9593, 0
        %v9595 = vsel %vm9594, %v9593, 0
        %v9596 = vshrl.u32 %v9595, 5
        %v9597 = vand.u32 %v9595, 31
        %v9598 = vsub.s32 32, %v9597
        %v9599 = vshrl.u32 683565275, %v9598
        %v9600 = vshll.u32 683565275, %v9597
        %v9601 = vshrl.u32 2475754826, %v9598
        %v9602 = vor.u32 %v9600, %v9601
        %v9603 = vshll.u32 2475754826, %v9597
        %v9604 = vshrl.u32 2131351028, %v9598
        %v9605 = vor.u32 %v9603, %v9604
        %v9606 = vshll.u32 2131351028, %v9597
        %v9607 = vshrl.u32 2102212464, %v9598
        %v9608 = vor.u32 %v9606, %v9607
        %v9609 = vshll.u32 2102212464, %v9597
        %v9610 = vshrl.u32 920167782, %v9598
        %v9611 = vor.u32 %v9609, %v9610
        %v9612 = vshll.u32 920167782, %v9597
        %v9613 = vshrl.u32 1326507024, %v9598
        %v9614 = vor.u32 %v9612, %v9613
        %vm9615 = vcmp.lt.s32.totalorder %v9596, 1
        %vm9616 = vcmp.lt.s32.totalorder %v9596, 2
        %vm9617 = vcmp.lt.s32.totalorder %v9596, 3
        %vm9618 = vcmp.lt.s32.totalorder %v9596, 4
        %v9619 = vsel %vm9615, %v9599, %v9602
        %v9620 = vsel %vm9618, %v9608, 2102212464
        %v9621 = vsel %vm9617, %v9605, %v9620
        %v9622 = vsel %vm9616, %v9619, %v9621
        %v9623 = vsel %vm9615, %v9602, %v9605
        %v9624 = vsel %vm9618, %v9611, 920167782
        %v9625 = vsel %vm9617, %v9608, %v9624
        %v9626 = vsel %vm9616, %v9623, %v9625
        %v9627 = vsel %vm9615, %v9605, %v9608
        %v9628 = vsel %vm9618, %v9614, 1326507024
        %v9629 = vsel %vm9617, %v9611, %v9628
        %v9630 = vsel %vm9616, %v9627, %v9629
        %v9631 = vshll.u32 %v9591, 8
        %v9632 = vand.u32 %v9631, 65535
        %v9633 = vshrl.u32 %v9631, 16
        %v9634 = vand.u32 %v9630, 65535
        %v9635 = vshrl.u32 %v9630, 16
        %v9636 = vmul.u32 %v9632, %v9634
        %v9637 = vmul.u32 %v9632, %v9635
        %v9638 = vmul.u32 %v9633, %v9634
        %v9639 = vmul.u32 %v9633, %v9635
        %v9640 = vshll.u32 %v9637, 16
        %v9641 = vshrl.u32 %v9637, 16
        %v9642 = vshll.u32 %v9638, 16
        %v9643 = vshrl.u32 %v9638, 16
        %vm9644 = vc.u32 %v9636, %v9640
        %v9645 = vsel %vm9644, 1, 0
        %v9646 = vadd.s32 %v9636, %v9640
        %v9647 = vadd.s32 %v9639, %v9645
        %vm9648 = vc.u32 %v9646, %v9642
        %v9649 = vsel %vm9648, 1, 0
        %v9650 = vadd.s32 %v9646, %v9642
        %v9651 = vadd.s32 %v9647, %v9649
        %v9652 = vadd.s32 %v9651, %v9641
        %v9653 = vadd.s32 %v9652, %v9643
        %v9654 = vand.u32 %v9631, 65535
        %v9655 = vshrl.u32 %v9631, 16
        %v9656 = vand.u32 %v9626, 65535
        %v9657 = vshrl.u32 %v9626, 16
        %v9658 = vmul.u32 %v9654, %v9656
        %v9659 = vmul.u32 %v9654, %v9657
        %v9660 = vmul.u32 %v9655, %v9656
        %v9661 = vmul.u32 %v9655, %v9657
        %v9662 = vshll.u32 %v9659, 16
        %v9663 = vshrl.u32 %v9659, 16
        %v9664 = vshll.u32 %v9660, 16
        %v9665 = vshrl.u32 %v9660, 16
        %vm9666 = vc.u32 %v9658, %v9662
        %v9667 = vsel %vm9666, 1, 0
        %v9668 = vadd.s32 %v9658, %v9662
        %v9669 = vadd.s32 %v9661, %v9667
        %vm9670 = vc.u32 %v9668, %v9664
        %v9671 = vsel %vm9670, 1, 0
        %v9672 = vadd.s32 %v9668, %v9664
        %v9673 = vadd.s32 %v9669, %v9671
        %v9674 = vadd.s32 %v9673, %v9663
        %v9675 = vadd.s32 %v9674, %v9665
        %v9676 = vmul.u32 %v9631, %v9622
        %v9677 = vadd.s32 %v9653, %v9672
        %vm9678 = vc.u32 %v9653, %v9672
        %v9679 = vadd.s32 %v9675, 1
        %v9680 = vsel %vm9678, %v9679, %v9675
        %v9681 = vadd.s32 %v9676, %v9680
        %v9682 = vadd.s32 %v9681, 536870912
        %v9683 = vshrl.u32 %v9682, 30
        %v9684 = vshll.u32 %v9683, 30
        %v9685 = vsub.s32 %v9681, %v9684
        %vm9686 = vcmp.lt.s32.totalorder %v9685, 0
        %v9687 = vsub.s32 0, %v9685
        %v9688 = vsel %vm9686, %v9687, %v9685
        %v9689 = vclz %v9688
        %v9690 = vsub.s32 %v9689, 2
        %vm9691 = vcmp.gt.s32.totalorder 0, %v9690
        %v9692 = vsel %vm9691, 0, %v9690
        %v9693 = vsub.s32 32, %v9692
        %v9694 = vshll.u32 %v9685, %v9692
        %v9695 = vshrl.u32 %v9677, %v9693
        %v9696 = vor.u32 %v9694, %v9695
        %v9697 = vsub.s32 4294967266, %v9692
        %v9698 = vadd.s32 %v9697, 127
        %v9699 = vshll.u32 %v9698, 23
        %v9700 = vor.u32 4788187, %v9699
        %v9701 = vand.u32 2147483647, %v9700
        %v9703 = vcvt.s32.f32 %v9696
        %v9704 = vmul.f32 %v9703, %v9701
        %v9705 = vxor.u32 %v9704, 2147483648
        %v9706 = vsel %vm9585, %v9705, %v9704
        %v9707 = vsub.s32 4, %v9683
        %v9708 = vsel %vm9585, %v9707, %v9683
        %v9709 = vsel %vm9584, %v1543, %v9706
        %v9710 = vsel %vm9584, 0, %v9708
        %v9711 = vmul.f32 %v9709, %v9709
        %v9712 = vmul.f32 %v9711, -0.001358992
        %v9713 = vadd.f32 %v9712, 0.041655596
        %v9714 = vmul.f32 %v9711, %v9713
        %v9715 = vadd.f32 %v9714, -0.4999988
        %v9716 = vmul.f32 %v9711, %v9715
        %v9717 = vadd.f32 1.0, %v9716
        %v9718 = vmul.f32 %v9709, %v9709
        %v9719 = vmul.f32 %v9718, -0.00019511016
        %v9720 = vadd.f32 %v9719, 0.008332121
        %v9721 = vmul.f32 %v9718, %v9720
        %v9722 = vadd.f32 %v9721, -0.16666654
        %v9723 = vmul.f32 %v9718, %v9722
        %v9724 = vadd.f32 %v9723, 1.0
        %v9725 = vmul.f32 %v9724, %v9709
        %vm9726 = vweird.f32 %v1543
        %v9727 = vadd.s32 %v9710, 3
        %v9728 = vand.u32 %v9727, 3
        %vm9729 = vcmp.lt.s32.totalorder %v9728, 2
        %vm9730 = vcmp.eq.s32.totalorder %v9728, 0
        %v9731 = vxor.u32 %v9725, 2147483648
        %v9732 = vsel %vm9730, %v9717, %v9731
        %vm9733 = vcmp.eq.s32.totalorder %v9728, 2
        %v9734 = vxor.u32 %v9717, 2147483648
        %v9735 = vsel %vm9733, %v9734, %v9725
        %v9736 = vsel %vm9729, %v9732, %v9735
        %v9737 = vsel %vm9726, nan, %v9736
        %v9738 = vand.u32 2147483647, %v1544
        %vm9739 = vcmp.le.f32.partialorder %v9738, 0.7853982
        %vm9740 = vcmp.lt.s32.totalorder %v1544, 0
        %v9741 = vand.u32 %v1544, 2139095040
        %v9742 = vshrl.u32 %v9741, 23
        %v9743 = vsub.s32 %v9742, 127
        %v9744 = vand.u32 2147483647, %v1544
        %v9745 = vand.u32 %v9744, 8388607
        %v9746 = vor.u32 %v9745, 8388608
        %v9747 = vsub.s32 0, %v9746
        %v9748 = vadd.s32 %v9743, 1
        %vm9749 = vcmp.gt.s32.totalorder %v9748, 0
        %v9750 = vsel %vm9749, %v9748, 0
        %v9751 = vshrl.u32 %v9750, 5
        %v9752 = vand.u32 %v9750, 31
        %v9753 = vsub.s32 32, %v9752
        %v9754 = vshrl.u32 683565275, %v9753
        %v9755 = vshll.u32 683565275, %v9752
        %v9756 = vshrl.u32 2475754826, %v9753
        %v9757 = vor.u32 %v9755, %v9756
        %v9758 = vshll.u32 2475754826, %v9752
        %v9759 = vshrl.u32 2131351028, %v9753
        %v9760 = vor.u32 %v9758, %v9759
        %v9761 = vshll.u32 2131351028, %v9752
        %v9762 = vshrl.u32 2102212464, %v9753
        %v9763 = vor.u32 %v9761, %v9762
        %v9764 = vshll.u32 2102212464, %v9752
        %v9765 = vshrl.u32 920167782, %v9753
        %v9766 = vor.u32 %v9764, %v9765
        %v9767 = vshll.u32 920167782, %v9752
        %v9768 = vshrl.u32 1326507024, %v9753
        %v9769 = vor.u32 %v9767, %v9768
        %vm9770 = vcmp.lt.s32.totalorder %v9751, 1
        %vm9771 = vcmp.lt.s32.totalorder %v9751, 2
        %vm9772 = vcmp.lt.s32.totalorder %v9751, 3
        %vm9773 = vcmp.lt.s32.totalorder %v9751, 4
        %v9774 = vsel %vm9770, %v9754, %v9757
        %v9775 = vsel %vm9773, %v9763, 2102212464
        %v9776 = vsel %vm9772, %v9760, %v9775
        %v9777 = vsel %vm9771, %v9774, %v9776
        %v9778 = vsel %vm9770, %v9757, %v9760
        %v9779 = vsel %vm9773, %v9766, 920167782
        %v9780 = vsel %vm9772, %v9763, %v9779
        %v9781 = vsel %vm9771, %v9778, %v9780
        %v9782 = vsel %vm9770, %v9760, %v9763
        %v9783 = vsel %vm9773, %v9769, 1326507024
        %v9784 = vsel %vm9772, %v9766, %v9783
        %v9785 = vsel %vm9771, %v9782, %v9784
        %v9786 = vshll.u32 %v9746, 8
        %v9787 = vand.u32 %v9786, 65535
        %v9788 = vshrl.u32 %v9786, 16
        %v9789 = vand.u32 %v9785, 65535
        %v9790 = vshrl.u32 %v9785, 16
        %v9791 = vmul.u32 %v9787, %v9789
        %v9792 = vmul.u32 %v9787, %v9790
        %v9793 = vmul.u32 %v9788, %v9789
        %v9794 = vmul.u32 %v9788, %v9790
        %v9795 = vshll.u32 %v9792, 16
        %v9796 = vshrl.u32 %v9792, 16
        %v9797 = vshll.u32 %v9793, 16
        %v9798 = vshrl.u32 %v9793, 16
        %vm9799 = vc.u32 %v9791, %v9795
        %v9800 = vsel %vm9799, 1, 0
        %v9801 = vadd.s32 %v9791, %v9795
        %v9802 = vadd.s32 %v9794, %v9800
        %vm9803 = vc.u32 %v9801, %v9797
        %v9804 = vsel %vm9803, 1, 0
        %v9805 = vadd.s32 %v9801, %v9797
        %v9806 = vadd.s32 %v9802, %v9804
        %v9807 = vadd.s32 %v9806, %v9796
        %v9808 = vadd.s32 %v9807, %v9798
        %v9809 = vand.u32 %v9786, 65535
        %v9810 = vshrl.u32 %v9786, 16
        %v9811 = vand.u32 %v9781, 65535
        %v9812 = vshrl.u32 %v9781, 16
        %v9813 = vmul.u32 %v9809, %v9811
        %v9814 = vmul.u32 %v9809, %v9812
        %v9815 = vmul.u32 %v9810, %v9811
        %v9816 = vmul.u32 %v9810, %v9812
        %v9817 = vshll.u32 %v9814, 16
        %v9818 = vshrl.u32 %v9814, 16
        %v9819 = vshll.u32 %v9815, 16
        %v9820 = vshrl.u32 %v9815, 16
        %vm9821 = vc.u32 %v9813, %v9817
        %v9822 = vsel %vm9821, 1, 0
        %v9823 = vadd.s32 %v9813, %v9817
        %v9824 = vadd.s32 %v9816, %v9822
        %vm9825 = vc.u32 %v9823, %v9819
        %v9826 = vsel %vm9825, 1, 0
        %v9827 = vadd.s32 %v9823, %v9819
        %v9828 = vadd.s32 %v9824, %v9826
        %v9829 = vadd.s32 %v9828, %v9818
        %v9830 = vadd.s32 %v9829, %v9820
        %v9831 = vmul.u32 %v9786, %v9777
        %v9832 = vadd.s32 %v9808, %v9827
        %vm9833 = vc.u32 %v9808, %v9827
        %v9834 = vadd.s32 %v9830, 1
        %v9835 = vsel %vm9833, %v9834, %v9830
        %v9836 = vadd.s32 %v9831, %v9835
        %v9837 = vadd.s32 %v9836, 536870912
        %v9838 = vshrl.u32 %v9837, 30
        %v9839 = vshll.u32 %v9838, 30
        %v9840 = vsub.s32 %v9836, %v9839
        %vm9841 = vcmp.lt.s32.totalorder %v9840, 0
        %v9842 = vsub.s32 0, %v9840
        %v9843 = vsel %vm9841, %v9842, %v9840
        %v9844 = vclz %v9843
        %v9845 = vsub.s32 %v9844, 2
        %vm9846 = vcmp.gt.s32.totalorder 0, %v9845
        %v9847 = vsel %vm9846, 0, %v9845
        %v9848 = vsub.s32 32, %v9847
        %v9849 = vshll.u32 %v9840, %v9847
        %v9850 = vshrl.u32 %v9832, %v9848
        %v9851 = vor.u32 %v9849, %v9850
        %v9852 = vsub.s32 4294967266, %v9847
        %v9853 = vadd.s32 %v9852, 127
        %v9854 = vshll.u32 %v9853, 23
        %v9855 = vor.u32 4788187, %v9854
        %v9856 = vand.u32 2147483647, %v9855
        %v9858 = vcvt.s32.f32 %v9851
        %v9859 = vmul.f32 %v9858, %v9856
        %v9860 = vxor.u32 %v9859, 2147483648
        %v9861 = vsel %vm9740, %v9860, %v9859
        %v9862 = vsub.s32 4, %v9838
        %v9863 = vsel %vm9740, %v9862, %v9838
        %v9864 = vsel %vm9739, %v1544, %v9861
        %v9865 = vsel %vm9739, 0, %v9863
        %v9866 = vmul.f32 %v9864, %v9864
        %v9867 = vmul.f32 %v9866, -0.001358992
        %v9868 = vadd.f32 %v9867, 0.041655596
        %v9869 = vmul.f32 %v9866, %v9868
        %v9870 = vadd.f32 %v9869, -0.4999988
        %v9871 = vmul.f32 %v9866, %v9870
        %v9872 = vadd.f32 1.0, %v9871
        %v9873 = vmul.f32 %v9864, %v9864
        %v9874 = vmul.f32 %v9873, -0.00019511016
        %v9875 = vadd.f32 %v9874, 0.008332121
        %v9876 = vmul.f32 %v9873, %v9875
        %v9877 = vadd.f32 %v9876, -0.16666654
        %v9878 = vmul.f32 %v9873, %v9877
        %v9879 = vadd.f32 %v9878, 1.0
        %v9880 = vmul.f32 %v9879, %v9864
        %vm9881 = vweird.f32 %v1544
        %v9882 = vadd.s32 %v9865, 3
        %v9883 = vand.u32 %v9882, 3
        %vm9884 = vcmp.lt.s32.totalorder %v9883, 2
        %vm9885 = vcmp.eq.s32.totalorder %v9883, 0
        %v9886 = vxor.u32 %v9880, 2147483648
        %v9887 = vsel %vm9885, %v9872, %v9886
        %vm9888 = vcmp.eq.s32.totalorder %v9883, 2
        %v9889 = vxor.u32 %v9872, 2147483648
        %v9890 = vsel %vm9888, %v9889, %v9880
        %v9891 = vsel %vm9884, %v9887, %v9890
        %v9892 = vsel %vm9881, nan, %v9891
        %v9893 = vand.u32 2147483647, %v1545
        %vm9894 = vcmp.le.f32.partialorder %v9893, 0.7853982
        %vm9895 = vcmp.lt.s32.totalorder %v1545, 0
        %v9896 = vand.u32 %v1545, 2139095040
        %v9897 = vshrl.u32 %v9896, 23
        %v9898 = vsub.s32 %v9897, 127
        %v9899 = vand.u32 2147483647, %v1545
        %v9900 = vand.u32 %v9899, 8388607
        %v9901 = vor.u32 %v9900, 8388608
        %v9902 = vsub.s32 0, %v9901
        %v9903 = vadd.s32 %v9898, 1
        %vm9904 = vcmp.gt.s32.totalorder %v9903, 0
        %v9905 = vsel %vm9904, %v9903, 0
        %v9906 = vshrl.u32 %v9905, 5
        %v9907 = vand.u32 %v9905, 31
        %v9908 = vsub.s32 32, %v9907
        %v9909 = vshrl.u32 683565275, %v9908
        %v9910 = vshll.u32 683565275, %v9907
        %v9911 = vshrl.u32 2475754826, %v9908
        %v9912 = vor.u32 %v9910, %v9911
        %v9913 = vshll.u32 2475754826, %v9907
        %v9914 = vshrl.u32 2131351028, %v9908
        %v9915 = vor.u32 %v9913, %v9914
        %v9916 = vshll.u32 2131351028, %v9907
        %v9917 = vshrl.u32 2102212464, %v9908
        %v9918 = vor.u32 %v9916, %v9917
        %v9919 = vshll.u32 2102212464, %v9907
        %v9920 = vshrl.u32 920167782, %v9908
        %v9921 = vor.u32 %v9919, %v9920
        %v9922 = vshll.u32 920167782, %v9907
        %v9923 = vshrl.u32 1326507024, %v9908
        %v9924 = vor.u32 %v9922, %v9923
        %vm9925 = vcmp.lt.s32.totalorder %v9906, 1
        %vm9926 = vcmp.lt.s32.totalorder %v9906, 2
        %vm9927 = vcmp.lt.s32.totalorder %v9906, 3
        %vm9928 = vcmp.lt.s32.totalorder %v9906, 4
        %v9929 = vsel %vm9925, %v9909, %v9912
        %v9930 = vsel %vm9928, %v9918, 2102212464
        %v9931 = vsel %vm9927, %v9915, %v9930
        %v9932 = vsel %vm9926, %v9929, %v9931
        %v9933 = vsel %vm9925, %v9912, %v9915
        %v9934 = vsel %vm9928, %v9921, 920167782
        %v9935 = vsel %vm9927, %v9918, %v9934
        %v9936 = vsel %vm9926, %v9933, %v9935
        %v9937 = vsel %vm9925, %v9915, %v9918
        %v9938 = vsel %vm9928, %v9924, 1326507024
        %v9939 = vsel %vm9927, %v9921, %v9938
        %v9940 = vsel %vm9926, %v9937, %v9939
        %v9941 = vshll.u32 %v9901, 8
        %v9942 = vand.u32 %v9941, 65535
        %v9943 = vshrl.u32 %v9941, 16
        %v9944 = vand.u32 %v9940, 65535
        %v9945 = vshrl.u32 %v9940, 16
        %v9946 = vmul.u32 %v9942, %v9944
        %v9947 = vmul.u32 %v9942, %v9945
        %v9948 = vmul.u32 %v9943, %v9944
        %v9949 = vmul.u32 %v9943, %v9945
        %v9950 = vshll.u32 %v9947, 16
        %v9951 = vshrl.u32 %v9947, 16
        %v9952 = vshll.u32 %v9948, 16
        %v9953 = vshrl.u32 %v9948, 16
        %vm9954 = vc.u32 %v9946, %v9950
        %v9955 = vsel %vm9954, 1, 0
        %v9956 = vadd.s32 %v9946, %v9950
        %v9957 = vadd.s32 %v9949, %v9955
        %vm9958 = vc.u32 %v9956, %v9952
        %v9959 = vsel %vm9958, 1, 0
        %v9960 = vadd.s32 %v9956, %v9952
        %v9961 = vadd.s32 %v9957, %v9959
        %v9962 = vadd.s32 %v9961, %v9951
        %v9963 = vadd.s32 %v9962, %v9953
        %v9964 = vand.u32 %v9941, 65535
        %v9965 = vshrl.u32 %v9941, 16
        %v9966 = vand.u32 %v9936, 65535
        %v9967 = vshrl.u32 %v9936, 16
        %v9968 = vmul.u32 %v9964, %v9966
        %v9969 = vmul.u32 %v9964, %v9967
        %v9970 = vmul.u32 %v9965, %v9966
        %v9971 = vmul.u32 %v9965, %v9967
        %v9972 = vshll.u32 %v9969, 16
        %v9973 = vshrl.u32 %v9969, 16
        %v9974 = vshll.u32 %v9970, 16
        %v9975 = vshrl.u32 %v9970, 16
        %vm9976 = vc.u32 %v9968, %v9972
        %v9977 = vsel %vm9976, 1, 0
        %v9978 = vadd.s32 %v9968, %v9972
        %v9979 = vadd.s32 %v9971, %v9977
        %vm9980 = vc.u32 %v9978, %v9974
        %v9981 = vsel %vm9980, 1, 0
        %v9982 = vadd.s32 %v9978, %v9974
        %v9983 = vadd.s32 %v9979, %v9981
        %v9984 = vadd.s32 %v9983, %v9973
        %v9985 = vadd.s32 %v9984, %v9975
        %v9986 = vmul.u32 %v9941, %v9932
        %v9987 = vadd.s32 %v9963, %v9982
        %vm9988 = vc.u32 %v9963, %v9982
        %v9989 = vadd.s32 %v9985, 1
        %v9990 = vsel %vm9988, %v9989, %v9985
        %v9991 = vadd.s32 %v9986, %v9990
        %v9992 = vadd.s32 %v9991, 536870912
        %v9993 = vshrl.u32 %v9992, 30
        %v9994 = vshll.u32 %v9993, 30
        %v9995 = vsub.s32 %v9991, %v9994
        %vm9996 = vcmp.lt.s32.totalorder %v9995, 0
        %v9997 = vsub.s32 0, %v9995
        %v9998 = vsel %vm9996, %v9997, %v9995
        %v9999 = vclz %v9998
        %v10000 = vsub.s32 %v9999, 2
        %vm10001 = vcmp.gt.s32.totalorder 0, %v10000
        %v10002 = vsel %vm10001, 0, %v10000
        %v10003 = vsub.s32 32, %v10002
        %v10004 = vshll.u32 %v9995, %v10002
        %v10005 = vshrl.u32 %v9987, %v10003
        %v10006 = vor.u32 %v10004, %v10005
        %v10007 = vsub.s32 4294967266, %v10002
        %v10008 = vadd.s32 %v10007, 127
        %v10009 = vshll.u32 %v10008, 23
        %v10010 = vor.u32 4788187, %v10009
        %v10011 = vand.u32 2147483647, %v10010
        %v10013 = vcvt.s32.f32 %v10006
        %v10014 = vmul.f32 %v10013, %v10011
        %v10015 = vxor.u32 %v10014, 2147483648
        %v10016 = vsel %vm9895, %v10015, %v10014
        %v10017 = vsub.s32 4, %v9993
        %v10018 = vsel %vm9895, %v10017, %v9993
        %v10019 = vsel %vm9894, %v1545, %v10016
        %v10020 = vsel %vm9894, 0, %v10018
        %v10021 = vmul.f32 %v10019, %v10019
        %v10022 = vmul.f32 %v10021, -0.001358992
        %v10023 = vadd.f32 %v10022, 0.041655596
        %v10024 = vmul.f32 %v10021, %v10023
        %v10025 = vadd.f32 %v10024, -0.4999988
        %v10026 = vmul.f32 %v10021, %v10025
        %v10027 = vadd.f32 1.0, %v10026
        %v10028 = vmul.f32 %v10019, %v10019
        %v10029 = vmul.f32 %v10028, -0.00019511016
        %v10030 = vadd.f32 %v10029, 0.008332121
        %v10031 = vmul.f32 %v10028, %v10030
        %v10032 = vadd.f32 %v10031, -0.16666654
        %v10033 = vmul.f32 %v10028, %v10032
        %v10034 = vadd.f32 %v10033, 1.0
        %v10035 = vmul.f32 %v10034, %v10019
        %vm10036 = vweird.f32 %v1545
        %v10037 = vadd.s32 %v10020, 3
        %v10038 = vand.u32 %v10037, 3
        %vm10039 = vcmp.lt.s32.totalorder %v10038, 2
        %vm10040 = vcmp.eq.s32.totalorder %v10038, 0
        %v10041 = vxor.u32 %v10035, 2147483648
        %v10042 = vsel %vm10040, %v10027, %v10041
        %vm10043 = vcmp.eq.s32.totalorder %v10038, 2
        %v10044 = vxor.u32 %v10027, 2147483648
        %v10045 = vsel %vm10043, %v10044, %v10035
        %v10046 = vsel %vm10039, %v10042, %v10045
        %v10047 = vsel %vm10036, nan, %v10046
        %v10048 = vand.u32 2147483647, %v1546
        %vm10049 = vcmp.le.f32.partialorder %v10048, 0.7853982
        %vm10050 = vcmp.lt.s32.totalorder %v1546, 0
        %v10051 = vand.u32 %v1546, 2139095040
        %v10052 = vshrl.u32 %v10051, 23
        %v10053 = vsub.s32 %v10052, 127
        %v10054 = vand.u32 2147483647, %v1546
        %v10055 = vand.u32 %v10054, 8388607
        %v10056 = vor.u32 %v10055, 8388608
        %v10057 = vsub.s32 0, %v10056
        %v10058 = vadd.s32 %v10053, 1
        %vm10059 = vcmp.gt.s32.totalorder %v10058, 0
        %v10060 = vsel %vm10059, %v10058, 0
        %v10061 = vshrl.u32 %v10060, 5
        %v10062 = vand.u32 %v10060, 31
        %v10063 = vsub.s32 32, %v10062
        %v10064 = vshrl.u32 683565275, %v10063
        %v10065 = vshll.u32 683565275, %v10062
        %v10066 = vshrl.u32 2475754826, %v10063
        %v10067 = vor.u32 %v10065, %v10066
        %v10068 = vshll.u32 2475754826, %v10062
        %v10069 = vshrl.u32 2131351028, %v10063
        %v10070 = vor.u32 %v10068, %v10069
        %v10071 = vshll.u32 2131351028, %v10062
        %v10072 = vshrl.u32 2102212464, %v10063
        %v10073 = vor.u32 %v10071, %v10072
        %v10074 = vshll.u32 2102212464, %v10062
        %v10075 = vshrl.u32 920167782, %v10063
        %v10076 = vor.u32 %v10074, %v10075
        %v10077 = vshll.u32 920167782, %v10062
        %v10078 = vshrl.u32 1326507024, %v10063
        %v10079 = vor.u32 %v10077, %v10078
        %vm10080 = vcmp.lt.s32.totalorder %v10061, 1
        %vm10081 = vcmp.lt.s32.totalorder %v10061, 2
        %vm10082 = vcmp.lt.s32.totalorder %v10061, 3
        %vm10083 = vcmp.lt.s32.totalorder %v10061, 4
        %v10084 = vsel %vm10080, %v10064, %v10067
        %v10085 = vsel %vm10083, %v10073, 2102212464
        %v10086 = vsel %vm10082, %v10070, %v10085
        %v10087 = vsel %vm10081, %v10084, %v10086
        %v10088 = vsel %vm10080, %v10067, %v10070
        %v10089 = vsel %vm10083, %v10076, 920167782
        %v10090 = vsel %vm10082, %v10073, %v10089
        %v10091 = vsel %vm10081, %v10088, %v10090
        %v10092 = vsel %vm10080, %v10070, %v10073
        %v10093 = vsel %vm10083, %v10079, 1326507024
        %v10094 = vsel %vm10082, %v10076, %v10093
        %v10095 = vsel %vm10081, %v10092, %v10094
        %v10096 = vshll.u32 %v10056, 8
        %v10097 = vand.u32 %v10096, 65535
        %v10098 = vshrl.u32 %v10096, 16
        %v10099 = vand.u32 %v10095, 65535
        %v10100 = vshrl.u32 %v10095, 16
        %v10101 = vmul.u32 %v10097, %v10099
        %v10102 = vmul.u32 %v10097, %v10100
        %v10103 = vmul.u32 %v10098, %v10099
        %v10104 = vmul.u32 %v10098, %v10100
        %v10105 = vshll.u32 %v10102, 16
        %v10106 = vshrl.u32 %v10102, 16
        %v10107 = vshll.u32 %v10103, 16
        %v10108 = vshrl.u32 %v10103, 16
        %vm10109 = vc.u32 %v10101, %v10105
        %v10110 = vsel %vm10109, 1, 0
        %v10111 = vadd.s32 %v10101, %v10105
        %v10112 = vadd.s32 %v10104, %v10110
        %vm10113 = vc.u32 %v10111, %v10107
        %v10114 = vsel %vm10113, 1, 0
        %v10115 = vadd.s32 %v10111, %v10107
        %v10116 = vadd.s32 %v10112, %v10114
        %v10117 = vadd.s32 %v10116, %v10106
        %v10118 = vadd.s32 %v10117, %v10108
        %v10119 = vand.u32 %v10096, 65535
        %v10120 = vshrl.u32 %v10096, 16
        %v10121 = vand.u32 %v10091, 65535
        %v10122 = vshrl.u32 %v10091, 16
        %v10123 = vmul.u32 %v10119, %v10121
        %v10124 = vmul.u32 %v10119, %v10122
        %v10125 = vmul.u32 %v10120, %v10121
        %v10126 = vmul.u32 %v10120, %v10122
        %v10127 = vshll.u32 %v10124, 16
        %v10128 = vshrl.u32 %v10124, 16
        %v10129 = vshll.u32 %v10125, 16
        %v10130 = vshrl.u32 %v10125, 16
        %vm10131 = vc.u32 %v10123, %v10127
        %v10132 = vsel %vm10131, 1, 0
        %v10133 = vadd.s32 %v10123, %v10127
        %v10134 = vadd.s32 %v10126, %v10132
        %vm10135 = vc.u32 %v10133, %v10129
        %v10136 = vsel %vm10135, 1, 0
        %v10137 = vadd.s32 %v10133, %v10129
        %v10138 = vadd.s32 %v10134, %v10136
        %v10139 = vadd.s32 %v10138, %v10128
        %v10140 = vadd.s32 %v10139, %v10130
        %v10141 = vmul.u32 %v10096, %v10087
        %v10142 = vadd.s32 %v10118, %v10137
        %vm10143 = vc.u32 %v10118, %v10137
        %v10144 = vadd.s32 %v10140, 1
        %v10145 = vsel %vm10143, %v10144, %v10140
        %v10146 = vadd.s32 %v10141, %v10145
        %v10147 = vadd.s32 %v10146, 536870912
        %v10148 = vshrl.u32 %v10147, 30
        %v10149 = vshll.u32 %v10148, 30
        %v10150 = vsub.s32 %v10146, %v10149
        %vm10151 = vcmp.lt.s32.totalorder %v10150, 0
        %v10152 = vsub.s32 0, %v10150
        %v10153 = vsel %vm10151, %v10152, %v10150
        %v10154 = vclz %v10153
        %v10155 = vsub.s32 %v10154, 2
        %vm10156 = vcmp.gt.s32.totalorder 0, %v10155
        %v10157 = vsel %vm10156, 0, %v10155
        %v10158 = vsub.s32 32, %v10157
        %v10159 = vshll.u32 %v10150, %v10157
        %v10160 = vshrl.u32 %v10142, %v10158
        %v10161 = vor.u32 %v10159, %v10160
        %v10162 = vsub.s32 4294967266, %v10157
        %v10163 = vadd.s32 %v10162, 127
        %v10164 = vshll.u32 %v10163, 23
        %v10165 = vor.u32 4788187, %v10164
        %v10166 = vand.u32 2147483647, %v10165
        %v10168 = vcvt.s32.f32 %v10161
        %v10169 = vmul.f32 %v10168, %v10166
        %v10170 = vxor.u32 %v10169, 2147483648
        %v10171 = vsel %vm10050, %v10170, %v10169
        %v10172 = vsub.s32 4, %v10148
        %v10173 = vsel %vm10050, %v10172, %v10148
        %v10174 = vsel %vm10049, %v1546, %v10171
        %v10175 = vsel %vm10049, 0, %v10173
        %v10176 = vmul.f32 %v10174, %v10174
        %v10177 = vmul.f32 %v10176, -0.001358992
        %v10178 = vadd.f32 %v10177, 0.041655596
        %v10179 = vmul.f32 %v10176, %v10178
        %v10180 = vadd.f32 %v10179, -0.4999988
        %v10181 = vmul.f32 %v10176, %v10180
        %v10182 = vadd.f32 1.0, %v10181
        %v10183 = vmul.f32 %v10174, %v10174
        %v10184 = vmul.f32 %v10183, -0.00019511016
        %v10185 = vadd.f32 %v10184, 0.008332121
        %v10186 = vmul.f32 %v10183, %v10185
        %v10187 = vadd.f32 %v10186, -0.16666654
        %v10188 = vmul.f32 %v10183, %v10187
        %v10189 = vadd.f32 %v10188, 1.0
        %v10190 = vmul.f32 %v10189, %v10174
        %vm10191 = vweird.f32 %v1546
        %v10192 = vadd.s32 %v10175, 3
        %v10193 = vand.u32 %v10192, 3
        %vm10194 = vcmp.lt.s32.totalorder %v10193, 2
        %vm10195 = vcmp.eq.s32.totalorder %v10193, 0
        %v10196 = vxor.u32 %v10190, 2147483648
        %v10197 = vsel %vm10195, %v10182, %v10196
        %vm10198 = vcmp.eq.s32.totalorder %v10193, 2
        %v10199 = vxor.u32 %v10182, 2147483648
        %v10200 = vsel %vm10198, %v10199, %v10190
        %v10201 = vsel %vm10194, %v10197, %v10200
        %v10202 = vsel %vm10191, nan, %v10201
        %v10203 = vand.u32 2147483647, %v1547
        %vm10204 = vcmp.le.f32.partialorder %v10203, 0.7853982
        %vm10205 = vcmp.lt.s32.totalorder %v1547, 0
        %v10206 = vand.u32 %v1547, 2139095040
        %v10207 = vshrl.u32 %v10206, 23
        %v10208 = vsub.s32 %v10207, 127
        %v10209 = vand.u32 2147483647, %v1547
        %v10210 = vand.u32 %v10209, 8388607
        %v10211 = vor.u32 %v10210, 8388608
        %v10212 = vsub.s32 0, %v10211
        %v10213 = vadd.s32 %v10208, 1
        %vm10214 = vcmp.gt.s32.totalorder %v10213, 0
        %v10215 = vsel %vm10214, %v10213, 0
        %v10216 = vshrl.u32 %v10215, 5
        %v10217 = vand.u32 %v10215, 31
        %v10218 = vsub.s32 32, %v10217
        %v10219 = vshrl.u32 683565275, %v10218
        %v10220 = vshll.u32 683565275, %v10217
        %v10221 = vshrl.u32 2475754826, %v10218
        %v10222 = vor.u32 %v10220, %v10221
        %v10223 = vshll.u32 2475754826, %v10217
        %v10224 = vshrl.u32 2131351028, %v10218
        %v10225 = vor.u32 %v10223, %v10224
        %v10226 = vshll.u32 2131351028, %v10217
        %v10227 = vshrl.u32 2102212464, %v10218
        %v10228 = vor.u32 %v10226, %v10227
        %v10229 = vshll.u32 2102212464, %v10217
        %v10230 = vshrl.u32 920167782, %v10218
        %v10231 = vor.u32 %v10229, %v10230
        %v10232 = vshll.u32 920167782, %v10217
        %v10233 = vshrl.u32 1326507024, %v10218
        %v10234 = vor.u32 %v10232, %v10233
        %vm10235 = vcmp.lt.s32.totalorder %v10216, 1
        %vm10236 = vcmp.lt.s32.totalorder %v10216, 2
        %vm10237 = vcmp.lt.s32.totalorder %v10216, 3
        %vm10238 = vcmp.lt.s32.totalorder %v10216, 4
        %v10239 = vsel %vm10235, %v10219, %v10222
        %v10240 = vsel %vm10238, %v10228, 2102212464
        %v10241 = vsel %vm10237, %v10225, %v10240
        %v10242 = vsel %vm10236, %v10239, %v10241
        %v10243 = vsel %vm10235, %v10222, %v10225
        %v10244 = vsel %vm10238, %v10231, 920167782
        %v10245 = vsel %vm10237, %v10228, %v10244
        %v10246 = vsel %vm10236, %v10243, %v10245
        %v10247 = vsel %vm10235, %v10225, %v10228
        %v10248 = vsel %vm10238, %v10234, 1326507024
        %v10249 = vsel %vm10237, %v10231, %v10248
        %v10250 = vsel %vm10236, %v10247, %v10249
        %v10251 = vshll.u32 %v10211, 8
        %v10252 = vand.u32 %v10251, 65535
        %v10253 = vshrl.u32 %v10251, 16
        %v10254 = vand.u32 %v10250, 65535
        %v10255 = vshrl.u32 %v10250, 16
        %v10256 = vmul.u32 %v10252, %v10254
        %v10257 = vmul.u32 %v10252, %v10255
        %v10258 = vmul.u32 %v10253, %v10254
        %v10259 = vmul.u32 %v10253, %v10255
        %v10260 = vshll.u32 %v10257, 16
        %v10261 = vshrl.u32 %v10257, 16
        %v10262 = vshll.u32 %v10258, 16
        %v10263 = vshrl.u32 %v10258, 16
        %vm10264 = vc.u32 %v10256, %v10260
        %v10265 = vsel %vm10264, 1, 0
        %v10266 = vadd.s32 %v10256, %v10260
        %v10267 = vadd.s32 %v10259, %v10265
        %vm10268 = vc.u32 %v10266, %v10262
        %v10269 = vsel %vm10268, 1, 0
        %v10270 = vadd.s32 %v10266, %v10262
        %v10271 = vadd.s32 %v10267, %v10269
        %v10272 = vadd.s32 %v10271, %v10261
        %v10273 = vadd.s32 %v10272, %v10263
        %v10274 = vand.u32 %v10251, 65535
        %v10275 = vshrl.u32 %v10251, 16
        %v10276 = vand.u32 %v10246, 65535
        %v10277 = vshrl.u32 %v10246, 16
        %v10278 = vmul.u32 %v10274, %v10276
        %v10279 = vmul.u32 %v10274, %v10277
        %v10280 = vmul.u32 %v10275, %v10276
        %v10281 = vmul.u32 %v10275, %v10277
        %v10282 = vshll.u32 %v10279, 16
        %v10283 = vshrl.u32 %v10279, 16
        %v10284 = vshll.u32 %v10280, 16
        %v10285 = vshrl.u32 %v10280, 16
        %vm10286 = vc.u32 %v10278, %v10282
        %v10287 = vsel %vm10286, 1, 0
        %v10288 = vadd.s32 %v10278, %v10282
        %v10289 = vadd.s32 %v10281, %v10287
        %vm10290 = vc.u32 %v10288, %v10284
        %v10291 = vsel %vm10290, 1, 0
        %v10292 = vadd.s32 %v10288, %v10284
        %v10293 = vadd.s32 %v10289, %v10291
        %v10294 = vadd.s32 %v10293, %v10283
        %v10295 = vadd.s32 %v10294, %v10285
        %v10296 = vmul.u32 %v10251, %v10242
        %v10297 = vadd.s32 %v10273, %v10292
        %vm10298 = vc.u32 %v10273, %v10292
        %v10299 = vadd.s32 %v10295, 1
        %v10300 = vsel %vm10298, %v10299, %v10295
        %v10301 = vadd.s32 %v10296, %v10300
        %v10302 = vadd.s32 %v10301, 536870912
        %v10303 = vshrl.u32 %v10302, 30
        %v10304 = vshll.u32 %v10303, 30
        %v10305 = vsub.s32 %v10301, %v10304
        %vm10306 = vcmp.lt.s32.totalorder %v10305, 0
        %v10307 = vsub.s32 0, %v10305
        %v10308 = vsel %vm10306, %v10307, %v10305
        %v10309 = vclz %v10308
        %v10310 = vsub.s32 %v10309, 2
        %vm10311 = vcmp.gt.s32.totalorder 0, %v10310
        %v10312 = vsel %vm10311, 0, %v10310
        %v10313 = vsub.s32 32, %v10312
        %v10314 = vshll.u32 %v10305, %v10312
        %v10315 = vshrl.u32 %v10297, %v10313
        %v10316 = vor.u32 %v10314, %v10315
        %v10317 = vsub.s32 4294967266, %v10312
        %v10318 = vadd.s32 %v10317, 127
        %v10319 = vshll.u32 %v10318, 23
        %v10320 = vor.u32 4788187, %v10319
        %v10321 = vand.u32 2147483647, %v10320
        %v10323 = vcvt.s32.f32 %v10316
        %v10324 = vmul.f32 %v10323, %v10321
        %v10325 = vxor.u32 %v10324, 2147483648
        %v10326 = vsel %vm10205, %v10325, %v10324
        %v10327 = vsub.s32 4, %v10303
        %v10328 = vsel %vm10205, %v10327, %v10303
        %v10329 = vsel %vm10204, %v1547, %v10326
        %v10330 = vsel %vm10204, 0, %v10328
        %v10331 = vmul.f32 %v10329, %v10329
        %v10332 = vmul.f32 %v10331, -0.001358992
        %v10333 = vadd.f32 %v10332, 0.041655596
        %v10334 = vmul.f32 %v10331, %v10333
        %v10335 = vadd.f32 %v10334, -0.4999988
        %v10336 = vmul.f32 %v10331, %v10335
        %v10337 = vadd.f32 1.0, %v10336
        %v10338 = vmul.f32 %v10329, %v10329
        %v10339 = vmul.f32 %v10338, -0.00019511016
        %v10340 = vadd.f32 %v10339, 0.008332121
        %v10341 = vmul.f32 %v10338, %v10340
        %v10342 = vadd.f32 %v10341, -0.16666654
        %v10343 = vmul.f32 %v10338, %v10342
        %v10344 = vadd.f32 %v10343, 1.0
        %v10345 = vmul.f32 %v10344, %v10329
        %vm10346 = vweird.f32 %v1547
        %v10347 = vadd.s32 %v10330, 3
        %v10348 = vand.u32 %v10347, 3
        %vm10349 = vcmp.lt.s32.totalorder %v10348, 2
        %vm10350 = vcmp.eq.s32.totalorder %v10348, 0
        %v10351 = vxor.u32 %v10345, 2147483648
        %v10352 = vsel %vm10350, %v10337, %v10351
        %vm10353 = vcmp.eq.s32.totalorder %v10348, 2
        %v10354 = vxor.u32 %v10337, 2147483648
        %v10355 = vsel %vm10353, %v10354, %v10345
        %v10356 = vsel %vm10349, %v10352, %v10355
        %v10357 = vsel %vm10346, nan, %v10356
        %v10358 = vand.u32 2147483647, %v1548
        %vm10359 = vcmp.le.f32.partialorder %v10358, 0.7853982
        %vm10360 = vcmp.lt.s32.totalorder %v1548, 0
        %v10361 = vand.u32 %v1548, 2139095040
        %v10362 = vshrl.u32 %v10361, 23
        %v10363 = vsub.s32 %v10362, 127
        %v10364 = vand.u32 2147483647, %v1548
        %v10365 = vand.u32 %v10364, 8388607
        %v10366 = vor.u32 %v10365, 8388608
        %v10367 = vsub.s32 0, %v10366
        %v10368 = vadd.s32 %v10363, 1
        %vm10369 = vcmp.gt.s32.totalorder %v10368, 0
        %v10370 = vsel %vm10369, %v10368, 0
        %v10371 = vshrl.u32 %v10370, 5
        %v10372 = vand.u32 %v10370, 31
        %v10373 = vsub.s32 32, %v10372
        %v10374 = vshrl.u32 683565275, %v10373
        %v10375 = vshll.u32 683565275, %v10372
        %v10376 = vshrl.u32 2475754826, %v10373
        %v10377 = vor.u32 %v10375, %v10376
        %v10378 = vshll.u32 2475754826, %v10372
        %v10379 = vshrl.u32 2131351028, %v10373
        %v10380 = vor.u32 %v10378, %v10379
        %v10381 = vshll.u32 2131351028, %v10372
        %v10382 = vshrl.u32 2102212464, %v10373
        %v10383 = vor.u32 %v10381, %v10382
        %v10384 = vshll.u32 2102212464, %v10372
        %v10385 = vshrl.u32 920167782, %v10373
        %v10386 = vor.u32 %v10384, %v10385
        %v10387 = vshll.u32 920167782, %v10372
        %v10388 = vshrl.u32 1326507024, %v10373
        %v10389 = vor.u32 %v10387, %v10388
        %vm10390 = vcmp.lt.s32.totalorder %v10371, 1
        %vm10391 = vcmp.lt.s32.totalorder %v10371, 2
        %vm10392 = vcmp.lt.s32.totalorder %v10371, 3
        %vm10393 = vcmp.lt.s32.totalorder %v10371, 4
        %v10394 = vsel %vm10390, %v10374, %v10377
        %v10395 = vsel %vm10393, %v10383, 2102212464
        %v10396 = vsel %vm10392, %v10380, %v10395
        %v10397 = vsel %vm10391, %v10394, %v10396
        %v10398 = vsel %vm10390, %v10377, %v10380
        %v10399 = vsel %vm10393, %v10386, 920167782
        %v10400 = vsel %vm10392, %v10383, %v10399
        %v10401 = vsel %vm10391, %v10398, %v10400
        %v10402 = vsel %vm10390, %v10380, %v10383
        %v10403 = vsel %vm10393, %v10389, 1326507024
        %v10404 = vsel %vm10392, %v10386, %v10403
        %v10405 = vsel %vm10391, %v10402, %v10404
        %v10406 = vshll.u32 %v10366, 8
        %v10407 = vand.u32 %v10406, 65535
        %v10408 = vshrl.u32 %v10406, 16
        %v10409 = vand.u32 %v10405, 65535
        %v10410 = vshrl.u32 %v10405, 16
        %v10411 = vmul.u32 %v10407, %v10409
        %v10412 = vmul.u32 %v10407, %v10410
        %v10413 = vmul.u32 %v10408, %v10409
        %v10414 = vmul.u32 %v10408, %v10410
        %v10415 = vshll.u32 %v10412, 16
        %v10416 = vshrl.u32 %v10412, 16
        %v10417 = vshll.u32 %v10413, 16
        %v10418 = vshrl.u32 %v10413, 16
        %vm10419 = vc.u32 %v10411, %v10415
        %v10420 = vsel %vm10419, 1, 0
        %v10421 = vadd.s32 %v10411, %v10415
        %v10422 = vadd.s32 %v10414, %v10420
        %vm10423 = vc.u32 %v10421, %v10417
        %v10424 = vsel %vm10423, 1, 0
        %v10425 = vadd.s32 %v10421, %v10417
        %v10426 = vadd.s32 %v10422, %v10424
        %v10427 = vadd.s32 %v10426, %v10416
        %v10428 = vadd.s32 %v10427, %v10418
        %v10429 = vand.u32 %v10406, 65535
        %v10430 = vshrl.u32 %v10406, 16
        %v10431 = vand.u32 %v10401, 65535
        %v10432 = vshrl.u32 %v10401, 16
        %v10433 = vmul.u32 %v10429, %v10431
        %v10434 = vmul.u32 %v10429, %v10432
        %v10435 = vmul.u32 %v10430, %v10431
        %v10436 = vmul.u32 %v10430, %v10432
        %v10437 = vshll.u32 %v10434, 16
        %v10438 = vshrl.u32 %v10434, 16
        %v10439 = vshll.u32 %v10435, 16
        %v10440 = vshrl.u32 %v10435, 16
        %vm10441 = vc.u32 %v10433, %v10437
        %v10442 = vsel %vm10441, 1, 0
        %v10443 = vadd.s32 %v10433, %v10437
        %v10444 = vadd.s32 %v10436, %v10442
        %vm10445 = vc.u32 %v10443, %v10439
        %v10446 = vsel %vm10445, 1, 0
        %v10447 = vadd.s32 %v10443, %v10439
        %v10448 = vadd.s32 %v10444, %v10446
        %v10449 = vadd.s32 %v10448, %v10438
        %v10450 = vadd.s32 %v10449, %v10440
        %v10451 = vmul.u32 %v10406, %v10397
        %v10452 = vadd.s32 %v10428, %v10447
        %vm10453 = vc.u32 %v10428, %v10447
        %v10454 = vadd.s32 %v10450, 1
        %v10455 = vsel %vm10453, %v10454, %v10450
        %v10456 = vadd.s32 %v10451, %v10455
        %v10457 = vadd.s32 %v10456, 536870912
        %v10458 = vshrl.u32 %v10457, 30
        %v10459 = vshll.u32 %v10458, 30
        %v10460 = vsub.s32 %v10456, %v10459
        %vm10461 = vcmp.lt.s32.totalorder %v10460, 0
        %v10462 = vsub.s32 0, %v10460
        %v10463 = vsel %vm10461, %v10462, %v10460
        %v10464 = vclz %v10463
        %v10465 = vsub.s32 %v10464, 2
        %vm10466 = vcmp.gt.s32.totalorder 0, %v10465
        %v10467 = vsel %vm10466, 0, %v10465
        %v10468 = vsub.s32 32, %v10467
        %v10469 = vshll.u32 %v10460, %v10467
        %v10470 = vshrl.u32 %v10452, %v10468
        %v10471 = vor.u32 %v10469, %v10470
        %v10472 = vsub.s32 4294967266, %v10467
        %v10473 = vadd.s32 %v10472, 127
        %v10474 = vshll.u32 %v10473, 23
        %v10475 = vor.u32 4788187, %v10474
        %v10476 = vand.u32 2147483647, %v10475
        %v10478 = vcvt.s32.f32 %v10471
        %v10479 = vmul.f32 %v10478, %v10476
        %v10480 = vxor.u32 %v10479, 2147483648
        %v10481 = vsel %vm10360, %v10480, %v10479
        %v10482 = vsub.s32 4, %v10458
        %v10483 = vsel %vm10360, %v10482, %v10458
        %v10484 = vsel %vm10359, %v1548, %v10481
        %v10485 = vsel %vm10359, 0, %v10483
        %v10486 = vmul.f32 %v10484, %v10484
        %v10487 = vmul.f32 %v10486, -0.001358992
        %v10488 = vadd.f32 %v10487, 0.041655596
        %v10489 = vmul.f32 %v10486, %v10488
        %v10490 = vadd.f32 %v10489, -0.4999988
        %v10491 = vmul.f32 %v10486, %v10490
        %v10492 = vadd.f32 1.0, %v10491
        %v10493 = vmul.f32 %v10484, %v10484
        %v10494 = vmul.f32 %v10493, -0.00019511016
        %v10495 = vadd.f32 %v10494, 0.008332121
        %v10496 = vmul.f32 %v10493, %v10495
        %v10497 = vadd.f32 %v10496, -0.16666654
        %v10498 = vmul.f32 %v10493, %v10497
        %v10499 = vadd.f32 %v10498, 1.0
        %v10500 = vmul.f32 %v10499, %v10484
        %vm10501 = vweird.f32 %v1548
        %v10502 = vadd.s32 %v10485, 3
        %v10503 = vand.u32 %v10502, 3
        %vm10504 = vcmp.lt.s32.totalorder %v10503, 2
        %vm10505 = vcmp.eq.s32.totalorder %v10503, 0
        %v10506 = vxor.u32 %v10500, 2147483648
        %v10507 = vsel %vm10505, %v10492, %v10506
        %vm10508 = vcmp.eq.s32.totalorder %v10503, 2
        %v10509 = vxor.u32 %v10492, 2147483648
        %v10510 = vsel %vm10508, %v10509, %v10500
        %v10511 = vsel %vm10504, %v10507, %v10510
        %v10512 = vsel %vm10501, nan, %v10511
        %v10513 = vand.u32 2147483647, %v1549
        %vm10514 = vcmp.le.f32.partialorder %v10513, 0.7853982
        %vm10515 = vcmp.lt.s32.totalorder %v1549, 0
        %v10516 = vand.u32 %v1549, 2139095040
        %v10517 = vshrl.u32 %v10516, 23
        %v10518 = vsub.s32 %v10517, 127
        %v10519 = vand.u32 2147483647, %v1549
        %v10520 = vand.u32 %v10519, 8388607
        %v10521 = vor.u32 %v10520, 8388608
        %v10522 = vsub.s32 0, %v10521
        %v10523 = vadd.s32 %v10518, 1
        %vm10524 = vcmp.gt.s32.totalorder %v10523, 0
        %v10525 = vsel %vm10524, %v10523, 0
        %v10526 = vshrl.u32 %v10525, 5
        %v10527 = vand.u32 %v10525, 31
        %v10528 = vsub.s32 32, %v10527
        %v10529 = vshrl.u32 683565275, %v10528
        %v10530 = vshll.u32 683565275, %v10527
        %v10531 = vshrl.u32 2475754826, %v10528
        %v10532 = vor.u32 %v10530, %v10531
        %v10533 = vshll.u32 2475754826, %v10527
        %v10534 = vshrl.u32 2131351028, %v10528
        %v10535 = vor.u32 %v10533, %v10534
        %v10536 = vshll.u32 2131351028, %v10527
        %v10537 = vshrl.u32 2102212464, %v10528
        %v10538 = vor.u32 %v10536, %v10537
        %v10539 = vshll.u32 2102212464, %v10527
        %v10540 = vshrl.u32 920167782, %v10528
        %v10541 = vor.u32 %v10539, %v10540
        %v10542 = vshll.u32 920167782, %v10527
        %v10543 = vshrl.u32 1326507024, %v10528
        %v10544 = vor.u32 %v10542, %v10543
        %vm10545 = vcmp.lt.s32.totalorder %v10526, 1
        %vm10546 = vcmp.lt.s32.totalorder %v10526, 2
        %vm10547 = vcmp.lt.s32.totalorder %v10526, 3
        %vm10548 = vcmp.lt.s32.totalorder %v10526, 4
        %v10549 = vsel %vm10545, %v10529, %v10532
        %v10550 = vsel %vm10548, %v10538, 2102212464
        %v10551 = vsel %vm10547, %v10535, %v10550
        %v10552 = vsel %vm10546, %v10549, %v10551
        %v10553 = vsel %vm10545, %v10532, %v10535
        %v10554 = vsel %vm10548, %v10541, 920167782
        %v10555 = vsel %vm10547, %v10538, %v10554
        %v10556 = vsel %vm10546, %v10553, %v10555
        %v10557 = vsel %vm10545, %v10535, %v10538
        %v10558 = vsel %vm10548, %v10544, 1326507024
        %v10559 = vsel %vm10547, %v10541, %v10558
        %v10560 = vsel %vm10546, %v10557, %v10559
        %v10561 = vshll.u32 %v10521, 8
        %v10562 = vand.u32 %v10561, 65535
        %v10563 = vshrl.u32 %v10561, 16
        %v10564 = vand.u32 %v10560, 65535
        %v10565 = vshrl.u32 %v10560, 16
        %v10566 = vmul.u32 %v10562, %v10564
        %v10567 = vmul.u32 %v10562, %v10565
        %v10568 = vmul.u32 %v10563, %v10564
        %v10569 = vmul.u32 %v10563, %v10565
        %v10570 = vshll.u32 %v10567, 16
        %v10571 = vshrl.u32 %v10567, 16
        %v10572 = vshll.u32 %v10568, 16
        %v10573 = vshrl.u32 %v10568, 16
        %vm10574 = vc.u32 %v10566, %v10570
        %v10575 = vsel %vm10574, 1, 0
        %v10576 = vadd.s32 %v10566, %v10570
        %v10577 = vadd.s32 %v10569, %v10575
        %vm10578 = vc.u32 %v10576, %v10572
        %v10579 = vsel %vm10578, 1, 0
        %v10580 = vadd.s32 %v10576, %v10572
        %v10581 = vadd.s32 %v10577, %v10579
        %v10582 = vadd.s32 %v10581, %v10571
        %v10583 = vadd.s32 %v10582, %v10573
        %v10584 = vand.u32 %v10561, 65535
        %v10585 = vshrl.u32 %v10561, 16
        %v10586 = vand.u32 %v10556, 65535
        %v10587 = vshrl.u32 %v10556, 16
        %v10588 = vmul.u32 %v10584, %v10586
        %v10589 = vmul.u32 %v10584, %v10587
        %v10590 = vmul.u32 %v10585, %v10586
        %v10591 = vmul.u32 %v10585, %v10587
        %v10592 = vshll.u32 %v10589, 16
        %v10593 = vshrl.u32 %v10589, 16
        %v10594 = vshll.u32 %v10590, 16
        %v10595 = vshrl.u32 %v10590, 16
        %vm10596 = vc.u32 %v10588, %v10592
        %v10597 = vsel %vm10596, 1, 0
        %v10598 = vadd.s32 %v10588, %v10592
        %v10599 = vadd.s32 %v10591, %v10597
        %vm10600 = vc.u32 %v10598, %v10594
        %v10601 = vsel %vm10600, 1, 0
        %v10602 = vadd.s32 %v10598, %v10594
        %v10603 = vadd.s32 %v10599, %v10601
        %v10604 = vadd.s32 %v10603, %v10593
        %v10605 = vadd.s32 %v10604, %v10595
        %v10606 = vmul.u32 %v10561, %v10552
        %v10607 = vadd.s32 %v10583, %v10602
        %vm10608 = vc.u32 %v10583, %v10602
        %v10609 = vadd.s32 %v10605, 1
        %v10610 = vsel %vm10608, %v10609, %v10605
        %v10611 = vadd.s32 %v10606, %v10610
        %v10612 = vadd.s32 %v10611, 536870912
        %v10613 = vshrl.u32 %v10612, 30
        %v10614 = vshll.u32 %v10613, 30
        %v10615 = vsub.s32 %v10611, %v10614
        %vm10616 = vcmp.lt.s32.totalorder %v10615, 0
        %v10617 = vsub.s32 0, %v10615
        %v10618 = vsel %vm10616, %v10617, %v10615
        %v10619 = vclz %v10618
        %v10620 = vsub.s32 %v10619, 2
        %vm10621 = vcmp.gt.s32.totalorder 0, %v10620
        %v10622 = vsel %vm10621, 0, %v10620
        %v10623 = vsub.s32 32, %v10622
        %v10624 = vshll.u32 %v10615, %v10622
        %v10625 = vshrl.u32 %v10607, %v10623
        %v10626 = vor.u32 %v10624, %v10625
        %v10627 = vsub.s32 4294967266, %v10622
        %v10628 = vadd.s32 %v10627, 127
        %v10629 = vshll.u32 %v10628, 23
        %v10630 = vor.u32 4788187, %v10629
        %v10631 = vand.u32 2147483647, %v10630
        %v10633 = vcvt.s32.f32 %v10626
        %v10634 = vmul.f32 %v10633, %v10631
        %v10635 = vxor.u32 %v10634, 2147483648
        %v10636 = vsel %vm10515, %v10635, %v10634
        %v10637 = vsub.s32 4, %v10613
        %v10638 = vsel %vm10515, %v10637, %v10613
        %v10639 = vsel %vm10514, %v1549, %v10636
        %v10640 = vsel %vm10514, 0, %v10638
        %v10641 = vmul.f32 %v10639, %v10639
        %v10642 = vmul.f32 %v10641, -0.001358992
        %v10643 = vadd.f32 %v10642, 0.041655596
        %v10644 = vmul.f32 %v10641, %v10643
        %v10645 = vadd.f32 %v10644, -0.4999988
        %v10646 = vmul.f32 %v10641, %v10645
        %v10647 = vadd.f32 1.0, %v10646
        %v10648 = vmul.f32 %v10639, %v10639
        %v10649 = vmul.f32 %v10648, -0.00019511016
        %v10650 = vadd.f32 %v10649, 0.008332121
        %v10651 = vmul.f32 %v10648, %v10650
        %v10652 = vadd.f32 %v10651, -0.16666654
        %v10653 = vmul.f32 %v10648, %v10652
        %v10654 = vadd.f32 %v10653, 1.0
        %v10655 = vmul.f32 %v10654, %v10639
        %vm10656 = vweird.f32 %v1549
        %v10657 = vadd.s32 %v10640, 3
        %v10658 = vand.u32 %v10657, 3
        %vm10659 = vcmp.lt.s32.totalorder %v10658, 2
        %vm10660 = vcmp.eq.s32.totalorder %v10658, 0
        %v10661 = vxor.u32 %v10655, 2147483648
        %v10662 = vsel %vm10660, %v10647, %v10661
        %vm10663 = vcmp.eq.s32.totalorder %v10658, 2
        %v10664 = vxor.u32 %v10647, 2147483648
        %v10665 = vsel %vm10663, %v10664, %v10655
        %v10666 = vsel %vm10659, %v10662, %v10665
        %v10667 = vsel %vm10656, nan, %v10666
        %v10668 = vand.u32 2147483647, %v1550
        %vm10669 = vcmp.le.f32.partialorder %v10668, 0.7853982
        %vm10670 = vcmp.lt.s32.totalorder %v1550, 0
        %v10671 = vand.u32 %v1550, 2139095040
        %v10672 = vshrl.u32 %v10671, 23
        %v10673 = vsub.s32 %v10672, 127
        %v10674 = vand.u32 2147483647, %v1550
        %v10675 = vand.u32 %v10674, 8388607
        %v10676 = vor.u32 %v10675, 8388608
        %v10677 = vsub.s32 0, %v10676
        %v10678 = vadd.s32 %v10673, 1
        %vm10679 = vcmp.gt.s32.totalorder %v10678, 0
        %v10680 = vsel %vm10679, %v10678, 0
        %v10681 = vshrl.u32 %v10680, 5
        %v10682 = vand.u32 %v10680, 31
        %v10683 = vsub.s32 32, %v10682
        %v10684 = vshrl.u32 683565275, %v10683
        %v10685 = vshll.u32 683565275, %v10682
        %v10686 = vshrl.u32 2475754826, %v10683
        %v10687 = vor.u32 %v10685, %v10686
        %v10688 = vshll.u32 2475754826, %v10682
        %v10689 = vshrl.u32 2131351028, %v10683
        %v10690 = vor.u32 %v10688, %v10689
        %v10691 = vshll.u32 2131351028, %v10682
        %v10692 = vshrl.u32 2102212464, %v10683
        %v10693 = vor.u32 %v10691, %v10692
        %v10694 = vshll.u32 2102212464, %v10682
        %v10695 = vshrl.u32 920167782, %v10683
        %v10696 = vor.u32 %v10694, %v10695
        %v10697 = vshll.u32 920167782, %v10682
        %v10698 = vshrl.u32 1326507024, %v10683
        %v10699 = vor.u32 %v10697, %v10698
        %vm10700 = vcmp.lt.s32.totalorder %v10681, 1
        %vm10701 = vcmp.lt.s32.totalorder %v10681, 2
        %vm10702 = vcmp.lt.s32.totalorder %v10681, 3
        %vm10703 = vcmp.lt.s32.totalorder %v10681, 4
        %v10704 = vsel %vm10700, %v10684, %v10687
        %v10705 = vsel %vm10703, %v10693, 2102212464
        %v10706 = vsel %vm10702, %v10690, %v10705
        %v10707 = vsel %vm10701, %v10704, %v10706
        %v10708 = vsel %vm10700, %v10687, %v10690
        %v10709 = vsel %vm10703, %v10696, 920167782
        %v10710 = vsel %vm10702, %v10693, %v10709
        %v10711 = vsel %vm10701, %v10708, %v10710
        %v10712 = vsel %vm10700, %v10690, %v10693
        %v10713 = vsel %vm10703, %v10699, 1326507024
        %v10714 = vsel %vm10702, %v10696, %v10713
        %v10715 = vsel %vm10701, %v10712, %v10714
        %v10716 = vshll.u32 %v10676, 8
        %v10717 = vand.u32 %v10716, 65535
        %v10718 = vshrl.u32 %v10716, 16
        %v10719 = vand.u32 %v10715, 65535
        %v10720 = vshrl.u32 %v10715, 16
        %v10721 = vmul.u32 %v10717, %v10719
        %v10722 = vmul.u32 %v10717, %v10720
        %v10723 = vmul.u32 %v10718, %v10719
        %v10724 = vmul.u32 %v10718, %v10720
        %v10725 = vshll.u32 %v10722, 16
        %v10726 = vshrl.u32 %v10722, 16
        %v10727 = vshll.u32 %v10723, 16
        %v10728 = vshrl.u32 %v10723, 16
        %vm10729 = vc.u32 %v10721, %v10725
        %v10730 = vsel %vm10729, 1, 0
        %v10731 = vadd.s32 %v10721, %v10725
        %v10732 = vadd.s32 %v10724, %v10730
        %vm10733 = vc.u32 %v10731, %v10727
        %v10734 = vsel %vm10733, 1, 0
        %v10735 = vadd.s32 %v10731, %v10727
        %v10736 = vadd.s32 %v10732, %v10734
        %v10737 = vadd.s32 %v10736, %v10726
        %v10738 = vadd.s32 %v10737, %v10728
        %v10739 = vand.u32 %v10716, 65535
        %v10740 = vshrl.u32 %v10716, 16
        %v10741 = vand.u32 %v10711, 65535
        %v10742 = vshrl.u32 %v10711, 16
        %v10743 = vmul.u32 %v10739, %v10741
        %v10744 = vmul.u32 %v10739, %v10742
        %v10745 = vmul.u32 %v10740, %v10741
        %v10746 = vmul.u32 %v10740, %v10742
        %v10747 = vshll.u32 %v10744, 16
        %v10748 = vshrl.u32 %v10744, 16
        %v10749 = vshll.u32 %v10745, 16
        %v10750 = vshrl.u32 %v10745, 16
        %vm10751 = vc.u32 %v10743, %v10747
        %v10752 = vsel %vm10751, 1, 0
        %v10753 = vadd.s32 %v10743, %v10747
        %v10754 = vadd.s32 %v10746, %v10752
        %vm10755 = vc.u32 %v10753, %v10749
        %v10756 = vsel %vm10755, 1, 0
        %v10757 = vadd.s32 %v10753, %v10749
        %v10758 = vadd.s32 %v10754, %v10756
        %v10759 = vadd.s32 %v10758, %v10748
        %v10760 = vadd.s32 %v10759, %v10750
        %v10761 = vmul.u32 %v10716, %v10707
        %v10762 = vadd.s32 %v10738, %v10757
        %vm10763 = vc.u32 %v10738, %v10757
        %v10764 = vadd.s32 %v10760, 1
        %v10765 = vsel %vm10763, %v10764, %v10760
        %v10766 = vadd.s32 %v10761, %v10765
        %v10767 = vadd.s32 %v10766, 536870912
        %v10768 = vshrl.u32 %v10767, 30
        %v10769 = vshll.u32 %v10768, 30
        %v10770 = vsub.s32 %v10766, %v10769
        %vm10771 = vcmp.lt.s32.totalorder %v10770, 0
        %v10772 = vsub.s32 0, %v10770
        %v10773 = vsel %vm10771, %v10772, %v10770
        %v10774 = vclz %v10773
        %v10775 = vsub.s32 %v10774, 2
        %vm10776 = vcmp.gt.s32.totalorder 0, %v10775
        %v10777 = vsel %vm10776, 0, %v10775
        %v10778 = vsub.s32 32, %v10777
        %v10779 = vshll.u32 %v10770, %v10777
        %v10780 = vshrl.u32 %v10762, %v10778
        %v10781 = vor.u32 %v10779, %v10780
        %v10782 = vsub.s32 4294967266, %v10777
        %v10783 = vadd.s32 %v10782, 127
        %v10784 = vshll.u32 %v10783, 23
        %v10785 = vor.u32 4788187, %v10784
        %v10786 = vand.u32 2147483647, %v10785
        %v10788 = vcvt.s32.f32 %v10781
        %v10789 = vmul.f32 %v10788, %v10786
        %v10790 = vxor.u32 %v10789, 2147483648
        %v10791 = vsel %vm10670, %v10790, %v10789
        %v10792 = vsub.s32 4, %v10768
        %v10793 = vsel %vm10670, %v10792, %v10768
        %v10794 = vsel %vm10669, %v1550, %v10791
        %v10795 = vsel %vm10669, 0, %v10793
        %v10796 = vmul.f32 %v10794, %v10794
        %v10797 = vmul.f32 %v10796, -0.001358992
        %v10798 = vadd.f32 %v10797, 0.041655596
        %v10799 = vmul.f32 %v10796, %v10798
        %v10800 = vadd.f32 %v10799, -0.4999988
        %v10801 = vmul.f32 %v10796, %v10800
        %v10802 = vadd.f32 1.0, %v10801
        %v10803 = vmul.f32 %v10794, %v10794
        %v10804 = vmul.f32 %v10803, -0.00019511016
        %v10805 = vadd.f32 %v10804, 0.008332121
        %v10806 = vmul.f32 %v10803, %v10805
        %v10807 = vadd.f32 %v10806, -0.16666654
        %v10808 = vmul.f32 %v10803, %v10807
        %v10809 = vadd.f32 %v10808, 1.0
        %v10810 = vmul.f32 %v10809, %v10794
        %vm10811 = vweird.f32 %v1550
        %v10812 = vadd.s32 %v10795, 3
        %v10813 = vand.u32 %v10812, 3
        %vm10814 = vcmp.lt.s32.totalorder %v10813, 2
        %vm10815 = vcmp.eq.s32.totalorder %v10813, 0
        %v10816 = vxor.u32 %v10810, 2147483648
        %v10817 = vsel %vm10815, %v10802, %v10816
        %vm10818 = vcmp.eq.s32.totalorder %v10813, 2
        %v10819 = vxor.u32 %v10802, 2147483648
        %v10820 = vsel %vm10818, %v10819, %v10810
        %v10821 = vsel %vm10814, %v10817, %v10820
        %v10822 = vsel %vm10811, nan, %v10821
        %v10823 = vand.u32 2147483647, %v1551
        %vm10824 = vcmp.le.f32.partialorder %v10823, 0.7853982
        %vm10825 = vcmp.lt.s32.totalorder %v1551, 0
        %v10826 = vand.u32 %v1551, 2139095040
        %v10827 = vshrl.u32 %v10826, 23
        %v10828 = vsub.s32 %v10827, 127
        %v10829 = vand.u32 2147483647, %v1551
        %v10830 = vand.u32 %v10829, 8388607
        %v10831 = vor.u32 %v10830, 8388608
        %v10832 = vsub.s32 0, %v10831
        %v10833 = vadd.s32 %v10828, 1
        %vm10834 = vcmp.gt.s32.totalorder %v10833, 0
        %v10835 = vsel %vm10834, %v10833, 0
        %v10836 = vshrl.u32 %v10835, 5
        %v10837 = vand.u32 %v10835, 31
        %v10838 = vsub.s32 32, %v10837
        %v10839 = vshrl.u32 683565275, %v10838
        %v10840 = vshll.u32 683565275, %v10837
        %v10841 = vshrl.u32 2475754826, %v10838
        %v10842 = vor.u32 %v10840, %v10841
        %v10843 = vshll.u32 2475754826, %v10837
        %v10844 = vshrl.u32 2131351028, %v10838
        %v10845 = vor.u32 %v10843, %v10844
        %v10846 = vshll.u32 2131351028, %v10837
        %v10847 = vshrl.u32 2102212464, %v10838
        %v10848 = vor.u32 %v10846, %v10847
        %v10849 = vshll.u32 2102212464, %v10837
        %v10850 = vshrl.u32 920167782, %v10838
        %v10851 = vor.u32 %v10849, %v10850
        %v10852 = vshll.u32 920167782, %v10837
        %v10853 = vshrl.u32 1326507024, %v10838
        %v10854 = vor.u32 %v10852, %v10853
        %vm10855 = vcmp.lt.s32.totalorder %v10836, 1
        %vm10856 = vcmp.lt.s32.totalorder %v10836, 2
        %vm10857 = vcmp.lt.s32.totalorder %v10836, 3
        %vm10858 = vcmp.lt.s32.totalorder %v10836, 4
        %v10859 = vsel %vm10855, %v10839, %v10842
        %v10860 = vsel %vm10858, %v10848, 2102212464
        %v10861 = vsel %vm10857, %v10845, %v10860
        %v10862 = vsel %vm10856, %v10859, %v10861
        %v10863 = vsel %vm10855, %v10842, %v10845
        %v10864 = vsel %vm10858, %v10851, 920167782
        %v10865 = vsel %vm10857, %v10848, %v10864
        %v10866 = vsel %vm10856, %v10863, %v10865
        %v10867 = vsel %vm10855, %v10845, %v10848
        %v10868 = vsel %vm10858, %v10854, 1326507024
        %v10869 = vsel %vm10857, %v10851, %v10868
        %v10870 = vsel %vm10856, %v10867, %v10869
        %v10871 = vshll.u32 %v10831, 8
        %v10872 = vand.u32 %v10871, 65535
        %v10873 = vshrl.u32 %v10871, 16
        %v10874 = vand.u32 %v10870, 65535
        %v10875 = vshrl.u32 %v10870, 16
        %v10876 = vmul.u32 %v10872, %v10874
        %v10877 = vmul.u32 %v10872, %v10875
        %v10878 = vmul.u32 %v10873, %v10874
        %v10879 = vmul.u32 %v10873, %v10875
        %v10880 = vshll.u32 %v10877, 16
        %v10881 = vshrl.u32 %v10877, 16
        %v10882 = vshll.u32 %v10878, 16
        %v10883 = vshrl.u32 %v10878, 16
        %vm10884 = vc.u32 %v10876, %v10880
        %v10885 = vsel %vm10884, 1, 0
        %v10886 = vadd.s32 %v10876, %v10880
        %v10887 = vadd.s32 %v10879, %v10885
        %vm10888 = vc.u32 %v10886, %v10882
        %v10889 = vsel %vm10888, 1, 0
        %v10890 = vadd.s32 %v10886, %v10882
        %v10891 = vadd.s32 %v10887, %v10889
        %v10892 = vadd.s32 %v10891, %v10881
        %v10893 = vadd.s32 %v10892, %v10883
        %v10894 = vand.u32 %v10871, 65535
        %v10895 = vshrl.u32 %v10871, 16
        %v10896 = vand.u32 %v10866, 65535
        %v10897 = vshrl.u32 %v10866, 16
        %v10898 = vmul.u32 %v10894, %v10896
        %v10899 = vmul.u32 %v10894, %v10897
        %v10900 = vmul.u32 %v10895, %v10896
        %v10901 = vmul.u32 %v10895, %v10897
        %v10902 = vshll.u32 %v10899, 16
        %v10903 = vshrl.u32 %v10899, 16
        %v10904 = vshll.u32 %v10900, 16
        %v10905 = vshrl.u32 %v10900, 16
        %vm10906 = vc.u32 %v10898, %v10902
        %v10907 = vsel %vm10906, 1, 0
        %v10908 = vadd.s32 %v10898, %v10902
        %v10909 = vadd.s32 %v10901, %v10907
        %vm10910 = vc.u32 %v10908, %v10904
        %v10911 = vsel %vm10910, 1, 0
        %v10912 = vadd.s32 %v10908, %v10904
        %v10913 = vadd.s32 %v10909, %v10911
        %v10914 = vadd.s32 %v10913, %v10903
        %v10915 = vadd.s32 %v10914, %v10905
        %v10916 = vmul.u32 %v10871, %v10862
        %v10917 = vadd.s32 %v10893, %v10912
        %vm10918 = vc.u32 %v10893, %v10912
        %v10919 = vadd.s32 %v10915, 1
        %v10920 = vsel %vm10918, %v10919, %v10915
        %v10921 = vadd.s32 %v10916, %v10920
        %v10922 = vadd.s32 %v10921, 536870912
        %v10923 = vshrl.u32 %v10922, 30
        %v10924 = vshll.u32 %v10923, 30
        %v10925 = vsub.s32 %v10921, %v10924
        %vm10926 = vcmp.lt.s32.totalorder %v10925, 0
        %v10927 = vsub.s32 0, %v10925
        %v10928 = vsel %vm10926, %v10927, %v10925
        %v10929 = vclz %v10928
        %v10930 = vsub.s32 %v10929, 2
        %vm10931 = vcmp.gt.s32.totalorder 0, %v10930
        %v10932 = vsel %vm10931, 0, %v10930
        %v10933 = vsub.s32 32, %v10932
        %v10934 = vshll.u32 %v10925, %v10932
        %v10935 = vshrl.u32 %v10917, %v10933
        %v10936 = vor.u32 %v10934, %v10935
        %v10937 = vsub.s32 4294967266, %v10932
        %v10938 = vadd.s32 %v10937, 127
        %v10939 = vshll.u32 %v10938, 23
        %v10940 = vor.u32 4788187, %v10939
        %v10941 = vand.u32 2147483647, %v10940
        %v10943 = vcvt.s32.f32 %v10936
        %v10944 = vmul.f32 %v10943, %v10941
        %v10945 = vxor.u32 %v10944, 2147483648
        %v10946 = vsel %vm10825, %v10945, %v10944
        %v10947 = vsub.s32 4, %v10923
        %v10948 = vsel %vm10825, %v10947, %v10923
        %v10949 = vsel %vm10824, %v1551, %v10946
        %v10950 = vsel %vm10824, 0, %v10948
        %v10951 = vmul.f32 %v10949, %v10949
        %v10952 = vmul.f32 %v10951, -0.001358992
        %v10953 = vadd.f32 %v10952, 0.041655596
        %v10954 = vmul.f32 %v10951, %v10953
        %v10955 = vadd.f32 %v10954, -0.4999988
        %v10956 = vmul.f32 %v10951, %v10955
        %v10957 = vadd.f32 1.0, %v10956
        %v10958 = vmul.f32 %v10949, %v10949
        %v10959 = vmul.f32 %v10958, -0.00019511016
        %v10960 = vadd.f32 %v10959, 0.008332121
        %v10961 = vmul.f32 %v10958, %v10960
        %v10962 = vadd.f32 %v10961, -0.16666654
        %v10963 = vmul.f32 %v10958, %v10962
        %v10964 = vadd.f32 %v10963, 1.0
        %v10965 = vmul.f32 %v10964, %v10949
        %vm10966 = vweird.f32 %v1551
        %v10967 = vadd.s32 %v10950, 3
        %v10968 = vand.u32 %v10967, 3
        %vm10969 = vcmp.lt.s32.totalorder %v10968, 2
        %vm10970 = vcmp.eq.s32.totalorder %v10968, 0
        %v10971 = vxor.u32 %v10965, 2147483648
        %v10972 = vsel %vm10970, %v10957, %v10971
        %vm10973 = vcmp.eq.s32.totalorder %v10968, 2
        %v10974 = vxor.u32 %v10957, 2147483648
        %v10975 = vsel %vm10973, %v10974, %v10965
        %v10976 = vsel %vm10969, %v10972, %v10975
        %v10977 = vsel %vm10966, nan, %v10976
        %v10978 = vand.u32 2147483647, %v1552
        %vm10979 = vcmp.le.f32.partialorder %v10978, 0.7853982
        %vm10980 = vcmp.lt.s32.totalorder %v1552, 0
        %v10981 = vand.u32 %v1552, 2139095040
        %v10982 = vshrl.u32 %v10981, 23
        %v10983 = vsub.s32 %v10982, 127
        %v10984 = vand.u32 2147483647, %v1552
        %v10985 = vand.u32 %v10984, 8388607
        %v10986 = vor.u32 %v10985, 8388608
        %v10987 = vsub.s32 0, %v10986
        %v10988 = vadd.s32 %v10983, 1
        %vm10989 = vcmp.gt.s32.totalorder %v10988, 0
        %v10990 = vsel %vm10989, %v10988, 0
        %v10991 = vshrl.u32 %v10990, 5
        %v10992 = vand.u32 %v10990, 31
        %v10993 = vsub.s32 32, %v10992
        %v10994 = vshrl.u32 683565275, %v10993
        %v10995 = vshll.u32 683565275, %v10992
        %v10996 = vshrl.u32 2475754826, %v10993
        %v10997 = vor.u32 %v10995, %v10996
        %v10998 = vshll.u32 2475754826, %v10992
        %v10999 = vshrl.u32 2131351028, %v10993
        %v11000 = vor.u32 %v10998, %v10999
        %v11001 = vshll.u32 2131351028, %v10992
        %v11002 = vshrl.u32 2102212464, %v10993
        %v11003 = vor.u32 %v11001, %v11002
        %v11004 = vshll.u32 2102212464, %v10992
        %v11005 = vshrl.u32 920167782, %v10993
        %v11006 = vor.u32 %v11004, %v11005
        %v11007 = vshll.u32 920167782, %v10992
        %v11008 = vshrl.u32 1326507024, %v10993
        %v11009 = vor.u32 %v11007, %v11008
        %vm11010 = vcmp.lt.s32.totalorder %v10991, 1
        %vm11011 = vcmp.lt.s32.totalorder %v10991, 2
        %vm11012 = vcmp.lt.s32.totalorder %v10991, 3
        %vm11013 = vcmp.lt.s32.totalorder %v10991, 4
        %v11014 = vsel %vm11010, %v10994, %v10997
        %v11015 = vsel %vm11013, %v11003, 2102212464
        %v11016 = vsel %vm11012, %v11000, %v11015
        %v11017 = vsel %vm11011, %v11014, %v11016
        %v11018 = vsel %vm11010, %v10997, %v11000
        %v11019 = vsel %vm11013, %v11006, 920167782
        %v11020 = vsel %vm11012, %v11003, %v11019
        %v11021 = vsel %vm11011, %v11018, %v11020
        %v11022 = vsel %vm11010, %v11000, %v11003
        %v11023 = vsel %vm11013, %v11009, 1326507024
        %v11024 = vsel %vm11012, %v11006, %v11023
        %v11025 = vsel %vm11011, %v11022, %v11024
        %v11026 = vshll.u32 %v10986, 8
        %v11027 = vand.u32 %v11026, 65535
        %v11028 = vshrl.u32 %v11026, 16
        %v11029 = vand.u32 %v11025, 65535
        %v11030 = vshrl.u32 %v11025, 16
        %v11031 = vmul.u32 %v11027, %v11029
        %v11032 = vmul.u32 %v11027, %v11030
        %v11033 = vmul.u32 %v11028, %v11029
        %v11034 = vmul.u32 %v11028, %v11030
        %v11035 = vshll.u32 %v11032, 16
        %v11036 = vshrl.u32 %v11032, 16
        %v11037 = vshll.u32 %v11033, 16
        %v11038 = vshrl.u32 %v11033, 16
        %vm11039 = vc.u32 %v11031, %v11035
        %v11040 = vsel %vm11039, 1, 0
        %v11041 = vadd.s32 %v11031, %v11035
        %v11042 = vadd.s32 %v11034, %v11040
        %vm11043 = vc.u32 %v11041, %v11037
        %v11044 = vsel %vm11043, 1, 0
        %v11045 = vadd.s32 %v11041, %v11037
        %v11046 = vadd.s32 %v11042, %v11044
        %v11047 = vadd.s32 %v11046, %v11036
        %v11048 = vadd.s32 %v11047, %v11038
        %v11049 = vand.u32 %v11026, 65535
        %v11050 = vshrl.u32 %v11026, 16
        %v11051 = vand.u32 %v11021, 65535
        %v11052 = vshrl.u32 %v11021, 16
        %v11053 = vmul.u32 %v11049, %v11051
        %v11054 = vmul.u32 %v11049, %v11052
        %v11055 = vmul.u32 %v11050, %v11051
        %v11056 = vmul.u32 %v11050, %v11052
        %v11057 = vshll.u32 %v11054, 16
        %v11058 = vshrl.u32 %v11054, 16
        %v11059 = vshll.u32 %v11055, 16
        %v11060 = vshrl.u32 %v11055, 16
        %vm11061 = vc.u32 %v11053, %v11057
        %v11062 = vsel %vm11061, 1, 0
        %v11063 = vadd.s32 %v11053, %v11057
        %v11064 = vadd.s32 %v11056, %v11062
        %vm11065 = vc.u32 %v11063, %v11059
        %v11066 = vsel %vm11065, 1, 0
        %v11067 = vadd.s32 %v11063, %v11059
        %v11068 = vadd.s32 %v11064, %v11066
        %v11069 = vadd.s32 %v11068, %v11058
        %v11070 = vadd.s32 %v11069, %v11060
        %v11071 = vmul.u32 %v11026, %v11017
        %v11072 = vadd.s32 %v11048, %v11067
        %vm11073 = vc.u32 %v11048, %v11067
        %v11074 = vadd.s32 %v11070, 1
        %v11075 = vsel %vm11073, %v11074, %v11070
        %v11076 = vadd.s32 %v11071, %v11075
        %v11077 = vadd.s32 %v11076, 536870912
        %v11078 = vshrl.u32 %v11077, 30
        %v11079 = vshll.u32 %v11078, 30
        %v11080 = vsub.s32 %v11076, %v11079
        %vm11081 = vcmp.lt.s32.totalorder %v11080, 0
        %v11082 = vsub.s32 0, %v11080
        %v11083 = vsel %vm11081, %v11082, %v11080
        %v11084 = vclz %v11083
        %v11085 = vsub.s32 %v11084, 2
        %vm11086 = vcmp.gt.s32.totalorder 0, %v11085
        %v11087 = vsel %vm11086, 0, %v11085
        %v11088 = vsub.s32 32, %v11087
        %v11089 = vshll.u32 %v11080, %v11087
        %v11090 = vshrl.u32 %v11072, %v11088
        %v11091 = vor.u32 %v11089, %v11090
        %v11092 = vsub.s32 4294967266, %v11087
        %v11093 = vadd.s32 %v11092, 127
        %v11094 = vshll.u32 %v11093, 23
        %v11095 = vor.u32 4788187, %v11094
        %v11096 = vand.u32 2147483647, %v11095
        %v11098 = vcvt.s32.f32 %v11091
        %v11099 = vmul.f32 %v11098, %v11096
        %v11100 = vxor.u32 %v11099, 2147483648
        %v11101 = vsel %vm10980, %v11100, %v11099
        %v11102 = vsub.s32 4, %v11078
        %v11103 = vsel %vm10980, %v11102, %v11078
        %v11104 = vsel %vm10979, %v1552, %v11101
        %v11105 = vsel %vm10979, 0, %v11103
        %v11106 = vmul.f32 %v11104, %v11104
        %v11107 = vmul.f32 %v11106, -0.001358992
        %v11108 = vadd.f32 %v11107, 0.041655596
        %v11109 = vmul.f32 %v11106, %v11108
        %v11110 = vadd.f32 %v11109, -0.4999988
        %v11111 = vmul.f32 %v11106, %v11110
        %v11112 = vadd.f32 1.0, %v11111
        %v11113 = vmul.f32 %v11104, %v11104
        %v11114 = vmul.f32 %v11113, -0.00019511016
        %v11115 = vadd.f32 %v11114, 0.008332121
        %v11116 = vmul.f32 %v11113, %v11115
        %v11117 = vadd.f32 %v11116, -0.16666654
        %v11118 = vmul.f32 %v11113, %v11117
        %v11119 = vadd.f32 %v11118, 1.0
        %v11120 = vmul.f32 %v11119, %v11104
        %vm11121 = vweird.f32 %v1552
        %v11122 = vadd.s32 %v11105, 3
        %v11123 = vand.u32 %v11122, 3
        %vm11124 = vcmp.lt.s32.totalorder %v11123, 2
        %vm11125 = vcmp.eq.s32.totalorder %v11123, 0
        %v11126 = vxor.u32 %v11120, 2147483648
        %v11127 = vsel %vm11125, %v11112, %v11126
        %vm11128 = vcmp.eq.s32.totalorder %v11123, 2
        %v11129 = vxor.u32 %v11112, 2147483648
        %v11130 = vsel %vm11128, %v11129, %v11120
        %v11131 = vsel %vm11124, %v11127, %v11130
        %v11132 = vsel %vm11121, nan, %v11131
        %v11133 = vand.u32 2147483647, %v1553
        %vm11134 = vcmp.le.f32.partialorder %v11133, 0.7853982
        %vm11135 = vcmp.lt.s32.totalorder %v1553, 0
        %v11136 = vand.u32 %v1553, 2139095040
        %v11137 = vshrl.u32 %v11136, 23
        %v11138 = vsub.s32 %v11137, 127
        %v11139 = vand.u32 2147483647, %v1553
        %v11140 = vand.u32 %v11139, 8388607
        %v11141 = vor.u32 %v11140, 8388608
        %v11142 = vsub.s32 0, %v11141
        %v11143 = vadd.s32 %v11138, 1
        %vm11144 = vcmp.gt.s32.totalorder %v11143, 0
        %v11145 = vsel %vm11144, %v11143, 0
        %v11146 = vshrl.u32 %v11145, 5
        %v11147 = vand.u32 %v11145, 31
        %v11148 = vsub.s32 32, %v11147
        %v11149 = vshrl.u32 683565275, %v11148
        %v11150 = vshll.u32 683565275, %v11147
        %v11151 = vshrl.u32 2475754826, %v11148
        %v11152 = vor.u32 %v11150, %v11151
        %v11153 = vshll.u32 2475754826, %v11147
        %v11154 = vshrl.u32 2131351028, %v11148
        %v11155 = vor.u32 %v11153, %v11154
        %v11156 = vshll.u32 2131351028, %v11147
        %v11157 = vshrl.u32 2102212464, %v11148
        %v11158 = vor.u32 %v11156, %v11157
        %v11159 = vshll.u32 2102212464, %v11147
        %v11160 = vshrl.u32 920167782, %v11148
        %v11161 = vor.u32 %v11159, %v11160
        %v11162 = vshll.u32 920167782, %v11147
        %v11163 = vshrl.u32 1326507024, %v11148
        %v11164 = vor.u32 %v11162, %v11163
        %vm11165 = vcmp.lt.s32.totalorder %v11146, 1
        %vm11166 = vcmp.lt.s32.totalorder %v11146, 2
        %vm11167 = vcmp.lt.s32.totalorder %v11146, 3
        %vm11168 = vcmp.lt.s32.totalorder %v11146, 4
        %v11169 = vsel %vm11165, %v11149, %v11152
        %v11170 = vsel %vm11168, %v11158, 2102212464
        %v11171 = vsel %vm11167, %v11155, %v11170
        %v11172 = vsel %vm11166, %v11169, %v11171
        %v11173 = vsel %vm11165, %v11152, %v11155
        %v11174 = vsel %vm11168, %v11161, 920167782
        %v11175 = vsel %vm11167, %v11158, %v11174
        %v11176 = vsel %vm11166, %v11173, %v11175
        %v11177 = vsel %vm11165, %v11155, %v11158
        %v11178 = vsel %vm11168, %v11164, 1326507024
        %v11179 = vsel %vm11167, %v11161, %v11178
        %v11180 = vsel %vm11166, %v11177, %v11179
        %v11181 = vshll.u32 %v11141, 8
        %v11182 = vand.u32 %v11181, 65535
        %v11183 = vshrl.u32 %v11181, 16
        %v11184 = vand.u32 %v11180, 65535
        %v11185 = vshrl.u32 %v11180, 16
        %v11186 = vmul.u32 %v11182, %v11184
        %v11187 = vmul.u32 %v11182, %v11185
        %v11188 = vmul.u32 %v11183, %v11184
        %v11189 = vmul.u32 %v11183, %v11185
        %v11190 = vshll.u32 %v11187, 16
        %v11191 = vshrl.u32 %v11187, 16
        %v11192 = vshll.u32 %v11188, 16
        %v11193 = vshrl.u32 %v11188, 16
        %vm11194 = vc.u32 %v11186, %v11190
        %v11195 = vsel %vm11194, 1, 0
        %v11196 = vadd.s32 %v11186, %v11190
        %v11197 = vadd.s32 %v11189, %v11195
        %vm11198 = vc.u32 %v11196, %v11192
        %v11199 = vsel %vm11198, 1, 0
        %v11200 = vadd.s32 %v11196, %v11192
        %v11201 = vadd.s32 %v11197, %v11199
        %v11202 = vadd.s32 %v11201, %v11191
        %v11203 = vadd.s32 %v11202, %v11193
        %v11204 = vand.u32 %v11181, 65535
        %v11205 = vshrl.u32 %v11181, 16
        %v11206 = vand.u32 %v11176, 65535
        %v11207 = vshrl.u32 %v11176, 16
        %v11208 = vmul.u32 %v11204, %v11206
        %v11209 = vmul.u32 %v11204, %v11207
        %v11210 = vmul.u32 %v11205, %v11206
        %v11211 = vmul.u32 %v11205, %v11207
        %v11212 = vshll.u32 %v11209, 16
        %v11213 = vshrl.u32 %v11209, 16
        %v11214 = vshll.u32 %v11210, 16
        %v11215 = vshrl.u32 %v11210, 16
        %vm11216 = vc.u32 %v11208, %v11212
        %v11217 = vsel %vm11216, 1, 0
        %v11218 = vadd.s32 %v11208, %v11212
        %v11219 = vadd.s32 %v11211, %v11217
        %vm11220 = vc.u32 %v11218, %v11214
        %v11221 = vsel %vm11220, 1, 0
        %v11222 = vadd.s32 %v11218, %v11214
        %v11223 = vadd.s32 %v11219, %v11221
        %v11224 = vadd.s32 %v11223, %v11213
        %v11225 = vadd.s32 %v11224, %v11215
        %v11226 = vmul.u32 %v11181, %v11172
        %v11227 = vadd.s32 %v11203, %v11222
        %vm11228 = vc.u32 %v11203, %v11222
        %v11229 = vadd.s32 %v11225, 1
        %v11230 = vsel %vm11228, %v11229, %v11225
        %v11231 = vadd.s32 %v11226, %v11230
        %v11232 = vadd.s32 %v11231, 536870912
        %v11233 = vshrl.u32 %v11232, 30
        %v11234 = vshll.u32 %v11233, 30
        %v11235 = vsub.s32 %v11231, %v11234
        %vm11236 = vcmp.lt.s32.totalorder %v11235, 0
        %v11237 = vsub.s32 0, %v11235
        %v11238 = vsel %vm11236, %v11237, %v11235
        %v11239 = vclz %v11238
        %v11240 = vsub.s32 %v11239, 2
        %vm11241 = vcmp.gt.s32.totalorder 0, %v11240
        %v11242 = vsel %vm11241, 0, %v11240
        %v11243 = vsub.s32 32, %v11242
        %v11244 = vshll.u32 %v11235, %v11242
        %v11245 = vshrl.u32 %v11227, %v11243
        %v11246 = vor.u32 %v11244, %v11245
        %v11247 = vsub.s32 4294967266, %v11242
        %v11248 = vadd.s32 %v11247, 127
        %v11249 = vshll.u32 %v11248, 23
        %v11250 = vor.u32 4788187, %v11249
        %v11251 = vand.u32 2147483647, %v11250
        %v11253 = vcvt.s32.f32 %v11246
        %v11254 = vmul.f32 %v11253, %v11251
        %v11255 = vxor.u32 %v11254, 2147483648
        %v11256 = vsel %vm11135, %v11255, %v11254
        %v11257 = vsub.s32 4, %v11233
        %v11258 = vsel %vm11135, %v11257, %v11233
        %v11259 = vsel %vm11134, %v1553, %v11256
        %v11260 = vsel %vm11134, 0, %v11258
        %v11261 = vmul.f32 %v11259, %v11259
        %v11262 = vmul.f32 %v11261, -0.001358992
        %v11263 = vadd.f32 %v11262, 0.041655596
        %v11264 = vmul.f32 %v11261, %v11263
        %v11265 = vadd.f32 %v11264, -0.4999988
        %v11266 = vmul.f32 %v11261, %v11265
        %v11267 = vadd.f32 1.0, %v11266
        %v11268 = vmul.f32 %v11259, %v11259
        %v11269 = vmul.f32 %v11268, -0.00019511016
        %v11270 = vadd.f32 %v11269, 0.008332121
        %v11271 = vmul.f32 %v11268, %v11270
        %v11272 = vadd.f32 %v11271, -0.16666654
        %v11273 = vmul.f32 %v11268, %v11272
        %v11274 = vadd.f32 %v11273, 1.0
        %v11275 = vmul.f32 %v11274, %v11259
        %vm11276 = vweird.f32 %v1553
        %v11277 = vadd.s32 %v11260, 3
        %v11278 = vand.u32 %v11277, 3
        %vm11279 = vcmp.lt.s32.totalorder %v11278, 2
        %vm11280 = vcmp.eq.s32.totalorder %v11278, 0
        %v11281 = vxor.u32 %v11275, 2147483648
        %v11282 = vsel %vm11280, %v11267, %v11281
        %vm11283 = vcmp.eq.s32.totalorder %v11278, 2
        %v11284 = vxor.u32 %v11267, 2147483648
        %v11285 = vsel %vm11283, %v11284, %v11275
        %v11286 = vsel %vm11279, %v11282, %v11285
        %v11287 = vsel %vm11276, nan, %v11286
        %v11288 = vand.u32 2147483647, %v1554
        %vm11289 = vcmp.le.f32.partialorder %v11288, 0.7853982
        %vm11290 = vcmp.lt.s32.totalorder %v1554, 0
        %v11291 = vand.u32 %v1554, 2139095040
        %v11292 = vshrl.u32 %v11291, 23
        %v11293 = vsub.s32 %v11292, 127
        %v11294 = vand.u32 2147483647, %v1554
        %v11295 = vand.u32 %v11294, 8388607
        %v11296 = vor.u32 %v11295, 8388608
        %v11297 = vsub.s32 0, %v11296
        %v11298 = vadd.s32 %v11293, 1
        %vm11299 = vcmp.gt.s32.totalorder %v11298, 0
        %v11300 = vsel %vm11299, %v11298, 0
        %v11301 = vshrl.u32 %v11300, 5
        %v11302 = vand.u32 %v11300, 31
        %v11303 = vsub.s32 32, %v11302
        %v11304 = vshrl.u32 683565275, %v11303
        %v11305 = vshll.u32 683565275, %v11302
        %v11306 = vshrl.u32 2475754826, %v11303
        %v11307 = vor.u32 %v11305, %v11306
        %v11308 = vshll.u32 2475754826, %v11302
        %v11309 = vshrl.u32 2131351028, %v11303
        %v11310 = vor.u32 %v11308, %v11309
        %v11311 = vshll.u32 2131351028, %v11302
        %v11312 = vshrl.u32 2102212464, %v11303
        %v11313 = vor.u32 %v11311, %v11312
        %v11314 = vshll.u32 2102212464, %v11302
        %v11315 = vshrl.u32 920167782, %v11303
        %v11316 = vor.u32 %v11314, %v11315
        %v11317 = vshll.u32 920167782, %v11302
        %v11318 = vshrl.u32 1326507024, %v11303
        %v11319 = vor.u32 %v11317, %v11318
        %vm11320 = vcmp.lt.s32.totalorder %v11301, 1
        %vm11321 = vcmp.lt.s32.totalorder %v11301, 2
        %vm11322 = vcmp.lt.s32.totalorder %v11301, 3
        %vm11323 = vcmp.lt.s32.totalorder %v11301, 4
        %v11324 = vsel %vm11320, %v11304, %v11307
        %v11325 = vsel %vm11323, %v11313, 2102212464
        %v11326 = vsel %vm11322, %v11310, %v11325
        %v11327 = vsel %vm11321, %v11324, %v11326
        %v11328 = vsel %vm11320, %v11307, %v11310
        %v11329 = vsel %vm11323, %v11316, 920167782
        %v11330 = vsel %vm11322, %v11313, %v11329
        %v11331 = vsel %vm11321, %v11328, %v11330
        %v11332 = vsel %vm11320, %v11310, %v11313
        %v11333 = vsel %vm11323, %v11319, 1326507024
        %v11334 = vsel %vm11322, %v11316, %v11333
        %v11335 = vsel %vm11321, %v11332, %v11334
        %v11336 = vshll.u32 %v11296, 8
        %v11337 = vand.u32 %v11336, 65535
        %v11338 = vshrl.u32 %v11336, 16
        %v11339 = vand.u32 %v11335, 65535
        %v11340 = vshrl.u32 %v11335, 16
        %v11341 = vmul.u32 %v11337, %v11339
        %v11342 = vmul.u32 %v11337, %v11340
        %v11343 = vmul.u32 %v11338, %v11339
        %v11344 = vmul.u32 %v11338, %v11340
        %v11345 = vshll.u32 %v11342, 16
        %v11346 = vshrl.u32 %v11342, 16
        %v11347 = vshll.u32 %v11343, 16
        %v11348 = vshrl.u32 %v11343, 16
        %vm11349 = vc.u32 %v11341, %v11345
        %v11350 = vsel %vm11349, 1, 0
        %v11351 = vadd.s32 %v11341, %v11345
        %v11352 = vadd.s32 %v11344, %v11350
        %vm11353 = vc.u32 %v11351, %v11347
        %v11354 = vsel %vm11353, 1, 0
        %v11355 = vadd.s32 %v11351, %v11347
        %v11356 = vadd.s32 %v11352, %v11354
        %v11357 = vadd.s32 %v11356, %v11346
        %v11358 = vadd.s32 %v11357, %v11348
        %v11359 = vand.u32 %v11336, 65535
        %v11360 = vshrl.u32 %v11336, 16
        %v11361 = vand.u32 %v11331, 65535
        %v11362 = vshrl.u32 %v11331, 16
        %v11363 = vmul.u32 %v11359, %v11361
        %v11364 = vmul.u32 %v11359, %v11362
        %v11365 = vmul.u32 %v11360, %v11361
        %v11366 = vmul.u32 %v11360, %v11362
        %v11367 = vshll.u32 %v11364, 16
        %v11368 = vshrl.u32 %v11364, 16
        %v11369 = vshll.u32 %v11365, 16
        %v11370 = vshrl.u32 %v11365, 16
        %vm11371 = vc.u32 %v11363, %v11367
        %v11372 = vsel %vm11371, 1, 0
        %v11373 = vadd.s32 %v11363, %v11367
        %v11374 = vadd.s32 %v11366, %v11372
        %vm11375 = vc.u32 %v11373, %v11369
        %v11376 = vsel %vm11375, 1, 0
        %v11377 = vadd.s32 %v11373, %v11369
        %v11378 = vadd.s32 %v11374, %v11376
        %v11379 = vadd.s32 %v11378, %v11368
        %v11380 = vadd.s32 %v11379, %v11370
        %v11381 = vmul.u32 %v11336, %v11327
        %v11382 = vadd.s32 %v11358, %v11377
        %vm11383 = vc.u32 %v11358, %v11377
        %v11384 = vadd.s32 %v11380, 1
        %v11385 = vsel %vm11383, %v11384, %v11380
        %v11386 = vadd.s32 %v11381, %v11385
        %v11387 = vadd.s32 %v11386, 536870912
        %v11388 = vshrl.u32 %v11387, 30
        %v11389 = vshll.u32 %v11388, 30
        %v11390 = vsub.s32 %v11386, %v11389
        %vm11391 = vcmp.lt.s32.totalorder %v11390, 0
        %v11392 = vsub.s32 0, %v11390
        %v11393 = vsel %vm11391, %v11392, %v11390
        %v11394 = vclz %v11393
        %v11395 = vsub.s32 %v11394, 2
        %vm11396 = vcmp.gt.s32.totalorder 0, %v11395
        %v11397 = vsel %vm11396, 0, %v11395
        %v11398 = vsub.s32 32, %v11397
        %v11399 = vshll.u32 %v11390, %v11397
        %v11400 = vshrl.u32 %v11382, %v11398
        %v11401 = vor.u32 %v11399, %v11400
        %v11402 = vsub.s32 4294967266, %v11397
        %v11403 = vadd.s32 %v11402, 127
        %v11404 = vshll.u32 %v11403, 23
        %v11405 = vor.u32 4788187, %v11404
        %v11406 = vand.u32 2147483647, %v11405
        %v11408 = vcvt.s32.f32 %v11401
        %v11409 = vmul.f32 %v11408, %v11406
        %v11410 = vxor.u32 %v11409, 2147483648
        %v11411 = vsel %vm11290, %v11410, %v11409
        %v11412 = vsub.s32 4, %v11388
        %v11413 = vsel %vm11290, %v11412, %v11388
        %v11414 = vsel %vm11289, %v1554, %v11411
        %v11415 = vsel %vm11289, 0, %v11413
        %v11416 = vmul.f32 %v11414, %v11414
        %v11417 = vmul.f32 %v11416, -0.001358992
        %v11418 = vadd.f32 %v11417, 0.041655596
        %v11419 = vmul.f32 %v11416, %v11418
        %v11420 = vadd.f32 %v11419, -0.4999988
        %v11421 = vmul.f32 %v11416, %v11420
        %v11422 = vadd.f32 1.0, %v11421
        %v11423 = vmul.f32 %v11414, %v11414
        %v11424 = vmul.f32 %v11423, -0.00019511016
        %v11425 = vadd.f32 %v11424, 0.008332121
        %v11426 = vmul.f32 %v11423, %v11425
        %v11427 = vadd.f32 %v11426, -0.16666654
        %v11428 = vmul.f32 %v11423, %v11427
        %v11429 = vadd.f32 %v11428, 1.0
        %v11430 = vmul.f32 %v11429, %v11414
        %vm11431 = vweird.f32 %v1554
        %v11432 = vadd.s32 %v11415, 3
        %v11433 = vand.u32 %v11432, 3
        %vm11434 = vcmp.lt.s32.totalorder %v11433, 2
        %vm11435 = vcmp.eq.s32.totalorder %v11433, 0
        %v11436 = vxor.u32 %v11430, 2147483648
        %v11437 = vsel %vm11435, %v11422, %v11436
        %vm11438 = vcmp.eq.s32.totalorder %v11433, 2
        %v11439 = vxor.u32 %v11422, 2147483648
        %v11440 = vsel %vm11438, %v11439, %v11430
        %v11441 = vsel %vm11434, %v11437, %v11440
        %v11442 = vsel %vm11431, nan, %v11441
        %v11443 = vpack.c.bf16 %v1862, %v1708
        %v11444 = vpack.c.bf16 %v6792, %v6637
        %v11445 = vpack.c.bf16 %v2170, %v2016
        %v11446 = vpack.c.bf16 %v7102, %v6947
        %v11447 = vpack.c.bf16 %v2478, %v2324
        %v11448 = vpack.c.bf16 %v7412, %v7257
        %v11449 = vpack.c.bf16 %v2786, %v2632
        %v11450 = vpack.c.bf16 %v7722, %v7567
        %v11451 = vpack.c.bf16 %v3094, %v2940
        %v11452 = vpack.c.bf16 %v8032, %v7877
        %v11453 = vpack.c.bf16 %v3402, %v3248
        %v11454 = vpack.c.bf16 %v8342, %v8187
        %v11455 = vpack.c.bf16 %v3710, %v3556
        %v11456 = vpack.c.bf16 %v8652, %v8497
        %v11457 = vpack.c.bf16 %v4018, %v3864
        %v11458 = vpack.c.bf16 %v8962, %v8807
        %v11459 = vpack.c.bf16 %v4326, %v4172
        %v11460 = vpack.c.bf16 %v9272, %v9117
        %v11461 = vpack.c.bf16 %v4634, %v4480
        %v11462 = vpack.c.bf16 %v9582, %v9427
        %v11463 = vpack.c.bf16 %v4942, %v4788
        %v11464 = vpack.c.bf16 %v9892, %v9737
        %v11465 = vpack.c.bf16 %v5250, %v5096
        %v11466 = vpack.c.bf16 %v10202, %v10047
        %v11467 = vpack.c.bf16 %v5558, %v5404
        %v11468 = vpack.c.bf16 %v10512, %v10357
        %v11469 = vpack.c.bf16 %v5866, %v5712
        %v11470 = vpack.c.bf16 %v10822, %v10667
        %v11471 = vpack.c.bf16 %v6174, %v6020
        %v11472 = vpack.c.bf16 %v11132, %v10977
        %v11473 = vpack.c.bf16 %v6482, %v6328
        %v11474 = vpack.c.bf16 %v11442, %v11287
        %v11475 = vld [vmem:[%s1] sm:$0xf]
        %v11476 = vld [vmem:[%s1 + $0x4] sm:$0xf]
        %v11477 = vld [vmem:[%s1 + $0x8] sm:$0xf]
        %v11478 = vld [vmem:[%s1 + $0xc] sm:$0xf]
        %v11479 = vld [vmem:[%s1 + $0x10] sm:$0xf]
        %v11480 = vld [vmem:[%s1 + $0x14] sm:$0xf]
        %v11481 = vld [vmem:[%s1 + $0x18] sm:$0xf]
        %v11482 = vld [vmem:[%s1 + $0x1c] sm:$0xf]
        %v11483 = vld [vmem:[%s1 + $0x20] sm:$0xf]
        %v11484 = vld [vmem:[%s1 + $0x24] sm:$0xf]
        %v11485 = vld [vmem:[%s1 + $0x28] sm:$0xf]
        %v11486 = vld [vmem:[%s1 + $0x2c] sm:$0xf]
        %v11487 = vld [vmem:[%s1 + $0x30] sm:$0xf]
        %v11488 = vld [vmem:[%s1 + $0x34] sm:$0xf]
        %v11489 = vld [vmem:[%s1 + $0x38] sm:$0xf]
        %v11490 = vld [vmem:[%s1 + $0x3c] sm:$0xf]
        %v11491 = vld [vmem:[%s1 + $0x40] sm:$0xf]
        %v11492 = vld [vmem:[%s1 + $0x44] sm:$0xf]
        %v11493 = vld [vmem:[%s1 + $0x48] sm:$0xf]
        %v11494 = vld [vmem:[%s1 + $0x4c] sm:$0xf]
        %v11495 = vld [vmem:[%s1 + $0x50] sm:$0xf]
        %v11496 = vld [vmem:[%s1 + $0x54] sm:$0xf]
        %v11497 = vld [vmem:[%s1 + $0x58] sm:$0xf]
        %v11498 = vld [vmem:[%s1 + $0x5c] sm:$0xf]
        %v11499 = vld [vmem:[%s1 + $0x60] sm:$0xf]
        %v11500 = vld [vmem:[%s1 + $0x64] sm:$0xf]
        %v11501 = vld [vmem:[%s1 + $0x68] sm:$0xf]
        %v11502 = vld [vmem:[%s1 + $0x6c] sm:$0xf]
        %v11503 = vld [vmem:[%s1 + $0x70] sm:$0xf]
        %v11504 = vld [vmem:[%s1 + $0x74] sm:$0xf]
        %v11505 = vld [vmem:[%s1 + $0x78] sm:$0xf]
        %v11506 = vld [vmem:[%s1 + $0x7c] sm:$0xf]
        %v11507 = vld [vmem:[%s2] sm:$0x1]
        %v11509 = vperm.slane %v11507, 0
        %v11543 = vunpack.c.l.b16 %v11475
        %v11544 = vunpack.c.l.b16 %v11476
        %v11545 = vunpack.c.l.b16 %v11477
        %v11546 = vunpack.c.l.b16 %v11478
        %v11547 = vunpack.c.l.b16 %v11479
        %v11548 = vunpack.c.l.b16 %v11480
        %v11549 = vunpack.c.l.b16 %v11481
        %v11550 = vunpack.c.l.b16 %v11482
        %v11551 = vunpack.c.l.b16 %v11483
        %v11552 = vunpack.c.l.b16 %v11484
        %v11553 = vunpack.c.l.b16 %v11485
        %v11554 = vunpack.c.l.b16 %v11486
        %v11555 = vunpack.c.l.b16 %v11487
        %v11556 = vunpack.c.l.b16 %v11488
        %v11557 = vunpack.c.l.b16 %v11489
        %v11558 = vunpack.c.l.b16 %v11490
        %v11559 = vunpack.c.l.b16 %v11491
        %v11560 = vunpack.c.l.b16 %v11492
        %v11561 = vunpack.c.l.b16 %v11493
        %v11562 = vunpack.c.l.b16 %v11494
        %v11563 = vunpack.c.l.b16 %v11495
        %v11564 = vunpack.c.l.b16 %v11496
        %v11565 = vunpack.c.l.b16 %v11497
        %v11566 = vunpack.c.l.b16 %v11498
        %v11567 = vunpack.c.l.b16 %v11499
        %v11568 = vunpack.c.l.b16 %v11500
        %v11569 = vunpack.c.l.b16 %v11501
        %v11570 = vunpack.c.l.b16 %v11502
        %v11571 = vunpack.c.l.b16 %v11503
        %v11572 = vunpack.c.l.b16 %v11504
        %v11573 = vunpack.c.l.b16 %v11505
        %v11574 = vunpack.c.l.b16 %v11506
        %v11575 = vpack.c.b16 %v11544, %v11543
        %v11576 = vpack.c.b16 %v11546, %v11545
        %v11577 = vpack.c.b16 %v11548, %v11547
        %v11578 = vpack.c.b16 %v11550, %v11549
        %v11579 = vpack.c.b16 %v11552, %v11551
        %v11580 = vpack.c.b16 %v11554, %v11553
        %v11581 = vpack.c.b16 %v11556, %v11555
        %v11582 = vpack.c.b16 %v11558, %v11557
        %v11583 = vpack.c.b16 %v11560, %v11559
        %v11584 = vpack.c.b16 %v11562, %v11561
        %v11585 = vpack.c.b16 %v11564, %v11563
        %v11586 = vpack.c.b16 %v11566, %v11565
        %v11587 = vpack.c.b16 %v11568, %v11567
        %v11588 = vpack.c.b16 %v11570, %v11569
        %v11589 = vpack.c.b16 %v11572, %v11571
        %v11590 = vpack.c.b16 %v11574, %v11573
        %11607 = vmatpush.bf16.msra.mxu0 %v11582
        %11608 = vmatpush.bf16.msra.mxu0 %v11581
        %11609 = vmatpush.bf16.msra.mxu0 %v11580
        %11610 = vmatpush.bf16.msra.mxu0 %v11579
        %11611 = vmatpush.bf16.msra.mxu0 %v11578
        %11612 = vmatpush.bf16.msra.mxu0 %v11577
        %11613 = vmatpush.bf16.msra.mxu0 %v11576
        %11614 = vmatpush.bf16.msra.mxu0 %v11575
        %11615 = vmatmul.bf16.gmra.mxu0 %v11443
        %v11616 = vpop.f32.mrf.mxu0
        %v11617 = vadd.f32 %v11509, %v11616
        %v11618 = vpop.f32.mrf.mxu0
        %v11619 = vadd.f32 %v11509, %v11618
        %11620 = vmatmul.bf16.gmra.mxu0 %v11445
        %v11621 = vpop.f32.mrf.mxu0
        %v11622 = vadd.f32 %v11509, %v11621
        %v11623 = vpop.f32.mrf.mxu0
        %v11624 = vadd.f32 %v11509, %v11623
        %11625 = vmatmul.bf16.gmra.mxu0 %v11447
        %v11626 = vpop.f32.mrf.mxu0
        %v11627 = vadd.f32 %v11509, %v11626
        %v11628 = vpop.f32.mrf.mxu0
        %v11629 = vadd.f32 %v11509, %v11628
        %11630 = vmatmul.bf16.gmra.mxu0 %v11449
        %v11631 = vpop.f32.mrf.mxu0
        %v11632 = vadd.f32 %v11509, %v11631
        %v11633 = vpop.f32.mrf.mxu0
        %v11634 = vadd.f32 %v11509, %v11633
        %11635 = vmatmul.bf16.gmra.mxu0 %v11451
        %v11636 = vpop.f32.mrf.mxu0
        %v11637 = vadd.f32 %v11509, %v11636
        %v11638 = vpop.f32.mrf.mxu0
        %v11639 = vadd.f32 %v11509, %v11638
        %11640 = vmatmul.bf16.gmra.mxu0 %v11453
        %v11641 = vpop.f32.mrf.mxu0
        %v11642 = vadd.f32 %v11509, %v11641
        %v11643 = vpop.f32.mrf.mxu0
        %v11644 = vadd.f32 %v11509, %v11643
        %11645 = vmatmul.bf16.gmra.mxu0 %v11455
        %v11646 = vpop.f32.mrf.mxu0
        %v11647 = vadd.f32 %v11509, %v11646
        %v11648 = vpop.f32.mrf.mxu0
        %v11649 = vadd.f32 %v11509, %v11648
        %11650 = vmatmul.bf16.gmra.mxu0 %v11457
        %v11651 = vpop.f32.mrf.mxu0
        %v11652 = vadd.f32 %v11509, %v11651
        %v11653 = vpop.f32.mrf.mxu0
        %v11654 = vadd.f32 %v11509, %v11653
        %11655 = vmatmul.bf16.gmra.mxu0 %v11459
        %v11656 = vpop.f32.mrf.mxu0
        %v11657 = vadd.f32 %v11509, %v11656
        %v11658 = vpop.f32.mrf.mxu0
        %v11659 = vadd.f32 %v11509, %v11658
        %11660 = vmatmul.bf16.gmra.mxu0 %v11461
        %v11661 = vpop.f32.mrf.mxu0
        %v11662 = vadd.f32 %v11509, %v11661
        %v11663 = vpop.f32.mrf.mxu0
        %v11664 = vadd.f32 %v11509, %v11663
        %11665 = vmatmul.bf16.gmra.mxu0 %v11463
        %v11666 = vpop.f32.mrf.mxu0
        %v11667 = vadd.f32 %v11509, %v11666
        %v11668 = vpop.f32.mrf.mxu0
        %v11669 = vadd.f32 %v11509, %v11668
        %11670 = vmatmul.bf16.gmra.mxu0 %v11465
        %v11671 = vpop.f32.mrf.mxu0
        %v11672 = vadd.f32 %v11509, %v11671
        %v11673 = vpop.f32.mrf.mxu0
        %v11674 = vadd.f32 %v11509, %v11673
        %11675 = vmatmul.bf16.gmra.mxu0 %v11467
        %v11676 = vpop.f32.mrf.mxu0
        %v11677 = vadd.f32 %v11509, %v11676
        %v11678 = vpop.f32.mrf.mxu0
        %v11679 = vadd.f32 %v11509, %v11678
        %11680 = vmatmul.bf16.gmra.mxu0 %v11469
        %v11681 = vpop.f32.mrf.mxu0
        %v11682 = vadd.f32 %v11509, %v11681
        %v11683 = vpop.f32.mrf.mxu0
        %v11684 = vadd.f32 %v11509, %v11683
        %11685 = vmatmul.bf16.gmra.mxu0 %v11471
        %v11686 = vpop.f32.mrf.mxu0
        %v11687 = vadd.f32 %v11509, %v11686
        %v11688 = vpop.f32.mrf.mxu0
        %v11689 = vadd.f32 %v11509, %v11688
        %11690 = vmatmul.bf16.gmra.mxu0 %v11473
        %v11691 = vpop.f32.mrf.mxu0
        %v11692 = vadd.f32 %v11509, %v11691
        %v11693 = vpop.f32.mrf.mxu0
        %v11694 = vadd.f32 %v11509, %v11693
        %11695 = vdwg.mxu0
        %11696 = vmatpush.bf16.msra.mxu0 %v11590
        %11697 = vmatpush.bf16.msra.mxu0 %v11589
        %11698 = vmatpush.bf16.msra.mxu0 %v11588
        %11699 = vmatpush.bf16.msra.mxu0 %v11587
        %11700 = vmatpush.bf16.msra.mxu0 %v11586
        %11701 = vmatpush.bf16.msra.mxu0 %v11585
        %11702 = vmatpush.bf16.msra.mxu0 %v11584
        %11703 = vmatpush.bf16.msra.mxu0 %v11583
        %11704 = vmatmul.bf16.gmra.mxu0 %v11444
        %v11705 = vpop.f32.mrf.mxu0
        %v11706 = vadd.f32 %v11617, %v11705
        %v11707 = vpop.f32.mrf.mxu0
        %v11708 = vadd.f32 %v11619, %v11707
        %11709 = vmatmul.bf16.gmra.mxu0 %v11446
        %v11710 = vpop.f32.mrf.mxu0
        %v11711 = vadd.f32 %v11622, %v11710
        %v11712 = vpop.f32.mrf.mxu0
        %v11713 = vadd.f32 %v11624, %v11712
        %11714 = vmatmul.bf16.gmra.mxu0 %v11448
        %v11715 = vpop.f32.mrf.mxu0
        %v11716 = vadd.f32 %v11627, %v11715
        %v11717 = vpop.f32.mrf.mxu0
        %v11718 = vadd.f32 %v11629, %v11717
        %11719 = vmatmul.bf16.gmra.mxu0 %v11450
        %v11720 = vpop.f32.mrf.mxu0
        %v11721 = vadd.f32 %v11632, %v11720
        %v11722 = vpop.f32.mrf.mxu0
        %v11723 = vadd.f32 %v11634, %v11722
        %11724 = vmatmul.bf16.gmra.mxu0 %v11452
        %v11725 = vpop.f32.mrf.mxu0
        %v11726 = vadd.f32 %v11637, %v11725
        %v11727 = vpop.f32.mrf.mxu0
        %v11728 = vadd.f32 %v11639, %v11727
        %11729 = vmatmul.bf16.gmra.mxu0 %v11454
        %v11730 = vpop.f32.mrf.mxu0
        %v11731 = vadd.f32 %v11642, %v11730
        %v11732 = vpop.f32.mrf.mxu0
        %v11733 = vadd.f32 %v11644, %v11732
        %11734 = vmatmul.bf16.gmra.mxu0 %v11456
        %v11735 = vpop.f32.mrf.mxu0
        %v11736 = vadd.f32 %v11647, %v11735
        %v11737 = vpop.f32.mrf.mxu0
        %v11738 = vadd.f32 %v11649, %v11737
        %11739 = vmatmul.bf16.gmra.mxu0 %v11458
        %v11740 = vpop.f32.mrf.mxu0
        %v11741 = vadd.f32 %v11652, %v11740
        %v11742 = vpop.f32.mrf.mxu0
        %v11743 = vadd.f32 %v11654, %v11742
        %11744 = vmatmul.bf16.gmra.mxu0 %v11460
        %v11745 = vpop.f32.mrf.mxu0
        %v11746 = vadd.f32 %v11657, %v11745
        %v11747 = vpop.f32.mrf.mxu0
        %v11748 = vadd.f32 %v11659, %v11747
        %11749 = vmatmul.bf16.gmra.mxu0 %v11462
        %v11750 = vpop.f32.mrf.mxu0
        %v11751 = vadd.f32 %v11662, %v11750
        %v11752 = vpop.f32.mrf.mxu0
        %v11753 = vadd.f32 %v11664, %v11752
        %11754 = vmatmul.bf16.gmra.mxu0 %v11464
        %v11755 = vpop.f32.mrf.mxu0
        %v11756 = vadd.f32 %v11667, %v11755
        %v11757 = vpop.f32.mrf.mxu0
        %v11758 = vadd.f32 %v11669, %v11757
        %11759 = vmatmul.bf16.gmra.mxu0 %v11466
        %v11760 = vpop.f32.mrf.mxu0
        %v11761 = vadd.f32 %v11672, %v11760
        %v11762 = vpop.f32.mrf.mxu0
        %v11763 = vadd.f32 %v11674, %v11762
        %11764 = vmatmul.bf16.gmra.mxu0 %v11468
        %v11765 = vpop.f32.mrf.mxu0
        %v11766 = vadd.f32 %v11677, %v11765
        %v11767 = vpop.f32.mrf.mxu0
        %v11768 = vadd.f32 %v11679, %v11767
        %11769 = vmatmul.bf16.gmra.mxu0 %v11470
        %v11770 = vpop.f32.mrf.mxu0
        %v11771 = vadd.f32 %v11682, %v11770
        %v11772 = vpop.f32.mrf.mxu0
        %v11773 = vadd.f32 %v11684, %v11772
        %11774 = vmatmul.bf16.gmra.mxu0 %v11472
        %v11775 = vpop.f32.mrf.mxu0
        %v11776 = vadd.f32 %v11687, %v11775
        %v11777 = vpop.f32.mrf.mxu0
        %v11778 = vadd.f32 %v11689, %v11777
        %11779 = vmatmul.bf16.gmra.mxu0 %v11474
        %v11780 = vpop.f32.mrf.mxu0
        %v11781 = vadd.f32 %v11692, %v11780
        %v11782 = vpop.f32.mrf.mxu0
        %v11783 = vadd.f32 %v11694, %v11782
        %11784 = vdwg.mxu0
        %11785 = vst [vmem:[%s164] sm:$0xff] %v11706
        %11786 = vst [vmem:[%s164 + $0x8] sm:$0xff] %v11708
        %11787 = vst [vmem:[%s164 + $0x10] sm:$0xff] %v11711
        %11788 = vst [vmem:[%s164 + $0x18] sm:$0xff] %v11713
        %11789 = vst [vmem:[%s164 + $0x20] sm:$0xff] %v11716
        %11790 = vst [vmem:[%s164 + $0x28] sm:$0xff] %v11718
        %11791 = vst [vmem:[%s164 + $0x30] sm:$0xff] %v11721
        %11792 = vst [vmem:[%s164 + $0x38] sm:$0xff] %v11723
        %11793 = vst [vmem:[%s164 + $0x40] sm:$0xff] %v11726
        %11794 = vst [vmem:[%s164 + $0x48] sm:$0xff] %v11728
        %11795 = vst [vmem:[%s164 + $0x50] sm:$0xff] %v11731
        %11796 = vst [vmem:[%s164 + $0x58] sm:$0xff] %v11733
        %11797 = vst [vmem:[%s164 + $0x60] sm:$0xff] %v11736
        %11798 = vst [vmem:[%s164 + $0x68] sm:$0xff] %v11738
        %11799 = vst [vmem:[%s164 + $0x70] sm:$0xff] %v11741
        %11800 = vst [vmem:[%s164 + $0x78] sm:$0xff] %v11743
        %11801 = vst [vmem:[%s164 + $0x80] sm:$0xff] %v11746
        %11802 = vst [vmem:[%s164 + $0x88] sm:$0xff] %v11748
        %11803 = vst [vmem:[%s164 + $0x90] sm:$0xff] %v11751
        %11804 = vst [vmem:[%s164 + $0x98] sm:$0xff] %v11753
        %11805 = vst [vmem:[%s164 + $0xa0] sm:$0xff] %v11756
        %11806 = vst [vmem:[%s164 + $0xa8] sm:$0xff] %v11758
        %11807 = vst [vmem:[%s164 + $0xb0] sm:$0xff] %v11761
        %11808 = vst [vmem:[%s164 + $0xb8] sm:$0xff] %v11763
        %11809 = vst [vmem:[%s164 + $0xc0] sm:$0xff] %v11766
        %11810 = vst [vmem:[%s164 + $0xc8] sm:$0xff] %v11768
        %11811 = vst [vmem:[%s164 + $0xd0] sm:$0xff] %v11771
        %11812 = vst [vmem:[%s164 + $0xd8] sm:$0xff] %v11773
        %11813 = vst [vmem:[%s164 + $0xe0] sm:$0xff] %v11776
        %11814 = vst [vmem:[%s164 + $0xe8] sm:$0xff] %v11778
        %11815 = vst [vmem:[%s164 + $0xf0] sm:$0xff] %v11781
        %11816 = vst [vmem:[%s164 + $0xf8] sm:$0xff] %v11783
        %s11817 = sand.u32 %s93, 1
        %s11818 = scalar_lea.sflag [#allocation3], %s11817
        %s11819 = sand.u32 %s93, 1
        %s11820 = smul.addr %s11819, 256
        %s11821 = scalar_lea.vmem [#allocation2], %s11820
        // Predicated region
        $region33: #{tpu_custom_call.1} parent=31 // pred_check
          %p11822 = pneg %p103
        $region34: #{tpu_custom_call.1} parent=31 // pred_check_branch
          %11824 = sbr.rel (%p11822) target = $region36
        $region35: #{tpu_custom_call.1} parent=31 // pred_region
          %s11825 = smul.u32 32, %s17
          %11827 = vsyncadd %s11818, 0
          %s11828 = smul.addr %s11825, 8
          %s11829 = scalar_lea.hbm %s3, %s11828
          %s11830 = sshll.u32 %s11821, 4
          %s11831 = int_to_ptr.vmem [resolvable:$true] %s11830
          %s11832 = sshll.u32 %s11829, 4
          %s11833 = int_to_ptr.hbm [resolvable:$true] %s11832
          %11838 = dma.vmem_to_hbm [thread:$0]  %s11831, 4096, %s11833, %s11818, 128, 128, 8
        $region36: #{tpu_custom_call.1} parent=31 // pred_fallthru
          _
      $region32: #{tpu_custom_call.1} parent=5 // pred_fallthru
        _
      %p11839 = scmp.le.s32.totalorder 2, %s12
      // Predicated region
      $region37: #{tpu_custom_call.1} parent=5 // pred_check
        %p11840 = pneg %p11839
      $region38: #{tpu_custom_call.1} parent=5 // pred_check_branch
        %11842 = sbr.rel (%p11840) target = $region40
      $region39: #{tpu_custom_call.1} parent=5 // pred_region
        %s11843 = ssub.s32 %s12, 2
        // Predicated region
        $region41: #{tpu_custom_call.1} parent=39 // pred_check
          %p11844 = pneg %p109
        $region42: #{tpu_custom_call.1} parent=39 // pred_check_branch
          %11846 = sbr.rel (%p11844) target = $region44
        $region43: #{tpu_custom_call.1} parent=39 // pred_region
          %s11847 = sand.u32 %s94, 1
          %s11848 = scalar_lea.sflag [#allocation3], %s11847
          %s11849 = sand.u32 %s94, 1
          %s11850 = smul.addr %s11849, 256
          %s11851 = scalar_lea.vmem [#allocation2], %s11850
          %11853 = dma.done %s11848, 4096
        $region44: #{tpu_custom_call.1} parent=39 // pred_fallthru
          _
      $region40: #{tpu_custom_call.1} parent=5 // pred_fallthru
        _
    $region6: #{tpu_custom_call.1} parent=1 // loop_footer
      %s16 = sadd.s32 1, %s12
    $region7: #{tpu_custom_call.1} parent=1 // loop_footer_branch
      %11 = sbr.rel target = $region3
    $region8: #{tpu_custom_call.1} parent=1 // loop_exit
      _
    %11854 = vsyncpa [#allocation3], 1
    %s11855 = scalar_lea.sflag [#allocation3], 1
    %11856 = vsyncpa %s11855, 1

</llo_original>
